<compile_context>
chip_gen: v7x
topology: tpu7x:2x2x1
jax: 0.10.0
libtpu: 0.0.40
codegen_flags: <defaults>
</compile_context>

<pallas_src>
import jax
import jax.numpy as jnp
from jax import lax
from jax.experimental import pallas as pl
from jax.experimental.pallas import tpu as pltpu

HIDDEN_LAYER_WIDTH = 128


def _cde_kernel(x0_ref, dxt_ref, wi_ref, bi_ref, w1_ref, b1_ref,
                w2_ref, b2_ref, wr_ref, br_ref, s_ref, out_ref):
    """Single-invocation kernel: full RK4 integration over all knot intervals."""
    B = x0_ref.shape[0]
    steps = dxt_ref.shape[0]
    HC = wi_ref.shape[1]
    HLW = w1_ref.shape[1]
    HCIC = w2_ref.shape[1]
    OC = wr_ref.shape[1]

    # Hoist weights and (broadcast) biases once — JAX does not CSE
    # broadcast_in_dim, so placing these inside f_dX would re-emit them
    # 4x per RK4 step on the serial critical path.
    w1 = w1_ref[...]
    b1 = jnp.broadcast_to(b1_ref[...], (B, HLW))
    w2 = w2_ref[...]
    b2 = jnp.broadcast_to(b2_ref[...], (B, HCIC))
    smat = s_ref[...]
    wr = wr_ref[...]
    br = jnp.broadcast_to(br_ref[...], (B, OC))

    # Initial condition: z0 = X0 @ Wi + bi
    z0 = (jnp.dot(x0_ref[...], wi_ref[...], preferred_element_type=jnp.float32)
          + jnp.broadcast_to(bi_ref[...], (B, HC)))

    def knot(s, z):
        # dX over this interval, pre-tiled along the hidden axis on the host:
        # column h*IC + i  <->  dX[:, i]
        dx_tiled = dxt_ref[s]                                   # (B, HC*IC)

        def f_dX(z):
            # func(z): Linear -> ReLU -> Linear -> Tanh, output is vec(f(z))
            # with row-major (HC, IC) layout, i.e. column h*IC + i <-> f(z)[h,i]
            h = jnp.maximum(
                jnp.dot(z, w1, preferred_element_type=jnp.float32) + b1, 0.0)
            g = jnp.tanh(
                jnp.dot(h, w2, preferred_element_type=jnp.float32) + b2)
            # f(z) @ dX == (g * dx_tiled) @ Smat  (sums each IC-lane group -> HC)
            return jnp.dot(g * dx_tiled, smat,
                           preferred_element_type=jnp.float32)  # (B, HC)

        # RK4 update over this knot interval (dt cancels against dX/dt).
        k1 = f_dX(z)
        k2 = f_dX(z + 0.5 * k1)
        k3 = f_dX(z + 0.5 * k2)
        k4 = f_dX(z + k3)
        return z + (k1 + 2.0 * k2 + 2.0 * k3 + k4) * (1.0 / 6.0)

    # Short, static trip-count loop: unroll for LLO scheduler visibility.
    z_T = lax.fori_loop(0, steps, knot, z0, unroll=True)

    # Readout.
    out_ref[...] = (jnp.dot(z_T, wr, preferred_element_type=jnp.float32) + br)


def neural_cde_forward(X, params):
    B, S, IC = X.shape
    HC = params["wi"].shape[1]
    OC = params["wr"].shape[1]
    steps = S - 1

    X = X.astype(jnp.float32)

    # Pad batch to a multiple of 8 sublanes (lane/sublane-dense layouts).
    Bp = ((B + 7) // 8) * 8

    x0 = X[:, 0, :]                                                 # (B, IC)
    dx = jnp.transpose(X[:, 1:, :] - X[:, :-1, :], (1, 0, 2))        # (steps, B, IC)
    # Precompute the hidden-axis tiling of dX on the host:
    #   dx_tiled[..., h*IC + i] == dx[..., i]
    dx_tiled = jnp.tile(dx, (1, 1, HC))                              # (steps, B, HC*IC)

    pad_b = Bp - B
    x0 = jnp.pad(x0, ((0, pad_b), (0, 0)))
    dx_tiled = jnp.pad(dx_tiled, ((0, 0), (0, pad_b), (0, 0)))

    # Smat[h*IC + i, h] = 1 : sums each group of IC lanes back to the hidden axis.
    Smat = jnp.kron(jnp.eye(HC, dtype=jnp.float32),
                    jnp.ones((IC, 1), dtype=jnp.float32))            # (HC*IC, HC)

    vmem = pl.BlockSpec(memory_space=pltpu.MemorySpace.VMEM)

    out = pl.pallas_call(
        _cde_kernel,
        out_shape=jax.ShapeDtypeStruct((Bp, OC), jnp.float32),
        in_specs=[vmem] * 11,
        out_specs=vmem,
    )(x0, dx_tiled, params["wi"], params["bi"], params["w1"], params["b1"],
      params["w2"], params["b2"], params["wr"], params["br"], Smat)

    return out[:B]


# ------------------------- pure-JAX reference --------------------------------
def neural_cde_reference(X, params):
    X = X.astype(jnp.float32)
    x0 = X[:, 0, :]
    z = x0 @ params["wi"] + params["bi"][0]

    def func(z):
        B = z.shape[0]
        HC = params["wi"].shape[1]
        IC = params["wi"].shape[0]
        h = jax.nn.relu(z @ params["w1"] + params["b1"][0])
        g = jnp.tanh(h @ params["w2"] + params["b2"][0])
        return g.reshape(B, HC, IC)                   # matches View(HC, IC)

    for s in range(X.shape[1] - 1):
        dx = X[:, s + 1, :] - X[:, s, :]
        f_dX = lambda z: jnp.einsum("bhi,bi->bh", func(z), dx)
        k1 = f_dX(z)
        k2 = f_dX(z + 0.5 * k1)
        k3 = f_dX(z + 0.5 * k2)
        k4 = f_dX(z + k3)
        z = z + (k1 + 2.0 * k2 + 2.0 * k3 + k4) / 6.0
    return z @ params["wr"] + params["br"][0]


# ------------------------- deterministic parameter init ----------------------
def init_params(key, input_channels, hidden_channels, output_channels):
    """PyTorch-Linear-style uniform(-1/sqrt(fan_in), 1/sqrt(fan_in)) init.

    Weights stored pre-transposed as (in, out); biases as (1, out).
    """
    def linear(k, fan_in, fan_out):
        kw, kb = jax.random.split(k)
        bound = 1.0 / jnp.sqrt(fan_in)
        w = jax.random.uniform(kw, (fan_in, fan_out), jnp.float32, -bound, bound)
        b = jax.random.uniform(kb, (1, fan_out), jnp.float32, -bound, bound)
        return w, b

    k1, k2, k3, k4 = jax.random.split(key, 4)
    wi, bi = linear(k1, input_channels, hidden_channels)                      # initial
    w1, b1 = linear(k2, hidden_channels, HIDDEN_LAYER_WIDTH)                  # func[0]
    w2, b2 = linear(k3, HIDDEN_LAYER_WIDTH, input_channels * hidden_channels) # func[2]
    wr, br = linear(k4, hidden_channels, output_channels)                     # readout
    return dict(wi=wi, bi=bi, w1=w1, b1=b1, w2=w2, b2=b2, wr=wr, br=br)


if __name__ == "__main__":
    batch, seq = 4, 8
    input_channels, hidden_channels, output_channels = 3, 8, 2

    key = jax.random.PRNGKey(0)
    kx, kp = jax.random.split(key)

    # Control-path samples (batch, seq, input_channels); channel 0 is "time".
    t = jnp.broadcast_to(jnp.linspace(0.0, 1.0, seq)[None, :, None],
                         (batch, seq, 1))
    feats = 0.3 * jnp.cumsum(
        jax.random.normal(kx, (batch, seq, input_channels - 1), jnp.float32),
        axis=1)
    X = jnp.concatenate([t, feats], axis=-1)

    params = init_params(kp, input_channels, hidden_channels, output_channels)

    out = neural_cde_forward(X, params)
    out = jax.block_until_ready(out)

    ref = neural_cde_reference(X, params)
    assert out.shape == (batch, output_channels)
    assert jnp.allclose(out, ref, rtol=1e-4, atol=1e-4), (out, ref)

    print("KERNEL_OK")
</pallas_src>

<mosaic_0001>
module attributes {stable_mosaic.version = 11 : i64} {
  func.func @_cde_kernel(%arg0: memref<8x3xf32, #tpu.memory_space<vmem>>, %arg1: memref<7x8x24xf32, #tpu.memory_space<vmem>>, %arg2: memref<3x8xf32, #tpu.memory_space<vmem>>, %arg3: memref<1x8xf32, #tpu.memory_space<vmem>>, %arg4: memref<8x128xf32, #tpu.memory_space<vmem>>, %arg5: memref<1x128xf32, #tpu.memory_space<vmem>>, %arg6: memref<128x24xf32, #tpu.memory_space<vmem>>, %arg7: memref<1x24xf32, #tpu.memory_space<vmem>>, %arg8: memref<8x2xf32, #tpu.memory_space<vmem>>, %arg9: memref<1x2xf32, #tpu.memory_space<vmem>>, %arg10: memref<24x8xf32, #tpu.memory_space<vmem>>, %arg11: memref<8x2xf32, #tpu.memory_space<vmem>>) attributes {dimension_semantics = [], scalar_prefetch = 0 : i64, scratch_operands = 0 : i64, tpu.core_type = #tpu.core_type<tc>} {
    %c0 = arith.constant 0 : index
    %c0_0 = arith.constant 0 : index
    %0 = vector.load %arg4[%c0, %c0_0] : memref<8x128xf32, #tpu.memory_space<vmem>>, vector<8x128xf32>
    %c0_1 = arith.constant 0 : index
    %c0_2 = arith.constant 0 : index
    %1 = vector.load %arg5[%c0_1, %c0_2] : memref<1x128xf32, #tpu.memory_space<vmem>>, vector<1x128xf32>
    %2 = vector.shape_cast %1 : vector<1x128xf32> to vector<1x128xf32>
    %3 = vector.broadcast %2 : vector<1x128xf32> to vector<8x128xf32>
    %c0_3 = arith.constant 0 : index
    %c0_4 = arith.constant 0 : index
    %4 = vector.load %arg6[%c0_3, %c0_4] : memref<128x24xf32, #tpu.memory_space<vmem>>, vector<128x24xf32>
    %c0_5 = arith.constant 0 : index
    %c0_6 = arith.constant 0 : index
    %5 = vector.load %arg7[%c0_5, %c0_6] : memref<1x24xf32, #tpu.memory_space<vmem>>, vector<1x24xf32>
    %6 = vector.shape_cast %5 : vector<1x24xf32> to vector<1x24xf32>
    %7 = vector.broadcast %6 : vector<1x24xf32> to vector<8x24xf32>
    %c0_7 = arith.constant 0 : index
    %c0_8 = arith.constant 0 : index
    %8 = vector.load %arg10[%c0_7, %c0_8] : memref<24x8xf32, #tpu.memory_space<vmem>>, vector<24x8xf32>
    %c0_9 = arith.constant 0 : index
    %c0_10 = arith.constant 0 : index
    %9 = vector.load %arg8[%c0_9, %c0_10] : memref<8x2xf32, #tpu.memory_space<vmem>>, vector<8x2xf32>
    %c0_11 = arith.constant 0 : index
    %c0_12 = arith.constant 0 : index
    %10 = vector.load %arg9[%c0_11, %c0_12] : memref<1x2xf32, #tpu.memory_space<vmem>>, vector<1x2xf32>
    %11 = vector.shape_cast %10 : vector<1x2xf32> to vector<1x2xf32>
    %12 = vector.broadcast %11 : vector<1x2xf32> to vector<8x2xf32>
    %c0_13 = arith.constant 0 : index
    %c0_14 = arith.constant 0 : index
    %13 = vector.load %arg0[%c0_13, %c0_14] : memref<8x3xf32, #tpu.memory_space<vmem>>, vector<8x3xf32>
    %c0_15 = arith.constant 0 : index
    %c0_16 = arith.constant 0 : index
    %14 = vector.load %arg2[%c0_15, %c0_16] : memref<3x8xf32, #tpu.memory_space<vmem>>, vector<3x8xf32>
    %cst = arith.constant dense<0.000000e+00> : vector<8x8xf32>
    %15 = tpu.matmul %13, %14, %cst {dimension_numbers = #tpu.dot_dimension_numbers<[1], [0], [0], [1], [0, 0, 1, 1], [], []>} : vector<8x3xf32>, vector<3x8xf32>, vector<8x8xf32> -> vector<8x8xf32>
    %c0_17 = arith.constant 0 : index
    %c0_18 = arith.constant 0 : index
    %16 = vector.load %arg3[%c0_17, %c0_18] : memref<1x8xf32, #tpu.memory_space<vmem>>, vector<1x8xf32>
    %17 = vector.shape_cast %16 : vector<1x8xf32> to vector<1x8xf32>
    %18 = vector.broadcast %17 : vector<1x8xf32> to vector<8x8xf32>
    %19 = arith.addf %15, %18 : vector<8x8xf32>
    %c0_i32 = arith.constant 0 : i32
    %20 = arith.index_cast %c0_i32 : i32 to index
    %c0_19 = arith.constant 0 : index
    %c0_20 = arith.constant 0 : index
    %21 = vector.load %arg1[%20, %c0_19, %c0_20] : memref<7x8x24xf32, #tpu.memory_space<vmem>>, vector<1x8x24xf32>
    %22 = vector.shape_cast %21 : vector<1x8x24xf32> to vector<8x24xf32>
    %cst_21 = arith.constant dense<0.000000e+00> : vector<8x128xf32>
    %23 = tpu.matmul %19, %0, %cst_21 {dimension_numbers = #tpu.dot_dimension_numbers<[1], [0], [0], [1], [0, 0, 1, 1], [], []>} : vector<8x8xf32>, vector<8x128xf32>, vector<8x128xf32> -> vector<8x128xf32>
    %24 = arith.addf %23, %3 : vector<8x128xf32>
    %cst_22 = arith.constant 0.000000e+00 : f32
    %25 = vector.broadcast %cst_22 : f32 to vector<8x128xf32>
    %26 = arith.maximumf %24, %25 : vector<8x128xf32>
    %cst_23 = arith.constant dense<0.000000e+00> : vector<8x24xf32>
    %27 = tpu.matmul %26, %4, %cst_23 {dimension_numbers = #tpu.dot_dimension_numbers<[1], [0], [0], [1], [0, 0, 1, 1], [], []>} : vector<8x128xf32>, vector<128x24xf32>, vector<8x24xf32> -> vector<8x24xf32>
    %28 = arith.addf %27, %7 : vector<8x24xf32>
    %29 = math.tanh %28 : vector<8x24xf32>
    %30 = arith.mulf %29, %22 : vector<8x24xf32>
    %cst_24 = arith.constant dense<0.000000e+00> : vector<8x8xf32>
    %31 = tpu.matmul %30, %8, %cst_24 {dimension_numbers = #tpu.dot_dimension_numbers<[1], [0], [0], [1], [0, 0, 1, 1], [], []>} : vector<8x24xf32>, vector<24x8xf32>, vector<8x8xf32> -> vector<8x8xf32>
    %cst_25 = arith.constant 5.000000e-01 : f32
    %32 = vector.broadcast %cst_25 : f32 to vector<8x8xf32>
    %33 = arith.mulf %32, %31 : vector<8x8xf32>
    %34 = arith.addf %19, %33 : vector<8x8xf32>
    %cst_26 = arith.constant dense<0.000000e+00> : vector<8x128xf32>
    %35 = tpu.matmul %34, %0, %cst_26 {dimension_numbers = #tpu.dot_dimension_numbers<[1], [0], [0], [1], [0, 0, 1, 1], [], []>} : vector<8x8xf32>, vector<8x128xf32>, vector<8x128xf32> -> vector<8x128xf32>
    %36 = arith.addf %35, %3 : vector<8x128xf32>
    %cst_27 = arith.constant 0.000000e+00 : f32
    %37 = vector.broadcast %cst_27 : f32 to vector<8x128xf32>
    %38 = arith.maximumf %36, %37 : vector<8x128xf32>
    %cst_28 = arith.constant dense<0.000000e+00> : vector<8x24xf32>
    %39 = tpu.matmul %38, %4, %cst_28 {dimension_numbers = #tpu.dot_dimension_numbers<[1], [0], [0], [1], [0, 0, 1, 1], [], []>} : vector<8x128xf32>, vector<128x24xf32>, vector<8x24xf32> -> vector<8x24xf32>
    %40 = arith.addf %39, %7 : vector<8x24xf32>
    %41 = math.tanh %40 : vector<8x24xf32>
    %42 = arith.mulf %41, %22 : vector<8x24xf32>
    %cst_29 = arith.constant dense<0.000000e+00> : vector<8x8xf32>
    %43 = tpu.matmul %42, %8, %cst_29 {dimension_numbers = #tpu.dot_dimension_numbers<[1], [0], [0], [1], [0, 0, 1, 1], [], []>} : vector<8x24xf32>, vector<24x8xf32>, vector<8x8xf32> -> vector<8x8xf32>
    %cst_30 = arith.constant 5.000000e-01 : f32
    %44 = vector.broadcast %cst_30 : f32 to vector<8x8xf32>
    %45 = arith.mulf %44, %43 : vector<8x8xf32>
    %46 = arith.addf %19, %45 : vector<8x8xf32>
    %cst_31 = arith.constant dense<0.000000e+00> : vector<8x128xf32>
    %47 = tpu.matmul %46, %0, %cst_31 {dimension_numbers = #tpu.dot_dimension_numbers<[1], [0], [0], [1], [0, 0, 1, 1], [], []>} : vector<8x8xf32>, vector<8x128xf32>, vector<8x128xf32> -> vector<8x128xf32>
    %48 = arith.addf %47, %3 : vector<8x128xf32>
    %cst_32 = arith.constant 0.000000e+00 : f32
    %49 = vector.broadcast %cst_32 : f32 to vector<8x128xf32>
    %50 = arith.maximumf %48, %49 : vector<8x128xf32>
    %cst_33 = arith.constant dense<0.000000e+00> : vector<8x24xf32>
    %51 = tpu.matmul %50, %4, %cst_33 {dimension_numbers = #tpu.dot_dimension_numbers<[1], [0], [0], [1], [0, 0, 1, 1], [], []>} : vector<8x128xf32>, vector<128x24xf32>, vector<8x24xf32> -> vector<8x24xf32>
    %52 = arith.addf %51, %7 : vector<8x24xf32>
    %53 = math.tanh %52 : vector<8x24xf32>
    %54 = arith.mulf %53, %22 : vector<8x24xf32>
    %cst_34 = arith.constant dense<0.000000e+00> : vector<8x8xf32>
    %55 = tpu.matmul %54, %8, %cst_34 {dimension_numbers = #tpu.dot_dimension_numbers<[1], [0], [0], [1], [0, 0, 1, 1], [], []>} : vector<8x24xf32>, vector<24x8xf32>, vector<8x8xf32> -> vector<8x8xf32>
    %56 = arith.addf %19, %55 : vector<8x8xf32>
    %cst_35 = arith.constant dense<0.000000e+00> : vector<8x128xf32>
    %57 = tpu.matmul %56, %0, %cst_35 {dimension_numbers = #tpu.dot_dimension_numbers<[1], [0], [0], [1], [0, 0, 1, 1], [], []>} : vector<8x8xf32>, vector<8x128xf32>, vector<8x128xf32> -> vector<8x128xf32>
    %58 = arith.addf %57, %3 : vector<8x128xf32>
    %cst_36 = arith.constant 0.000000e+00 : f32
    %59 = vector.broadcast %cst_36 : f32 to vector<8x128xf32>
    %60 = arith.maximumf %58, %59 : vector<8x128xf32>
    %cst_37 = arith.constant dense<0.000000e+00> : vector<8x24xf32>
    %61 = tpu.matmul %60, %4, %cst_37 {dimension_numbers = #tpu.dot_dimension_numbers<[1], [0], [0], [1], [0, 0, 1, 1], [], []>} : vector<8x128xf32>, vector<128x24xf32>, vector<8x24xf32> -> vector<8x24xf32>
    %62 = arith.addf %61, %7 : vector<8x24xf32>
    %63 = math.tanh %62 : vector<8x24xf32>
    %64 = arith.mulf %63, %22 : vector<8x24xf32>
    %cst_38 = arith.constant dense<0.000000e+00> : vector<8x8xf32>
    %65 = tpu.matmul %64, %8, %cst_38 {dimension_numbers = #tpu.dot_dimension_numbers<[1], [0], [0], [1], [0, 0, 1, 1], [], []>} : vector<8x24xf32>, vector<24x8xf32>, vector<8x8xf32> -> vector<8x8xf32>
    %cst_39 = arith.constant 2.000000e+00 : f32
    %66 = vector.broadcast %cst_39 : f32 to vector<8x8xf32>
    %67 = arith.mulf %66, %43 : vector<8x8xf32>
    %68 = arith.addf %31, %67 : vector<8x8xf32>
    %cst_40 = arith.constant 2.000000e+00 : f32
    %69 = vector.broadcast %cst_40 : f32 to vector<8x8xf32>
    %70 = arith.mulf %69, %55 : vector<8x8xf32>
    %71 = arith.addf %68, %70 : vector<8x8xf32>
    %72 = arith.addf %71, %65 : vector<8x8xf32>
    %cst_41 = arith.constant 0.166666672 : f32
    %73 = vector.broadcast %cst_41 : f32 to vector<8x8xf32>
    %74 = arith.mulf %72, %73 : vector<8x8xf32>
    %75 = arith.addf %19, %74 : vector<8x8xf32>
    %c1_i32 = arith.constant 1 : i32
    %76 = arith.index_cast %c1_i32 : i32 to index
    %c0_42 = arith.constant 0 : index
    %c0_43 = arith.constant 0 : index
    %77 = vector.load %arg1[%76, %c0_42, %c0_43] : memref<7x8x24xf32, #tpu.memory_space<vmem>>, vector<1x8x24xf32>
    %78 = vector.shape_cast %77 : vector<1x8x24xf32> to vector<8x24xf32>
    %cst_44 = arith.constant dense<0.000000e+00> : vector<8x128xf32>
    %79 = tpu.matmul %75, %0, %cst_44 {dimension_numbers = #tpu.dot_dimension_numbers<[1], [0], [0], [1], [0, 0, 1, 1], [], []>} : vector<8x8xf32>, vector<8x128xf32>, vector<8x128xf32> -> vector<8x128xf32>
    %80 = arith.addf %79, %3 : vector<8x128xf32>
    %cst_45 = arith.constant 0.000000e+00 : f32
    %81 = vector.broadcast %cst_45 : f32 to vector<8x128xf32>
    %82 = arith.maximumf %80, %81 : vector<8x128xf32>
    %cst_46 = arith.constant dense<0.000000e+00> : vector<8x24xf32>
    %83 = tpu.matmul %82, %4, %cst_46 {dimension_numbers = #tpu.dot_dimension_numbers<[1], [0], [0], [1], [0, 0, 1, 1], [], []>} : vector<8x128xf32>, vector<128x24xf32>, vector<8x24xf32> -> vector<8x24xf32>
    %84 = arith.addf %83, %7 : vector<8x24xf32>
    %85 = math.tanh %84 : vector<8x24xf32>
    %86 = arith.mulf %85, %78 : vector<8x24xf32>
    %cst_47 = arith.constant dense<0.000000e+00> : vector<8x8xf32>
    %87 = tpu.matmul %86, %8, %cst_47 {dimension_numbers = #tpu.dot_dimension_numbers<[1], [0], [0], [1], [0, 0, 1, 1], [], []>} : vector<8x24xf32>, vector<24x8xf32>, vector<8x8xf32> -> vector<8x8xf32>
    %cst_48 = arith.constant 5.000000e-01 : f32
    %88 = vector.broadcast %cst_48 : f32 to vector<8x8xf32>
    %89 = arith.mulf %88, %87 : vector<8x8xf32>
    %90 = arith.addf %75, %89 : vector<8x8xf32>
    %cst_49 = arith.constant dense<0.000000e+00> : vector<8x128xf32>
    %91 = tpu.matmul %90, %0, %cst_49 {dimension_numbers = #tpu.dot_dimension_numbers<[1], [0], [0], [1], [0, 0, 1, 1], [], []>} : vector<8x8xf32>, vector<8x128xf32>, vector<8x128xf32> -> vector<8x128xf32>
    %92 = arith.addf %91, %3 : vector<8x128xf32>
    %cst_50 = arith.constant 0.000000e+00 : f32
    %93 = vector.broadcast %cst_50 : f32 to vector<8x128xf32>
    %94 = arith.maximumf %92, %93 : vector<8x128xf32>
    %cst_51 = arith.constant dense<0.000000e+00> : vector<8x24xf32>
    %95 = tpu.matmul %94, %4, %cst_51 {dimension_numbers = #tpu.dot_dimension_numbers<[1], [0], [0], [1], [0, 0, 1, 1], [], []>} : vector<8x128xf32>, vector<128x24xf32>, vector<8x24xf32> -> vector<8x24xf32>
    %96 = arith.addf %95, %7 : vector<8x24xf32>
    %97 = math.tanh %96 : vector<8x24xf32>
    %98 = arith.mulf %97, %78 : vector<8x24xf32>
    %cst_52 = arith.constant dense<0.000000e+00> : vector<8x8xf32>
    %99 = tpu.matmul %98, %8, %cst_52 {dimension_numbers = #tpu.dot_dimension_numbers<[1], [0], [0], [1], [0, 0, 1, 1], [], []>} : vector<8x24xf32>, vector<24x8xf32>, vector<8x8xf32> -> vector<8x8xf32>
    %cst_53 = arith.constant 5.000000e-01 : f32
    %100 = vector.broadcast %cst_53 : f32 to vector<8x8xf32>
    %101 = arith.mulf %100, %99 : vector<8x8xf32>
    %102 = arith.addf %75, %101 : vector<8x8xf32>
    %cst_54 = arith.constant dense<0.000000e+00> : vector<8x128xf32>
    %103 = tpu.matmul %102, %0, %cst_54 {dimension_numbers = #tpu.dot_dimension_numbers<[1], [0], [0], [1], [0, 0, 1, 1], [], []>} : vector<8x8xf32>, vector<8x128xf32>, vector<8x128xf32> -> vector<8x128xf32>
    %104 = arith.addf %103, %3 : vector<8x128xf32>
    %cst_55 = arith.constant 0.000000e+00 : f32
    %105 = vector.broadcast %cst_55 : f32 to vector<8x128xf32>
    %106 = arith.maximumf %104, %105 : vector<8x128xf32>
    %cst_56 = arith.constant dense<0.000000e+00> : vector<8x24xf32>
    %107 = tpu.matmul %106, %4, %cst_56 {dimension_numbers = #tpu.dot_dimension_numbers<[1], [0], [0], [1], [0, 0, 1, 1], [], []>} : vector<8x128xf32>, vector<128x24xf32>, vector<8x24xf32> -> vector<8x24xf32>
    %108 = arith.addf %107, %7 : vector<8x24xf32>
    %109 = math.tanh %108 : vector<8x24xf32>
    %110 = arith.mulf %109, %78 : vector<8x24xf32>
    %cst_57 = arith.constant dense<0.000000e+00> : vector<8x8xf32>
    %111 = tpu.matmul %110, %8, %cst_57 {dimension_numbers = #tpu.dot_dimension_numbers<[1], [0], [0], [1], [0, 0, 1, 1], [], []>} : vector<8x24xf32>, vector<24x8xf32>, vector<8x8xf32> -> vector<8x8xf32>
    %112 = arith.addf %75, %111 : vector<8x8xf32>
    %cst_58 = arith.constant dense<0.000000e+00> : vector<8x128xf32>
    %113 = tpu.matmul %112, %0, %cst_58 {dimension_numbers = #tpu.dot_dimension_numbers<[1], [0], [0], [1], [0, 0, 1, 1], [], []>} : vector<8x8xf32>, vector<8x128xf32>, vector<8x128xf32> -> vector<8x128xf32>
    %114 = arith.addf %113, %3 : vector<8x128xf32>
    %cst_59 = arith.constant 0.000000e+00 : f32
    %115 = vector.broadcast %cst_59 : f32 to vector<8x128xf32>
    %116 = arith.maximumf %114, %115 : vector<8x128xf32>
    %cst_60 = arith.constant dense<0.000000e+00> : vector<8x24xf32>
    %117 = tpu.matmul %116, %4, %cst_60 {dimension_numbers = #tpu.dot_dimension_numbers<[1], [0], [0], [1], [0, 0, 1, 1], [], []>} : vector<8x128xf32>, vector<128x24xf32>, vector<8x24xf32> -> vector<8x24xf32>
    %118 = arith.addf %117, %7 : vector<8x24xf32>
    %119 = math.tanh %118 : vector<8x24xf32>
    %120 = arith.mulf %119, %78 : vector<8x24xf32>
    %cst_61 = arith.constant dense<0.000000e+00> : vector<8x8xf32>
    %121 = tpu.matmul %120, %8, %cst_61 {dimension_numbers = #tpu.dot_dimension_numbers<[1], [0], [0], [1], [0, 0, 1, 1], [], []>} : vector<8x24xf32>, vector<24x8xf32>, vector<8x8xf32> -> vector<8x8xf32>
    %cst_62 = arith.constant 2.000000e+00 : f32
    %122 = vector.broadcast %cst_62 : f32 to vector<8x8xf32>
    %123 = arith.mulf %122, %99 : vector<8x8xf32>
    %124 = arith.addf %87, %123 : vector<8x8xf32>
    %cst_63 = arith.constant 2.000000e+00 : f32
    %125 = vector.broadcast %cst_63 : f32 to vector<8x8xf32>
    %126 = arith.mulf %125, %111 : vector<8x8xf32>
    %127 = arith.addf %124, %126 : vector<8x8xf32>
    %128 = arith.addf %127, %121 : vector<8x8xf32>
    %cst_64 = arith.constant 0.166666672 : f32
    %129 = vector.broadcast %cst_64 : f32 to vector<8x8xf32>
    %130 = arith.mulf %128, %129 : vector<8x8xf32>
    %131 = arith.addf %75, %130 : vector<8x8xf32>
    %c2_i32 = arith.constant 2 : i32
    %132 = arith.index_cast %c2_i32 : i32 to index
    %c0_65 = arith.constant 0 : index
    %c0_66 = arith.constant 0 : index
    %133 = vector.load %arg1[%132, %c0_65, %c0_66] : memref<7x8x24xf32, #tpu.memory_space<vmem>>, vector<1x8x24xf32>
    %134 = vector.shape_cast %133 : vector<1x8x24xf32> to vector<8x24xf32>
    %cst_67 = arith.constant dense<0.000000e+00> : vector<8x128xf32>
    %135 = tpu.matmul %131, %0, %cst_67 {dimension_numbers = #tpu.dot_dimension_numbers<[1], [0], [0], [1], [0, 0, 1, 1], [], []>} : vector<8x8xf32>, vector<8x128xf32>, vector<8x128xf32> -> vector<8x128xf32>
    %136 = arith.addf %135, %3 : vector<8x128xf32>
    %cst_68 = arith.constant 0.000000e+00 : f32
    %137 = vector.broadcast %cst_68 : f32 to vector<8x128xf32>
    %138 = arith.maximumf %136, %137 : vector<8x128xf32>
    %cst_69 = arith.constant dense<0.000000e+00> : vector<8x24xf32>
    %139 = tpu.matmul %138, %4, %cst_69 {dimension_numbers = #tpu.dot_dimension_numbers<[1], [0], [0], [1], [0, 0, 1, 1], [], []>} : vector<8x128xf32>, vector<128x24xf32>, vector<8x24xf32> -> vector<8x24xf32>
    %140 = arith.addf %139, %7 : vector<8x24xf32>
    %141 = math.tanh %140 : vector<8x24xf32>
    %142 = arith.mulf %141, %134 : vector<8x24xf32>
    %cst_70 = arith.constant dense<0.000000e+00> : vector<8x8xf32>
    %143 = tpu.matmul %142, %8, %cst_70 {dimension_numbers = #tpu.dot_dimension_numbers<[1], [0], [0], [1], [0, 0, 1, 1], [], []>} : vector<8x24xf32>, vector<24x8xf32>, vector<8x8xf32> -> vector<8x8xf32>
    %cst_71 = arith.constant 5.000000e-01 : f32
    %144 = vector.broadcast %cst_71 : f32 to vector<8x8xf32>
    %145 = arith.mulf %144, %143 : vector<8x8xf32>
    %146 = arith.addf %131, %145 : vector<8x8xf32>
    %cst_72 = arith.constant dense<0.000000e+00> : vector<8x128xf32>
    %147 = tpu.matmul %146, %0, %cst_72 {dimension_numbers = #tpu.dot_dimension_numbers<[1], [0], [0], [1], [0, 0, 1, 1], [], []>} : vector<8x8xf32>, vector<8x128xf32>, vector<8x128xf32> -> vector<8x128xf32>
    %148 = arith.addf %147, %3 : vector<8x128xf32>
    %cst_73 = arith.constant 0.000000e+00 : f32
    %149 = vector.broadcast %cst_73 : f32 to vector<8x128xf32>
    %150 = arith.maximumf %148, %149 : vector<8x128xf32>
    %cst_74 = arith.constant dense<0.000000e+00> : vector<8x24xf32>
    %151 = tpu.matmul %150, %4, %cst_74 {dimension_numbers = #tpu.dot_dimension_numbers<[1], [0], [0], [1], [0, 0, 1, 1], [], []>} : vector<8x128xf32>, vector<128x24xf32>, vector<8x24xf32> -> vector<8x24xf32>
    %152 = arith.addf %151, %7 : vector<8x24xf32>
    %153 = math.tanh %152 : vector<8x24xf32>
    %154 = arith.mulf %153, %134 : vector<8x24xf32>
    %cst_75 = arith.constant dense<0.000000e+00> : vector<8x8xf32>
    %155 = tpu.matmul %154, %8, %cst_75 {dimension_numbers = #tpu.dot_dimension_numbers<[1], [0], [0], [1], [0, 0, 1, 1], [], []>} : vector<8x24xf32>, vector<24x8xf32>, vector<8x8xf32> -> vector<8x8xf32>
    %cst_76 = arith.constant 5.000000e-01 : f32
    %156 = vector.broadcast %cst_76 : f32 to vector<8x8xf32>
    %157 = arith.mulf %156, %155 : vector<8x8xf32>
    %158 = arith.addf %131, %157 : vector<8x8xf32>
    %cst_77 = arith.constant dense<0.000000e+00> : vector<8x128xf32>
    %159 = tpu.matmul %158, %0, %cst_77 {dimension_numbers = #tpu.dot_dimension_numbers<[1], [0], [0], [1], [0, 0, 1, 1], [], []>} : vector<8x8xf32>, vector<8x128xf32>, vector<8x128xf32> -> vector<8x128xf32>
    %160 = arith.addf %159, %3 : vector<8x128xf32>
    %cst_78 = arith.constant 0.000000e+00 : f32
    %161 = vector.broadcast %cst_78 : f32 to vector<8x128xf32>
    %162 = arith.maximumf %160, %161 : vector<8x128xf32>
    %cst_79 = arith.constant dense<0.000000e+00> : vector<8x24xf32>
    %163 = tpu.matmul %162, %4, %cst_79 {dimension_numbers = #tpu.dot_dimension_numbers<[1], [0], [0], [1], [0, 0, 1, 1], [], []>} : vector<8x128xf32>, vector<128x24xf32>, vector<8x24xf32> -> vector<8x24xf32>
    %164 = arith.addf %163, %7 : vector<8x24xf32>
    %165 = math.tanh %164 : vector<8x24xf32>
    %166 = arith.mulf %165, %134 : vector<8x24xf32>
    %cst_80 = arith.constant dense<0.000000e+00> : vector<8x8xf32>
    %167 = tpu.matmul %166, %8, %cst_80 {dimension_numbers = #tpu.dot_dimension_numbers<[1], [0], [0], [1], [0, 0, 1, 1], [], []>} : vector<8x24xf32>, vector<24x8xf32>, vector<8x8xf32> -> vector<8x8xf32>
    %168 = arith.addf %131, %167 : vector<8x8xf32>
    %cst_81 = arith.constant dense<0.000000e+00> : vector<8x128xf32>
    %169 = tpu.matmul %168, %0, %cst_81 {dimension_numbers = #tpu.dot_dimension_numbers<[1], [0], [0], [1], [0, 0, 1, 1], [], []>} : vector<8x8xf32>, vector<8x128xf32>, vector<8x128xf32> -> vector<8x128xf32>
    %170 = arith.addf %169, %3 : vector<8x128xf32>
    %cst_82 = arith.constant 0.000000e+00 : f32
    %171 = vector.broadcast %cst_82 : f32 to vector<8x128xf32>
    %172 = arith.maximumf %170, %171 : vector<8x128xf32>
    %cst_83 = arith.constant dense<0.000000e+00> : vector<8x24xf32>
    %173 = tpu.matmul %172, %4, %cst_83 {dimension_numbers = #tpu.dot_dimension_numbers<[1], [0], [0], [1], [0, 0, 1, 1], [], []>} : vector<8x128xf32>, vector<128x24xf32>, vector<8x24xf32> -> vector<8x24xf32>
    %174 = arith.addf %173, %7 : vector<8x24xf32>
    %175 = math.tanh %174 : vector<8x24xf32>
    %176 = arith.mulf %175, %134 : vector<8x24xf32>
    %cst_84 = arith.constant dense<0.000000e+00> : vector<8x8xf32>
    %177 = tpu.matmul %176, %8, %cst_84 {dimension_numbers = #tpu.dot_dimension_numbers<[1], [0], [0], [1], [0, 0, 1, 1], [], []>} : vector<8x24xf32>, vector<24x8xf32>, vector<8x8xf32> -> vector<8x8xf32>
    %cst_85 = arith.constant 2.000000e+00 : f32
    %178 = vector.broadcast %cst_85 : f32 to vector<8x8xf32>
    %179 = arith.mulf %178, %155 : vector<8x8xf32>
    %180 = arith.addf %143, %179 : vector<8x8xf32>
    %cst_86 = arith.constant 2.000000e+00 : f32
    %181 = vector.broadcast %cst_86 : f32 to vector<8x8xf32>
    %182 = arith.mulf %181, %167 : vector<8x8xf32>
    %183 = arith.addf %180, %182 : vector<8x8xf32>
    %184 = arith.addf %183, %177 : vector<8x8xf32>
    %cst_87 = arith.constant 0.166666672 : f32
    %185 = vector.broadcast %cst_87 : f32 to vector<8x8xf32>
    %186 = arith.mulf %184, %185 : vector<8x8xf32>
    %187 = arith.addf %131, %186 : vector<8x8xf32>
    %c3_i32 = arith.constant 3 : i32
    %188 = arith.index_cast %c3_i32 : i32 to index
    %c0_88 = arith.constant 0 : index
    %c0_89 = arith.constant 0 : index
    %189 = vector.load %arg1[%188, %c0_88, %c0_89] : memref<7x8x24xf32, #tpu.memory_space<vmem>>, vector<1x8x24xf32>
    %190 = vector.shape_cast %189 : vector<1x8x24xf32> to vector<8x24xf32>
    %cst_90 = arith.constant dense<0.000000e+00> : vector<8x128xf32>
    %191 = tpu.matmul %187, %0, %cst_90 {dimension_numbers = #tpu.dot_dimension_numbers<[1], [0], [0], [1], [0, 0, 1, 1], [], []>} : vector<8x8xf32>, vector<8x128xf32>, vector<8x128xf32> -> vector<8x128xf32>
    %192 = arith.addf %191, %3 : vector<8x128xf32>
    %cst_91 = arith.constant 0.000000e+00 : f32
    %193 = vector.broadcast %cst_91 : f32 to vector<8x128xf32>
    %194 = arith.maximumf %192, %193 : vector<8x128xf32>
    %cst_92 = arith.constant dense<0.000000e+00> : vector<8x24xf32>
    %195 = tpu.matmul %194, %4, %cst_92 {dimension_numbers = #tpu.dot_dimension_numbers<[1], [0], [0], [1], [0, 0, 1, 1], [], []>} : vector<8x128xf32>, vector<128x24xf32>, vector<8x24xf32> -> vector<8x24xf32>
    %196 = arith.addf %195, %7 : vector<8x24xf32>
    %197 = math.tanh %196 : vector<8x24xf32>
    %198 = arith.mulf %197, %190 : vector<8x24xf32>
    %cst_93 = arith.constant dense<0.000000e+00> : vector<8x8xf32>
    %199 = tpu.matmul %198, %8, %cst_93 {dimension_numbers = #tpu.dot_dimension_numbers<[1], [0], [0], [1], [0, 0, 1, 1], [], []>} : vector<8x24xf32>, vector<24x8xf32>, vector<8x8xf32> -> vector<8x8xf32>
    %cst_94 = arith.constant 5.000000e-01 : f32
    %200 = vector.broadcast %cst_94 : f32 to vector<8x8xf32>
    %201 = arith.mulf %200, %199 : vector<8x8xf32>
    %202 = arith.addf %187, %201 : vector<8x8xf32>
    %cst_95 = arith.constant dense<0.000000e+00> : vector<8x128xf32>
    %203 = tpu.matmul %202, %0, %cst_95 {dimension_numbers = #tpu.dot_dimension_numbers<[1], [0], [0], [1], [0, 0, 1, 1], [], []>} : vector<8x8xf32>, vector<8x128xf32>, vector<8x128xf32> -> vector<8x128xf32>
    %204 = arith.addf %203, %3 : vector<8x128xf32>
    %cst_96 = arith.constant 0.000000e+00 : f32
    %205 = vector.broadcast %cst_96 : f32 to vector<8x128xf32>
    %206 = arith.maximumf %204, %205 : vector<8x128xf32>
    %cst_97 = arith.constant dense<0.000000e+00> : vector<8x24xf32>
    %207 = tpu.matmul %206, %4, %cst_97 {dimension_numbers = #tpu.dot_dimension_numbers<[1], [0], [0], [1], [0, 0, 1, 1], [], []>} : vector<8x128xf32>, vector<128x24xf32>, vector<8x24xf32> -> vector<8x24xf32>
    %208 = arith.addf %207, %7 : vector<8x24xf32>
    %209 = math.tanh %208 : vector<8x24xf32>
    %210 = arith.mulf %209, %190 : vector<8x24xf32>
    %cst_98 = arith.constant dense<0.000000e+00> : vector<8x8xf32>
    %211 = tpu.matmul %210, %8, %cst_98 {dimension_numbers = #tpu.dot_dimension_numbers<[1], [0], [0], [1], [0, 0, 1, 1], [], []>} : vector<8x24xf32>, vector<24x8xf32>, vector<8x8xf32> -> vector<8x8xf32>
    %cst_99 = arith.constant 5.000000e-01 : f32
    %212 = vector.broadcast %cst_99 : f32 to vector<8x8xf32>
    %213 = arith.mulf %212, %211 : vector<8x8xf32>
    %214 = arith.addf %187, %213 : vector<8x8xf32>
    %cst_100 = arith.constant dense<0.000000e+00> : vector<8x128xf32>
    %215 = tpu.matmul %214, %0, %cst_100 {dimension_numbers = #tpu.dot_dimension_numbers<[1], [0], [0], [1], [0, 0, 1, 1], [], []>} : vector<8x8xf32>, vector<8x128xf32>, vector<8x128xf32> -> vector<8x128xf32>
    %216 = arith.addf %215, %3 : vector<8x128xf32>
    %cst_101 = arith.constant 0.000000e+00 : f32
    %217 = vector.broadcast %cst_101 : f32 to vector<8x128xf32>
    %218 = arith.maximumf %216, %217 : vector<8x128xf32>
    %cst_102 = arith.constant dense<0.000000e+00> : vector<8x24xf32>
    %219 = tpu.matmul %218, %4, %cst_102 {dimension_numbers = #tpu.dot_dimension_numbers<[1], [0], [0], [1], [0, 0, 1, 1], [], []>} : vector<8x128xf32>, vector<128x24xf32>, vector<8x24xf32> -> vector<8x24xf32>
    %220 = arith.addf %219, %7 : vector<8x24xf32>
    %221 = math.tanh %220 : vector<8x24xf32>
    %222 = arith.mulf %221, %190 : vector<8x24xf32>
    %cst_103 = arith.constant dense<0.000000e+00> : vector<8x8xf32>
    %223 = tpu.matmul %222, %8, %cst_103 {dimension_numbers = #tpu.dot_dimension_numbers<[1], [0], [0], [1], [0, 0, 1, 1], [], []>} : vector<8x24xf32>, vector<24x8xf32>, vector<8x8xf32> -> vector<8x8xf32>
    %224 = arith.addf %187, %223 : vector<8x8xf32>
    %cst_104 = arith.constant dense<0.000000e+00> : vector<8x128xf32>
    %225 = tpu.matmul %224, %0, %cst_104 {dimension_numbers = #tpu.dot_dimension_numbers<[1], [0], [0], [1], [0, 0, 1, 1], [], []>} : vector<8x8xf32>, vector<8x128xf32>, vector<8x128xf32> -> vector<8x128xf32>
    %226 = arith.addf %225, %3 : vector<8x128xf32>
    %cst_105 = arith.constant 0.000000e+00 : f32
    %227 = vector.broadcast %cst_105 : f32 to vector<8x128xf32>
    %228 = arith.maximumf %226, %227 : vector<8x128xf32>
    %cst_106 = arith.constant dense<0.000000e+00> : vector<8x24xf32>
    %229 = tpu.matmul %228, %4, %cst_106 {dimension_numbers = #tpu.dot_dimension_numbers<[1], [0], [0], [1], [0, 0, 1, 1], [], []>} : vector<8x128xf32>, vector<128x24xf32>, vector<8x24xf32> -> vector<8x24xf32>
    %230 = arith.addf %229, %7 : vector<8x24xf32>
    %231 = math.tanh %230 : vector<8x24xf32>
    %232 = arith.mulf %231, %190 : vector<8x24xf32>
    %cst_107 = arith.constant dense<0.000000e+00> : vector<8x8xf32>
    %233 = tpu.matmul %232, %8, %cst_107 {dimension_numbers = #tpu.dot_dimension_numbers<[1], [0], [0], [1], [0, 0, 1, 1], [], []>} : vector<8x24xf32>, vector<24x8xf32>, vector<8x8xf32> -> vector<8x8xf32>
    %cst_108 = arith.constant 2.000000e+00 : f32
    %234 = vector.broadcast %cst_108 : f32 to vector<8x8xf32>
    %235 = arith.mulf %234, %211 : vector<8x8xf32>
    %236 = arith.addf %199, %235 : vector<8x8xf32>
    %cst_109 = arith.constant 2.000000e+00 : f32
    %237 = vector.broadcast %cst_109 : f32 to vector<8x8xf32>
    %238 = arith.mulf %237, %223 : vector<8x8xf32>
    %239 = arith.addf %236, %238 : vector<8x8xf32>
    %240 = arith.addf %239, %233 : vector<8x8xf32>
    %cst_110 = arith.constant 0.166666672 : f32
    %241 = vector.broadcast %cst_110 : f32 to vector<8x8xf32>
    %242 = arith.mulf %240, %241 : vector<8x8xf32>
    %243 = arith.addf %187, %242 : vector<8x8xf32>
    %c4_i32 = arith.constant 4 : i32
    %244 = arith.index_cast %c4_i32 : i32 to index
    %c0_111 = arith.constant 0 : index
    %c0_112 = arith.constant 0 : index
    %245 = vector.load %arg1[%244, %c0_111, %c0_112] : memref<7x8x24xf32, #tpu.memory_space<vmem>>, vector<1x8x24xf32>
    %246 = vector.shape_cast %245 : vector<1x8x24xf32> to vector<8x24xf32>
    %cst_113 = arith.constant dense<0.000000e+00> : vector<8x128xf32>
    %247 = tpu.matmul %243, %0, %cst_113 {dimension_numbers = #tpu.dot_dimension_numbers<[1], [0], [0], [1], [0, 0, 1, 1], [], []>} : vector<8x8xf32>, vector<8x128xf32>, vector<8x128xf32> -> vector<8x128xf32>
    %248 = arith.addf %247, %3 : vector<8x128xf32>
    %cst_114 = arith.constant 0.000000e+00 : f32
    %249 = vector.broadcast %cst_114 : f32 to vector<8x128xf32>
    %250 = arith.maximumf %248, %249 : vector<8x128xf32>
    %cst_115 = arith.constant dense<0.000000e+00> : vector<8x24xf32>
    %251 = tpu.matmul %250, %4, %cst_115 {dimension_numbers = #tpu.dot_dimension_numbers<[1], [0], [0], [1], [0, 0, 1, 1], [], []>} : vector<8x128xf32>, vector<128x24xf32>, vector<8x24xf32> -> vector<8x24xf32>
    %252 = arith.addf %251, %7 : vector<8x24xf32>
    %253 = math.tanh %252 : vector<8x24xf32>
    %254 = arith.mulf %253, %246 : vector<8x24xf32>
    %cst_116 = arith.constant dense<0.000000e+00> : vector<8x8xf32>
    %255 = tpu.matmul %254, %8, %cst_116 {dimension_numbers = #tpu.dot_dimension_numbers<[1], [0], [0], [1], [0, 0, 1, 1], [], []>} : vector<8x24xf32>, vector<24x8xf32>, vector<8x8xf32> -> vector<8x8xf32>
    %cst_117 = arith.constant 5.000000e-01 : f32
    %256 = vector.broadcast %cst_117 : f32 to vector<8x8xf32>
    %257 = arith.mulf %256, %255 : vector<8x8xf32>
    %258 = arith.addf %243, %257 : vector<8x8xf32>
    %cst_118 = arith.constant dense<0.000000e+00> : vector<8x128xf32>
    %259 = tpu.matmul %258, %0, %cst_118 {dimension_numbers = #tpu.dot_dimension_numbers<[1], [0], [0], [1], [0, 0, 1, 1], [], []>} : vector<8x8xf32>, vector<8x128xf32>, vector<8x128xf32> -> vector<8x128xf32>
    %260 = arith.addf %259, %3 : vector<8x128xf32>
    %cst_119 = arith.constant 0.000000e+00 : f32
    %261 = vector.broadcast %cst_119 : f32 to vector<8x128xf32>
    %262 = arith.maximumf %260, %261 : vector<8x128xf32>
    %cst_120 = arith.constant dense<0.000000e+00> : vector<8x24xf32>
    %263 = tpu.matmul %262, %4, %cst_120 {dimension_numbers = #tpu.dot_dimension_numbers<[1], [0], [0], [1], [0, 0, 1, 1], [], []>} : vector<8x128xf32>, vector<128x24xf32>, vector<8x24xf32> -> vector<8x24xf32>
    %264 = arith.addf %263, %7 : vector<8x24xf32>
    %265 = math.tanh %264 : vector<8x24xf32>
    %266 = arith.mulf %265, %246 : vector<8x24xf32>
    %cst_121 = arith.constant dense<0.000000e+00> : vector<8x8xf32>
    %267 = tpu.matmul %266, %8, %cst_121 {dimension_numbers = #tpu.dot_dimension_numbers<[1], [0], [0], [1], [0, 0, 1, 1], [], []>} : vector<8x24xf32>, vector<24x8xf32>, vector<8x8xf32> -> vector<8x8xf32>
    %cst_122 = arith.constant 5.000000e-01 : f32
    %268 = vector.broadcast %cst_122 : f32 to vector<8x8xf32>
    %269 = arith.mulf %268, %267 : vector<8x8xf32>
    %270 = arith.addf %243, %269 : vector<8x8xf32>
    %cst_123 = arith.constant dense<0.000000e+00> : vector<8x128xf32>
    %271 = tpu.matmul %270, %0, %cst_123 {dimension_numbers = #tpu.dot_dimension_numbers<[1], [0], [0], [1], [0, 0, 1, 1], [], []>} : vector<8x8xf32>, vector<8x128xf32>, vector<8x128xf32> -> vector<8x128xf32>
    %272 = arith.addf %271, %3 : vector<8x128xf32>
    %cst_124 = arith.constant 0.000000e+00 : f32
    %273 = vector.broadcast %cst_124 : f32 to vector<8x128xf32>
    %274 = arith.maximumf %272, %273 : vector<8x128xf32>
    %cst_125 = arith.constant dense<0.000000e+00> : vector<8x24xf32>
    %275 = tpu.matmul %274, %4, %cst_125 {dimension_numbers = #tpu.dot_dimension_numbers<[1], [0], [0], [1], [0, 0, 1, 1], [], []>} : vector<8x128xf32>, vector<128x24xf32>, vector<8x24xf32> -> vector<8x24xf32>
    %276 = arith.addf %275, %7 : vector<8x24xf32>
    %277 = math.tanh %276 : vector<8x24xf32>
    %278 = arith.mulf %277, %246 : vector<8x24xf32>
    %cst_126 = arith.constant dense<0.000000e+00> : vector<8x8xf32>
    %279 = tpu.matmul %278, %8, %cst_126 {dimension_numbers = #tpu.dot_dimension_numbers<[1], [0], [0], [1], [0, 0, 1, 1], [], []>} : vector<8x24xf32>, vector<24x8xf32>, vector<8x8xf32> -> vector<8x8xf32>
    %280 = arith.addf %243, %279 : vector<8x8xf32>
    %cst_127 = arith.constant dense<0.000000e+00> : vector<8x128xf32>
    %281 = tpu.matmul %280, %0, %cst_127 {dimension_numbers = #tpu.dot_dimension_numbers<[1], [0], [0], [1], [0, 0, 1, 1], [], []>} : vector<8x8xf32>, vector<8x128xf32>, vector<8x128xf32> -> vector<8x128xf32>
    %282 = arith.addf %281, %3 : vector<8x128xf32>
    %cst_128 = arith.constant 0.000000e+00 : f32
    %283 = vector.broadcast %cst_128 : f32 to vector<8x128xf32>
    %284 = arith.maximumf %282, %283 : vector<8x128xf32>
    %cst_129 = arith.constant dense<0.000000e+00> : vector<8x24xf32>
    %285 = tpu.matmul %284, %4, %cst_129 {dimension_numbers = #tpu.dot_dimension_numbers<[1], [0], [0], [1], [0, 0, 1, 1], [], []>} : vector<8x128xf32>, vector<128x24xf32>, vector<8x24xf32> -> vector<8x24xf32>
    %286 = arith.addf %285, %7 : vector<8x24xf32>
    %287 = math.tanh %286 : vector<8x24xf32>
    %288 = arith.mulf %287, %246 : vector<8x24xf32>
    %cst_130 = arith.constant dense<0.000000e+00> : vector<8x8xf32>
    %289 = tpu.matmul %288, %8, %cst_130 {dimension_numbers = #tpu.dot_dimension_numbers<[1], [0], [0], [1], [0, 0, 1, 1], [], []>} : vector<8x24xf32>, vector<24x8xf32>, vector<8x8xf32> -> vector<8x8xf32>
    %cst_131 = arith.constant 2.000000e+00 : f32
    %290 = vector.broadcast %cst_131 : f32 to vector<8x8xf32>
    %291 = arith.mulf %290, %267 : vector<8x8xf32>
    %292 = arith.addf %255, %291 : vector<8x8xf32>
    %cst_132 = arith.constant 2.000000e+00 : f32
    %293 = vector.broadcast %cst_132 : f32 to vector<8x8xf32>
    %294 = arith.mulf %293, %279 : vector<8x8xf32>
    %295 = arith.addf %292, %294 : vector<8x8xf32>
    %296 = arith.addf %295, %289 : vector<8x8xf32>
    %cst_133 = arith.constant 0.166666672 : f32
    %297 = vector.broadcast %cst_133 : f32 to vector<8x8xf32>
    %298 = arith.mulf %296, %297 : vector<8x8xf32>
    %299 = arith.addf %243, %298 : vector<8x8xf32>
    %c5_i32 = arith.constant 5 : i32
    %300 = arith.index_cast %c5_i32 : i32 to index
    %c0_134 = arith.constant 0 : index
    %c0_135 = arith.constant 0 : index
    %301 = vector.load %arg1[%300, %c0_134, %c0_135] : memref<7x8x24xf32, #tpu.memory_space<vmem>>, vector<1x8x24xf32>
    %302 = vector.shape_cast %301 : vector<1x8x24xf32> to vector<8x24xf32>
    %cst_136 = arith.constant dense<0.000000e+00> : vector<8x128xf32>
    %303 = tpu.matmul %299, %0, %cst_136 {dimension_numbers = #tpu.dot_dimension_numbers<[1], [0], [0], [1], [0, 0, 1, 1], [], []>} : vector<8x8xf32>, vector<8x128xf32>, vector<8x128xf32> -> vector<8x128xf32>
    %304 = arith.addf %303, %3 : vector<8x128xf32>
    %cst_137 = arith.constant 0.000000e+00 : f32
    %305 = vector.broadcast %cst_137 : f32 to vector<8x128xf32>
    %306 = arith.maximumf %304, %305 : vector<8x128xf32>
    %cst_138 = arith.constant dense<0.000000e+00> : vector<8x24xf32>
    %307 = tpu.matmul %306, %4, %cst_138 {dimension_numbers = #tpu.dot_dimension_numbers<[1], [0], [0], [1], [0, 0, 1, 1], [], []>} : vector<8x128xf32>, vector<128x24xf32>, vector<8x24xf32> -> vector<8x24xf32>
    %308 = arith.addf %307, %7 : vector<8x24xf32>
    %309 = math.tanh %308 : vector<8x24xf32>
    %310 = arith.mulf %309, %302 : vector<8x24xf32>
    %cst_139 = arith.constant dense<0.000000e+00> : vector<8x8xf32>
    %311 = tpu.matmul %310, %8, %cst_139 {dimension_numbers = #tpu.dot_dimension_numbers<[1], [0], [0], [1], [0, 0, 1, 1], [], []>} : vector<8x24xf32>, vector<24x8xf32>, vector<8x8xf32> -> vector<8x8xf32>
    %cst_140 = arith.constant 5.000000e-01 : f32
    %312 = vector.broadcast %cst_140 : f32 to vector<8x8xf32>
    %313 = arith.mulf %312, %311 : vector<8x8xf32>
    %314 = arith.addf %299, %313 : vector<8x8xf32>
    %cst_141 = arith.constant dense<0.000000e+00> : vector<8x128xf32>
    %315 = tpu.matmul %314, %0, %cst_141 {dimension_numbers = #tpu.dot_dimension_numbers<[1], [0], [0], [1], [0, 0, 1, 1], [], []>} : vector<8x8xf32>, vector<8x128xf32>, vector<8x128xf32> -> vector<8x128xf32>
    %316 = arith.addf %315, %3 : vector<8x128xf32>
    %cst_142 = arith.constant 0.000000e+00 : f32
    %317 = vector.broadcast %cst_142 : f32 to vector<8x128xf32>
    %318 = arith.maximumf %316, %317 : vector<8x128xf32>
    %cst_143 = arith.constant dense<0.000000e+00> : vector<8x24xf32>
    %319 = tpu.matmul %318, %4, %cst_143 {dimension_numbers = #tpu.dot_dimension_numbers<[1], [0], [0], [1], [0, 0, 1, 1], [], []>} : vector<8x128xf32>, vector<128x24xf32>, vector<8x24xf32> -> vector<8x24xf32>
    %320 = arith.addf %319, %7 : vector<8x24xf32>
    %321 = math.tanh %320 : vector<8x24xf32>
    %322 = arith.mulf %321, %302 : vector<8x24xf32>
    %cst_144 = arith.constant dense<0.000000e+00> : vector<8x8xf32>
    %323 = tpu.matmul %322, %8, %cst_144 {dimension_numbers = #tpu.dot_dimension_numbers<[1], [0], [0], [1], [0, 0, 1, 1], [], []>} : vector<8x24xf32>, vector<24x8xf32>, vector<8x8xf32> -> vector<8x8xf32>
    %cst_145 = arith.constant 5.000000e-01 : f32
    %324 = vector.broadcast %cst_145 : f32 to vector<8x8xf32>
    %325 = arith.mulf %324, %323 : vector<8x8xf32>
    %326 = arith.addf %299, %325 : vector<8x8xf32>
    %cst_146 = arith.constant dense<0.000000e+00> : vector<8x128xf32>
    %327 = tpu.matmul %326, %0, %cst_146 {dimension_numbers = #tpu.dot_dimension_numbers<[1], [0], [0], [1], [0, 0, 1, 1], [], []>} : vector<8x8xf32>, vector<8x128xf32>, vector<8x128xf32> -> vector<8x128xf32>
    %328 = arith.addf %327, %3 : vector<8x128xf32>
    %cst_147 = arith.constant 0.000000e+00 : f32
    %329 = vector.broadcast %cst_147 : f32 to vector<8x128xf32>
    %330 = arith.maximumf %328, %329 : vector<8x128xf32>
    %cst_148 = arith.constant dense<0.000000e+00> : vector<8x24xf32>
    %331 = tpu.matmul %330, %4, %cst_148 {dimension_numbers = #tpu.dot_dimension_numbers<[1], [0], [0], [1], [0, 0, 1, 1], [], []>} : vector<8x128xf32>, vector<128x24xf32>, vector<8x24xf32> -> vector<8x24xf32>
    %332 = arith.addf %331, %7 : vector<8x24xf32>
    %333 = math.tanh %332 : vector<8x24xf32>
    %334 = arith.mulf %333, %302 : vector<8x24xf32>
    %cst_149 = arith.constant dense<0.000000e+00> : vector<8x8xf32>
    %335 = tpu.matmul %334, %8, %cst_149 {dimension_numbers = #tpu.dot_dimension_numbers<[1], [0], [0], [1], [0, 0, 1, 1], [], []>} : vector<8x24xf32>, vector<24x8xf32>, vector<8x8xf32> -> vector<8x8xf32>
    %336 = arith.addf %299, %335 : vector<8x8xf32>
    %cst_150 = arith.constant dense<0.000000e+00> : vector<8x128xf32>
    %337 = tpu.matmul %336, %0, %cst_150 {dimension_numbers = #tpu.dot_dimension_numbers<[1], [0], [0], [1], [0, 0, 1, 1], [], []>} : vector<8x8xf32>, vector<8x128xf32>, vector<8x128xf32> -> vector<8x128xf32>
    %338 = arith.addf %337, %3 : vector<8x128xf32>
    %cst_151 = arith.constant 0.000000e+00 : f32
    %339 = vector.broadcast %cst_151 : f32 to vector<8x128xf32>
    %340 = arith.maximumf %338, %339 : vector<8x128xf32>
    %cst_152 = arith.constant dense<0.000000e+00> : vector<8x24xf32>
    %341 = tpu.matmul %340, %4, %cst_152 {dimension_numbers = #tpu.dot_dimension_numbers<[1], [0], [0], [1], [0, 0, 1, 1], [], []>} : vector<8x128xf32>, vector<128x24xf32>, vector<8x24xf32> -> vector<8x24xf32>
    %342 = arith.addf %341, %7 : vector<8x24xf32>
    %343 = math.tanh %342 : vector<8x24xf32>
    %344 = arith.mulf %343, %302 : vector<8x24xf32>
    %cst_153 = arith.constant dense<0.000000e+00> : vector<8x8xf32>
    %345 = tpu.matmul %344, %8, %cst_153 {dimension_numbers = #tpu.dot_dimension_numbers<[1], [0], [0], [1], [0, 0, 1, 1], [], []>} : vector<8x24xf32>, vector<24x8xf32>, vector<8x8xf32> -> vector<8x8xf32>
    %cst_154 = arith.constant 2.000000e+00 : f32
    %346 = vector.broadcast %cst_154 : f32 to vector<8x8xf32>
    %347 = arith.mulf %346, %323 : vector<8x8xf32>
    %348 = arith.addf %311, %347 : vector<8x8xf32>
    %cst_155 = arith.constant 2.000000e+00 : f32
    %349 = vector.broadcast %cst_155 : f32 to vector<8x8xf32>
    %350 = arith.mulf %349, %335 : vector<8x8xf32>
    %351 = arith.addf %348, %350 : vector<8x8xf32>
    %352 = arith.addf %351, %345 : vector<8x8xf32>
    %cst_156 = arith.constant 0.166666672 : f32
    %353 = vector.broadcast %cst_156 : f32 to vector<8x8xf32>
    %354 = arith.mulf %352, %353 : vector<8x8xf32>
    %355 = arith.addf %299, %354 : vector<8x8xf32>
    %c6_i32 = arith.constant 6 : i32
    %356 = arith.index_cast %c6_i32 : i32 to index
    %c0_157 = arith.constant 0 : index
    %c0_158 = arith.constant 0 : index
    %357 = vector.load %arg1[%356, %c0_157, %c0_158] : memref<7x8x24xf32, #tpu.memory_space<vmem>>, vector<1x8x24xf32>
    %358 = vector.shape_cast %357 : vector<1x8x24xf32> to vector<8x24xf32>
    %cst_159 = arith.constant dense<0.000000e+00> : vector<8x128xf32>
    %359 = tpu.matmul %355, %0, %cst_159 {dimension_numbers = #tpu.dot_dimension_numbers<[1], [0], [0], [1], [0, 0, 1, 1], [], []>} : vector<8x8xf32>, vector<8x128xf32>, vector<8x128xf32> -> vector<8x128xf32>
    %360 = arith.addf %359, %3 : vector<8x128xf32>
    %cst_160 = arith.constant 0.000000e+00 : f32
    %361 = vector.broadcast %cst_160 : f32 to vector<8x128xf32>
    %362 = arith.maximumf %360, %361 : vector<8x128xf32>
    %cst_161 = arith.constant dense<0.000000e+00> : vector<8x24xf32>
    %363 = tpu.matmul %362, %4, %cst_161 {dimension_numbers = #tpu.dot_dimension_numbers<[1], [0], [0], [1], [0, 0, 1, 1], [], []>} : vector<8x128xf32>, vector<128x24xf32>, vector<8x24xf32> -> vector<8x24xf32>
    %364 = arith.addf %363, %7 : vector<8x24xf32>
    %365 = math.tanh %364 : vector<8x24xf32>
    %366 = arith.mulf %365, %358 : vector<8x24xf32>
    %cst_162 = arith.constant dense<0.000000e+00> : vector<8x8xf32>
    %367 = tpu.matmul %366, %8, %cst_162 {dimension_numbers = #tpu.dot_dimension_numbers<[1], [0], [0], [1], [0, 0, 1, 1], [], []>} : vector<8x24xf32>, vector<24x8xf32>, vector<8x8xf32> -> vector<8x8xf32>
    %cst_163 = arith.constant 5.000000e-01 : f32
    %368 = vector.broadcast %cst_163 : f32 to vector<8x8xf32>
    %369 = arith.mulf %368, %367 : vector<8x8xf32>
    %370 = arith.addf %355, %369 : vector<8x8xf32>
    %cst_164 = arith.constant dense<0.000000e+00> : vector<8x128xf32>
    %371 = tpu.matmul %370, %0, %cst_164 {dimension_numbers = #tpu.dot_dimension_numbers<[1], [0], [0], [1], [0, 0, 1, 1], [], []>} : vector<8x8xf32>, vector<8x128xf32>, vector<8x128xf32> -> vector<8x128xf32>
    %372 = arith.addf %371, %3 : vector<8x128xf32>
    %cst_165 = arith.constant 0.000000e+00 : f32
    %373 = vector.broadcast %cst_165 : f32 to vector<8x128xf32>
    %374 = arith.maximumf %372, %373 : vector<8x128xf32>
    %cst_166 = arith.constant dense<0.000000e+00> : vector<8x24xf32>
    %375 = tpu.matmul %374, %4, %cst_166 {dimension_numbers = #tpu.dot_dimension_numbers<[1], [0], [0], [1], [0, 0, 1, 1], [], []>} : vector<8x128xf32>, vector<128x24xf32>, vector<8x24xf32> -> vector<8x24xf32>
    %376 = arith.addf %375, %7 : vector<8x24xf32>
    %377 = math.tanh %376 : vector<8x24xf32>
    %378 = arith.mulf %377, %358 : vector<8x24xf32>
    %cst_167 = arith.constant dense<0.000000e+00> : vector<8x8xf32>
    %379 = tpu.matmul %378, %8, %cst_167 {dimension_numbers = #tpu.dot_dimension_numbers<[1], [0], [0], [1], [0, 0, 1, 1], [], []>} : vector<8x24xf32>, vector<24x8xf32>, vector<8x8xf32> -> vector<8x8xf32>
    %cst_168 = arith.constant 5.000000e-01 : f32
    %380 = vector.broadcast %cst_168 : f32 to vector<8x8xf32>
    %381 = arith.mulf %380, %379 : vector<8x8xf32>
    %382 = arith.addf %355, %381 : vector<8x8xf32>
    %cst_169 = arith.constant dense<0.000000e+00> : vector<8x128xf32>
    %383 = tpu.matmul %382, %0, %cst_169 {dimension_numbers = #tpu.dot_dimension_numbers<[1], [0], [0], [1], [0, 0, 1, 1], [], []>} : vector<8x8xf32>, vector<8x128xf32>, vector<8x128xf32> -> vector<8x128xf32>
    %384 = arith.addf %383, %3 : vector<8x128xf32>
    %cst_170 = arith.constant 0.000000e+00 : f32
    %385 = vector.broadcast %cst_170 : f32 to vector<8x128xf32>
    %386 = arith.maximumf %384, %385 : vector<8x128xf32>
    %cst_171 = arith.constant dense<0.000000e+00> : vector<8x24xf32>
    %387 = tpu.matmul %386, %4, %cst_171 {dimension_numbers = #tpu.dot_dimension_numbers<[1], [0], [0], [1], [0, 0, 1, 1], [], []>} : vector<8x128xf32>, vector<128x24xf32>, vector<8x24xf32> -> vector<8x24xf32>
    %388 = arith.addf %387, %7 : vector<8x24xf32>
    %389 = math.tanh %388 : vector<8x24xf32>
    %390 = arith.mulf %389, %358 : vector<8x24xf32>
    %cst_172 = arith.constant dense<0.000000e+00> : vector<8x8xf32>
    %391 = tpu.matmul %390, %8, %cst_172 {dimension_numbers = #tpu.dot_dimension_numbers<[1], [0], [0], [1], [0, 0, 1, 1], [], []>} : vector<8x24xf32>, vector<24x8xf32>, vector<8x8xf32> -> vector<8x8xf32>
    %392 = arith.addf %355, %391 : vector<8x8xf32>
    %cst_173 = arith.constant dense<0.000000e+00> : vector<8x128xf32>
    %393 = tpu.matmul %392, %0, %cst_173 {dimension_numbers = #tpu.dot_dimension_numbers<[1], [0], [0], [1], [0, 0, 1, 1], [], []>} : vector<8x8xf32>, vector<8x128xf32>, vector<8x128xf32> -> vector<8x128xf32>
    %394 = arith.addf %393, %3 : vector<8x128xf32>
    %cst_174 = arith.constant 0.000000e+00 : f32
    %395 = vector.broadcast %cst_174 : f32 to vector<8x128xf32>
    %396 = arith.maximumf %394, %395 : vector<8x128xf32>
    %cst_175 = arith.constant dense<0.000000e+00> : vector<8x24xf32>
    %397 = tpu.matmul %396, %4, %cst_175 {dimension_numbers = #tpu.dot_dimension_numbers<[1], [0], [0], [1], [0, 0, 1, 1], [], []>} : vector<8x128xf32>, vector<128x24xf32>, vector<8x24xf32> -> vector<8x24xf32>
    %398 = arith.addf %397, %7 : vector<8x24xf32>
    %399 = math.tanh %398 : vector<8x24xf32>
    %400 = arith.mulf %399, %358 : vector<8x24xf32>
    %cst_176 = arith.constant dense<0.000000e+00> : vector<8x8xf32>
    %401 = tpu.matmul %400, %8, %cst_176 {dimension_numbers = #tpu.dot_dimension_numbers<[1], [0], [0], [1], [0, 0, 1, 1], [], []>} : vector<8x24xf32>, vector<24x8xf32>, vector<8x8xf32> -> vector<8x8xf32>
    %cst_177 = arith.constant 2.000000e+00 : f32
    %402 = vector.broadcast %cst_177 : f32 to vector<8x8xf32>
    %403 = arith.mulf %402, %379 : vector<8x8xf32>
    %404 = arith.addf %367, %403 : vector<8x8xf32>
    %cst_178 = arith.constant 2.000000e+00 : f32
    %405 = vector.broadcast %cst_178 : f32 to vector<8x8xf32>
    %406 = arith.mulf %405, %391 : vector<8x8xf32>
    %407 = arith.addf %404, %406 : vector<8x8xf32>
    %408 = arith.addf %407, %401 : vector<8x8xf32>
    %cst_179 = arith.constant 0.166666672 : f32
    %409 = vector.broadcast %cst_179 : f32 to vector<8x8xf32>
    %410 = arith.mulf %408, %409 : vector<8x8xf32>
    %411 = arith.addf %355, %410 : vector<8x8xf32>
    %c7_i32 = arith.constant 7 : i32
    %cst_180 = arith.constant dense<0.000000e+00> : vector<8x2xf32>
    %412 = tpu.matmul %411, %9, %cst_180 {dimension_numbers = #tpu.dot_dimension_numbers<[1], [0], [0], [1], [0, 0, 1, 1], [], []>} : vector<8x8xf32>, vector<8x2xf32>, vector<8x2xf32> -> vector<8x2xf32>
    %413 = arith.addf %412, %12 : vector<8x2xf32>
    %c0_181 = arith.constant 0 : index
    %c0_182 = arith.constant 0 : index
    %414 = vector.load %arg11[%c0_181, %c0_182] : memref<8x2xf32, #tpu.memory_space<vmem>>, vector<8x2xf32>
    tpu.vector_store %arg11[%c0_181, %c0_182], %413 {strides = array<i32>} : memref<8x2xf32, #tpu.memory_space<vmem>>, vector<8x2xf32>,
    return
  }
}

</mosaic_0001>

<llo_original>
// kernel: tpu_custom_call.1
$region0: #{tpu_custom_call.1}
  #allocation0 [shape = 'u32[]', space=smem, size = 0x4, offset = 0x4, fixed_abs, tag = 'smem constant byte address 0x4 - core index']
  #allocation1 [shape = 'u32[144,128]{1,0:T(1,128)}', space=vmem, size = 0x12000, scoped, tag = 'internal scratch']
  %s0 = inlined_call_operand.vmem [shape: f32[8,3], index: 0, kind: input, shape index: {}]
  %s1 = inlined_call_operand.vmem [shape: f32[7,8,24], index: 1, kind: input, shape index: {}]
  %s2 = inlined_call_operand.vmem [shape: f32[3,8], index: 2, kind: input, shape index: {}]
  %s3 = inlined_call_operand.vmem [shape: f32[1,8], index: 3, kind: input, shape index: {}]
  %s4 = inlined_call_operand.vmem [shape: f32[8,128], index: 4, kind: input, shape index: {}]
  %s5 = inlined_call_operand.vmem [shape: f32[1,128], index: 5, kind: input, shape index: {}]
  %s6 = inlined_call_operand.vmem [shape: f32[128,24], index: 6, kind: input, shape index: {}]
  %s7 = inlined_call_operand.vmem [shape: f32[1,24], index: 7, kind: input, shape index: {}]
  %s8 = inlined_call_operand.vmem [shape: f32[8,2], index: 8, kind: input, shape index: {}]
  %s9 = inlined_call_operand.vmem [shape: f32[1,2], index: 9, kind: input, shape index: {}]
  %s10 = inlined_call_operand.vmem [shape: f32[24,8], index: 10, kind: input, shape index: {}]
  %s11 = inlined_call_operand.vmem [shape: f32[8,2], index: 11, kind: output, shape index: {}]
  %s12 = sld [smem:[#allocation0]]
  $region54: #{tpu_custom_call.1} parent=0
    _
  %s14 = ssub.s32 1, %s12
  %s15 = scalar_select 0, %s14, %s12
  // Predicated region
  $region2: #{tpu_custom_call.1} parent=0 // pred_check
    _
  $region3: #{tpu_custom_call.1} parent=0 // pred_check_branch
    %17 = sbr.rel (0) target = $region5
  $region4: #{tpu_custom_call.1} parent=0 // pred_region
    _
  $region5: #{tpu_custom_call.1} parent=0 // pred_fallthru
    _
  // Predicated region
  $region6: #{tpu_custom_call.1} parent=0 // pred_check
    _
  $region7: #{tpu_custom_call.1} parent=0 // pred_check_branch
    %19 = sbr.rel (0) target = $region9
  $region8: #{tpu_custom_call.1} parent=0 // pred_region
    _
  $region9: #{tpu_custom_call.1} parent=0 // pred_fallthru
    _
  // Predicated region
  $region10: #{tpu_custom_call.1} parent=0 // pred_check
    _
  $region11: #{tpu_custom_call.1} parent=0 // pred_check_branch
    %21 = sbr.rel (0) target = $region13
  $region12: #{tpu_custom_call.1} parent=0 // pred_region
    _
  $region13: #{tpu_custom_call.1} parent=0 // pred_fallthru
    _
  // Predicated region
  $region14: #{tpu_custom_call.1} parent=0 // pred_check
    _
  $region15: #{tpu_custom_call.1} parent=0 // pred_check_branch
    %23 = sbr.rel (0) target = $region17
  $region16: #{tpu_custom_call.1} parent=0 // pred_region
    _
  $region17: #{tpu_custom_call.1} parent=0 // pred_fallthru
    _
  // Predicated region
  $region18: #{tpu_custom_call.1} parent=0 // pred_check
    _
  $region19: #{tpu_custom_call.1} parent=0 // pred_check_branch
    %25 = sbr.rel (0) target = $region21
  $region20: #{tpu_custom_call.1} parent=0 // pred_region
    _
  $region21: #{tpu_custom_call.1} parent=0 // pred_fallthru
    _
  // Predicated region
  $region22: #{tpu_custom_call.1} parent=0 // pred_check
    _
  $region23: #{tpu_custom_call.1} parent=0 // pred_check_branch
    %27 = sbr.rel (0) target = $region25
  $region24: #{tpu_custom_call.1} parent=0 // pred_region
    _
  $region25: #{tpu_custom_call.1} parent=0 // pred_fallthru
    _
  // Predicated region
  $region26: #{tpu_custom_call.1} parent=0 // pred_check
    _
  $region27: #{tpu_custom_call.1} parent=0 // pred_check_branch
    %29 = sbr.rel (0) target = $region29
  $region28: #{tpu_custom_call.1} parent=0 // pred_region
    _
  $region29: #{tpu_custom_call.1} parent=0 // pred_fallthru
    _
  // Predicated region
  $region30: #{tpu_custom_call.1} parent=0 // pred_check
    _
  $region31: #{tpu_custom_call.1} parent=0 // pred_check_branch
    %31 = sbr.rel (0) target = $region33
  $region32: #{tpu_custom_call.1} parent=0 // pred_region
    _
  $region33: #{tpu_custom_call.1} parent=0 // pred_fallthru
    _
  // Predicated region
  $region34: #{tpu_custom_call.1} parent=0 // pred_check
    _
  $region35: #{tpu_custom_call.1} parent=0 // pred_check_branch
    %33 = sbr.rel (0) target = $region37
  $region36: #{tpu_custom_call.1} parent=0 // pred_region
    _
  $region37: #{tpu_custom_call.1} parent=0 // pred_fallthru
    _
  // Predicated region
  $region38: #{tpu_custom_call.1} parent=0 // pred_check
    _
  $region39: #{tpu_custom_call.1} parent=0 // pred_check_branch
    %35 = sbr.rel (0) target = $region41
  $region40: #{tpu_custom_call.1} parent=0 // pred_region
    _
  $region41: #{tpu_custom_call.1} parent=0 // pred_fallthru
    _
  // Predicated region
  $region42: #{tpu_custom_call.1} parent=0 // pred_check
    _
  $region43: #{tpu_custom_call.1} parent=0 // pred_check_branch
    %37 = sbr.rel (0) target = $region45
  $region44: #{tpu_custom_call.1} parent=0 // pred_region
    _
  $region45: #{tpu_custom_call.1} parent=0 // pred_fallthru
    _
  %v38 = vld [vmem:[%s4] sm:$0xff]
  %v39 = vld [vmem:[%s5] sm:$0x1]
  %v41 = vlaneseq
  %v42 = vshrl.u32 %v41, 7
  %v43 = vsub.s32 0, %v42
  %v44 = vrot.slane %v39, %v43
  %v46 = vld [vmem:[%s6] sm:$0xff]
  %v47 = vld [vmem:[%s6 + $0x8] sm:$0xff]
  %v48 = vld [vmem:[%s6 + $0x10] sm:$0xff]
  %v49 = vld [vmem:[%s6 + $0x18] sm:$0xff]
  %v50 = vld [vmem:[%s6 + $0x20] sm:$0xff]
  %v51 = vld [vmem:[%s6 + $0x28] sm:$0xff]
  %v52 = vld [vmem:[%s6 + $0x30] sm:$0xff]
  %v53 = vld [vmem:[%s6 + $0x38] sm:$0xff]
  %v54 = vld [vmem:[%s6 + $0x40] sm:$0xff]
  %v55 = vld [vmem:[%s6 + $0x48] sm:$0xff]
  %v56 = vld [vmem:[%s6 + $0x50] sm:$0xff]
  %v57 = vld [vmem:[%s6 + $0x58] sm:$0xff]
  %v58 = vld [vmem:[%s6 + $0x60] sm:$0xff]
  %v59 = vld [vmem:[%s6 + $0x68] sm:$0xff]
  %v60 = vld [vmem:[%s6 + $0x70] sm:$0xff]
  %v61 = vld [vmem:[%s6 + $0x78] sm:$0xff]
  %v62 = vld [vmem:[%s7] sm:$0x1]
  %v64 = vlaneseq
  %v65 = vshrl.u32 %v64, 7
  %v66 = vsub.s32 0, %v65
  %v67 = vrot.slane %v62, %v66
  %v69 = vld [vmem:[%s10] sm:$0xff]
  %v70 = vld [vmem:[%s10 + $0x8] sm:$0xff]
  %v71 = vld [vmem:[%s10 + $0x10] sm:$0xff]
  %v72 = vld [vmem:[%s8] sm:$0xff]
  %v73 = vld [vmem:[%s9] sm:$0x1]
  %v75 = vlaneseq
  %v76 = vshrl.u32 %v75, 7
  %v77 = vsub.s32 0, %v76
  %v78 = vrot.slane %v73, %v77
  %v80 = vld [vmem:[%s0] sm:$0xff]
  %v81 = vld [vmem:[%s2] sm:$0x7]
  %v82 = vld [vmem:[%s3] sm:$0x1]
  %v84 = vlaneseq
  %v85 = vshrl.u32 %v84, 7
  %v86 = vsub.s32 0, %v85
  %v87 = vrot.slane %v82, %v86
  %vm89 = vcmask 23552
  %v91 = vsel %vm89, %v80, 0
  %vm93 = vcmask 1042432
  %v95 = vsel %vm93, %v81, 0
  %97 = vmatprep.subr.mxu0 0.0
  %98 = vmatpush1.msra.mxu0 %v95
  %99 = vmatprep.subr.mxu0 0.0
  %100 = vmatpush1.msra.mxu0 0.0
  %101 = vmatprep.subr.mxu0 0.0
  %102 = vmatpush1.msra.mxu0 0.0
  %103 = vmatprep.subr.mxu0 0.0
  %104 = vmatpush1.msra.mxu0 0.0
  %105 = vmatprep.subr.mxu0 0.0
  %106 = vmatpush1.msra.mxu0 0.0
  %107 = vmatprep.subr.mxu0 0.0
  %108 = vmatpush1.msra.mxu0 0.0
  %109 = vmatprep.subr.mxu0 0.0
  %110 = vmatpush1.msra.mxu0 0.0
  %111 = vmatprep.subr.mxu0 0.0
  %112 = vmatpush1.msra.mxu0 0.0
  %113 = vmatprep.subr.mxu0 0.0
  %114 = vmatpush1.msra.mxu0 0.0
  %115 = vmatprep.subr.mxu0 0.0
  %116 = vmatpush1.msra.mxu0 0.0
  %117 = vmatprep.subr.mxu0 0.0
  %118 = vmatpush1.msra.mxu0 0.0
  %119 = vmatprep.subr.mxu0 0.0
  %120 = vmatpush1.msra.mxu0 0.0
  %121 = vmatprep.subr.mxu0 0.0
  %122 = vmatpush1.msra.mxu0 0.0
  %123 = vmatprep.subr.mxu0 0.0
  %124 = vmatpush1.msra.mxu0 0.0
  %125 = vmatprep.subr.mxu0 0.0
  %126 = vmatpush1.msra.mxu0 0.0
  %127 = vmatprep.subr.mxu0 0.0
  %128 = vmatpush1.msra.mxu0 0.0
  %129 = vmatprep.subr.mxu0 0.0
  %130 = vmatpush1.msra.mxu0 0.0
  %131 = vmatprep.subr.mxu0 0.0
  %132 = vmatpush1.msra.mxu0 0.0
  %133 = vmatprep.subr.mxu0 0.0
  %134 = vmatpush1.msra.mxu0 0.0
  %135 = vmatprep.subr.mxu0 0.0
  %136 = vmatpush1.msra.mxu0 0.0
  %137 = vmatprep.subr.mxu0 0.0
  %138 = vmatpush1.msra.mxu0 0.0
  %139 = vmatprep.subr.mxu0 0.0
  %140 = vmatpush1.msra.mxu0 0.0
  %141 = vmatprep.subr.mxu0 0.0
  %142 = vmatpush1.msra.mxu0 0.0
  %143 = vmatprep.subr.mxu0 0.0
  %144 = vmatpush1.msra.mxu0 0.0
  %145 = vmatprep.subr.mxu0 0.0
  %146 = vmatpush1.msra.mxu0 0.0
  %147 = vmatprep.subr.mxu0 0.0
  %148 = vmatpush1.msra.mxu0 0.0
  %149 = vmatprep.subr.mxu0 0.0
  %150 = vmatpush1.msra.mxu0 0.0
  %151 = vmatprep.subr.mxu0 0.0
  %152 = vmatpush1.msra.mxu0 0.0
  %153 = vmatprep.subr.mxu0 0.0
  %154 = vmatpush1.msra.mxu0 0.0
  %155 = vmatprep.subr.mxu0 0.0
  %156 = vmatpush1.msra.mxu0 0.0
  %157 = vmatprep.subr.mxu0 0.0
  %158 = vmatpush1.msra.mxu0 0.0
  %159 = vmatprep.subr.mxu0 0.0
  %160 = vmatpush1.msra.mxu0 0.0
  %161 = vmatprep.mubr.f32.mxu0 0.0
  %162 = vmatmul.mubr.f32.gmra.mrb[0].mxu0 %v91
  %v163 = vpop.f32.mrb[0].mxu0
  %v164 = vadd.f32 %v87, %v163
  %v165 = vpop.f32.mrb[0].mxu0
  %166 = vdwg.mxu0
  %v167 = vld [vmem:[%s1] sm:$0xff]
  %vm168 = vcmask 64512
  %v170 = vsel %vm168, %v164, 0
  %172 = vmatprep.subr.mxu0 0.0
  %173 = vmatpush1.msra.mxu0 %v38
  %174 = vmatprep.subr.mxu0 0.0
  %175 = vmatpush1.msra.mxu0 0.0
  %176 = vmatprep.subr.mxu0 0.0
  %177 = vmatpush1.msra.mxu0 0.0
  %178 = vmatprep.subr.mxu0 0.0
  %179 = vmatpush1.msra.mxu0 0.0
  %180 = vmatprep.subr.mxu0 0.0
  %181 = vmatpush1.msra.mxu0 0.0
  %182 = vmatprep.subr.mxu0 0.0
  %183 = vmatpush1.msra.mxu0 0.0
  %184 = vmatprep.subr.mxu0 0.0
  %185 = vmatpush1.msra.mxu0 0.0
  %186 = vmatprep.subr.mxu0 0.0
  %187 = vmatpush1.msra.mxu0 0.0
  %188 = vmatprep.subr.mxu0 0.0
  %189 = vmatpush1.msra.mxu0 0.0
  %190 = vmatprep.subr.mxu0 0.0
  %191 = vmatpush1.msra.mxu0 0.0
  %192 = vmatprep.subr.mxu0 0.0
  %193 = vmatpush1.msra.mxu0 0.0
  %194 = vmatprep.subr.mxu0 0.0
  %195 = vmatpush1.msra.mxu0 0.0
  %196 = vmatprep.subr.mxu0 0.0
  %197 = vmatpush1.msra.mxu0 0.0
  %198 = vmatprep.subr.mxu0 0.0
  %199 = vmatpush1.msra.mxu0 0.0
  %200 = vmatprep.subr.mxu0 0.0
  %201 = vmatpush1.msra.mxu0 0.0
  %202 = vmatprep.subr.mxu0 0.0
  %203 = vmatpush1.msra.mxu0 0.0
  %204 = vmatprep.subr.mxu0 0.0
  %205 = vmatpush1.msra.mxu0 0.0
  %206 = vmatprep.subr.mxu0 0.0
  %207 = vmatpush1.msra.mxu0 0.0
  %208 = vmatprep.subr.mxu0 0.0
  %209 = vmatpush1.msra.mxu0 0.0
  %210 = vmatprep.subr.mxu0 0.0
  %211 = vmatpush1.msra.mxu0 0.0
  %212 = vmatprep.subr.mxu0 0.0
  %213 = vmatpush1.msra.mxu0 0.0
  %214 = vmatprep.subr.mxu0 0.0
  %215 = vmatpush1.msra.mxu0 0.0
  %216 = vmatprep.subr.mxu0 0.0
  %217 = vmatpush1.msra.mxu0 0.0
  %218 = vmatprep.subr.mxu0 0.0
  %219 = vmatpush1.msra.mxu0 0.0
  %220 = vmatprep.subr.mxu0 0.0
  %221 = vmatpush1.msra.mxu0 0.0
  %222 = vmatprep.subr.mxu0 0.0
  %223 = vmatpush1.msra.mxu0 0.0
  %224 = vmatprep.subr.mxu0 0.0
  %225 = vmatpush1.msra.mxu0 0.0
  %226 = vmatprep.subr.mxu0 0.0
  %227 = vmatpush1.msra.mxu0 0.0
  %228 = vmatprep.subr.mxu0 0.0
  %229 = vmatpush1.msra.mxu0 0.0
  %230 = vmatprep.subr.mxu0 0.0
  %231 = vmatpush1.msra.mxu0 0.0
  %232 = vmatprep.subr.mxu0 0.0
  %233 = vmatpush1.msra.mxu0 0.0
  %234 = vmatprep.subr.mxu0 0.0
  %235 = vmatpush1.msra.mxu0 0.0
  %236 = vmatprep.mubr.f32.mxu0 0.0
  %237 = vmatmul.mubr.f32.gmra.mrb[0].mxu0 %v170
  %v238 = vpop.f32.mrb[0].mxu0
  %v239 = vadd.f32 %v44, %v238
  %v240 = vpop.f32.mrb[0].mxu0
  %241 = vdwg.mxu0
  %v242 = vmax.f32 %v239, 0.0
  %243 = vmatprep.subr.mxu0 0.0
  %244 = vmatpush1.msra.mxu0 %v46
  %245 = vmatprep.subr.mxu0 0.0
  %246 = vmatpush1.msra.mxu0 %v47
  %247 = vmatprep.subr.mxu0 0.0
  %248 = vmatpush1.msra.mxu0 %v48
  %249 = vmatprep.subr.mxu0 0.0
  %250 = vmatpush1.msra.mxu0 %v49
  %251 = vmatprep.subr.mxu0 0.0
  %252 = vmatpush1.msra.mxu0 %v50
  %253 = vmatprep.subr.mxu0 0.0
  %254 = vmatpush1.msra.mxu0 %v51
  %255 = vmatprep.subr.mxu0 0.0
  %256 = vmatpush1.msra.mxu0 %v52
  %257 = vmatprep.subr.mxu0 0.0
  %258 = vmatpush1.msra.mxu0 %v53
  %259 = vmatprep.subr.mxu0 0.0
  %260 = vmatpush1.msra.mxu0 %v54
  %261 = vmatprep.subr.mxu0 0.0
  %262 = vmatpush1.msra.mxu0 %v55
  %263 = vmatprep.subr.mxu0 0.0
  %264 = vmatpush1.msra.mxu0 %v56
  %265 = vmatprep.subr.mxu0 0.0
  %266 = vmatpush1.msra.mxu0 %v57
  %267 = vmatprep.subr.mxu0 0.0
  %268 = vmatpush1.msra.mxu0 %v58
  %269 = vmatprep.subr.mxu0 0.0
  %270 = vmatpush1.msra.mxu0 %v59
  %271 = vmatprep.subr.mxu0 0.0
  %272 = vmatpush1.msra.mxu0 %v60
  %273 = vmatprep.subr.mxu0 0.0
  %274 = vmatpush1.msra.mxu0 %v61
  %275 = vmatprep.subr.mxu0 0.0
  %276 = vmatpush1.msra.mxu0 0.0
  %277 = vmatprep.subr.mxu0 0.0
  %278 = vmatpush1.msra.mxu0 0.0
  %279 = vmatprep.subr.mxu0 0.0
  %280 = vmatpush1.msra.mxu0 0.0
  %281 = vmatprep.subr.mxu0 0.0
  %282 = vmatpush1.msra.mxu0 0.0
  %283 = vmatprep.subr.mxu0 0.0
  %284 = vmatpush1.msra.mxu0 0.0
  %285 = vmatprep.subr.mxu0 0.0
  %286 = vmatpush1.msra.mxu0 0.0
  %287 = vmatprep.subr.mxu0 0.0
  %288 = vmatpush1.msra.mxu0 0.0
  %289 = vmatprep.subr.mxu0 0.0
  %290 = vmatpush1.msra.mxu0 0.0
  %291 = vmatprep.subr.mxu0 0.0
  %292 = vmatpush1.msra.mxu0 0.0
  %293 = vmatprep.subr.mxu0 0.0
  %294 = vmatpush1.msra.mxu0 0.0
  %295 = vmatprep.subr.mxu0 0.0
  %296 = vmatpush1.msra.mxu0 0.0
  %297 = vmatprep.subr.mxu0 0.0
  %298 = vmatpush1.msra.mxu0 0.0
  %299 = vmatprep.subr.mxu0 0.0
  %300 = vmatpush1.msra.mxu0 0.0
  %301 = vmatprep.subr.mxu0 0.0
  %302 = vmatpush1.msra.mxu0 0.0
  %303 = vmatprep.subr.mxu0 0.0
  %304 = vmatpush1.msra.mxu0 0.0
  %305 = vmatprep.subr.mxu0 0.0
  %306 = vmatpush1.msra.mxu0 0.0
  %307 = vmatprep.mubr.f32.mxu0 0.0
  %308 = vmatmul.mubr.f32.gmra.mrb[0].mxu0 %v242
  %v309 = vpop.f32.mrb[0].mxu0
  %v310 = vadd.f32 %v67, %v309
  %v311 = vpop.f32.mrb[0].mxu0
  %312 = vdwg.mxu0
  %v313 = vtanh.pop %v310
  %v314 = vmul.f32 %v313, %v167
  %vm315 = vcmask 195584
  %v317 = vsel %vm315, %v314, 0
  %319 = vmatprep.subr.mxu0 0.0
  %320 = vmatpush1.msra.mxu0 %v69
  %321 = vmatprep.subr.mxu0 0.0
  %322 = vmatpush1.msra.mxu0 %v70
  %323 = vmatprep.subr.mxu0 0.0
  %324 = vmatpush1.msra.mxu0 %v71
  %325 = vmatprep.subr.mxu0 0.0
  %326 = vmatpush1.msra.mxu0 0.0
  %327 = vmatprep.subr.mxu0 0.0
  %328 = vmatpush1.msra.mxu0 0.0
  %329 = vmatprep.subr.mxu0 0.0
  %330 = vmatpush1.msra.mxu0 0.0
  %331 = vmatprep.subr.mxu0 0.0
  %332 = vmatpush1.msra.mxu0 0.0
  %333 = vmatprep.subr.mxu0 0.0
  %334 = vmatpush1.msra.mxu0 0.0
  %335 = vmatprep.subr.mxu0 0.0
  %336 = vmatpush1.msra.mxu0 0.0
  %337 = vmatprep.subr.mxu0 0.0
  %338 = vmatpush1.msra.mxu0 0.0
  %339 = vmatprep.subr.mxu0 0.0
  %340 = vmatpush1.msra.mxu0 0.0
  %341 = vmatprep.subr.mxu0 0.0
  %342 = vmatpush1.msra.mxu0 0.0
  %343 = vmatprep.subr.mxu0 0.0
  %344 = vmatpush1.msra.mxu0 0.0
  %345 = vmatprep.subr.mxu0 0.0
  %346 = vmatpush1.msra.mxu0 0.0
  %347 = vmatprep.subr.mxu0 0.0
  %348 = vmatpush1.msra.mxu0 0.0
  %349 = vmatprep.subr.mxu0 0.0
  %350 = vmatpush1.msra.mxu0 0.0
  %351 = vmatprep.subr.mxu0 0.0
  %352 = vmatpush1.msra.mxu0 0.0
  %353 = vmatprep.subr.mxu0 0.0
  %354 = vmatpush1.msra.mxu0 0.0
  %355 = vmatprep.subr.mxu0 0.0
  %356 = vmatpush1.msra.mxu0 0.0
  %357 = vmatprep.subr.mxu0 0.0
  %358 = vmatpush1.msra.mxu0 0.0
  %359 = vmatprep.subr.mxu0 0.0
  %360 = vmatpush1.msra.mxu0 0.0
  %361 = vmatprep.subr.mxu0 0.0
  %362 = vmatpush1.msra.mxu0 0.0
  %363 = vmatprep.subr.mxu0 0.0
  %364 = vmatpush1.msra.mxu0 0.0
  %365 = vmatprep.subr.mxu0 0.0
  %366 = vmatpush1.msra.mxu0 0.0
  %367 = vmatprep.subr.mxu0 0.0
  %368 = vmatpush1.msra.mxu0 0.0
  %369 = vmatprep.subr.mxu0 0.0
  %370 = vmatpush1.msra.mxu0 0.0
  %371 = vmatprep.subr.mxu0 0.0
  %372 = vmatpush1.msra.mxu0 0.0
  %373 = vmatprep.subr.mxu0 0.0
  %374 = vmatpush1.msra.mxu0 0.0
  %375 = vmatprep.subr.mxu0 0.0
  %376 = vmatpush1.msra.mxu0 0.0
  %377 = vmatprep.subr.mxu0 0.0
  %378 = vmatpush1.msra.mxu0 0.0
  %379 = vmatprep.subr.mxu0 0.0
  %380 = vmatpush1.msra.mxu0 0.0
  %381 = vmatprep.subr.mxu0 0.0
  %382 = vmatpush1.msra.mxu0 0.0
  %383 = vmatprep.mubr.f32.mxu0 0.0
  %384 = vmatmul.mubr.f32.gmra.mrb[0].mxu0 %v317
  %v385 = vpop.f32.mrb[0].mxu0
  %v386 = vadd.f32 0.0, %v385
  %v387 = vpop.f32.mrb[0].mxu0
  %388 = vdwg.mxu0
  %v389 = vmul.f32 %v386, 0.5
  %v390 = vadd.f32 %v164, %v389
  %v392 = vsel %vm168, %v390, 0
  %394 = vmatprep.subr.mxu0 0.0
  %395 = vmatpush1.msra.mxu0 %v38
  %396 = vmatprep.subr.mxu0 0.0
  %397 = vmatpush1.msra.mxu0 0.0
  %398 = vmatprep.subr.mxu0 0.0
  %399 = vmatpush1.msra.mxu0 0.0
  %400 = vmatprep.subr.mxu0 0.0
  %401 = vmatpush1.msra.mxu0 0.0
  %402 = vmatprep.subr.mxu0 0.0
  %403 = vmatpush1.msra.mxu0 0.0
  %404 = vmatprep.subr.mxu0 0.0
  %405 = vmatpush1.msra.mxu0 0.0
  %406 = vmatprep.subr.mxu0 0.0
  %407 = vmatpush1.msra.mxu0 0.0
  %408 = vmatprep.subr.mxu0 0.0
  %409 = vmatpush1.msra.mxu0 0.0
  %410 = vmatprep.subr.mxu0 0.0
  %411 = vmatpush1.msra.mxu0 0.0
  %412 = vmatprep.subr.mxu0 0.0
  %413 = vmatpush1.msra.mxu0 0.0
  %414 = vmatprep.subr.mxu0 0.0
  %415 = vmatpush1.msra.mxu0 0.0
  %416 = vmatprep.subr.mxu0 0.0
  %417 = vmatpush1.msra.mxu0 0.0
  %418 = vmatprep.subr.mxu0 0.0
  %419 = vmatpush1.msra.mxu0 0.0
  %420 = vmatprep.subr.mxu0 0.0
  %421 = vmatpush1.msra.mxu0 0.0
  %422 = vmatprep.subr.mxu0 0.0
  %423 = vmatpush1.msra.mxu0 0.0
  %424 = vmatprep.subr.mxu0 0.0
  %425 = vmatpush1.msra.mxu0 0.0
  %426 = vmatprep.subr.mxu0 0.0
  %427 = vmatpush1.msra.mxu0 0.0
  %428 = vmatprep.subr.mxu0 0.0
  %429 = vmatpush1.msra.mxu0 0.0
  %430 = vmatprep.subr.mxu0 0.0
  %431 = vmatpush1.msra.mxu0 0.0
  %432 = vmatprep.subr.mxu0 0.0
  %433 = vmatpush1.msra.mxu0 0.0
  %434 = vmatprep.subr.mxu0 0.0
  %435 = vmatpush1.msra.mxu0 0.0
  %436 = vmatprep.subr.mxu0 0.0
  %437 = vmatpush1.msra.mxu0 0.0
  %438 = vmatprep.subr.mxu0 0.0
  %439 = vmatpush1.msra.mxu0 0.0
  %440 = vmatprep.subr.mxu0 0.0
  %441 = vmatpush1.msra.mxu0 0.0
  %442 = vmatprep.subr.mxu0 0.0
  %443 = vmatpush1.msra.mxu0 0.0
  %444 = vmatprep.subr.mxu0 0.0
  %445 = vmatpush1.msra.mxu0 0.0
  %446 = vmatprep.subr.mxu0 0.0
  %447 = vmatpush1.msra.mxu0 0.0
  %448 = vmatprep.subr.mxu0 0.0
  %449 = vmatpush1.msra.mxu0 0.0
  %450 = vmatprep.subr.mxu0 0.0
  %451 = vmatpush1.msra.mxu0 0.0
  %452 = vmatprep.subr.mxu0 0.0
  %453 = vmatpush1.msra.mxu0 0.0
  %454 = vmatprep.subr.mxu0 0.0
  %455 = vmatpush1.msra.mxu0 0.0
  %456 = vmatprep.subr.mxu0 0.0
  %457 = vmatpush1.msra.mxu0 0.0
  %458 = vmatprep.mubr.f32.mxu0 0.0
  %459 = vmatmul.mubr.f32.gmra.mrb[0].mxu0 %v392
  %v460 = vpop.f32.mrb[0].mxu0
  %v461 = vadd.f32 %v44, %v460
  %v462 = vpop.f32.mrb[0].mxu0
  %463 = vdwg.mxu0
  %v464 = vmax.f32 %v461, 0.0
  %465 = vmatprep.subr.mxu0 0.0
  %466 = vmatpush1.msra.mxu0 %v46
  %467 = vmatprep.subr.mxu0 0.0
  %468 = vmatpush1.msra.mxu0 %v47
  %469 = vmatprep.subr.mxu0 0.0
  %470 = vmatpush1.msra.mxu0 %v48
  %471 = vmatprep.subr.mxu0 0.0
  %472 = vmatpush1.msra.mxu0 %v49
  %473 = vmatprep.subr.mxu0 0.0
  %474 = vmatpush1.msra.mxu0 %v50
  %475 = vmatprep.subr.mxu0 0.0
  %476 = vmatpush1.msra.mxu0 %v51
  %477 = vmatprep.subr.mxu0 0.0
  %478 = vmatpush1.msra.mxu0 %v52
  %479 = vmatprep.subr.mxu0 0.0
  %480 = vmatpush1.msra.mxu0 %v53
  %481 = vmatprep.subr.mxu0 0.0
  %482 = vmatpush1.msra.mxu0 %v54
  %483 = vmatprep.subr.mxu0 0.0
  %484 = vmatpush1.msra.mxu0 %v55
  %485 = vmatprep.subr.mxu0 0.0
  %486 = vmatpush1.msra.mxu0 %v56
  %487 = vmatprep.subr.mxu0 0.0
  %488 = vmatpush1.msra.mxu0 %v57
  %489 = vmatprep.subr.mxu0 0.0
  %490 = vmatpush1.msra.mxu0 %v58
  %491 = vmatprep.subr.mxu0 0.0
  %492 = vmatpush1.msra.mxu0 %v59
  %493 = vmatprep.subr.mxu0 0.0
  %494 = vmatpush1.msra.mxu0 %v60
  %495 = vmatprep.subr.mxu0 0.0
  %496 = vmatpush1.msra.mxu0 %v61
  %497 = vmatprep.subr.mxu0 0.0
  %498 = vmatpush1.msra.mxu0 0.0
  %499 = vmatprep.subr.mxu0 0.0
  %500 = vmatpush1.msra.mxu0 0.0
  %501 = vmatprep.subr.mxu0 0.0
  %502 = vmatpush1.msra.mxu0 0.0
  %503 = vmatprep.subr.mxu0 0.0
  %504 = vmatpush1.msra.mxu0 0.0
  %505 = vmatprep.subr.mxu0 0.0
  %506 = vmatpush1.msra.mxu0 0.0
  %507 = vmatprep.subr.mxu0 0.0
  %508 = vmatpush1.msra.mxu0 0.0
  %509 = vmatprep.subr.mxu0 0.0
  %510 = vmatpush1.msra.mxu0 0.0
  %511 = vmatprep.subr.mxu0 0.0
  %512 = vmatpush1.msra.mxu0 0.0
  %513 = vmatprep.subr.mxu0 0.0
  %514 = vmatpush1.msra.mxu0 0.0
  %515 = vmatprep.subr.mxu0 0.0
  %516 = vmatpush1.msra.mxu0 0.0
  %517 = vmatprep.subr.mxu0 0.0
  %518 = vmatpush1.msra.mxu0 0.0
  %519 = vmatprep.subr.mxu0 0.0
  %520 = vmatpush1.msra.mxu0 0.0
  %521 = vmatprep.subr.mxu0 0.0
  %522 = vmatpush1.msra.mxu0 0.0
  %523 = vmatprep.subr.mxu0 0.0
  %524 = vmatpush1.msra.mxu0 0.0
  %525 = vmatprep.subr.mxu0 0.0
  %526 = vmatpush1.msra.mxu0 0.0
  %527 = vmatprep.subr.mxu0 0.0
  %528 = vmatpush1.msra.mxu0 0.0
  %529 = vmatprep.mubr.f32.mxu0 0.0
  %530 = vmatmul.mubr.f32.gmra.mrb[0].mxu0 %v464
  %v531 = vpop.f32.mrb[0].mxu0
  %v532 = vadd.f32 %v67, %v531
  %v533 = vpop.f32.mrb[0].mxu0
  %534 = vdwg.mxu0
  %v535 = vtanh.pop %v532
  %v536 = vmul.f32 %v535, %v167
  %v538 = vsel %vm315, %v536, 0
  %540 = vmatprep.subr.mxu0 0.0
  %541 = vmatpush1.msra.mxu0 %v69
  %542 = vmatprep.subr.mxu0 0.0
  %543 = vmatpush1.msra.mxu0 %v70
  %544 = vmatprep.subr.mxu0 0.0
  %545 = vmatpush1.msra.mxu0 %v71
  %546 = vmatprep.subr.mxu0 0.0
  %547 = vmatpush1.msra.mxu0 0.0
  %548 = vmatprep.subr.mxu0 0.0
  %549 = vmatpush1.msra.mxu0 0.0
  %550 = vmatprep.subr.mxu0 0.0
  %551 = vmatpush1.msra.mxu0 0.0
  %552 = vmatprep.subr.mxu0 0.0
  %553 = vmatpush1.msra.mxu0 0.0
  %554 = vmatprep.subr.mxu0 0.0
  %555 = vmatpush1.msra.mxu0 0.0
  %556 = vmatprep.subr.mxu0 0.0
  %557 = vmatpush1.msra.mxu0 0.0
  %558 = vmatprep.subr.mxu0 0.0
  %559 = vmatpush1.msra.mxu0 0.0
  %560 = vmatprep.subr.mxu0 0.0
  %561 = vmatpush1.msra.mxu0 0.0
  %562 = vmatprep.subr.mxu0 0.0
  %563 = vmatpush1.msra.mxu0 0.0
  %564 = vmatprep.subr.mxu0 0.0
  %565 = vmatpush1.msra.mxu0 0.0
  %566 = vmatprep.subr.mxu0 0.0
  %567 = vmatpush1.msra.mxu0 0.0
  %568 = vmatprep.subr.mxu0 0.0
  %569 = vmatpush1.msra.mxu0 0.0
  %570 = vmatprep.subr.mxu0 0.0
  %571 = vmatpush1.msra.mxu0 0.0
  %572 = vmatprep.subr.mxu0 0.0
  %573 = vmatpush1.msra.mxu0 0.0
  %574 = vmatprep.subr.mxu0 0.0
  %575 = vmatpush1.msra.mxu0 0.0
  %576 = vmatprep.subr.mxu0 0.0
  %577 = vmatpush1.msra.mxu0 0.0
  %578 = vmatprep.subr.mxu0 0.0
  %579 = vmatpush1.msra.mxu0 0.0
  %580 = vmatprep.subr.mxu0 0.0
  %581 = vmatpush1.msra.mxu0 0.0
  %582 = vmatprep.subr.mxu0 0.0
  %583 = vmatpush1.msra.mxu0 0.0
  %584 = vmatprep.subr.mxu0 0.0
  %585 = vmatpush1.msra.mxu0 0.0
  %586 = vmatprep.subr.mxu0 0.0
  %587 = vmatpush1.msra.mxu0 0.0
  %588 = vmatprep.subr.mxu0 0.0
  %589 = vmatpush1.msra.mxu0 0.0
  %590 = vmatprep.subr.mxu0 0.0
  %591 = vmatpush1.msra.mxu0 0.0
  %592 = vmatprep.subr.mxu0 0.0
  %593 = vmatpush1.msra.mxu0 0.0
  %594 = vmatprep.subr.mxu0 0.0
  %595 = vmatpush1.msra.mxu0 0.0
  %596 = vmatprep.subr.mxu0 0.0
  %597 = vmatpush1.msra.mxu0 0.0
  %598 = vmatprep.subr.mxu0 0.0
  %599 = vmatpush1.msra.mxu0 0.0
  %600 = vmatprep.subr.mxu0 0.0
  %601 = vmatpush1.msra.mxu0 0.0
  %602 = vmatprep.subr.mxu0 0.0
  %603 = vmatpush1.msra.mxu0 0.0
  %604 = vmatprep.mubr.f32.mxu0 0.0
  %605 = vmatmul.mubr.f32.gmra.mrb[0].mxu0 %v538
  %v606 = vpop.f32.mrb[0].mxu0
  %v607 = vadd.f32 0.0, %v606
  %v608 = vpop.f32.mrb[0].mxu0
  %609 = vdwg.mxu0
  %v610 = vmul.f32 %v607, 0.5
  %v611 = vadd.f32 %v164, %v610
  %v613 = vsel %vm168, %v611, 0
  %615 = vmatprep.subr.mxu0 0.0
  %616 = vmatpush1.msra.mxu0 %v38
  %617 = vmatprep.subr.mxu0 0.0
  %618 = vmatpush1.msra.mxu0 0.0
  %619 = vmatprep.subr.mxu0 0.0
  %620 = vmatpush1.msra.mxu0 0.0
  %621 = vmatprep.subr.mxu0 0.0
  %622 = vmatpush1.msra.mxu0 0.0
  %623 = vmatprep.subr.mxu0 0.0
  %624 = vmatpush1.msra.mxu0 0.0
  %625 = vmatprep.subr.mxu0 0.0
  %626 = vmatpush1.msra.mxu0 0.0
  %627 = vmatprep.subr.mxu0 0.0
  %628 = vmatpush1.msra.mxu0 0.0
  %629 = vmatprep.subr.mxu0 0.0
  %630 = vmatpush1.msra.mxu0 0.0
  %631 = vmatprep.subr.mxu0 0.0
  %632 = vmatpush1.msra.mxu0 0.0
  %633 = vmatprep.subr.mxu0 0.0
  %634 = vmatpush1.msra.mxu0 0.0
  %635 = vmatprep.subr.mxu0 0.0
  %636 = vmatpush1.msra.mxu0 0.0
  %637 = vmatprep.subr.mxu0 0.0
  %638 = vmatpush1.msra.mxu0 0.0
  %639 = vmatprep.subr.mxu0 0.0
  %640 = vmatpush1.msra.mxu0 0.0
  %641 = vmatprep.subr.mxu0 0.0
  %642 = vmatpush1.msra.mxu0 0.0
  %643 = vmatprep.subr.mxu0 0.0
  %644 = vmatpush1.msra.mxu0 0.0
  %645 = vmatprep.subr.mxu0 0.0
  %646 = vmatpush1.msra.mxu0 0.0
  %647 = vmatprep.subr.mxu0 0.0
  %648 = vmatpush1.msra.mxu0 0.0
  %649 = vmatprep.subr.mxu0 0.0
  %650 = vmatpush1.msra.mxu0 0.0
  %651 = vmatprep.subr.mxu0 0.0
  %652 = vmatpush1.msra.mxu0 0.0
  %653 = vmatprep.subr.mxu0 0.0
  %654 = vmatpush1.msra.mxu0 0.0
  %655 = vmatprep.subr.mxu0 0.0
  %656 = vmatpush1.msra.mxu0 0.0
  %657 = vmatprep.subr.mxu0 0.0
  %658 = vmatpush1.msra.mxu0 0.0
  %659 = vmatprep.subr.mxu0 0.0
  %660 = vmatpush1.msra.mxu0 0.0
  %661 = vmatprep.subr.mxu0 0.0
  %662 = vmatpush1.msra.mxu0 0.0
  %663 = vmatprep.subr.mxu0 0.0
  %664 = vmatpush1.msra.mxu0 0.0
  %665 = vmatprep.subr.mxu0 0.0
  %666 = vmatpush1.msra.mxu0 0.0
  %667 = vmatprep.subr.mxu0 0.0
  %668 = vmatpush1.msra.mxu0 0.0
  %669 = vmatprep.subr.mxu0 0.0
  %670 = vmatpush1.msra.mxu0 0.0
  %671 = vmatprep.subr.mxu0 0.0
  %672 = vmatpush1.msra.mxu0 0.0
  %673 = vmatprep.subr.mxu0 0.0
  %674 = vmatpush1.msra.mxu0 0.0
  %675 = vmatprep.subr.mxu0 0.0
  %676 = vmatpush1.msra.mxu0 0.0
  %677 = vmatprep.subr.mxu0 0.0
  %678 = vmatpush1.msra.mxu0 0.0
  %679 = vmatprep.mubr.f32.mxu0 0.0
  %680 = vmatmul.mubr.f32.gmra.mrb[0].mxu0 %v613
  %v681 = vpop.f32.mrb[0].mxu0
  %v682 = vadd.f32 %v44, %v681
  %v683 = vpop.f32.mrb[0].mxu0
  %684 = vdwg.mxu0
  %v685 = vmax.f32 %v682, 0.0
  %686 = vmatprep.subr.mxu0 0.0
  %687 = vmatpush1.msra.mxu0 %v46
  %688 = vmatprep.subr.mxu0 0.0
  %689 = vmatpush1.msra.mxu0 %v47
  %690 = vmatprep.subr.mxu0 0.0
  %691 = vmatpush1.msra.mxu0 %v48
  %692 = vmatprep.subr.mxu0 0.0
  %693 = vmatpush1.msra.mxu0 %v49
  %694 = vmatprep.subr.mxu0 0.0
  %695 = vmatpush1.msra.mxu0 %v50
  %696 = vmatprep.subr.mxu0 0.0
  %697 = vmatpush1.msra.mxu0 %v51
  %698 = vmatprep.subr.mxu0 0.0
  %699 = vmatpush1.msra.mxu0 %v52
  %700 = vmatprep.subr.mxu0 0.0
  %701 = vmatpush1.msra.mxu0 %v53
  %702 = vmatprep.subr.mxu0 0.0
  %703 = vmatpush1.msra.mxu0 %v54
  %704 = vmatprep.subr.mxu0 0.0
  %705 = vmatpush1.msra.mxu0 %v55
  %706 = vmatprep.subr.mxu0 0.0
  %707 = vmatpush1.msra.mxu0 %v56
  %708 = vmatprep.subr.mxu0 0.0
  %709 = vmatpush1.msra.mxu0 %v57
  %710 = vmatprep.subr.mxu0 0.0
  %711 = vmatpush1.msra.mxu0 %v58
  %712 = vmatprep.subr.mxu0 0.0
  %713 = vmatpush1.msra.mxu0 %v59
  %714 = vmatprep.subr.mxu0 0.0
  %715 = vmatpush1.msra.mxu0 %v60
  %716 = vmatprep.subr.mxu0 0.0
  %717 = vmatpush1.msra.mxu0 %v61
  %718 = vmatprep.subr.mxu0 0.0
  %719 = vmatpush1.msra.mxu0 0.0
  %720 = vmatprep.subr.mxu0 0.0
  %721 = vmatpush1.msra.mxu0 0.0
  %722 = vmatprep.subr.mxu0 0.0
  %723 = vmatpush1.msra.mxu0 0.0
  %724 = vmatprep.subr.mxu0 0.0
  %725 = vmatpush1.msra.mxu0 0.0
  %726 = vmatprep.subr.mxu0 0.0
  %727 = vmatpush1.msra.mxu0 0.0
  %728 = vmatprep.subr.mxu0 0.0
  %729 = vmatpush1.msra.mxu0 0.0
  %730 = vmatprep.subr.mxu0 0.0
  %731 = vmatpush1.msra.mxu0 0.0
  %732 = vmatprep.subr.mxu0 0.0
  %733 = vmatpush1.msra.mxu0 0.0
  %734 = vmatprep.subr.mxu0 0.0
  %735 = vmatpush1.msra.mxu0 0.0
  %736 = vmatprep.subr.mxu0 0.0
  %737 = vmatpush1.msra.mxu0 0.0
  %738 = vmatprep.subr.mxu0 0.0
  %739 = vmatpush1.msra.mxu0 0.0
  %740 = vmatprep.subr.mxu0 0.0
  %741 = vmatpush1.msra.mxu0 0.0
  %742 = vmatprep.subr.mxu0 0.0
  %743 = vmatpush1.msra.mxu0 0.0
  %744 = vmatprep.subr.mxu0 0.0
  %745 = vmatpush1.msra.mxu0 0.0
  %746 = vmatprep.subr.mxu0 0.0
  %747 = vmatpush1.msra.mxu0 0.0
  %748 = vmatprep.subr.mxu0 0.0
  %749 = vmatpush1.msra.mxu0 0.0
  %750 = vmatprep.mubr.f32.mxu0 0.0
  %751 = vmatmul.mubr.f32.gmra.mrb[0].mxu0 %v685
  %v752 = vpop.f32.mrb[0].mxu0
  %v753 = vadd.f32 %v67, %v752
  %v754 = vpop.f32.mrb[0].mxu0
  %755 = vdwg.mxu0
  %v756 = vtanh.pop %v753
  %v757 = vmul.f32 %v756, %v167
  %v759 = vsel %vm315, %v757, 0
  %761 = vmatprep.subr.mxu0 0.0
  %762 = vmatpush1.msra.mxu0 %v69
  %763 = vmatprep.subr.mxu0 0.0
  %764 = vmatpush1.msra.mxu0 %v70
  %765 = vmatprep.subr.mxu0 0.0
  %766 = vmatpush1.msra.mxu0 %v71
  %767 = vmatprep.subr.mxu0 0.0
  %768 = vmatpush1.msra.mxu0 0.0
  %769 = vmatprep.subr.mxu0 0.0
  %770 = vmatpush1.msra.mxu0 0.0
  %771 = vmatprep.subr.mxu0 0.0
  %772 = vmatpush1.msra.mxu0 0.0
  %773 = vmatprep.subr.mxu0 0.0
  %774 = vmatpush1.msra.mxu0 0.0
  %775 = vmatprep.subr.mxu0 0.0
  %776 = vmatpush1.msra.mxu0 0.0
  %777 = vmatprep.subr.mxu0 0.0
  %778 = vmatpush1.msra.mxu0 0.0
  %779 = vmatprep.subr.mxu0 0.0
  %780 = vmatpush1.msra.mxu0 0.0
  %781 = vmatprep.subr.mxu0 0.0
  %782 = vmatpush1.msra.mxu0 0.0
  %783 = vmatprep.subr.mxu0 0.0
  %784 = vmatpush1.msra.mxu0 0.0
  %785 = vmatprep.subr.mxu0 0.0
  %786 = vmatpush1.msra.mxu0 0.0
  %787 = vmatprep.subr.mxu0 0.0
  %788 = vmatpush1.msra.mxu0 0.0
  %789 = vmatprep.subr.mxu0 0.0
  %790 = vmatpush1.msra.mxu0 0.0
  %791 = vmatprep.subr.mxu0 0.0
  %792 = vmatpush1.msra.mxu0 0.0
  %793 = vmatprep.subr.mxu0 0.0
  %794 = vmatpush1.msra.mxu0 0.0
  %795 = vmatprep.subr.mxu0 0.0
  %796 = vmatpush1.msra.mxu0 0.0
  %797 = vmatprep.subr.mxu0 0.0
  %798 = vmatpush1.msra.mxu0 0.0
  %799 = vmatprep.subr.mxu0 0.0
  %800 = vmatpush1.msra.mxu0 0.0
  %801 = vmatprep.subr.mxu0 0.0
  %802 = vmatpush1.msra.mxu0 0.0
  %803 = vmatprep.subr.mxu0 0.0
  %804 = vmatpush1.msra.mxu0 0.0
  %805 = vmatprep.subr.mxu0 0.0
  %806 = vmatpush1.msra.mxu0 0.0
  %807 = vmatprep.subr.mxu0 0.0
  %808 = vmatpush1.msra.mxu0 0.0
  %809 = vmatprep.subr.mxu0 0.0
  %810 = vmatpush1.msra.mxu0 0.0
  %811 = vmatprep.subr.mxu0 0.0
  %812 = vmatpush1.msra.mxu0 0.0
  %813 = vmatprep.subr.mxu0 0.0
  %814 = vmatpush1.msra.mxu0 0.0
  %815 = vmatprep.subr.mxu0 0.0
  %816 = vmatpush1.msra.mxu0 0.0
  %817 = vmatprep.subr.mxu0 0.0
  %818 = vmatpush1.msra.mxu0 0.0
  %819 = vmatprep.subr.mxu0 0.0
  %820 = vmatpush1.msra.mxu0 0.0
  %821 = vmatprep.subr.mxu0 0.0
  %822 = vmatpush1.msra.mxu0 0.0
  %823 = vmatprep.subr.mxu0 0.0
  %824 = vmatpush1.msra.mxu0 0.0
  %825 = vmatprep.mubr.f32.mxu0 0.0
  %826 = vmatmul.mubr.f32.gmra.mrb[0].mxu0 %v759
  %v827 = vpop.f32.mrb[0].mxu0
  %v828 = vadd.f32 0.0, %v827
  %v829 = vpop.f32.mrb[0].mxu0
  %830 = vdwg.mxu0
  %v831 = vadd.f32 %v164, %v828
  %v833 = vsel %vm168, %v831, 0
  %835 = vmatprep.subr.mxu0 0.0
  %836 = vmatpush1.msra.mxu0 %v38
  %837 = vmatprep.subr.mxu0 0.0
  %838 = vmatpush1.msra.mxu0 0.0
  %839 = vmatprep.subr.mxu0 0.0
  %840 = vmatpush1.msra.mxu0 0.0
  %841 = vmatprep.subr.mxu0 0.0
  %842 = vmatpush1.msra.mxu0 0.0
  %843 = vmatprep.subr.mxu0 0.0
  %844 = vmatpush1.msra.mxu0 0.0
  %845 = vmatprep.subr.mxu0 0.0
  %846 = vmatpush1.msra.mxu0 0.0
  %847 = vmatprep.subr.mxu0 0.0
  %848 = vmatpush1.msra.mxu0 0.0
  %849 = vmatprep.subr.mxu0 0.0
  %850 = vmatpush1.msra.mxu0 0.0
  %851 = vmatprep.subr.mxu0 0.0
  %852 = vmatpush1.msra.mxu0 0.0
  %853 = vmatprep.subr.mxu0 0.0
  %854 = vmatpush1.msra.mxu0 0.0
  %855 = vmatprep.subr.mxu0 0.0
  %856 = vmatpush1.msra.mxu0 0.0
  %857 = vmatprep.subr.mxu0 0.0
  %858 = vmatpush1.msra.mxu0 0.0
  %859 = vmatprep.subr.mxu0 0.0
  %860 = vmatpush1.msra.mxu0 0.0
  %861 = vmatprep.subr.mxu0 0.0
  %862 = vmatpush1.msra.mxu0 0.0
  %863 = vmatprep.subr.mxu0 0.0
  %864 = vmatpush1.msra.mxu0 0.0
  %865 = vmatprep.subr.mxu0 0.0
  %866 = vmatpush1.msra.mxu0 0.0
  %867 = vmatprep.subr.mxu0 0.0
  %868 = vmatpush1.msra.mxu0 0.0
  %869 = vmatprep.subr.mxu0 0.0
  %870 = vmatpush1.msra.mxu0 0.0
  %871 = vmatprep.subr.mxu0 0.0
  %872 = vmatpush1.msra.mxu0 0.0
  %873 = vmatprep.subr.mxu0 0.0
  %874 = vmatpush1.msra.mxu0 0.0
  %875 = vmatprep.subr.mxu0 0.0
  %876 = vmatpush1.msra.mxu0 0.0
  %877 = vmatprep.subr.mxu0 0.0
  %878 = vmatpush1.msra.mxu0 0.0
  %879 = vmatprep.subr.mxu0 0.0
  %880 = vmatpush1.msra.mxu0 0.0
  %881 = vmatprep.subr.mxu0 0.0
  %882 = vmatpush1.msra.mxu0 0.0
  %883 = vmatprep.subr.mxu0 0.0
  %884 = vmatpush1.msra.mxu0 0.0
  %885 = vmatprep.subr.mxu0 0.0
  %886 = vmatpush1.msra.mxu0 0.0
  %887 = vmatprep.subr.mxu0 0.0
  %888 = vmatpush1.msra.mxu0 0.0
  %889 = vmatprep.subr.mxu0 0.0
  %890 = vmatpush1.msra.mxu0 0.0
  %891 = vmatprep.subr.mxu0 0.0
  %892 = vmatpush1.msra.mxu0 0.0
  %893 = vmatprep.subr.mxu0 0.0
  %894 = vmatpush1.msra.mxu0 0.0
  %895 = vmatprep.subr.mxu0 0.0
  %896 = vmatpush1.msra.mxu0 0.0
  %897 = vmatprep.subr.mxu0 0.0
  %898 = vmatpush1.msra.mxu0 0.0
  %899 = vmatprep.mubr.f32.mxu0 0.0
  %900 = vmatmul.mubr.f32.gmra.mrb[0].mxu0 %v833
  %v901 = vpop.f32.mrb[0].mxu0
  %v902 = vadd.f32 %v44, %v901
  %v903 = vpop.f32.mrb[0].mxu0
  %904 = vdwg.mxu0
  %v905 = vmax.f32 %v902, 0.0
  %906 = vmatprep.subr.mxu0 0.0
  %907 = vmatpush1.msra.mxu0 %v46
  %908 = vmatprep.subr.mxu0 0.0
  %909 = vmatpush1.msra.mxu0 %v47
  %910 = vmatprep.subr.mxu0 0.0
  %911 = vmatpush1.msra.mxu0 %v48
  %912 = vmatprep.subr.mxu0 0.0
  %913 = vmatpush1.msra.mxu0 %v49
  %914 = vmatprep.subr.mxu0 0.0
  %915 = vmatpush1.msra.mxu0 %v50
  %916 = vmatprep.subr.mxu0 0.0
  %917 = vmatpush1.msra.mxu0 %v51
  %918 = vmatprep.subr.mxu0 0.0
  %919 = vmatpush1.msra.mxu0 %v52
  %920 = vmatprep.subr.mxu0 0.0
  %921 = vmatpush1.msra.mxu0 %v53
  %922 = vmatprep.subr.mxu0 0.0
  %923 = vmatpush1.msra.mxu0 %v54
  %924 = vmatprep.subr.mxu0 0.0
  %925 = vmatpush1.msra.mxu0 %v55
  %926 = vmatprep.subr.mxu0 0.0
  %927 = vmatpush1.msra.mxu0 %v56
  %928 = vmatprep.subr.mxu0 0.0
  %929 = vmatpush1.msra.mxu0 %v57
  %930 = vmatprep.subr.mxu0 0.0
  %931 = vmatpush1.msra.mxu0 %v58
  %932 = vmatprep.subr.mxu0 0.0
  %933 = vmatpush1.msra.mxu0 %v59
  %934 = vmatprep.subr.mxu0 0.0
  %935 = vmatpush1.msra.mxu0 %v60
  %936 = vmatprep.subr.mxu0 0.0
  %937 = vmatpush1.msra.mxu0 %v61
  %938 = vmatprep.subr.mxu0 0.0
  %939 = vmatpush1.msra.mxu0 0.0
  %940 = vmatprep.subr.mxu0 0.0
  %941 = vmatpush1.msra.mxu0 0.0
  %942 = vmatprep.subr.mxu0 0.0
  %943 = vmatpush1.msra.mxu0 0.0
  %944 = vmatprep.subr.mxu0 0.0
  %945 = vmatpush1.msra.mxu0 0.0
  %946 = vmatprep.subr.mxu0 0.0
  %947 = vmatpush1.msra.mxu0 0.0
  %948 = vmatprep.subr.mxu0 0.0
  %949 = vmatpush1.msra.mxu0 0.0
  %950 = vmatprep.subr.mxu0 0.0
  %951 = vmatpush1.msra.mxu0 0.0
  %952 = vmatprep.subr.mxu0 0.0
  %953 = vmatpush1.msra.mxu0 0.0
  %954 = vmatprep.subr.mxu0 0.0
  %955 = vmatpush1.msra.mxu0 0.0
  %956 = vmatprep.subr.mxu0 0.0
  %957 = vmatpush1.msra.mxu0 0.0
  %958 = vmatprep.subr.mxu0 0.0
  %959 = vmatpush1.msra.mxu0 0.0
  %960 = vmatprep.subr.mxu0 0.0
  %961 = vmatpush1.msra.mxu0 0.0
  %962 = vmatprep.subr.mxu0 0.0
  %963 = vmatpush1.msra.mxu0 0.0
  %964 = vmatprep.subr.mxu0 0.0
  %965 = vmatpush1.msra.mxu0 0.0
  %966 = vmatprep.subr.mxu0 0.0
  %967 = vmatpush1.msra.mxu0 0.0
  %968 = vmatprep.subr.mxu0 0.0
  %969 = vmatpush1.msra.mxu0 0.0
  %970 = vmatprep.mubr.f32.mxu0 0.0
  %971 = vmatmul.mubr.f32.gmra.mrb[0].mxu0 %v905
  %v972 = vpop.f32.mrb[0].mxu0
  %v973 = vadd.f32 %v67, %v972
  %v974 = vpop.f32.mrb[0].mxu0
  %975 = vdwg.mxu0
  %v976 = vtanh.pop %v973
  %v977 = vmul.f32 %v976, %v167
  %v979 = vsel %vm315, %v977, 0
  %981 = vmatprep.subr.mxu0 0.0
  %982 = vmatpush1.msra.mxu0 %v69
  %983 = vmatprep.subr.mxu0 0.0
  %984 = vmatpush1.msra.mxu0 %v70
  %985 = vmatprep.subr.mxu0 0.0
  %986 = vmatpush1.msra.mxu0 %v71
  %987 = vmatprep.subr.mxu0 0.0
  %988 = vmatpush1.msra.mxu0 0.0
  %989 = vmatprep.subr.mxu0 0.0
  %990 = vmatpush1.msra.mxu0 0.0
  %991 = vmatprep.subr.mxu0 0.0
  %992 = vmatpush1.msra.mxu0 0.0
  %993 = vmatprep.subr.mxu0 0.0
  %994 = vmatpush1.msra.mxu0 0.0
  %995 = vmatprep.subr.mxu0 0.0
  %996 = vmatpush1.msra.mxu0 0.0
  %997 = vmatprep.subr.mxu0 0.0
  %998 = vmatpush1.msra.mxu0 0.0
  %999 = vmatprep.subr.mxu0 0.0
  %1000 = vmatpush1.msra.mxu0 0.0
  %1001 = vmatprep.subr.mxu0 0.0
  %1002 = vmatpush1.msra.mxu0 0.0
  %1003 = vmatprep.subr.mxu0 0.0
  %1004 = vmatpush1.msra.mxu0 0.0
  %1005 = vmatprep.subr.mxu0 0.0
  %1006 = vmatpush1.msra.mxu0 0.0
  %1007 = vmatprep.subr.mxu0 0.0
  %1008 = vmatpush1.msra.mxu0 0.0
  %1009 = vmatprep.subr.mxu0 0.0
  %1010 = vmatpush1.msra.mxu0 0.0
  %1011 = vmatprep.subr.mxu0 0.0
  %1012 = vmatpush1.msra.mxu0 0.0
  %1013 = vmatprep.subr.mxu0 0.0
  %1014 = vmatpush1.msra.mxu0 0.0
  %1015 = vmatprep.subr.mxu0 0.0
  %1016 = vmatpush1.msra.mxu0 0.0
  %1017 = vmatprep.subr.mxu0 0.0
  %1018 = vmatpush1.msra.mxu0 0.0
  %1019 = vmatprep.subr.mxu0 0.0
  %1020 = vmatpush1.msra.mxu0 0.0
  %1021 = vmatprep.subr.mxu0 0.0
  %1022 = vmatpush1.msra.mxu0 0.0
  %1023 = vmatprep.subr.mxu0 0.0
  %1024 = vmatpush1.msra.mxu0 0.0
  %1025 = vmatprep.subr.mxu0 0.0
  %1026 = vmatpush1.msra.mxu0 0.0
  %1027 = vmatprep.subr.mxu0 0.0
  %1028 = vmatpush1.msra.mxu0 0.0
  %1029 = vmatprep.subr.mxu0 0.0
  %1030 = vmatpush1.msra.mxu0 0.0
  %1031 = vmatprep.subr.mxu0 0.0
  %1032 = vmatpush1.msra.mxu0 0.0
  %1033 = vmatprep.subr.mxu0 0.0
  %1034 = vmatpush1.msra.mxu0 0.0
  %1035 = vmatprep.subr.mxu0 0.0
  %1036 = vmatpush1.msra.mxu0 0.0
  %1037 = vmatprep.subr.mxu0 0.0
  %1038 = vmatpush1.msra.mxu0 0.0
  %1039 = vmatprep.subr.mxu0 0.0
  %1040 = vmatpush1.msra.mxu0 0.0
  %1041 = vmatprep.subr.mxu0 0.0
  %1042 = vmatpush1.msra.mxu0 0.0
  %1043 = vmatprep.subr.mxu0 0.0
  %1044 = vmatpush1.msra.mxu0 0.0
  %1045 = vmatprep.mubr.f32.mxu0 0.0
  %1046 = vmatmul.mubr.f32.gmra.mrb[0].mxu0 %v979
  %v1047 = vpop.f32.mrb[0].mxu0
  %v1048 = vadd.f32 0.0, %v1047
  %v1049 = vpop.f32.mrb[0].mxu0
  %1050 = vdwg.mxu0
  %v1051 = vmul.f32 %v607, 2.0
  %v1052 = vadd.f32 %v386, %v1051
  %v1053 = vmul.f32 %v828, 2.0
  %v1054 = vadd.f32 %v1052, %v1053
  %v1055 = vadd.f32 %v1054, %v1048
  %v1056 = vmul.f32 %v1055, 0.16666667
  %v1057 = vadd.f32 %v164, %v1056
  %s1058 = scalar_lea.vmem %s1, 8
  %v1059 = vld [vmem:[%s1058] sm:$0xff]
  %v1061 = vsel %vm168, %v1057, 0
  %1063 = vmatprep.subr.mxu0 0.0
  %1064 = vmatpush1.msra.mxu0 %v38
  %1065 = vmatprep.subr.mxu0 0.0
  %1066 = vmatpush1.msra.mxu0 0.0
  %1067 = vmatprep.subr.mxu0 0.0
  %1068 = vmatpush1.msra.mxu0 0.0
  %1069 = vmatprep.subr.mxu0 0.0
  %1070 = vmatpush1.msra.mxu0 0.0
  %1071 = vmatprep.subr.mxu0 0.0
  %1072 = vmatpush1.msra.mxu0 0.0
  %1073 = vmatprep.subr.mxu0 0.0
  %1074 = vmatpush1.msra.mxu0 0.0
  %1075 = vmatprep.subr.mxu0 0.0
  %1076 = vmatpush1.msra.mxu0 0.0
  %1077 = vmatprep.subr.mxu0 0.0
  %1078 = vmatpush1.msra.mxu0 0.0
  %1079 = vmatprep.subr.mxu0 0.0
  %1080 = vmatpush1.msra.mxu0 0.0
  %1081 = vmatprep.subr.mxu0 0.0
  %1082 = vmatpush1.msra.mxu0 0.0
  %1083 = vmatprep.subr.mxu0 0.0
  %1084 = vmatpush1.msra.mxu0 0.0
  %1085 = vmatprep.subr.mxu0 0.0
  %1086 = vmatpush1.msra.mxu0 0.0
  %1087 = vmatprep.subr.mxu0 0.0
  %1088 = vmatpush1.msra.mxu0 0.0
  %1089 = vmatprep.subr.mxu0 0.0
  %1090 = vmatpush1.msra.mxu0 0.0
  %1091 = vmatprep.subr.mxu0 0.0
  %1092 = vmatpush1.msra.mxu0 0.0
  %1093 = vmatprep.subr.mxu0 0.0
  %1094 = vmatpush1.msra.mxu0 0.0
  %1095 = vmatprep.subr.mxu0 0.0
  %1096 = vmatpush1.msra.mxu0 0.0
  %1097 = vmatprep.subr.mxu0 0.0
  %1098 = vmatpush1.msra.mxu0 0.0
  %1099 = vmatprep.subr.mxu0 0.0
  %1100 = vmatpush1.msra.mxu0 0.0
  %1101 = vmatprep.subr.mxu0 0.0
  %1102 = vmatpush1.msra.mxu0 0.0
  %1103 = vmatprep.subr.mxu0 0.0
  %1104 = vmatpush1.msra.mxu0 0.0
  %1105 = vmatprep.subr.mxu0 0.0
  %1106 = vmatpush1.msra.mxu0 0.0
  %1107 = vmatprep.subr.mxu0 0.0
  %1108 = vmatpush1.msra.mxu0 0.0
  %1109 = vmatprep.subr.mxu0 0.0
  %1110 = vmatpush1.msra.mxu0 0.0
  %1111 = vmatprep.subr.mxu0 0.0
  %1112 = vmatpush1.msra.mxu0 0.0
  %1113 = vmatprep.subr.mxu0 0.0
  %1114 = vmatpush1.msra.mxu0 0.0
  %1115 = vmatprep.subr.mxu0 0.0
  %1116 = vmatpush1.msra.mxu0 0.0
  %1117 = vmatprep.subr.mxu0 0.0
  %1118 = vmatpush1.msra.mxu0 0.0
  %1119 = vmatprep.subr.mxu0 0.0
  %1120 = vmatpush1.msra.mxu0 0.0
  %1121 = vmatprep.subr.mxu0 0.0
  %1122 = vmatpush1.msra.mxu0 0.0
  %1123 = vmatprep.subr.mxu0 0.0
  %1124 = vmatpush1.msra.mxu0 0.0
  %1125 = vmatprep.subr.mxu0 0.0
  %1126 = vmatpush1.msra.mxu0 0.0
  %1127 = vmatprep.mubr.f32.mxu0 0.0
  %1128 = vmatmul.mubr.f32.gmra.mrb[0].mxu0 %v1061
  %v1129 = vpop.f32.mrb[0].mxu0
  %v1130 = vadd.f32 %v44, %v1129
  %v1131 = vpop.f32.mrb[0].mxu0
  %1132 = vdwg.mxu0
  %v1133 = vmax.f32 %v1130, 0.0
  %1134 = vmatprep.subr.mxu0 0.0
  %1135 = vmatpush1.msra.mxu0 %v46
  %1136 = vmatprep.subr.mxu0 0.0
  %1137 = vmatpush1.msra.mxu0 %v47
  %1138 = vmatprep.subr.mxu0 0.0
  %1139 = vmatpush1.msra.mxu0 %v48
  %1140 = vmatprep.subr.mxu0 0.0
  %1141 = vmatpush1.msra.mxu0 %v49
  %1142 = vmatprep.subr.mxu0 0.0
  %1143 = vmatpush1.msra.mxu0 %v50
  %1144 = vmatprep.subr.mxu0 0.0
  %1145 = vmatpush1.msra.mxu0 %v51
  %1146 = vmatprep.subr.mxu0 0.0
  %1147 = vmatpush1.msra.mxu0 %v52
  %1148 = vmatprep.subr.mxu0 0.0
  %1149 = vmatpush1.msra.mxu0 %v53
  %1150 = vmatprep.subr.mxu0 0.0
  %1151 = vmatpush1.msra.mxu0 %v54
  %1152 = vmatprep.subr.mxu0 0.0
  %1153 = vmatpush1.msra.mxu0 %v55
  %1154 = vmatprep.subr.mxu0 0.0
  %1155 = vmatpush1.msra.mxu0 %v56
  %1156 = vmatprep.subr.mxu0 0.0
  %1157 = vmatpush1.msra.mxu0 %v57
  %1158 = vmatprep.subr.mxu0 0.0
  %1159 = vmatpush1.msra.mxu0 %v58
  %1160 = vmatprep.subr.mxu0 0.0
  %1161 = vmatpush1.msra.mxu0 %v59
  %1162 = vmatprep.subr.mxu0 0.0
  %1163 = vmatpush1.msra.mxu0 %v60
  %1164 = vmatprep.subr.mxu0 0.0
  %1165 = vmatpush1.msra.mxu0 %v61
  %1166 = vmatprep.subr.mxu0 0.0
  %1167 = vmatpush1.msra.mxu0 0.0
  %1168 = vmatprep.subr.mxu0 0.0
  %1169 = vmatpush1.msra.mxu0 0.0
  %1170 = vmatprep.subr.mxu0 0.0
  %1171 = vmatpush1.msra.mxu0 0.0
  %1172 = vmatprep.subr.mxu0 0.0
  %1173 = vmatpush1.msra.mxu0 0.0
  %1174 = vmatprep.subr.mxu0 0.0
  %1175 = vmatpush1.msra.mxu0 0.0
  %1176 = vmatprep.subr.mxu0 0.0
  %1177 = vmatpush1.msra.mxu0 0.0
  %1178 = vmatprep.subr.mxu0 0.0
  %1179 = vmatpush1.msra.mxu0 0.0
  %1180 = vmatprep.subr.mxu0 0.0
  %1181 = vmatpush1.msra.mxu0 0.0
  %1182 = vmatprep.subr.mxu0 0.0
  %1183 = vmatpush1.msra.mxu0 0.0
  %1184 = vmatprep.subr.mxu0 0.0
  %1185 = vmatpush1.msra.mxu0 0.0
  %1186 = vmatprep.subr.mxu0 0.0
  %1187 = vmatpush1.msra.mxu0 0.0
  %1188 = vmatprep.subr.mxu0 0.0
  %1189 = vmatpush1.msra.mxu0 0.0
  %1190 = vmatprep.subr.mxu0 0.0
  %1191 = vmatpush1.msra.mxu0 0.0
  %1192 = vmatprep.subr.mxu0 0.0
  %1193 = vmatpush1.msra.mxu0 0.0
  %1194 = vmatprep.subr.mxu0 0.0
  %1195 = vmatpush1.msra.mxu0 0.0
  %1196 = vmatprep.subr.mxu0 0.0
  %1197 = vmatpush1.msra.mxu0 0.0
  %1198 = vmatprep.mubr.f32.mxu0 0.0
  %1199 = vmatmul.mubr.f32.gmra.mrb[0].mxu0 %v1133
  %v1200 = vpop.f32.mrb[0].mxu0
  %v1201 = vadd.f32 %v67, %v1200
  %v1202 = vpop.f32.mrb[0].mxu0
  %1203 = vdwg.mxu0
  %v1204 = vtanh.pop %v1201
  %v1205 = vmul.f32 %v1204, %v1059
  %v1207 = vsel %vm315, %v1205, 0
  %1209 = vmatprep.subr.mxu0 0.0
  %1210 = vmatpush1.msra.mxu0 %v69
  %1211 = vmatprep.subr.mxu0 0.0
  %1212 = vmatpush1.msra.mxu0 %v70
  %1213 = vmatprep.subr.mxu0 0.0
  %1214 = vmatpush1.msra.mxu0 %v71
  %1215 = vmatprep.subr.mxu0 0.0
  %1216 = vmatpush1.msra.mxu0 0.0
  %1217 = vmatprep.subr.mxu0 0.0
  %1218 = vmatpush1.msra.mxu0 0.0
  %1219 = vmatprep.subr.mxu0 0.0
  %1220 = vmatpush1.msra.mxu0 0.0
  %1221 = vmatprep.subr.mxu0 0.0
  %1222 = vmatpush1.msra.mxu0 0.0
  %1223 = vmatprep.subr.mxu0 0.0
  %1224 = vmatpush1.msra.mxu0 0.0
  %1225 = vmatprep.subr.mxu0 0.0
  %1226 = vmatpush1.msra.mxu0 0.0
  %1227 = vmatprep.subr.mxu0 0.0
  %1228 = vmatpush1.msra.mxu0 0.0
  %1229 = vmatprep.subr.mxu0 0.0
  %1230 = vmatpush1.msra.mxu0 0.0
  %1231 = vmatprep.subr.mxu0 0.0
  %1232 = vmatpush1.msra.mxu0 0.0
  %1233 = vmatprep.subr.mxu0 0.0
  %1234 = vmatpush1.msra.mxu0 0.0
  %1235 = vmatprep.subr.mxu0 0.0
  %1236 = vmatpush1.msra.mxu0 0.0
  %1237 = vmatprep.subr.mxu0 0.0
  %1238 = vmatpush1.msra.mxu0 0.0
  %1239 = vmatprep.subr.mxu0 0.0
  %1240 = vmatpush1.msra.mxu0 0.0
  %1241 = vmatprep.subr.mxu0 0.0
  %1242 = vmatpush1.msra.mxu0 0.0
  %1243 = vmatprep.subr.mxu0 0.0
  %1244 = vmatpush1.msra.mxu0 0.0
  %1245 = vmatprep.subr.mxu0 0.0
  %1246 = vmatpush1.msra.mxu0 0.0
  %1247 = vmatprep.subr.mxu0 0.0
  %1248 = vmatpush1.msra.mxu0 0.0
  %1249 = vmatprep.subr.mxu0 0.0
  %1250 = vmatpush1.msra.mxu0 0.0
  %1251 = vmatprep.subr.mxu0 0.0
  %1252 = vmatpush1.msra.mxu0 0.0
  %1253 = vmatprep.subr.mxu0 0.0
  %1254 = vmatpush1.msra.mxu0 0.0
  %1255 = vmatprep.subr.mxu0 0.0
  %1256 = vmatpush1.msra.mxu0 0.0
  %1257 = vmatprep.subr.mxu0 0.0
  %1258 = vmatpush1.msra.mxu0 0.0
  %1259 = vmatprep.subr.mxu0 0.0
  %1260 = vmatpush1.msra.mxu0 0.0
  %1261 = vmatprep.subr.mxu0 0.0
  %1262 = vmatpush1.msra.mxu0 0.0
  %1263 = vmatprep.subr.mxu0 0.0
  %1264 = vmatpush1.msra.mxu0 0.0
  %1265 = vmatprep.subr.mxu0 0.0
  %1266 = vmatpush1.msra.mxu0 0.0
  %1267 = vmatprep.subr.mxu0 0.0
  %1268 = vmatpush1.msra.mxu0 0.0
  %1269 = vmatprep.subr.mxu0 0.0
  %1270 = vmatpush1.msra.mxu0 0.0
  %1271 = vmatprep.subr.mxu0 0.0
  %1272 = vmatpush1.msra.mxu0 0.0
  %1273 = vmatprep.mubr.f32.mxu0 0.0
  %1274 = vmatmul.mubr.f32.gmra.mrb[0].mxu0 %v1207
  %v1275 = vpop.f32.mrb[0].mxu0
  %v1276 = vadd.f32 0.0, %v1275
  %v1277 = vpop.f32.mrb[0].mxu0
  %1278 = vdwg.mxu0
  %v1279 = vmul.f32 %v1276, 0.5
  %v1280 = vadd.f32 %v1057, %v1279
  %v1282 = vsel %vm168, %v1280, 0
  %1284 = vmatprep.subr.mxu0 0.0
  %1285 = vmatpush1.msra.mxu0 %v38
  %1286 = vmatprep.subr.mxu0 0.0
  %1287 = vmatpush1.msra.mxu0 0.0
  %1288 = vmatprep.subr.mxu0 0.0
  %1289 = vmatpush1.msra.mxu0 0.0
  %1290 = vmatprep.subr.mxu0 0.0
  %1291 = vmatpush1.msra.mxu0 0.0
  %1292 = vmatprep.subr.mxu0 0.0
  %1293 = vmatpush1.msra.mxu0 0.0
  %1294 = vmatprep.subr.mxu0 0.0
  %1295 = vmatpush1.msra.mxu0 0.0
  %1296 = vmatprep.subr.mxu0 0.0
  %1297 = vmatpush1.msra.mxu0 0.0
  %1298 = vmatprep.subr.mxu0 0.0
  %1299 = vmatpush1.msra.mxu0 0.0
  %1300 = vmatprep.subr.mxu0 0.0
  %1301 = vmatpush1.msra.mxu0 0.0
  %1302 = vmatprep.subr.mxu0 0.0
  %1303 = vmatpush1.msra.mxu0 0.0
  %1304 = vmatprep.subr.mxu0 0.0
  %1305 = vmatpush1.msra.mxu0 0.0
  %1306 = vmatprep.subr.mxu0 0.0
  %1307 = vmatpush1.msra.mxu0 0.0
  %1308 = vmatprep.subr.mxu0 0.0
  %1309 = vmatpush1.msra.mxu0 0.0
  %1310 = vmatprep.subr.mxu0 0.0
  %1311 = vmatpush1.msra.mxu0 0.0
  %1312 = vmatprep.subr.mxu0 0.0
  %1313 = vmatpush1.msra.mxu0 0.0
  %1314 = vmatprep.subr.mxu0 0.0
  %1315 = vmatpush1.msra.mxu0 0.0
  %1316 = vmatprep.subr.mxu0 0.0
  %1317 = vmatpush1.msra.mxu0 0.0
  %1318 = vmatprep.subr.mxu0 0.0
  %1319 = vmatpush1.msra.mxu0 0.0
  %1320 = vmatprep.subr.mxu0 0.0
  %1321 = vmatpush1.msra.mxu0 0.0
  %1322 = vmatprep.subr.mxu0 0.0
  %1323 = vmatpush1.msra.mxu0 0.0
  %1324 = vmatprep.subr.mxu0 0.0
  %1325 = vmatpush1.msra.mxu0 0.0
  %1326 = vmatprep.subr.mxu0 0.0
  %1327 = vmatpush1.msra.mxu0 0.0
  %1328 = vmatprep.subr.mxu0 0.0
  %1329 = vmatpush1.msra.mxu0 0.0
  %1330 = vmatprep.subr.mxu0 0.0
  %1331 = vmatpush1.msra.mxu0 0.0
  %1332 = vmatprep.subr.mxu0 0.0
  %1333 = vmatpush1.msra.mxu0 0.0
  %1334 = vmatprep.subr.mxu0 0.0
  %1335 = vmatpush1.msra.mxu0 0.0
  %1336 = vmatprep.subr.mxu0 0.0
  %1337 = vmatpush1.msra.mxu0 0.0
  %1338 = vmatprep.subr.mxu0 0.0
  %1339 = vmatpush1.msra.mxu0 0.0
  %1340 = vmatprep.subr.mxu0 0.0
  %1341 = vmatpush1.msra.mxu0 0.0
  %1342 = vmatprep.subr.mxu0 0.0
  %1343 = vmatpush1.msra.mxu0 0.0
  %1344 = vmatprep.subr.mxu0 0.0
  %1345 = vmatpush1.msra.mxu0 0.0
  %1346 = vmatprep.subr.mxu0 0.0
  %1347 = vmatpush1.msra.mxu0 0.0
  %1348 = vmatprep.mubr.f32.mxu0 0.0
  %1349 = vmatmul.mubr.f32.gmra.mrb[0].mxu0 %v1282
  %v1350 = vpop.f32.mrb[0].mxu0
  %v1351 = vadd.f32 %v44, %v1350
  %v1352 = vpop.f32.mrb[0].mxu0
  %1353 = vdwg.mxu0
  %v1354 = vmax.f32 %v1351, 0.0
  %1355 = vmatprep.subr.mxu0 0.0
  %1356 = vmatpush1.msra.mxu0 %v46
  %1357 = vmatprep.subr.mxu0 0.0
  %1358 = vmatpush1.msra.mxu0 %v47
  %1359 = vmatprep.subr.mxu0 0.0
  %1360 = vmatpush1.msra.mxu0 %v48
  %1361 = vmatprep.subr.mxu0 0.0
  %1362 = vmatpush1.msra.mxu0 %v49
  %1363 = vmatprep.subr.mxu0 0.0
  %1364 = vmatpush1.msra.mxu0 %v50
  %1365 = vmatprep.subr.mxu0 0.0
  %1366 = vmatpush1.msra.mxu0 %v51
  %1367 = vmatprep.subr.mxu0 0.0
  %1368 = vmatpush1.msra.mxu0 %v52
  %1369 = vmatprep.subr.mxu0 0.0
  %1370 = vmatpush1.msra.mxu0 %v53
  %1371 = vmatprep.subr.mxu0 0.0
  %1372 = vmatpush1.msra.mxu0 %v54
  %1373 = vmatprep.subr.mxu0 0.0
  %1374 = vmatpush1.msra.mxu0 %v55
  %1375 = vmatprep.subr.mxu0 0.0
  %1376 = vmatpush1.msra.mxu0 %v56
  %1377 = vmatprep.subr.mxu0 0.0
  %1378 = vmatpush1.msra.mxu0 %v57
  %1379 = vmatprep.subr.mxu0 0.0
  %1380 = vmatpush1.msra.mxu0 %v58
  %1381 = vmatprep.subr.mxu0 0.0
  %1382 = vmatpush1.msra.mxu0 %v59
  %1383 = vmatprep.subr.mxu0 0.0
  %1384 = vmatpush1.msra.mxu0 %v60
  %1385 = vmatprep.subr.mxu0 0.0
  %1386 = vmatpush1.msra.mxu0 %v61
  %1387 = vmatprep.subr.mxu0 0.0
  %1388 = vmatpush1.msra.mxu0 0.0
  %1389 = vmatprep.subr.mxu0 0.0
  %1390 = vmatpush1.msra.mxu0 0.0
  %1391 = vmatprep.subr.mxu0 0.0
  %1392 = vmatpush1.msra.mxu0 0.0
  %1393 = vmatprep.subr.mxu0 0.0
  %1394 = vmatpush1.msra.mxu0 0.0
  %1395 = vmatprep.subr.mxu0 0.0
  %1396 = vmatpush1.msra.mxu0 0.0
  %1397 = vmatprep.subr.mxu0 0.0
  %1398 = vmatpush1.msra.mxu0 0.0
  %1399 = vmatprep.subr.mxu0 0.0
  %1400 = vmatpush1.msra.mxu0 0.0
  %1401 = vmatprep.subr.mxu0 0.0
  %1402 = vmatpush1.msra.mxu0 0.0
  %1403 = vmatprep.subr.mxu0 0.0
  %1404 = vmatpush1.msra.mxu0 0.0
  %1405 = vmatprep.subr.mxu0 0.0
  %1406 = vmatpush1.msra.mxu0 0.0
  %1407 = vmatprep.subr.mxu0 0.0
  %1408 = vmatpush1.msra.mxu0 0.0
  %1409 = vmatprep.subr.mxu0 0.0
  %1410 = vmatpush1.msra.mxu0 0.0
  %1411 = vmatprep.subr.mxu0 0.0
  %1412 = vmatpush1.msra.mxu0 0.0
  %1413 = vmatprep.subr.mxu0 0.0
  %1414 = vmatpush1.msra.mxu0 0.0
  %1415 = vmatprep.subr.mxu0 0.0
  %1416 = vmatpush1.msra.mxu0 0.0
  %1417 = vmatprep.subr.mxu0 0.0
  %1418 = vmatpush1.msra.mxu0 0.0
  %1419 = vmatprep.mubr.f32.mxu0 0.0
  %1420 = vmatmul.mubr.f32.gmra.mrb[0].mxu0 %v1354
  %v1421 = vpop.f32.mrb[0].mxu0
  %v1422 = vadd.f32 %v67, %v1421
  %v1423 = vpop.f32.mrb[0].mxu0
  %1424 = vdwg.mxu0
  %v1425 = vtanh.pop %v1422
  %v1426 = vmul.f32 %v1425, %v1059
  %v1428 = vsel %vm315, %v1426, 0
  %1430 = vmatprep.subr.mxu0 0.0
  %1431 = vmatpush1.msra.mxu0 %v69
  %1432 = vmatprep.subr.mxu0 0.0
  %1433 = vmatpush1.msra.mxu0 %v70
  %1434 = vmatprep.subr.mxu0 0.0
  %1435 = vmatpush1.msra.mxu0 %v71
  %1436 = vmatprep.subr.mxu0 0.0
  %1437 = vmatpush1.msra.mxu0 0.0
  %1438 = vmatprep.subr.mxu0 0.0
  %1439 = vmatpush1.msra.mxu0 0.0
  %1440 = vmatprep.subr.mxu0 0.0
  %1441 = vmatpush1.msra.mxu0 0.0
  %1442 = vmatprep.subr.mxu0 0.0
  %1443 = vmatpush1.msra.mxu0 0.0
  %1444 = vmatprep.subr.mxu0 0.0
  %1445 = vmatpush1.msra.mxu0 0.0
  %1446 = vmatprep.subr.mxu0 0.0
  %1447 = vmatpush1.msra.mxu0 0.0
  %1448 = vmatprep.subr.mxu0 0.0
  %1449 = vmatpush1.msra.mxu0 0.0
  %1450 = vmatprep.subr.mxu0 0.0
  %1451 = vmatpush1.msra.mxu0 0.0
  %1452 = vmatprep.subr.mxu0 0.0
  %1453 = vmatpush1.msra.mxu0 0.0
  %1454 = vmatprep.subr.mxu0 0.0
  %1455 = vmatpush1.msra.mxu0 0.0
  %1456 = vmatprep.subr.mxu0 0.0
  %1457 = vmatpush1.msra.mxu0 0.0
  %1458 = vmatprep.subr.mxu0 0.0
  %1459 = vmatpush1.msra.mxu0 0.0
  %1460 = vmatprep.subr.mxu0 0.0
  %1461 = vmatpush1.msra.mxu0 0.0
  %1462 = vmatprep.subr.mxu0 0.0
  %1463 = vmatpush1.msra.mxu0 0.0
  %1464 = vmatprep.subr.mxu0 0.0
  %1465 = vmatpush1.msra.mxu0 0.0
  %1466 = vmatprep.subr.mxu0 0.0
  %1467 = vmatpush1.msra.mxu0 0.0
  %1468 = vmatprep.subr.mxu0 0.0
  %1469 = vmatpush1.msra.mxu0 0.0
  %1470 = vmatprep.subr.mxu0 0.0
  %1471 = vmatpush1.msra.mxu0 0.0
  %1472 = vmatprep.subr.mxu0 0.0
  %1473 = vmatpush1.msra.mxu0 0.0
  %1474 = vmatprep.subr.mxu0 0.0
  %1475 = vmatpush1.msra.mxu0 0.0
  %1476 = vmatprep.subr.mxu0 0.0
  %1477 = vmatpush1.msra.mxu0 0.0
  %1478 = vmatprep.subr.mxu0 0.0
  %1479 = vmatpush1.msra.mxu0 0.0
  %1480 = vmatprep.subr.mxu0 0.0
  %1481 = vmatpush1.msra.mxu0 0.0
  %1482 = vmatprep.subr.mxu0 0.0
  %1483 = vmatpush1.msra.mxu0 0.0
  %1484 = vmatprep.subr.mxu0 0.0
  %1485 = vmatpush1.msra.mxu0 0.0
  %1486 = vmatprep.subr.mxu0 0.0
  %1487 = vmatpush1.msra.mxu0 0.0
  %1488 = vmatprep.subr.mxu0 0.0
  %1489 = vmatpush1.msra.mxu0 0.0
  %1490 = vmatprep.subr.mxu0 0.0
  %1491 = vmatpush1.msra.mxu0 0.0
  %1492 = vmatprep.subr.mxu0 0.0
  %1493 = vmatpush1.msra.mxu0 0.0
  %1494 = vmatprep.mubr.f32.mxu0 0.0
  %1495 = vmatmul.mubr.f32.gmra.mrb[0].mxu0 %v1428
  %v1496 = vpop.f32.mrb[0].mxu0
  %v1497 = vadd.f32 0.0, %v1496
  %v1498 = vpop.f32.mrb[0].mxu0
  %1499 = vdwg.mxu0
  %v1500 = vmul.f32 %v1497, 0.5
  %v1501 = vadd.f32 %v1057, %v1500
  %v1503 = vsel %vm168, %v1501, 0
  %1505 = vmatprep.subr.mxu0 0.0
  %1506 = vmatpush1.msra.mxu0 %v38
  %1507 = vmatprep.subr.mxu0 0.0
  %1508 = vmatpush1.msra.mxu0 0.0
  %1509 = vmatprep.subr.mxu0 0.0
  %1510 = vmatpush1.msra.mxu0 0.0
  %1511 = vmatprep.subr.mxu0 0.0
  %1512 = vmatpush1.msra.mxu0 0.0
  %1513 = vmatprep.subr.mxu0 0.0
  %1514 = vmatpush1.msra.mxu0 0.0
  %1515 = vmatprep.subr.mxu0 0.0
  %1516 = vmatpush1.msra.mxu0 0.0
  %1517 = vmatprep.subr.mxu0 0.0
  %1518 = vmatpush1.msra.mxu0 0.0
  %1519 = vmatprep.subr.mxu0 0.0
  %1520 = vmatpush1.msra.mxu0 0.0
  %1521 = vmatprep.subr.mxu0 0.0
  %1522 = vmatpush1.msra.mxu0 0.0
  %1523 = vmatprep.subr.mxu0 0.0
  %1524 = vmatpush1.msra.mxu0 0.0
  %1525 = vmatprep.subr.mxu0 0.0
  %1526 = vmatpush1.msra.mxu0 0.0
  %1527 = vmatprep.subr.mxu0 0.0
  %1528 = vmatpush1.msra.mxu0 0.0
  %1529 = vmatprep.subr.mxu0 0.0
  %1530 = vmatpush1.msra.mxu0 0.0
  %1531 = vmatprep.subr.mxu0 0.0
  %1532 = vmatpush1.msra.mxu0 0.0
  %1533 = vmatprep.subr.mxu0 0.0
  %1534 = vmatpush1.msra.mxu0 0.0
  %1535 = vmatprep.subr.mxu0 0.0
  %1536 = vmatpush1.msra.mxu0 0.0
  %1537 = vmatprep.subr.mxu0 0.0
  %1538 = vmatpush1.msra.mxu0 0.0
  %1539 = vmatprep.subr.mxu0 0.0
  %1540 = vmatpush1.msra.mxu0 0.0
  %1541 = vmatprep.subr.mxu0 0.0
  %1542 = vmatpush1.msra.mxu0 0.0
  %1543 = vmatprep.subr.mxu0 0.0
  %1544 = vmatpush1.msra.mxu0 0.0
  %1545 = vmatprep.subr.mxu0 0.0
  %1546 = vmatpush1.msra.mxu0 0.0
  %1547 = vmatprep.subr.mxu0 0.0
  %1548 = vmatpush1.msra.mxu0 0.0
  %1549 = vmatprep.subr.mxu0 0.0
  %1550 = vmatpush1.msra.mxu0 0.0
  %1551 = vmatprep.subr.mxu0 0.0
  %1552 = vmatpush1.msra.mxu0 0.0
  %1553 = vmatprep.subr.mxu0 0.0
  %1554 = vmatpush1.msra.mxu0 0.0
  %1555 = vmatprep.subr.mxu0 0.0
  %1556 = vmatpush1.msra.mxu0 0.0
  %1557 = vmatprep.subr.mxu0 0.0
  %1558 = vmatpush1.msra.mxu0 0.0
  %1559 = vmatprep.subr.mxu0 0.0
  %1560 = vmatpush1.msra.mxu0 0.0
  %1561 = vmatprep.subr.mxu0 0.0
  %1562 = vmatpush1.msra.mxu0 0.0
  %1563 = vmatprep.subr.mxu0 0.0
  %1564 = vmatpush1.msra.mxu0 0.0
  %1565 = vmatprep.subr.mxu0 0.0
  %1566 = vmatpush1.msra.mxu0 0.0
  %1567 = vmatprep.subr.mxu0 0.0
  %1568 = vmatpush1.msra.mxu0 0.0
  %1569 = vmatprep.mubr.f32.mxu0 0.0
  %1570 = vmatmul.mubr.f32.gmra.mrb[0].mxu0 %v1503
  %v1571 = vpop.f32.mrb[0].mxu0
  %v1572 = vadd.f32 %v44, %v1571
  %v1573 = vpop.f32.mrb[0].mxu0
  %1574 = vdwg.mxu0
  %v1575 = vmax.f32 %v1572, 0.0
  %1576 = vmatprep.subr.mxu0 0.0
  %1577 = vmatpush1.msra.mxu0 %v46
  %1578 = vmatprep.subr.mxu0 0.0
  %1579 = vmatpush1.msra.mxu0 %v47
  %1580 = vmatprep.subr.mxu0 0.0
  %1581 = vmatpush1.msra.mxu0 %v48
  %1582 = vmatprep.subr.mxu0 0.0
  %1583 = vmatpush1.msra.mxu0 %v49
  %1584 = vmatprep.subr.mxu0 0.0
  %1585 = vmatpush1.msra.mxu0 %v50
  %1586 = vmatprep.subr.mxu0 0.0
  %1587 = vmatpush1.msra.mxu0 %v51
  %1588 = vmatprep.subr.mxu0 0.0
  %1589 = vmatpush1.msra.mxu0 %v52
  %1590 = vmatprep.subr.mxu0 0.0
  %1591 = vmatpush1.msra.mxu0 %v53
  %1592 = vmatprep.subr.mxu0 0.0
  %1593 = vmatpush1.msra.mxu0 %v54
  %1594 = vmatprep.subr.mxu0 0.0
  %1595 = vmatpush1.msra.mxu0 %v55
  %1596 = vmatprep.subr.mxu0 0.0
  %1597 = vmatpush1.msra.mxu0 %v56
  %1598 = vmatprep.subr.mxu0 0.0
  %1599 = vmatpush1.msra.mxu0 %v57
  %1600 = vmatprep.subr.mxu0 0.0
  %1601 = vmatpush1.msra.mxu0 %v58
  %1602 = vmatprep.subr.mxu0 0.0
  %1603 = vmatpush1.msra.mxu0 %v59
  %1604 = vmatprep.subr.mxu0 0.0
  %1605 = vmatpush1.msra.mxu0 %v60
  %1606 = vmatprep.subr.mxu0 0.0
  %1607 = vmatpush1.msra.mxu0 %v61
  %1608 = vmatprep.subr.mxu0 0.0
  %1609 = vmatpush1.msra.mxu0 0.0
  %1610 = vmatprep.subr.mxu0 0.0
  %1611 = vmatpush1.msra.mxu0 0.0
  %1612 = vmatprep.subr.mxu0 0.0
  %1613 = vmatpush1.msra.mxu0 0.0
  %1614 = vmatprep.subr.mxu0 0.0
  %1615 = vmatpush1.msra.mxu0 0.0
  %1616 = vmatprep.subr.mxu0 0.0
  %1617 = vmatpush1.msra.mxu0 0.0
  %1618 = vmatprep.subr.mxu0 0.0
  %1619 = vmatpush1.msra.mxu0 0.0
  %1620 = vmatprep.subr.mxu0 0.0
  %1621 = vmatpush1.msra.mxu0 0.0
  %1622 = vmatprep.subr.mxu0 0.0
  %1623 = vmatpush1.msra.mxu0 0.0
  %1624 = vmatprep.subr.mxu0 0.0
  %1625 = vmatpush1.msra.mxu0 0.0
  %1626 = vmatprep.subr.mxu0 0.0
  %1627 = vmatpush1.msra.mxu0 0.0
  %1628 = vmatprep.subr.mxu0 0.0
  %1629 = vmatpush1.msra.mxu0 0.0
  %1630 = vmatprep.subr.mxu0 0.0
  %1631 = vmatpush1.msra.mxu0 0.0
  %1632 = vmatprep.subr.mxu0 0.0
  %1633 = vmatpush1.msra.mxu0 0.0
  %1634 = vmatprep.subr.mxu0 0.0
  %1635 = vmatpush1.msra.mxu0 0.0
  %1636 = vmatprep.subr.mxu0 0.0
  %1637 = vmatpush1.msra.mxu0 0.0
  %1638 = vmatprep.subr.mxu0 0.0
  %1639 = vmatpush1.msra.mxu0 0.0
  %1640 = vmatprep.mubr.f32.mxu0 0.0
  %1641 = vmatmul.mubr.f32.gmra.mrb[0].mxu0 %v1575
  %v1642 = vpop.f32.mrb[0].mxu0
  %v1643 = vadd.f32 %v67, %v1642
  %v1644 = vpop.f32.mrb[0].mxu0
  %1645 = vdwg.mxu0
  %v1646 = vtanh.pop %v1643
  %v1647 = vmul.f32 %v1646, %v1059
  %v1649 = vsel %vm315, %v1647, 0
  %1651 = vmatprep.subr.mxu0 0.0
  %1652 = vmatpush1.msra.mxu0 %v69
  %1653 = vmatprep.subr.mxu0 0.0
  %1654 = vmatpush1.msra.mxu0 %v70
  %1655 = vmatprep.subr.mxu0 0.0
  %1656 = vmatpush1.msra.mxu0 %v71
  %1657 = vmatprep.subr.mxu0 0.0
  %1658 = vmatpush1.msra.mxu0 0.0
  %1659 = vmatprep.subr.mxu0 0.0
  %1660 = vmatpush1.msra.mxu0 0.0
  %1661 = vmatprep.subr.mxu0 0.0
  %1662 = vmatpush1.msra.mxu0 0.0
  %1663 = vmatprep.subr.mxu0 0.0
  %1664 = vmatpush1.msra.mxu0 0.0
  %1665 = vmatprep.subr.mxu0 0.0
  %1666 = vmatpush1.msra.mxu0 0.0
  %1667 = vmatprep.subr.mxu0 0.0
  %1668 = vmatpush1.msra.mxu0 0.0
  %1669 = vmatprep.subr.mxu0 0.0
  %1670 = vmatpush1.msra.mxu0 0.0
  %1671 = vmatprep.subr.mxu0 0.0
  %1672 = vmatpush1.msra.mxu0 0.0
  %1673 = vmatprep.subr.mxu0 0.0
  %1674 = vmatpush1.msra.mxu0 0.0
  %1675 = vmatprep.subr.mxu0 0.0
  %1676 = vmatpush1.msra.mxu0 0.0
  %1677 = vmatprep.subr.mxu0 0.0
  %1678 = vmatpush1.msra.mxu0 0.0
  %1679 = vmatprep.subr.mxu0 0.0
  %1680 = vmatpush1.msra.mxu0 0.0
  %1681 = vmatprep.subr.mxu0 0.0
  %1682 = vmatpush1.msra.mxu0 0.0
  %1683 = vmatprep.subr.mxu0 0.0
  %1684 = vmatpush1.msra.mxu0 0.0
  %1685 = vmatprep.subr.mxu0 0.0
  %1686 = vmatpush1.msra.mxu0 0.0
  %1687 = vmatprep.subr.mxu0 0.0
  %1688 = vmatpush1.msra.mxu0 0.0
  %1689 = vmatprep.subr.mxu0 0.0
  %1690 = vmatpush1.msra.mxu0 0.0
  %1691 = vmatprep.subr.mxu0 0.0
  %1692 = vmatpush1.msra.mxu0 0.0
  %1693 = vmatprep.subr.mxu0 0.0
  %1694 = vmatpush1.msra.mxu0 0.0
  %1695 = vmatprep.subr.mxu0 0.0
  %1696 = vmatpush1.msra.mxu0 0.0
  %1697 = vmatprep.subr.mxu0 0.0
  %1698 = vmatpush1.msra.mxu0 0.0
  %1699 = vmatprep.subr.mxu0 0.0
  %1700 = vmatpush1.msra.mxu0 0.0
  %1701 = vmatprep.subr.mxu0 0.0
  %1702 = vmatpush1.msra.mxu0 0.0
  %1703 = vmatprep.subr.mxu0 0.0
  %1704 = vmatpush1.msra.mxu0 0.0
  %1705 = vmatprep.subr.mxu0 0.0
  %1706 = vmatpush1.msra.mxu0 0.0
  %1707 = vmatprep.subr.mxu0 0.0
  %1708 = vmatpush1.msra.mxu0 0.0
  %1709 = vmatprep.subr.mxu0 0.0
  %1710 = vmatpush1.msra.mxu0 0.0
  %1711 = vmatprep.subr.mxu0 0.0
  %1712 = vmatpush1.msra.mxu0 0.0
  %1713 = vmatprep.subr.mxu0 0.0
  %1714 = vmatpush1.msra.mxu0 0.0
  %1715 = vmatprep.mubr.f32.mxu0 0.0
  %1716 = vmatmul.mubr.f32.gmra.mrb[0].mxu0 %v1649
  %v1717 = vpop.f32.mrb[0].mxu0
  %v1718 = vadd.f32 0.0, %v1717
  %v1719 = vpop.f32.mrb[0].mxu0
  %1720 = vdwg.mxu0
  %v1721 = vadd.f32 %v1057, %v1718
  %v1723 = vsel %vm168, %v1721, 0
  %1725 = vmatprep.subr.mxu0 0.0
  %1726 = vmatpush1.msra.mxu0 %v38
  %1727 = vmatprep.subr.mxu0 0.0
  %1728 = vmatpush1.msra.mxu0 0.0
  %1729 = vmatprep.subr.mxu0 0.0
  %1730 = vmatpush1.msra.mxu0 0.0
  %1731 = vmatprep.subr.mxu0 0.0
  %1732 = vmatpush1.msra.mxu0 0.0
  %1733 = vmatprep.subr.mxu0 0.0
  %1734 = vmatpush1.msra.mxu0 0.0
  %1735 = vmatprep.subr.mxu0 0.0
  %1736 = vmatpush1.msra.mxu0 0.0
  %1737 = vmatprep.subr.mxu0 0.0
  %1738 = vmatpush1.msra.mxu0 0.0
  %1739 = vmatprep.subr.mxu0 0.0
  %1740 = vmatpush1.msra.mxu0 0.0
  %1741 = vmatprep.subr.mxu0 0.0
  %1742 = vmatpush1.msra.mxu0 0.0
  %1743 = vmatprep.subr.mxu0 0.0
  %1744 = vmatpush1.msra.mxu0 0.0
  %1745 = vmatprep.subr.mxu0 0.0
  %1746 = vmatpush1.msra.mxu0 0.0
  %1747 = vmatprep.subr.mxu0 0.0
  %1748 = vmatpush1.msra.mxu0 0.0
  %1749 = vmatprep.subr.mxu0 0.0
  %1750 = vmatpush1.msra.mxu0 0.0
  %1751 = vmatprep.subr.mxu0 0.0
  %1752 = vmatpush1.msra.mxu0 0.0
  %1753 = vmatprep.subr.mxu0 0.0
  %1754 = vmatpush1.msra.mxu0 0.0
  %1755 = vmatprep.subr.mxu0 0.0
  %1756 = vmatpush1.msra.mxu0 0.0
  %1757 = vmatprep.subr.mxu0 0.0
  %1758 = vmatpush1.msra.mxu0 0.0
  %1759 = vmatprep.subr.mxu0 0.0
  %1760 = vmatpush1.msra.mxu0 0.0
  %1761 = vmatprep.subr.mxu0 0.0
  %1762 = vmatpush1.msra.mxu0 0.0
  %1763 = vmatprep.subr.mxu0 0.0
  %1764 = vmatpush1.msra.mxu0 0.0
  %1765 = vmatprep.subr.mxu0 0.0
  %1766 = vmatpush1.msra.mxu0 0.0
  %1767 = vmatprep.subr.mxu0 0.0
  %1768 = vmatpush1.msra.mxu0 0.0
  %1769 = vmatprep.subr.mxu0 0.0
  %1770 = vmatpush1.msra.mxu0 0.0
  %1771 = vmatprep.subr.mxu0 0.0
  %1772 = vmatpush1.msra.mxu0 0.0
  %1773 = vmatprep.subr.mxu0 0.0
  %1774 = vmatpush1.msra.mxu0 0.0
  %1775 = vmatprep.subr.mxu0 0.0
  %1776 = vmatpush1.msra.mxu0 0.0
  %1777 = vmatprep.subr.mxu0 0.0
  %1778 = vmatpush1.msra.mxu0 0.0
  %1779 = vmatprep.subr.mxu0 0.0
  %1780 = vmatpush1.msra.mxu0 0.0
  %1781 = vmatprep.subr.mxu0 0.0
  %1782 = vmatpush1.msra.mxu0 0.0
  %1783 = vmatprep.subr.mxu0 0.0
  %1784 = vmatpush1.msra.mxu0 0.0
  %1785 = vmatprep.subr.mxu0 0.0
  %1786 = vmatpush1.msra.mxu0 0.0
  %1787 = vmatprep.subr.mxu0 0.0
  %1788 = vmatpush1.msra.mxu0 0.0
  %1789 = vmatprep.mubr.f32.mxu0 0.0
  %1790 = vmatmul.mubr.f32.gmra.mrb[0].mxu0 %v1723
  %v1791 = vpop.f32.mrb[0].mxu0
  %v1792 = vadd.f32 %v44, %v1791
  %v1793 = vpop.f32.mrb[0].mxu0
  %1794 = vdwg.mxu0
  %v1795 = vmax.f32 %v1792, 0.0
  %1796 = vmatprep.subr.mxu0 0.0
  %1797 = vmatpush1.msra.mxu0 %v46
  %1798 = vmatprep.subr.mxu0 0.0
  %1799 = vmatpush1.msra.mxu0 %v47
  %1800 = vmatprep.subr.mxu0 0.0
  %1801 = vmatpush1.msra.mxu0 %v48
  %1802 = vmatprep.subr.mxu0 0.0
  %1803 = vmatpush1.msra.mxu0 %v49
  %1804 = vmatprep.subr.mxu0 0.0
  %1805 = vmatpush1.msra.mxu0 %v50
  %1806 = vmatprep.subr.mxu0 0.0
  %1807 = vmatpush1.msra.mxu0 %v51
  %1808 = vmatprep.subr.mxu0 0.0
  %1809 = vmatpush1.msra.mxu0 %v52
  %1810 = vmatprep.subr.mxu0 0.0
  %1811 = vmatpush1.msra.mxu0 %v53
  %1812 = vmatprep.subr.mxu0 0.0
  %1813 = vmatpush1.msra.mxu0 %v54
  %1814 = vmatprep.subr.mxu0 0.0
  %1815 = vmatpush1.msra.mxu0 %v55
  %1816 = vmatprep.subr.mxu0 0.0
  %1817 = vmatpush1.msra.mxu0 %v56
  %1818 = vmatprep.subr.mxu0 0.0
  %1819 = vmatpush1.msra.mxu0 %v57
  %1820 = vmatprep.subr.mxu0 0.0
  %1821 = vmatpush1.msra.mxu0 %v58
  %1822 = vmatprep.subr.mxu0 0.0
  %1823 = vmatpush1.msra.mxu0 %v59
  %1824 = vmatprep.subr.mxu0 0.0
  %1825 = vmatpush1.msra.mxu0 %v60
  %1826 = vmatprep.subr.mxu0 0.0
  %1827 = vmatpush1.msra.mxu0 %v61
  %1828 = vmatprep.subr.mxu0 0.0
  %1829 = vmatpush1.msra.mxu0 0.0
  %1830 = vmatprep.subr.mxu0 0.0
  %1831 = vmatpush1.msra.mxu0 0.0
  %1832 = vmatprep.subr.mxu0 0.0
  %1833 = vmatpush1.msra.mxu0 0.0
  %1834 = vmatprep.subr.mxu0 0.0
  %1835 = vmatpush1.msra.mxu0 0.0
  %1836 = vmatprep.subr.mxu0 0.0
  %1837 = vmatpush1.msra.mxu0 0.0
  %1838 = vmatprep.subr.mxu0 0.0
  %1839 = vmatpush1.msra.mxu0 0.0
  %1840 = vmatprep.subr.mxu0 0.0
  %1841 = vmatpush1.msra.mxu0 0.0
  %1842 = vmatprep.subr.mxu0 0.0
  %1843 = vmatpush1.msra.mxu0 0.0
  %1844 = vmatprep.subr.mxu0 0.0
  %1845 = vmatpush1.msra.mxu0 0.0
  %1846 = vmatprep.subr.mxu0 0.0
  %1847 = vmatpush1.msra.mxu0 0.0
  %1848 = vmatprep.subr.mxu0 0.0
  %1849 = vmatpush1.msra.mxu0 0.0
  %1850 = vmatprep.subr.mxu0 0.0
  %1851 = vmatpush1.msra.mxu0 0.0
  %1852 = vmatprep.subr.mxu0 0.0
  %1853 = vmatpush1.msra.mxu0 0.0
  %1854 = vmatprep.subr.mxu0 0.0
  %1855 = vmatpush1.msra.mxu0 0.0
  %1856 = vmatprep.subr.mxu0 0.0
  %1857 = vmatpush1.msra.mxu0 0.0
  %1858 = vmatprep.subr.mxu0 0.0
  %1859 = vmatpush1.msra.mxu0 0.0
  %1860 = vmatprep.mubr.f32.mxu0 0.0
  %1861 = vmatmul.mubr.f32.gmra.mrb[0].mxu0 %v1795
  %v1862 = vpop.f32.mrb[0].mxu0
  %v1863 = vadd.f32 %v67, %v1862
  %v1864 = vpop.f32.mrb[0].mxu0
  %1865 = vdwg.mxu0
  %v1866 = vtanh.pop %v1863
  %v1867 = vmul.f32 %v1866, %v1059
  %v1869 = vsel %vm315, %v1867, 0
  %1871 = vmatprep.subr.mxu0 0.0
  %1872 = vmatpush1.msra.mxu0 %v69
  %1873 = vmatprep.subr.mxu0 0.0
  %1874 = vmatpush1.msra.mxu0 %v70
  %1875 = vmatprep.subr.mxu0 0.0
  %1876 = vmatpush1.msra.mxu0 %v71
  %1877 = vmatprep.subr.mxu0 0.0
  %1878 = vmatpush1.msra.mxu0 0.0
  %1879 = vmatprep.subr.mxu0 0.0
  %1880 = vmatpush1.msra.mxu0 0.0
  %1881 = vmatprep.subr.mxu0 0.0
  %1882 = vmatpush1.msra.mxu0 0.0
  %1883 = vmatprep.subr.mxu0 0.0
  %1884 = vmatpush1.msra.mxu0 0.0
  %1885 = vmatprep.subr.mxu0 0.0
  %1886 = vmatpush1.msra.mxu0 0.0
  %1887 = vmatprep.subr.mxu0 0.0
  %1888 = vmatpush1.msra.mxu0 0.0
  %1889 = vmatprep.subr.mxu0 0.0
  %1890 = vmatpush1.msra.mxu0 0.0
  %1891 = vmatprep.subr.mxu0 0.0
  %1892 = vmatpush1.msra.mxu0 0.0
  %1893 = vmatprep.subr.mxu0 0.0
  %1894 = vmatpush1.msra.mxu0 0.0
  %1895 = vmatprep.subr.mxu0 0.0
  %1896 = vmatpush1.msra.mxu0 0.0
  %1897 = vmatprep.subr.mxu0 0.0
  %1898 = vmatpush1.msra.mxu0 0.0
  %1899 = vmatprep.subr.mxu0 0.0
  %1900 = vmatpush1.msra.mxu0 0.0
  %1901 = vmatprep.subr.mxu0 0.0
  %1902 = vmatpush1.msra.mxu0 0.0
  %1903 = vmatprep.subr.mxu0 0.0
  %1904 = vmatpush1.msra.mxu0 0.0
  %1905 = vmatprep.subr.mxu0 0.0
  %1906 = vmatpush1.msra.mxu0 0.0
  %1907 = vmatprep.subr.mxu0 0.0
  %1908 = vmatpush1.msra.mxu0 0.0
  %1909 = vmatprep.subr.mxu0 0.0
  %1910 = vmatpush1.msra.mxu0 0.0
  %1911 = vmatprep.subr.mxu0 0.0
  %1912 = vmatpush1.msra.mxu0 0.0
  %1913 = vmatprep.subr.mxu0 0.0
  %1914 = vmatpush1.msra.mxu0 0.0
  %1915 = vmatprep.subr.mxu0 0.0
  %1916 = vmatpush1.msra.mxu0 0.0
  %1917 = vmatprep.subr.mxu0 0.0
  %1918 = vmatpush1.msra.mxu0 0.0
  %1919 = vmatprep.subr.mxu0 0.0
  %1920 = vmatpush1.msra.mxu0 0.0
  %1921 = vmatprep.subr.mxu0 0.0
  %1922 = vmatpush1.msra.mxu0 0.0
  %1923 = vmatprep.subr.mxu0 0.0
  %1924 = vmatpush1.msra.mxu0 0.0
  %1925 = vmatprep.subr.mxu0 0.0
  %1926 = vmatpush1.msra.mxu0 0.0
  %1927 = vmatprep.subr.mxu0 0.0
  %1928 = vmatpush1.msra.mxu0 0.0
  %1929 = vmatprep.subr.mxu0 0.0
  %1930 = vmatpush1.msra.mxu0 0.0
  %1931 = vmatprep.subr.mxu0 0.0
  %1932 = vmatpush1.msra.mxu0 0.0
  %1933 = vmatprep.subr.mxu0 0.0
  %1934 = vmatpush1.msra.mxu0 0.0
  %1935 = vmatprep.mubr.f32.mxu0 0.0
  %1936 = vmatmul.mubr.f32.gmra.mrb[0].mxu0 %v1869
  %v1937 = vpop.f32.mrb[0].mxu0
  %v1938 = vadd.f32 0.0, %v1937
  %v1939 = vpop.f32.mrb[0].mxu0
  %1940 = vdwg.mxu0
  %v1941 = vmul.f32 %v1497, 2.0
  %v1942 = vadd.f32 %v1276, %v1941
  %v1943 = vmul.f32 %v1718, 2.0
  %v1944 = vadd.f32 %v1942, %v1943
  %v1945 = vadd.f32 %v1944, %v1938
  %v1946 = vmul.f32 %v1945, 0.16666667
  %v1947 = vadd.f32 %v1057, %v1946
  %s1948 = scalar_lea.vmem %s1, 16
  %v1949 = vld [vmem:[%s1948] sm:$0xff]
  %v1951 = vsel %vm168, %v1947, 0
  %1953 = vmatprep.subr.mxu0 0.0
  %1954 = vmatpush1.msra.mxu0 %v38
  %1955 = vmatprep.subr.mxu0 0.0
  %1956 = vmatpush1.msra.mxu0 0.0
  %1957 = vmatprep.subr.mxu0 0.0
  %1958 = vmatpush1.msra.mxu0 0.0
  %1959 = vmatprep.subr.mxu0 0.0
  %1960 = vmatpush1.msra.mxu0 0.0
  %1961 = vmatprep.subr.mxu0 0.0
  %1962 = vmatpush1.msra.mxu0 0.0
  %1963 = vmatprep.subr.mxu0 0.0
  %1964 = vmatpush1.msra.mxu0 0.0
  %1965 = vmatprep.subr.mxu0 0.0
  %1966 = vmatpush1.msra.mxu0 0.0
  %1967 = vmatprep.subr.mxu0 0.0
  %1968 = vmatpush1.msra.mxu0 0.0
  %1969 = vmatprep.subr.mxu0 0.0
  %1970 = vmatpush1.msra.mxu0 0.0
  %1971 = vmatprep.subr.mxu0 0.0
  %1972 = vmatpush1.msra.mxu0 0.0
  %1973 = vmatprep.subr.mxu0 0.0
  %1974 = vmatpush1.msra.mxu0 0.0
  %1975 = vmatprep.subr.mxu0 0.0
  %1976 = vmatpush1.msra.mxu0 0.0
  %1977 = vmatprep.subr.mxu0 0.0
  %1978 = vmatpush1.msra.mxu0 0.0
  %1979 = vmatprep.subr.mxu0 0.0
  %1980 = vmatpush1.msra.mxu0 0.0
  %1981 = vmatprep.subr.mxu0 0.0
  %1982 = vmatpush1.msra.mxu0 0.0
  %1983 = vmatprep.subr.mxu0 0.0
  %1984 = vmatpush1.msra.mxu0 0.0
  %1985 = vmatprep.subr.mxu0 0.0
  %1986 = vmatpush1.msra.mxu0 0.0
  %1987 = vmatprep.subr.mxu0 0.0
  %1988 = vmatpush1.msra.mxu0 0.0
  %1989 = vmatprep.subr.mxu0 0.0
  %1990 = vmatpush1.msra.mxu0 0.0
  %1991 = vmatprep.subr.mxu0 0.0
  %1992 = vmatpush1.msra.mxu0 0.0
  %1993 = vmatprep.subr.mxu0 0.0
  %1994 = vmatpush1.msra.mxu0 0.0
  %1995 = vmatprep.subr.mxu0 0.0
  %1996 = vmatpush1.msra.mxu0 0.0
  %1997 = vmatprep.subr.mxu0 0.0
  %1998 = vmatpush1.msra.mxu0 0.0
  %1999 = vmatprep.subr.mxu0 0.0
  %2000 = vmatpush1.msra.mxu0 0.0
  %2001 = vmatprep.subr.mxu0 0.0
  %2002 = vmatpush1.msra.mxu0 0.0
  %2003 = vmatprep.subr.mxu0 0.0
  %2004 = vmatpush1.msra.mxu0 0.0
  %2005 = vmatprep.subr.mxu0 0.0
  %2006 = vmatpush1.msra.mxu0 0.0
  %2007 = vmatprep.subr.mxu0 0.0
  %2008 = vmatpush1.msra.mxu0 0.0
  %2009 = vmatprep.subr.mxu0 0.0
  %2010 = vmatpush1.msra.mxu0 0.0
  %2011 = vmatprep.subr.mxu0 0.0
  %2012 = vmatpush1.msra.mxu0 0.0
  %2013 = vmatprep.subr.mxu0 0.0
  %2014 = vmatpush1.msra.mxu0 0.0
  %2015 = vmatprep.subr.mxu0 0.0
  %2016 = vmatpush1.msra.mxu0 0.0
  %2017 = vmatprep.mubr.f32.mxu0 0.0
  %2018 = vmatmul.mubr.f32.gmra.mrb[0].mxu0 %v1951
  %v2019 = vpop.f32.mrb[0].mxu0
  %v2020 = vadd.f32 %v44, %v2019
  %v2021 = vpop.f32.mrb[0].mxu0
  %2022 = vdwg.mxu0
  %v2023 = vmax.f32 %v2020, 0.0
  %2024 = vmatprep.subr.mxu0 0.0
  %2025 = vmatpush1.msra.mxu0 %v46
  %2026 = vmatprep.subr.mxu0 0.0
  %2027 = vmatpush1.msra.mxu0 %v47
  %2028 = vmatprep.subr.mxu0 0.0
  %2029 = vmatpush1.msra.mxu0 %v48
  %2030 = vmatprep.subr.mxu0 0.0
  %2031 = vmatpush1.msra.mxu0 %v49
  %2032 = vmatprep.subr.mxu0 0.0
  %2033 = vmatpush1.msra.mxu0 %v50
  %2034 = vmatprep.subr.mxu0 0.0
  %2035 = vmatpush1.msra.mxu0 %v51
  %2036 = vmatprep.subr.mxu0 0.0
  %2037 = vmatpush1.msra.mxu0 %v52
  %2038 = vmatprep.subr.mxu0 0.0
  %2039 = vmatpush1.msra.mxu0 %v53
  %2040 = vmatprep.subr.mxu0 0.0
  %2041 = vmatpush1.msra.mxu0 %v54
  %2042 = vmatprep.subr.mxu0 0.0
  %2043 = vmatpush1.msra.mxu0 %v55
  %2044 = vmatprep.subr.mxu0 0.0
  %2045 = vmatpush1.msra.mxu0 %v56
  %2046 = vmatprep.subr.mxu0 0.0
  %2047 = vmatpush1.msra.mxu0 %v57
  %2048 = vmatprep.subr.mxu0 0.0
  %2049 = vmatpush1.msra.mxu0 %v58
  %2050 = vmatprep.subr.mxu0 0.0
  %2051 = vmatpush1.msra.mxu0 %v59
  %2052 = vmatprep.subr.mxu0 0.0
  %2053 = vmatpush1.msra.mxu0 %v60
  %2054 = vmatprep.subr.mxu0 0.0
  %2055 = vmatpush1.msra.mxu0 %v61
  %2056 = vmatprep.subr.mxu0 0.0
  %2057 = vmatpush1.msra.mxu0 0.0
  %2058 = vmatprep.subr.mxu0 0.0
  %2059 = vmatpush1.msra.mxu0 0.0
  %2060 = vmatprep.subr.mxu0 0.0
  %2061 = vmatpush1.msra.mxu0 0.0
  %2062 = vmatprep.subr.mxu0 0.0
  %2063 = vmatpush1.msra.mxu0 0.0
  %2064 = vmatprep.subr.mxu0 0.0
  %2065 = vmatpush1.msra.mxu0 0.0
  %2066 = vmatprep.subr.mxu0 0.0
  %2067 = vmatpush1.msra.mxu0 0.0
  %2068 = vmatprep.subr.mxu0 0.0
  %2069 = vmatpush1.msra.mxu0 0.0
  %2070 = vmatprep.subr.mxu0 0.0
  %2071 = vmatpush1.msra.mxu0 0.0
  %2072 = vmatprep.subr.mxu0 0.0
  %2073 = vmatpush1.msra.mxu0 0.0
  %2074 = vmatprep.subr.mxu0 0.0
  %2075 = vmatpush1.msra.mxu0 0.0
  %2076 = vmatprep.subr.mxu0 0.0
  %2077 = vmatpush1.msra.mxu0 0.0
  %2078 = vmatprep.subr.mxu0 0.0
  %2079 = vmatpush1.msra.mxu0 0.0
  %2080 = vmatprep.subr.mxu0 0.0
  %2081 = vmatpush1.msra.mxu0 0.0
  %2082 = vmatprep.subr.mxu0 0.0
  %2083 = vmatpush1.msra.mxu0 0.0
  %2084 = vmatprep.subr.mxu0 0.0
  %2085 = vmatpush1.msra.mxu0 0.0
  %2086 = vmatprep.subr.mxu0 0.0
  %2087 = vmatpush1.msra.mxu0 0.0
  %2088 = vmatprep.mubr.f32.mxu0 0.0
  %2089 = vmatmul.mubr.f32.gmra.mrb[0].mxu0 %v2023
  %v2090 = vpop.f32.mrb[0].mxu0
  %v2091 = vadd.f32 %v67, %v2090
  %v2092 = vpop.f32.mrb[0].mxu0
  %2093 = vdwg.mxu0
  %v2094 = vtanh.pop %v2091
  %v2095 = vmul.f32 %v2094, %v1949
  %v2097 = vsel %vm315, %v2095, 0
  %2099 = vmatprep.subr.mxu0 0.0
  %2100 = vmatpush1.msra.mxu0 %v69
  %2101 = vmatprep.subr.mxu0 0.0
  %2102 = vmatpush1.msra.mxu0 %v70
  %2103 = vmatprep.subr.mxu0 0.0
  %2104 = vmatpush1.msra.mxu0 %v71
  %2105 = vmatprep.subr.mxu0 0.0
  %2106 = vmatpush1.msra.mxu0 0.0
  %2107 = vmatprep.subr.mxu0 0.0
  %2108 = vmatpush1.msra.mxu0 0.0
  %2109 = vmatprep.subr.mxu0 0.0
  %2110 = vmatpush1.msra.mxu0 0.0
  %2111 = vmatprep.subr.mxu0 0.0
  %2112 = vmatpush1.msra.mxu0 0.0
  %2113 = vmatprep.subr.mxu0 0.0
  %2114 = vmatpush1.msra.mxu0 0.0
  %2115 = vmatprep.subr.mxu0 0.0
  %2116 = vmatpush1.msra.mxu0 0.0
  %2117 = vmatprep.subr.mxu0 0.0
  %2118 = vmatpush1.msra.mxu0 0.0
  %2119 = vmatprep.subr.mxu0 0.0
  %2120 = vmatpush1.msra.mxu0 0.0
  %2121 = vmatprep.subr.mxu0 0.0
  %2122 = vmatpush1.msra.mxu0 0.0
  %2123 = vmatprep.subr.mxu0 0.0
  %2124 = vmatpush1.msra.mxu0 0.0
  %2125 = vmatprep.subr.mxu0 0.0
  %2126 = vmatpush1.msra.mxu0 0.0
  %2127 = vmatprep.subr.mxu0 0.0
  %2128 = vmatpush1.msra.mxu0 0.0
  %2129 = vmatprep.subr.mxu0 0.0
  %2130 = vmatpush1.msra.mxu0 0.0
  %2131 = vmatprep.subr.mxu0 0.0
  %2132 = vmatpush1.msra.mxu0 0.0
  %2133 = vmatprep.subr.mxu0 0.0
  %2134 = vmatpush1.msra.mxu0 0.0
  %2135 = vmatprep.subr.mxu0 0.0
  %2136 = vmatpush1.msra.mxu0 0.0
  %2137 = vmatprep.subr.mxu0 0.0
  %2138 = vmatpush1.msra.mxu0 0.0
  %2139 = vmatprep.subr.mxu0 0.0
  %2140 = vmatpush1.msra.mxu0 0.0
  %2141 = vmatprep.subr.mxu0 0.0
  %2142 = vmatpush1.msra.mxu0 0.0
  %2143 = vmatprep.subr.mxu0 0.0
  %2144 = vmatpush1.msra.mxu0 0.0
  %2145 = vmatprep.subr.mxu0 0.0
  %2146 = vmatpush1.msra.mxu0 0.0
  %2147 = vmatprep.subr.mxu0 0.0
  %2148 = vmatpush1.msra.mxu0 0.0
  %2149 = vmatprep.subr.mxu0 0.0
  %2150 = vmatpush1.msra.mxu0 0.0
  %2151 = vmatprep.subr.mxu0 0.0
  %2152 = vmatpush1.msra.mxu0 0.0
  %2153 = vmatprep.subr.mxu0 0.0
  %2154 = vmatpush1.msra.mxu0 0.0
  %2155 = vmatprep.subr.mxu0 0.0
  %2156 = vmatpush1.msra.mxu0 0.0
  %2157 = vmatprep.subr.mxu0 0.0
  %2158 = vmatpush1.msra.mxu0 0.0
  %2159 = vmatprep.subr.mxu0 0.0
  %2160 = vmatpush1.msra.mxu0 0.0
  %2161 = vmatprep.subr.mxu0 0.0
  %2162 = vmatpush1.msra.mxu0 0.0
  %2163 = vmatprep.mubr.f32.mxu0 0.0
  %2164 = vmatmul.mubr.f32.gmra.mrb[0].mxu0 %v2097
  %v2165 = vpop.f32.mrb[0].mxu0
  %v2166 = vadd.f32 0.0, %v2165
  %v2167 = vpop.f32.mrb[0].mxu0
  %2168 = vdwg.mxu0
  %v2169 = vmul.f32 %v2166, 0.5
  %v2170 = vadd.f32 %v1947, %v2169
  %v2172 = vsel %vm168, %v2170, 0
  %2174 = vmatprep.subr.mxu0 0.0
  %2175 = vmatpush1.msra.mxu0 %v38
  %2176 = vmatprep.subr.mxu0 0.0
  %2177 = vmatpush1.msra.mxu0 0.0
  %2178 = vmatprep.subr.mxu0 0.0
  %2179 = vmatpush1.msra.mxu0 0.0
  %2180 = vmatprep.subr.mxu0 0.0
  %2181 = vmatpush1.msra.mxu0 0.0
  %2182 = vmatprep.subr.mxu0 0.0
  %2183 = vmatpush1.msra.mxu0 0.0
  %2184 = vmatprep.subr.mxu0 0.0
  %2185 = vmatpush1.msra.mxu0 0.0
  %2186 = vmatprep.subr.mxu0 0.0
  %2187 = vmatpush1.msra.mxu0 0.0
  %2188 = vmatprep.subr.mxu0 0.0
  %2189 = vmatpush1.msra.mxu0 0.0
  %2190 = vmatprep.subr.mxu0 0.0
  %2191 = vmatpush1.msra.mxu0 0.0
  %2192 = vmatprep.subr.mxu0 0.0
  %2193 = vmatpush1.msra.mxu0 0.0
  %2194 = vmatprep.subr.mxu0 0.0
  %2195 = vmatpush1.msra.mxu0 0.0
  %2196 = vmatprep.subr.mxu0 0.0
  %2197 = vmatpush1.msra.mxu0 0.0
  %2198 = vmatprep.subr.mxu0 0.0
  %2199 = vmatpush1.msra.mxu0 0.0
  %2200 = vmatprep.subr.mxu0 0.0
  %2201 = vmatpush1.msra.mxu0 0.0
  %2202 = vmatprep.subr.mxu0 0.0
  %2203 = vmatpush1.msra.mxu0 0.0
  %2204 = vmatprep.subr.mxu0 0.0
  %2205 = vmatpush1.msra.mxu0 0.0
  %2206 = vmatprep.subr.mxu0 0.0
  %2207 = vmatpush1.msra.mxu0 0.0
  %2208 = vmatprep.subr.mxu0 0.0
  %2209 = vmatpush1.msra.mxu0 0.0
  %2210 = vmatprep.subr.mxu0 0.0
  %2211 = vmatpush1.msra.mxu0 0.0
  %2212 = vmatprep.subr.mxu0 0.0
  %2213 = vmatpush1.msra.mxu0 0.0
  %2214 = vmatprep.subr.mxu0 0.0
  %2215 = vmatpush1.msra.mxu0 0.0
  %2216 = vmatprep.subr.mxu0 0.0
  %2217 = vmatpush1.msra.mxu0 0.0
  %2218 = vmatprep.subr.mxu0 0.0
  %2219 = vmatpush1.msra.mxu0 0.0
  %2220 = vmatprep.subr.mxu0 0.0
  %2221 = vmatpush1.msra.mxu0 0.0
  %2222 = vmatprep.subr.mxu0 0.0
  %2223 = vmatpush1.msra.mxu0 0.0
  %2224 = vmatprep.subr.mxu0 0.0
  %2225 = vmatpush1.msra.mxu0 0.0
  %2226 = vmatprep.subr.mxu0 0.0
  %2227 = vmatpush1.msra.mxu0 0.0
  %2228 = vmatprep.subr.mxu0 0.0
  %2229 = vmatpush1.msra.mxu0 0.0
  %2230 = vmatprep.subr.mxu0 0.0
  %2231 = vmatpush1.msra.mxu0 0.0
  %2232 = vmatprep.subr.mxu0 0.0
  %2233 = vmatpush1.msra.mxu0 0.0
  %2234 = vmatprep.subr.mxu0 0.0
  %2235 = vmatpush1.msra.mxu0 0.0
  %2236 = vmatprep.subr.mxu0 0.0
  %2237 = vmatpush1.msra.mxu0 0.0
  %2238 = vmatprep.mubr.f32.mxu0 0.0
  %2239 = vmatmul.mubr.f32.gmra.mrb[0].mxu0 %v2172
  %v2240 = vpop.f32.mrb[0].mxu0
  %v2241 = vadd.f32 %v44, %v2240
  %v2242 = vpop.f32.mrb[0].mxu0
  %2243 = vdwg.mxu0
  %v2244 = vmax.f32 %v2241, 0.0
  %2245 = vmatprep.subr.mxu0 0.0
  %2246 = vmatpush1.msra.mxu0 %v46
  %2247 = vmatprep.subr.mxu0 0.0
  %2248 = vmatpush1.msra.mxu0 %v47
  %2249 = vmatprep.subr.mxu0 0.0
  %2250 = vmatpush1.msra.mxu0 %v48
  %2251 = vmatprep.subr.mxu0 0.0
  %2252 = vmatpush1.msra.mxu0 %v49
  %2253 = vmatprep.subr.mxu0 0.0
  %2254 = vmatpush1.msra.mxu0 %v50
  %2255 = vmatprep.subr.mxu0 0.0
  %2256 = vmatpush1.msra.mxu0 %v51
  %2257 = vmatprep.subr.mxu0 0.0
  %2258 = vmatpush1.msra.mxu0 %v52
  %2259 = vmatprep.subr.mxu0 0.0
  %2260 = vmatpush1.msra.mxu0 %v53
  %2261 = vmatprep.subr.mxu0 0.0
  %2262 = vmatpush1.msra.mxu0 %v54
  %2263 = vmatprep.subr.mxu0 0.0
  %2264 = vmatpush1.msra.mxu0 %v55
  %2265 = vmatprep.subr.mxu0 0.0
  %2266 = vmatpush1.msra.mxu0 %v56
  %2267 = vmatprep.subr.mxu0 0.0
  %2268 = vmatpush1.msra.mxu0 %v57
  %2269 = vmatprep.subr.mxu0 0.0
  %2270 = vmatpush1.msra.mxu0 %v58
  %2271 = vmatprep.subr.mxu0 0.0
  %2272 = vmatpush1.msra.mxu0 %v59
  %2273 = vmatprep.subr.mxu0 0.0
  %2274 = vmatpush1.msra.mxu0 %v60
  %2275 = vmatprep.subr.mxu0 0.0
  %2276 = vmatpush1.msra.mxu0 %v61
  %2277 = vmatprep.subr.mxu0 0.0
  %2278 = vmatpush1.msra.mxu0 0.0
  %2279 = vmatprep.subr.mxu0 0.0
  %2280 = vmatpush1.msra.mxu0 0.0
  %2281 = vmatprep.subr.mxu0 0.0
  %2282 = vmatpush1.msra.mxu0 0.0
  %2283 = vmatprep.subr.mxu0 0.0
  %2284 = vmatpush1.msra.mxu0 0.0
  %2285 = vmatprep.subr.mxu0 0.0
  %2286 = vmatpush1.msra.mxu0 0.0
  %2287 = vmatprep.subr.mxu0 0.0
  %2288 = vmatpush1.msra.mxu0 0.0
  %2289 = vmatprep.subr.mxu0 0.0
  %2290 = vmatpush1.msra.mxu0 0.0
  %2291 = vmatprep.subr.mxu0 0.0
  %2292 = vmatpush1.msra.mxu0 0.0
  %2293 = vmatprep.subr.mxu0 0.0
  %2294 = vmatpush1.msra.mxu0 0.0
  %2295 = vmatprep.subr.mxu0 0.0
  %2296 = vmatpush1.msra.mxu0 0.0
  %2297 = vmatprep.subr.mxu0 0.0
  %2298 = vmatpush1.msra.mxu0 0.0
  %2299 = vmatprep.subr.mxu0 0.0
  %2300 = vmatpush1.msra.mxu0 0.0
  %2301 = vmatprep.subr.mxu0 0.0
  %2302 = vmatpush1.msra.mxu0 0.0
  %2303 = vmatprep.subr.mxu0 0.0
  %2304 = vmatpush1.msra.mxu0 0.0
  %2305 = vmatprep.subr.mxu0 0.0
  %2306 = vmatpush1.msra.mxu0 0.0
  %2307 = vmatprep.subr.mxu0 0.0
  %2308 = vmatpush1.msra.mxu0 0.0
  %2309 = vmatprep.mubr.f32.mxu0 0.0
  %2310 = vmatmul.mubr.f32.gmra.mrb[0].mxu0 %v2244
  %v2311 = vpop.f32.mrb[0].mxu0
  %v2312 = vadd.f32 %v67, %v2311
  %v2313 = vpop.f32.mrb[0].mxu0
  %2314 = vdwg.mxu0
  %v2315 = vtanh.pop %v2312
  %v2316 = vmul.f32 %v2315, %v1949
  %v2318 = vsel %vm315, %v2316, 0
  %2320 = vmatprep.subr.mxu0 0.0
  %2321 = vmatpush1.msra.mxu0 %v69
  %2322 = vmatprep.subr.mxu0 0.0
  %2323 = vmatpush1.msra.mxu0 %v70
  %2324 = vmatprep.subr.mxu0 0.0
  %2325 = vmatpush1.msra.mxu0 %v71
  %2326 = vmatprep.subr.mxu0 0.0
  %2327 = vmatpush1.msra.mxu0 0.0
  %2328 = vmatprep.subr.mxu0 0.0
  %2329 = vmatpush1.msra.mxu0 0.0
  %2330 = vmatprep.subr.mxu0 0.0
  %2331 = vmatpush1.msra.mxu0 0.0
  %2332 = vmatprep.subr.mxu0 0.0
  %2333 = vmatpush1.msra.mxu0 0.0
  %2334 = vmatprep.subr.mxu0 0.0
  %2335 = vmatpush1.msra.mxu0 0.0
  %2336 = vmatprep.subr.mxu0 0.0
  %2337 = vmatpush1.msra.mxu0 0.0
  %2338 = vmatprep.subr.mxu0 0.0
  %2339 = vmatpush1.msra.mxu0 0.0
  %2340 = vmatprep.subr.mxu0 0.0
  %2341 = vmatpush1.msra.mxu0 0.0
  %2342 = vmatprep.subr.mxu0 0.0
  %2343 = vmatpush1.msra.mxu0 0.0
  %2344 = vmatprep.subr.mxu0 0.0
  %2345 = vmatpush1.msra.mxu0 0.0
  %2346 = vmatprep.subr.mxu0 0.0
  %2347 = vmatpush1.msra.mxu0 0.0
  %2348 = vmatprep.subr.mxu0 0.0
  %2349 = vmatpush1.msra.mxu0 0.0
  %2350 = vmatprep.subr.mxu0 0.0
  %2351 = vmatpush1.msra.mxu0 0.0
  %2352 = vmatprep.subr.mxu0 0.0
  %2353 = vmatpush1.msra.mxu0 0.0
  %2354 = vmatprep.subr.mxu0 0.0
  %2355 = vmatpush1.msra.mxu0 0.0
  %2356 = vmatprep.subr.mxu0 0.0
  %2357 = vmatpush1.msra.mxu0 0.0
  %2358 = vmatprep.subr.mxu0 0.0
  %2359 = vmatpush1.msra.mxu0 0.0
  %2360 = vmatprep.subr.mxu0 0.0
  %2361 = vmatpush1.msra.mxu0 0.0
  %2362 = vmatprep.subr.mxu0 0.0
  %2363 = vmatpush1.msra.mxu0 0.0
  %2364 = vmatprep.subr.mxu0 0.0
  %2365 = vmatpush1.msra.mxu0 0.0
  %2366 = vmatprep.subr.mxu0 0.0
  %2367 = vmatpush1.msra.mxu0 0.0
  %2368 = vmatprep.subr.mxu0 0.0
  %2369 = vmatpush1.msra.mxu0 0.0
  %2370 = vmatprep.subr.mxu0 0.0
  %2371 = vmatpush1.msra.mxu0 0.0
  %2372 = vmatprep.subr.mxu0 0.0
  %2373 = vmatpush1.msra.mxu0 0.0
  %2374 = vmatprep.subr.mxu0 0.0
  %2375 = vmatpush1.msra.mxu0 0.0
  %2376 = vmatprep.subr.mxu0 0.0
  %2377 = vmatpush1.msra.mxu0 0.0
  %2378 = vmatprep.subr.mxu0 0.0
  %2379 = vmatpush1.msra.mxu0 0.0
  %2380 = vmatprep.subr.mxu0 0.0
  %2381 = vmatpush1.msra.mxu0 0.0
  %2382 = vmatprep.subr.mxu0 0.0
  %2383 = vmatpush1.msra.mxu0 0.0
  %2384 = vmatprep.mubr.f32.mxu0 0.0
  %2385 = vmatmul.mubr.f32.gmra.mrb[0].mxu0 %v2318
  %v2386 = vpop.f32.mrb[0].mxu0
  %v2387 = vadd.f32 0.0, %v2386
  %v2388 = vpop.f32.mrb[0].mxu0
  %2389 = vdwg.mxu0
  %v2390 = vmul.f32 %v2387, 0.5
  %v2391 = vadd.f32 %v1947, %v2390
  %v2393 = vsel %vm168, %v2391, 0
  %2395 = vmatprep.subr.mxu0 0.0
  %2396 = vmatpush1.msra.mxu0 %v38
  %2397 = vmatprep.subr.mxu0 0.0
  %2398 = vmatpush1.msra.mxu0 0.0
  %2399 = vmatprep.subr.mxu0 0.0
  %2400 = vmatpush1.msra.mxu0 0.0
  %2401 = vmatprep.subr.mxu0 0.0
  %2402 = vmatpush1.msra.mxu0 0.0
  %2403 = vmatprep.subr.mxu0 0.0
  %2404 = vmatpush1.msra.mxu0 0.0
  %2405 = vmatprep.subr.mxu0 0.0
  %2406 = vmatpush1.msra.mxu0 0.0
  %2407 = vmatprep.subr.mxu0 0.0
  %2408 = vmatpush1.msra.mxu0 0.0
  %2409 = vmatprep.subr.mxu0 0.0
  %2410 = vmatpush1.msra.mxu0 0.0
  %2411 = vmatprep.subr.mxu0 0.0
  %2412 = vmatpush1.msra.mxu0 0.0
  %2413 = vmatprep.subr.mxu0 0.0
  %2414 = vmatpush1.msra.mxu0 0.0
  %2415 = vmatprep.subr.mxu0 0.0
  %2416 = vmatpush1.msra.mxu0 0.0
  %2417 = vmatprep.subr.mxu0 0.0
  %2418 = vmatpush1.msra.mxu0 0.0
  %2419 = vmatprep.subr.mxu0 0.0
  %2420 = vmatpush1.msra.mxu0 0.0
  %2421 = vmatprep.subr.mxu0 0.0
  %2422 = vmatpush1.msra.mxu0 0.0
  %2423 = vmatprep.subr.mxu0 0.0
  %2424 = vmatpush1.msra.mxu0 0.0
  %2425 = vmatprep.subr.mxu0 0.0
  %2426 = vmatpush1.msra.mxu0 0.0
  %2427 = vmatprep.subr.mxu0 0.0
  %2428 = vmatpush1.msra.mxu0 0.0
  %2429 = vmatprep.subr.mxu0 0.0
  %2430 = vmatpush1.msra.mxu0 0.0
  %2431 = vmatprep.subr.mxu0 0.0
  %2432 = vmatpush1.msra.mxu0 0.0
  %2433 = vmatprep.subr.mxu0 0.0
  %2434 = vmatpush1.msra.mxu0 0.0
  %2435 = vmatprep.subr.mxu0 0.0
  %2436 = vmatpush1.msra.mxu0 0.0
  %2437 = vmatprep.subr.mxu0 0.0
  %2438 = vmatpush1.msra.mxu0 0.0
  %2439 = vmatprep.subr.mxu0 0.0
  %2440 = vmatpush1.msra.mxu0 0.0
  %2441 = vmatprep.subr.mxu0 0.0
  %2442 = vmatpush1.msra.mxu0 0.0
  %2443 = vmatprep.subr.mxu0 0.0
  %2444 = vmatpush1.msra.mxu0 0.0
  %2445 = vmatprep.subr.mxu0 0.0
  %2446 = vmatpush1.msra.mxu0 0.0
  %2447 = vmatprep.subr.mxu0 0.0
  %2448 = vmatpush1.msra.mxu0 0.0
  %2449 = vmatprep.subr.mxu0 0.0
  %2450 = vmatpush1.msra.mxu0 0.0
  %2451 = vmatprep.subr.mxu0 0.0
  %2452 = vmatpush1.msra.mxu0 0.0
  %2453 = vmatprep.subr.mxu0 0.0
  %2454 = vmatpush1.msra.mxu0 0.0
  %2455 = vmatprep.subr.mxu0 0.0
  %2456 = vmatpush1.msra.mxu0 0.0
  %2457 = vmatprep.subr.mxu0 0.0
  %2458 = vmatpush1.msra.mxu0 0.0
  %2459 = vmatprep.mubr.f32.mxu0 0.0
  %2460 = vmatmul.mubr.f32.gmra.mrb[0].mxu0 %v2393
  %v2461 = vpop.f32.mrb[0].mxu0
  %v2462 = vadd.f32 %v44, %v2461
  %v2463 = vpop.f32.mrb[0].mxu0
  %2464 = vdwg.mxu0
  %v2465 = vmax.f32 %v2462, 0.0
  %2466 = vmatprep.subr.mxu0 0.0
  %2467 = vmatpush1.msra.mxu0 %v46
  %2468 = vmatprep.subr.mxu0 0.0
  %2469 = vmatpush1.msra.mxu0 %v47
  %2470 = vmatprep.subr.mxu0 0.0
  %2471 = vmatpush1.msra.mxu0 %v48
  %2472 = vmatprep.subr.mxu0 0.0
  %2473 = vmatpush1.msra.mxu0 %v49
  %2474 = vmatprep.subr.mxu0 0.0
  %2475 = vmatpush1.msra.mxu0 %v50
  %2476 = vmatprep.subr.mxu0 0.0
  %2477 = vmatpush1.msra.mxu0 %v51
  %2478 = vmatprep.subr.mxu0 0.0
  %2479 = vmatpush1.msra.mxu0 %v52
  %2480 = vmatprep.subr.mxu0 0.0
  %2481 = vmatpush1.msra.mxu0 %v53
  %2482 = vmatprep.subr.mxu0 0.0
  %2483 = vmatpush1.msra.mxu0 %v54
  %2484 = vmatprep.subr.mxu0 0.0
  %2485 = vmatpush1.msra.mxu0 %v55
  %2486 = vmatprep.subr.mxu0 0.0
  %2487 = vmatpush1.msra.mxu0 %v56
  %2488 = vmatprep.subr.mxu0 0.0
  %2489 = vmatpush1.msra.mxu0 %v57
  %2490 = vmatprep.subr.mxu0 0.0
  %2491 = vmatpush1.msra.mxu0 %v58
  %2492 = vmatprep.subr.mxu0 0.0
  %2493 = vmatpush1.msra.mxu0 %v59
  %2494 = vmatprep.subr.mxu0 0.0
  %2495 = vmatpush1.msra.mxu0 %v60
  %2496 = vmatprep.subr.mxu0 0.0
  %2497 = vmatpush1.msra.mxu0 %v61
  %2498 = vmatprep.subr.mxu0 0.0
  %2499 = vmatpush1.msra.mxu0 0.0
  %2500 = vmatprep.subr.mxu0 0.0
  %2501 = vmatpush1.msra.mxu0 0.0
  %2502 = vmatprep.subr.mxu0 0.0
  %2503 = vmatpush1.msra.mxu0 0.0
  %2504 = vmatprep.subr.mxu0 0.0
  %2505 = vmatpush1.msra.mxu0 0.0
  %2506 = vmatprep.subr.mxu0 0.0
  %2507 = vmatpush1.msra.mxu0 0.0
  %2508 = vmatprep.subr.mxu0 0.0
  %2509 = vmatpush1.msra.mxu0 0.0
  %2510 = vmatprep.subr.mxu0 0.0
  %2511 = vmatpush1.msra.mxu0 0.0
  %2512 = vmatprep.subr.mxu0 0.0
  %2513 = vmatpush1.msra.mxu0 0.0
  %2514 = vmatprep.subr.mxu0 0.0
  %2515 = vmatpush1.msra.mxu0 0.0
  %2516 = vmatprep.subr.mxu0 0.0
  %2517 = vmatpush1.msra.mxu0 0.0
  %2518 = vmatprep.subr.mxu0 0.0
  %2519 = vmatpush1.msra.mxu0 0.0
  %2520 = vmatprep.subr.mxu0 0.0
  %2521 = vmatpush1.msra.mxu0 0.0
  %2522 = vmatprep.subr.mxu0 0.0
  %2523 = vmatpush1.msra.mxu0 0.0
  %2524 = vmatprep.subr.mxu0 0.0
  %2525 = vmatpush1.msra.mxu0 0.0
  %2526 = vmatprep.subr.mxu0 0.0
  %2527 = vmatpush1.msra.mxu0 0.0
  %2528 = vmatprep.subr.mxu0 0.0
  %2529 = vmatpush1.msra.mxu0 0.0
  %2530 = vmatprep.mubr.f32.mxu0 0.0
  %2531 = vmatmul.mubr.f32.gmra.mrb[0].mxu0 %v2465
  %v2532 = vpop.f32.mrb[0].mxu0
  %v2533 = vadd.f32 %v67, %v2532
  %v2534 = vpop.f32.mrb[0].mxu0
  %2535 = vdwg.mxu0
  %v2536 = vtanh.pop %v2533
  %v2537 = vmul.f32 %v2536, %v1949
  %v2539 = vsel %vm315, %v2537, 0
  %2541 = vmatprep.subr.mxu0 0.0
  %2542 = vmatpush1.msra.mxu0 %v69
  %2543 = vmatprep.subr.mxu0 0.0
  %2544 = vmatpush1.msra.mxu0 %v70
  %2545 = vmatprep.subr.mxu0 0.0
  %2546 = vmatpush1.msra.mxu0 %v71
  %2547 = vmatprep.subr.mxu0 0.0
  %2548 = vmatpush1.msra.mxu0 0.0
  %2549 = vmatprep.subr.mxu0 0.0
  %2550 = vmatpush1.msra.mxu0 0.0
  %2551 = vmatprep.subr.mxu0 0.0
  %2552 = vmatpush1.msra.mxu0 0.0
  %2553 = vmatprep.subr.mxu0 0.0
  %2554 = vmatpush1.msra.mxu0 0.0
  %2555 = vmatprep.subr.mxu0 0.0
  %2556 = vmatpush1.msra.mxu0 0.0
  %2557 = vmatprep.subr.mxu0 0.0
  %2558 = vmatpush1.msra.mxu0 0.0
  %2559 = vmatprep.subr.mxu0 0.0
  %2560 = vmatpush1.msra.mxu0 0.0
  %2561 = vmatprep.subr.mxu0 0.0
  %2562 = vmatpush1.msra.mxu0 0.0
  %2563 = vmatprep.subr.mxu0 0.0
  %2564 = vmatpush1.msra.mxu0 0.0
  %2565 = vmatprep.subr.mxu0 0.0
  %2566 = vmatpush1.msra.mxu0 0.0
  %2567 = vmatprep.subr.mxu0 0.0
  %2568 = vmatpush1.msra.mxu0 0.0
  %2569 = vmatprep.subr.mxu0 0.0
  %2570 = vmatpush1.msra.mxu0 0.0
  %2571 = vmatprep.subr.mxu0 0.0
  %2572 = vmatpush1.msra.mxu0 0.0
  %2573 = vmatprep.subr.mxu0 0.0
  %2574 = vmatpush1.msra.mxu0 0.0
  %2575 = vmatprep.subr.mxu0 0.0
  %2576 = vmatpush1.msra.mxu0 0.0
  %2577 = vmatprep.subr.mxu0 0.0
  %2578 = vmatpush1.msra.mxu0 0.0
  %2579 = vmatprep.subr.mxu0 0.0
  %2580 = vmatpush1.msra.mxu0 0.0
  %2581 = vmatprep.subr.mxu0 0.0
  %2582 = vmatpush1.msra.mxu0 0.0
  %2583 = vmatprep.subr.mxu0 0.0
  %2584 = vmatpush1.msra.mxu0 0.0
  %2585 = vmatprep.subr.mxu0 0.0
  %2586 = vmatpush1.msra.mxu0 0.0
  %2587 = vmatprep.subr.mxu0 0.0
  %2588 = vmatpush1.msra.mxu0 0.0
  %2589 = vmatprep.subr.mxu0 0.0
  %2590 = vmatpush1.msra.mxu0 0.0
  %2591 = vmatprep.subr.mxu0 0.0
  %2592 = vmatpush1.msra.mxu0 0.0
  %2593 = vmatprep.subr.mxu0 0.0
  %2594 = vmatpush1.msra.mxu0 0.0
  %2595 = vmatprep.subr.mxu0 0.0
  %2596 = vmatpush1.msra.mxu0 0.0
  %2597 = vmatprep.subr.mxu0 0.0
  %2598 = vmatpush1.msra.mxu0 0.0
  %2599 = vmatprep.subr.mxu0 0.0
  %2600 = vmatpush1.msra.mxu0 0.0
  %2601 = vmatprep.subr.mxu0 0.0
  %2602 = vmatpush1.msra.mxu0 0.0
  %2603 = vmatprep.subr.mxu0 0.0
  %2604 = vmatpush1.msra.mxu0 0.0
  %2605 = vmatprep.mubr.f32.mxu0 0.0
  %2606 = vmatmul.mubr.f32.gmra.mrb[0].mxu0 %v2539
  %v2607 = vpop.f32.mrb[0].mxu0
  %v2608 = vadd.f32 0.0, %v2607
  %v2609 = vpop.f32.mrb[0].mxu0
  %2610 = vdwg.mxu0
  %v2611 = vadd.f32 %v1947, %v2608
  %v2613 = vsel %vm168, %v2611, 0
  %2615 = vmatprep.subr.mxu0 0.0
  %2616 = vmatpush1.msra.mxu0 %v38
  %2617 = vmatprep.subr.mxu0 0.0
  %2618 = vmatpush1.msra.mxu0 0.0
  %2619 = vmatprep.subr.mxu0 0.0
  %2620 = vmatpush1.msra.mxu0 0.0
  %2621 = vmatprep.subr.mxu0 0.0
  %2622 = vmatpush1.msra.mxu0 0.0
  %2623 = vmatprep.subr.mxu0 0.0
  %2624 = vmatpush1.msra.mxu0 0.0
  %2625 = vmatprep.subr.mxu0 0.0
  %2626 = vmatpush1.msra.mxu0 0.0
  %2627 = vmatprep.subr.mxu0 0.0
  %2628 = vmatpush1.msra.mxu0 0.0
  %2629 = vmatprep.subr.mxu0 0.0
  %2630 = vmatpush1.msra.mxu0 0.0
  %2631 = vmatprep.subr.mxu0 0.0
  %2632 = vmatpush1.msra.mxu0 0.0
  %2633 = vmatprep.subr.mxu0 0.0
  %2634 = vmatpush1.msra.mxu0 0.0
  %2635 = vmatprep.subr.mxu0 0.0
  %2636 = vmatpush1.msra.mxu0 0.0
  %2637 = vmatprep.subr.mxu0 0.0
  %2638 = vmatpush1.msra.mxu0 0.0
  %2639 = vmatprep.subr.mxu0 0.0
  %2640 = vmatpush1.msra.mxu0 0.0
  %2641 = vmatprep.subr.mxu0 0.0
  %2642 = vmatpush1.msra.mxu0 0.0
  %2643 = vmatprep.subr.mxu0 0.0
  %2644 = vmatpush1.msra.mxu0 0.0
  %2645 = vmatprep.subr.mxu0 0.0
  %2646 = vmatpush1.msra.mxu0 0.0
  %2647 = vmatprep.subr.mxu0 0.0
  %2648 = vmatpush1.msra.mxu0 0.0
  %2649 = vmatprep.subr.mxu0 0.0
  %2650 = vmatpush1.msra.mxu0 0.0
  %2651 = vmatprep.subr.mxu0 0.0
  %2652 = vmatpush1.msra.mxu0 0.0
  %2653 = vmatprep.subr.mxu0 0.0
  %2654 = vmatpush1.msra.mxu0 0.0
  %2655 = vmatprep.subr.mxu0 0.0
  %2656 = vmatpush1.msra.mxu0 0.0
  %2657 = vmatprep.subr.mxu0 0.0
  %2658 = vmatpush1.msra.mxu0 0.0
  %2659 = vmatprep.subr.mxu0 0.0
  %2660 = vmatpush1.msra.mxu0 0.0
  %2661 = vmatprep.subr.mxu0 0.0
  %2662 = vmatpush1.msra.mxu0 0.0
  %2663 = vmatprep.subr.mxu0 0.0
  %2664 = vmatpush1.msra.mxu0 0.0
  %2665 = vmatprep.subr.mxu0 0.0
  %2666 = vmatpush1.msra.mxu0 0.0
  %2667 = vmatprep.subr.mxu0 0.0
  %2668 = vmatpush1.msra.mxu0 0.0
  %2669 = vmatprep.subr.mxu0 0.0
  %2670 = vmatpush1.msra.mxu0 0.0
  %2671 = vmatprep.subr.mxu0 0.0
  %2672 = vmatpush1.msra.mxu0 0.0
  %2673 = vmatprep.subr.mxu0 0.0
  %2674 = vmatpush1.msra.mxu0 0.0
  %2675 = vmatprep.subr.mxu0 0.0
  %2676 = vmatpush1.msra.mxu0 0.0
  %2677 = vmatprep.subr.mxu0 0.0
  %2678 = vmatpush1.msra.mxu0 0.0
  %2679 = vmatprep.mubr.f32.mxu0 0.0
  %2680 = vmatmul.mubr.f32.gmra.mrb[0].mxu0 %v2613
  %v2681 = vpop.f32.mrb[0].mxu0
  %v2682 = vadd.f32 %v44, %v2681
  %v2683 = vpop.f32.mrb[0].mxu0
  %2684 = vdwg.mxu0
  %v2685 = vmax.f32 %v2682, 0.0
  %2686 = vmatprep.subr.mxu0 0.0
  %2687 = vmatpush1.msra.mxu0 %v46
  %2688 = vmatprep.subr.mxu0 0.0
  %2689 = vmatpush1.msra.mxu0 %v47
  %2690 = vmatprep.subr.mxu0 0.0
  %2691 = vmatpush1.msra.mxu0 %v48
  %2692 = vmatprep.subr.mxu0 0.0
  %2693 = vmatpush1.msra.mxu0 %v49
  %2694 = vmatprep.subr.mxu0 0.0
  %2695 = vmatpush1.msra.mxu0 %v50
  %2696 = vmatprep.subr.mxu0 0.0
  %2697 = vmatpush1.msra.mxu0 %v51
  %2698 = vmatprep.subr.mxu0 0.0
  %2699 = vmatpush1.msra.mxu0 %v52
  %2700 = vmatprep.subr.mxu0 0.0
  %2701 = vmatpush1.msra.mxu0 %v53
  %2702 = vmatprep.subr.mxu0 0.0
  %2703 = vmatpush1.msra.mxu0 %v54
  %2704 = vmatprep.subr.mxu0 0.0
  %2705 = vmatpush1.msra.mxu0 %v55
  %2706 = vmatprep.subr.mxu0 0.0
  %2707 = vmatpush1.msra.mxu0 %v56
  %2708 = vmatprep.subr.mxu0 0.0
  %2709 = vmatpush1.msra.mxu0 %v57
  %2710 = vmatprep.subr.mxu0 0.0
  %2711 = vmatpush1.msra.mxu0 %v58
  %2712 = vmatprep.subr.mxu0 0.0
  %2713 = vmatpush1.msra.mxu0 %v59
  %2714 = vmatprep.subr.mxu0 0.0
  %2715 = vmatpush1.msra.mxu0 %v60
  %2716 = vmatprep.subr.mxu0 0.0
  %2717 = vmatpush1.msra.mxu0 %v61
  %2718 = vmatprep.subr.mxu0 0.0
  %2719 = vmatpush1.msra.mxu0 0.0
  %2720 = vmatprep.subr.mxu0 0.0
  %2721 = vmatpush1.msra.mxu0 0.0
  %2722 = vmatprep.subr.mxu0 0.0
  %2723 = vmatpush1.msra.mxu0 0.0
  %2724 = vmatprep.subr.mxu0 0.0
  %2725 = vmatpush1.msra.mxu0 0.0
  %2726 = vmatprep.subr.mxu0 0.0
  %2727 = vmatpush1.msra.mxu0 0.0
  %2728 = vmatprep.subr.mxu0 0.0
  %2729 = vmatpush1.msra.mxu0 0.0
  %2730 = vmatprep.subr.mxu0 0.0
  %2731 = vmatpush1.msra.mxu0 0.0
  %2732 = vmatprep.subr.mxu0 0.0
  %2733 = vmatpush1.msra.mxu0 0.0
  %2734 = vmatprep.subr.mxu0 0.0
  %2735 = vmatpush1.msra.mxu0 0.0
  %2736 = vmatprep.subr.mxu0 0.0
  %2737 = vmatpush1.msra.mxu0 0.0
  %2738 = vmatprep.subr.mxu0 0.0
  %2739 = vmatpush1.msra.mxu0 0.0
  %2740 = vmatprep.subr.mxu0 0.0
  %2741 = vmatpush1.msra.mxu0 0.0
  %2742 = vmatprep.subr.mxu0 0.0
  %2743 = vmatpush1.msra.mxu0 0.0
  %2744 = vmatprep.subr.mxu0 0.0
  %2745 = vmatpush1.msra.mxu0 0.0
  %2746 = vmatprep.subr.mxu0 0.0
  %2747 = vmatpush1.msra.mxu0 0.0
  %2748 = vmatprep.subr.mxu0 0.0
  %2749 = vmatpush1.msra.mxu0 0.0
  %2750 = vmatprep.mubr.f32.mxu0 0.0
  %2751 = vmatmul.mubr.f32.gmra.mrb[0].mxu0 %v2685
  %v2752 = vpop.f32.mrb[0].mxu0
  %v2753 = vadd.f32 %v67, %v2752
  %v2754 = vpop.f32.mrb[0].mxu0
  %2755 = vdwg.mxu0
  %v2756 = vtanh.pop %v2753
  %v2757 = vmul.f32 %v2756, %v1949
  %v2759 = vsel %vm315, %v2757, 0
  %2761 = vmatprep.subr.mxu0 0.0
  %2762 = vmatpush1.msra.mxu0 %v69
  %2763 = vmatprep.subr.mxu0 0.0
  %2764 = vmatpush1.msra.mxu0 %v70
  %2765 = vmatprep.subr.mxu0 0.0
  %2766 = vmatpush1.msra.mxu0 %v71
  %2767 = vmatprep.subr.mxu0 0.0
  %2768 = vmatpush1.msra.mxu0 0.0
  %2769 = vmatprep.subr.mxu0 0.0
  %2770 = vmatpush1.msra.mxu0 0.0
  %2771 = vmatprep.subr.mxu0 0.0
  %2772 = vmatpush1.msra.mxu0 0.0
  %2773 = vmatprep.subr.mxu0 0.0
  %2774 = vmatpush1.msra.mxu0 0.0
  %2775 = vmatprep.subr.mxu0 0.0
  %2776 = vmatpush1.msra.mxu0 0.0
  %2777 = vmatprep.subr.mxu0 0.0
  %2778 = vmatpush1.msra.mxu0 0.0
  %2779 = vmatprep.subr.mxu0 0.0
  %2780 = vmatpush1.msra.mxu0 0.0
  %2781 = vmatprep.subr.mxu0 0.0
  %2782 = vmatpush1.msra.mxu0 0.0
  %2783 = vmatprep.subr.mxu0 0.0
  %2784 = vmatpush1.msra.mxu0 0.0
  %2785 = vmatprep.subr.mxu0 0.0
  %2786 = vmatpush1.msra.mxu0 0.0
  %2787 = vmatprep.subr.mxu0 0.0
  %2788 = vmatpush1.msra.mxu0 0.0
  %2789 = vmatprep.subr.mxu0 0.0
  %2790 = vmatpush1.msra.mxu0 0.0
  %2791 = vmatprep.subr.mxu0 0.0
  %2792 = vmatpush1.msra.mxu0 0.0
  %2793 = vmatprep.subr.mxu0 0.0
  %2794 = vmatpush1.msra.mxu0 0.0
  %2795 = vmatprep.subr.mxu0 0.0
  %2796 = vmatpush1.msra.mxu0 0.0
  %2797 = vmatprep.subr.mxu0 0.0
  %2798 = vmatpush1.msra.mxu0 0.0
  %2799 = vmatprep.subr.mxu0 0.0
  %2800 = vmatpush1.msra.mxu0 0.0
  %2801 = vmatprep.subr.mxu0 0.0
  %2802 = vmatpush1.msra.mxu0 0.0
  %2803 = vmatprep.subr.mxu0 0.0
  %2804 = vmatpush1.msra.mxu0 0.0
  %2805 = vmatprep.subr.mxu0 0.0
  %2806 = vmatpush1.msra.mxu0 0.0
  %2807 = vmatprep.subr.mxu0 0.0
  %2808 = vmatpush1.msra.mxu0 0.0
  %2809 = vmatprep.subr.mxu0 0.0
  %2810 = vmatpush1.msra.mxu0 0.0
  %2811 = vmatprep.subr.mxu0 0.0
  %2812 = vmatpush1.msra.mxu0 0.0
  %2813 = vmatprep.subr.mxu0 0.0
  %2814 = vmatpush1.msra.mxu0 0.0
  %2815 = vmatprep.subr.mxu0 0.0
  %2816 = vmatpush1.msra.mxu0 0.0
  %2817 = vmatprep.subr.mxu0 0.0
  %2818 = vmatpush1.msra.mxu0 0.0
  %2819 = vmatprep.subr.mxu0 0.0
  %2820 = vmatpush1.msra.mxu0 0.0
  %2821 = vmatprep.subr.mxu0 0.0
  %2822 = vmatpush1.msra.mxu0 0.0
  %2823 = vmatprep.subr.mxu0 0.0
  %2824 = vmatpush1.msra.mxu0 0.0
  %2825 = vmatprep.mubr.f32.mxu0 0.0
  %2826 = vmatmul.mubr.f32.gmra.mrb[0].mxu0 %v2759
  %v2827 = vpop.f32.mrb[0].mxu0
  %v2828 = vadd.f32 0.0, %v2827
  %v2829 = vpop.f32.mrb[0].mxu0
  %2830 = vdwg.mxu0
  %v2831 = vmul.f32 %v2387, 2.0
  %v2832 = vadd.f32 %v2166, %v2831
  %v2833 = vmul.f32 %v2608, 2.0
  %v2834 = vadd.f32 %v2832, %v2833
  %v2835 = vadd.f32 %v2834, %v2828
  %v2836 = vmul.f32 %v2835, 0.16666667
  %v2837 = vadd.f32 %v1947, %v2836
  %s2838 = scalar_lea.vmem %s1, 24
  %v2839 = vld [vmem:[%s2838] sm:$0xff]
  %v2841 = vsel %vm168, %v2837, 0
  %2843 = vmatprep.subr.mxu0 0.0
  %2844 = vmatpush1.msra.mxu0 %v38
  %2845 = vmatprep.subr.mxu0 0.0
  %2846 = vmatpush1.msra.mxu0 0.0
  %2847 = vmatprep.subr.mxu0 0.0
  %2848 = vmatpush1.msra.mxu0 0.0
  %2849 = vmatprep.subr.mxu0 0.0
  %2850 = vmatpush1.msra.mxu0 0.0
  %2851 = vmatprep.subr.mxu0 0.0
  %2852 = vmatpush1.msra.mxu0 0.0
  %2853 = vmatprep.subr.mxu0 0.0
  %2854 = vmatpush1.msra.mxu0 0.0
  %2855 = vmatprep.subr.mxu0 0.0
  %2856 = vmatpush1.msra.mxu0 0.0
  %2857 = vmatprep.subr.mxu0 0.0
  %2858 = vmatpush1.msra.mxu0 0.0
  %2859 = vmatprep.subr.mxu0 0.0
  %2860 = vmatpush1.msra.mxu0 0.0
  %2861 = vmatprep.subr.mxu0 0.0
  %2862 = vmatpush1.msra.mxu0 0.0
  %2863 = vmatprep.subr.mxu0 0.0
  %2864 = vmatpush1.msra.mxu0 0.0
  %2865 = vmatprep.subr.mxu0 0.0
  %2866 = vmatpush1.msra.mxu0 0.0
  %2867 = vmatprep.subr.mxu0 0.0
  %2868 = vmatpush1.msra.mxu0 0.0
  %2869 = vmatprep.subr.mxu0 0.0
  %2870 = vmatpush1.msra.mxu0 0.0
  %2871 = vmatprep.subr.mxu0 0.0
  %2872 = vmatpush1.msra.mxu0 0.0
  %2873 = vmatprep.subr.mxu0 0.0
  %2874 = vmatpush1.msra.mxu0 0.0
  %2875 = vmatprep.subr.mxu0 0.0
  %2876 = vmatpush1.msra.mxu0 0.0
  %2877 = vmatprep.subr.mxu0 0.0
  %2878 = vmatpush1.msra.mxu0 0.0
  %2879 = vmatprep.subr.mxu0 0.0
  %2880 = vmatpush1.msra.mxu0 0.0
  %2881 = vmatprep.subr.mxu0 0.0
  %2882 = vmatpush1.msra.mxu0 0.0
  %2883 = vmatprep.subr.mxu0 0.0
  %2884 = vmatpush1.msra.mxu0 0.0
  %2885 = vmatprep.subr.mxu0 0.0
  %2886 = vmatpush1.msra.mxu0 0.0
  %2887 = vmatprep.subr.mxu0 0.0
  %2888 = vmatpush1.msra.mxu0 0.0
  %2889 = vmatprep.subr.mxu0 0.0
  %2890 = vmatpush1.msra.mxu0 0.0
  %2891 = vmatprep.subr.mxu0 0.0
  %2892 = vmatpush1.msra.mxu0 0.0
  %2893 = vmatprep.subr.mxu0 0.0
  %2894 = vmatpush1.msra.mxu0 0.0
  %2895 = vmatprep.subr.mxu0 0.0
  %2896 = vmatpush1.msra.mxu0 0.0
  %2897 = vmatprep.subr.mxu0 0.0
  %2898 = vmatpush1.msra.mxu0 0.0
  %2899 = vmatprep.subr.mxu0 0.0
  %2900 = vmatpush1.msra.mxu0 0.0
  %2901 = vmatprep.subr.mxu0 0.0
  %2902 = vmatpush1.msra.mxu0 0.0
  %2903 = vmatprep.subr.mxu0 0.0
  %2904 = vmatpush1.msra.mxu0 0.0
  %2905 = vmatprep.subr.mxu0 0.0
  %2906 = vmatpush1.msra.mxu0 0.0
  %2907 = vmatprep.mubr.f32.mxu0 0.0
  %2908 = vmatmul.mubr.f32.gmra.mrb[0].mxu0 %v2841
  %v2909 = vpop.f32.mrb[0].mxu0
  %v2910 = vadd.f32 %v44, %v2909
  %v2911 = vpop.f32.mrb[0].mxu0
  %2912 = vdwg.mxu0
  %v2913 = vmax.f32 %v2910, 0.0
  %2914 = vmatprep.subr.mxu0 0.0
  %2915 = vmatpush1.msra.mxu0 %v46
  %2916 = vmatprep.subr.mxu0 0.0
  %2917 = vmatpush1.msra.mxu0 %v47
  %2918 = vmatprep.subr.mxu0 0.0
  %2919 = vmatpush1.msra.mxu0 %v48
  %2920 = vmatprep.subr.mxu0 0.0
  %2921 = vmatpush1.msra.mxu0 %v49
  %2922 = vmatprep.subr.mxu0 0.0
  %2923 = vmatpush1.msra.mxu0 %v50
  %2924 = vmatprep.subr.mxu0 0.0
  %2925 = vmatpush1.msra.mxu0 %v51
  %2926 = vmatprep.subr.mxu0 0.0
  %2927 = vmatpush1.msra.mxu0 %v52
  %2928 = vmatprep.subr.mxu0 0.0
  %2929 = vmatpush1.msra.mxu0 %v53
  %2930 = vmatprep.subr.mxu0 0.0
  %2931 = vmatpush1.msra.mxu0 %v54
  %2932 = vmatprep.subr.mxu0 0.0
  %2933 = vmatpush1.msra.mxu0 %v55
  %2934 = vmatprep.subr.mxu0 0.0
  %2935 = vmatpush1.msra.mxu0 %v56
  %2936 = vmatprep.subr.mxu0 0.0
  %2937 = vmatpush1.msra.mxu0 %v57
  %2938 = vmatprep.subr.mxu0 0.0
  %2939 = vmatpush1.msra.mxu0 %v58
  %2940 = vmatprep.subr.mxu0 0.0
  %2941 = vmatpush1.msra.mxu0 %v59
  %2942 = vmatprep.subr.mxu0 0.0
  %2943 = vmatpush1.msra.mxu0 %v60
  %2944 = vmatprep.subr.mxu0 0.0
  %2945 = vmatpush1.msra.mxu0 %v61
  %2946 = vmatprep.subr.mxu0 0.0
  %2947 = vmatpush1.msra.mxu0 0.0
  %2948 = vmatprep.subr.mxu0 0.0
  %2949 = vmatpush1.msra.mxu0 0.0
  %2950 = vmatprep.subr.mxu0 0.0
  %2951 = vmatpush1.msra.mxu0 0.0
  %2952 = vmatprep.subr.mxu0 0.0
  %2953 = vmatpush1.msra.mxu0 0.0
  %2954 = vmatprep.subr.mxu0 0.0
  %2955 = vmatpush1.msra.mxu0 0.0
  %2956 = vmatprep.subr.mxu0 0.0
  %2957 = vmatpush1.msra.mxu0 0.0
  %2958 = vmatprep.subr.mxu0 0.0
  %2959 = vmatpush1.msra.mxu0 0.0
  %2960 = vmatprep.subr.mxu0 0.0
  %2961 = vmatpush1.msra.mxu0 0.0
  %2962 = vmatprep.subr.mxu0 0.0
  %2963 = vmatpush1.msra.mxu0 0.0
  %2964 = vmatprep.subr.mxu0 0.0
  %2965 = vmatpush1.msra.mxu0 0.0
  %2966 = vmatprep.subr.mxu0 0.0
  %2967 = vmatpush1.msra.mxu0 0.0
  %2968 = vmatprep.subr.mxu0 0.0
  %2969 = vmatpush1.msra.mxu0 0.0
  %2970 = vmatprep.subr.mxu0 0.0
  %2971 = vmatpush1.msra.mxu0 0.0
  %2972 = vmatprep.subr.mxu0 0.0
  %2973 = vmatpush1.msra.mxu0 0.0
  %2974 = vmatprep.subr.mxu0 0.0
  %2975 = vmatpush1.msra.mxu0 0.0
  %2976 = vmatprep.subr.mxu0 0.0
  %2977 = vmatpush1.msra.mxu0 0.0
  %2978 = vmatprep.mubr.f32.mxu0 0.0
  %2979 = vmatmul.mubr.f32.gmra.mrb[0].mxu0 %v2913
  %v2980 = vpop.f32.mrb[0].mxu0
  %v2981 = vadd.f32 %v67, %v2980
  %v2982 = vpop.f32.mrb[0].mxu0
  %2983 = vdwg.mxu0
  %v2984 = vtanh.pop %v2981
  %v2985 = vmul.f32 %v2984, %v2839
  %v2987 = vsel %vm315, %v2985, 0
  %2989 = vmatprep.subr.mxu0 0.0
  %2990 = vmatpush1.msra.mxu0 %v69
  %2991 = vmatprep.subr.mxu0 0.0
  %2992 = vmatpush1.msra.mxu0 %v70
  %2993 = vmatprep.subr.mxu0 0.0
  %2994 = vmatpush1.msra.mxu0 %v71
  %2995 = vmatprep.subr.mxu0 0.0
  %2996 = vmatpush1.msra.mxu0 0.0
  %2997 = vmatprep.subr.mxu0 0.0
  %2998 = vmatpush1.msra.mxu0 0.0
  %2999 = vmatprep.subr.mxu0 0.0
  %3000 = vmatpush1.msra.mxu0 0.0
  %3001 = vmatprep.subr.mxu0 0.0
  %3002 = vmatpush1.msra.mxu0 0.0
  %3003 = vmatprep.subr.mxu0 0.0
  %3004 = vmatpush1.msra.mxu0 0.0
  %3005 = vmatprep.subr.mxu0 0.0
  %3006 = vmatpush1.msra.mxu0 0.0
  %3007 = vmatprep.subr.mxu0 0.0
  %3008 = vmatpush1.msra.mxu0 0.0
  %3009 = vmatprep.subr.mxu0 0.0
  %3010 = vmatpush1.msra.mxu0 0.0
  %3011 = vmatprep.subr.mxu0 0.0
  %3012 = vmatpush1.msra.mxu0 0.0
  %3013 = vmatprep.subr.mxu0 0.0
  %3014 = vmatpush1.msra.mxu0 0.0
  %3015 = vmatprep.subr.mxu0 0.0
  %3016 = vmatpush1.msra.mxu0 0.0
  %3017 = vmatprep.subr.mxu0 0.0
  %3018 = vmatpush1.msra.mxu0 0.0
  %3019 = vmatprep.subr.mxu0 0.0
  %3020 = vmatpush1.msra.mxu0 0.0
  %3021 = vmatprep.subr.mxu0 0.0
  %3022 = vmatpush1.msra.mxu0 0.0
  %3023 = vmatprep.subr.mxu0 0.0
  %3024 = vmatpush1.msra.mxu0 0.0
  %3025 = vmatprep.subr.mxu0 0.0
  %3026 = vmatpush1.msra.mxu0 0.0
  %3027 = vmatprep.subr.mxu0 0.0
  %3028 = vmatpush1.msra.mxu0 0.0
  %3029 = vmatprep.subr.mxu0 0.0
  %3030 = vmatpush1.msra.mxu0 0.0
  %3031 = vmatprep.subr.mxu0 0.0
  %3032 = vmatpush1.msra.mxu0 0.0
  %3033 = vmatprep.subr.mxu0 0.0
  %3034 = vmatpush1.msra.mxu0 0.0
  %3035 = vmatprep.subr.mxu0 0.0
  %3036 = vmatpush1.msra.mxu0 0.0
  %3037 = vmatprep.subr.mxu0 0.0
  %3038 = vmatpush1.msra.mxu0 0.0
  %3039 = vmatprep.subr.mxu0 0.0
  %3040 = vmatpush1.msra.mxu0 0.0
  %3041 = vmatprep.subr.mxu0 0.0
  %3042 = vmatpush1.msra.mxu0 0.0
  %3043 = vmatprep.subr.mxu0 0.0
  %3044 = vmatpush1.msra.mxu0 0.0
  %3045 = vmatprep.subr.mxu0 0.0
  %3046 = vmatpush1.msra.mxu0 0.0
  %3047 = vmatprep.subr.mxu0 0.0
  %3048 = vmatpush1.msra.mxu0 0.0
  %3049 = vmatprep.subr.mxu0 0.0
  %3050 = vmatpush1.msra.mxu0 0.0
  %3051 = vmatprep.subr.mxu0 0.0
  %3052 = vmatpush1.msra.mxu0 0.0
  %3053 = vmatprep.mubr.f32.mxu0 0.0
  %3054 = vmatmul.mubr.f32.gmra.mrb[0].mxu0 %v2987
  %v3055 = vpop.f32.mrb[0].mxu0
  %v3056 = vadd.f32 0.0, %v3055
  %v3057 = vpop.f32.mrb[0].mxu0
  %3058 = vdwg.mxu0
  %v3059 = vmul.f32 %v3056, 0.5
  %v3060 = vadd.f32 %v2837, %v3059
  %v3062 = vsel %vm168, %v3060, 0
  %3064 = vmatprep.subr.mxu0 0.0
  %3065 = vmatpush1.msra.mxu0 %v38
  %3066 = vmatprep.subr.mxu0 0.0
  %3067 = vmatpush1.msra.mxu0 0.0
  %3068 = vmatprep.subr.mxu0 0.0
  %3069 = vmatpush1.msra.mxu0 0.0
  %3070 = vmatprep.subr.mxu0 0.0
  %3071 = vmatpush1.msra.mxu0 0.0
  %3072 = vmatprep.subr.mxu0 0.0
  %3073 = vmatpush1.msra.mxu0 0.0
  %3074 = vmatprep.subr.mxu0 0.0
  %3075 = vmatpush1.msra.mxu0 0.0
  %3076 = vmatprep.subr.mxu0 0.0
  %3077 = vmatpush1.msra.mxu0 0.0
  %3078 = vmatprep.subr.mxu0 0.0
  %3079 = vmatpush1.msra.mxu0 0.0
  %3080 = vmatprep.subr.mxu0 0.0
  %3081 = vmatpush1.msra.mxu0 0.0
  %3082 = vmatprep.subr.mxu0 0.0
  %3083 = vmatpush1.msra.mxu0 0.0
  %3084 = vmatprep.subr.mxu0 0.0
  %3085 = vmatpush1.msra.mxu0 0.0
  %3086 = vmatprep.subr.mxu0 0.0
  %3087 = vmatpush1.msra.mxu0 0.0
  %3088 = vmatprep.subr.mxu0 0.0
  %3089 = vmatpush1.msra.mxu0 0.0
  %3090 = vmatprep.subr.mxu0 0.0
  %3091 = vmatpush1.msra.mxu0 0.0
  %3092 = vmatprep.subr.mxu0 0.0
  %3093 = vmatpush1.msra.mxu0 0.0
  %3094 = vmatprep.subr.mxu0 0.0
  %3095 = vmatpush1.msra.mxu0 0.0
  %3096 = vmatprep.subr.mxu0 0.0
  %3097 = vmatpush1.msra.mxu0 0.0
  %3098 = vmatprep.subr.mxu0 0.0
  %3099 = vmatpush1.msra.mxu0 0.0
  %3100 = vmatprep.subr.mxu0 0.0
  %3101 = vmatpush1.msra.mxu0 0.0
  %3102 = vmatprep.subr.mxu0 0.0
  %3103 = vmatpush1.msra.mxu0 0.0
  %3104 = vmatprep.subr.mxu0 0.0
  %3105 = vmatpush1.msra.mxu0 0.0
  %3106 = vmatprep.subr.mxu0 0.0
  %3107 = vmatpush1.msra.mxu0 0.0
  %3108 = vmatprep.subr.mxu0 0.0
  %3109 = vmatpush1.msra.mxu0 0.0
  %3110 = vmatprep.subr.mxu0 0.0
  %3111 = vmatpush1.msra.mxu0 0.0
  %3112 = vmatprep.subr.mxu0 0.0
  %3113 = vmatpush1.msra.mxu0 0.0
  %3114 = vmatprep.subr.mxu0 0.0
  %3115 = vmatpush1.msra.mxu0 0.0
  %3116 = vmatprep.subr.mxu0 0.0
  %3117 = vmatpush1.msra.mxu0 0.0
  %3118 = vmatprep.subr.mxu0 0.0
  %3119 = vmatpush1.msra.mxu0 0.0
  %3120 = vmatprep.subr.mxu0 0.0
  %3121 = vmatpush1.msra.mxu0 0.0
  %3122 = vmatprep.subr.mxu0 0.0
  %3123 = vmatpush1.msra.mxu0 0.0
  %3124 = vmatprep.subr.mxu0 0.0
  %3125 = vmatpush1.msra.mxu0 0.0
  %3126 = vmatprep.subr.mxu0 0.0
  %3127 = vmatpush1.msra.mxu0 0.0
  %3128 = vmatprep.mubr.f32.mxu0 0.0
  %3129 = vmatmul.mubr.f32.gmra.mrb[0].mxu0 %v3062
  %v3130 = vpop.f32.mrb[0].mxu0
  %v3131 = vadd.f32 %v44, %v3130
  %v3132 = vpop.f32.mrb[0].mxu0
  %3133 = vdwg.mxu0
  %v3134 = vmax.f32 %v3131, 0.0
  %3135 = vmatprep.subr.mxu0 0.0
  %3136 = vmatpush1.msra.mxu0 %v46
  %3137 = vmatprep.subr.mxu0 0.0
  %3138 = vmatpush1.msra.mxu0 %v47
  %3139 = vmatprep.subr.mxu0 0.0
  %3140 = vmatpush1.msra.mxu0 %v48
  %3141 = vmatprep.subr.mxu0 0.0
  %3142 = vmatpush1.msra.mxu0 %v49
  %3143 = vmatprep.subr.mxu0 0.0
  %3144 = vmatpush1.msra.mxu0 %v50
  %3145 = vmatprep.subr.mxu0 0.0
  %3146 = vmatpush1.msra.mxu0 %v51
  %3147 = vmatprep.subr.mxu0 0.0
  %3148 = vmatpush1.msra.mxu0 %v52
  %3149 = vmatprep.subr.mxu0 0.0
  %3150 = vmatpush1.msra.mxu0 %v53
  %3151 = vmatprep.subr.mxu0 0.0
  %3152 = vmatpush1.msra.mxu0 %v54
  %3153 = vmatprep.subr.mxu0 0.0
  %3154 = vmatpush1.msra.mxu0 %v55
  %3155 = vmatprep.subr.mxu0 0.0
  %3156 = vmatpush1.msra.mxu0 %v56
  %3157 = vmatprep.subr.mxu0 0.0
  %3158 = vmatpush1.msra.mxu0 %v57
  %3159 = vmatprep.subr.mxu0 0.0
  %3160 = vmatpush1.msra.mxu0 %v58
  %3161 = vmatprep.subr.mxu0 0.0
  %3162 = vmatpush1.msra.mxu0 %v59
  %3163 = vmatprep.subr.mxu0 0.0
  %3164 = vmatpush1.msra.mxu0 %v60
  %3165 = vmatprep.subr.mxu0 0.0
  %3166 = vmatpush1.msra.mxu0 %v61
  %3167 = vmatprep.subr.mxu0 0.0
  %3168 = vmatpush1.msra.mxu0 0.0
  %3169 = vmatprep.subr.mxu0 0.0
  %3170 = vmatpush1.msra.mxu0 0.0
  %3171 = vmatprep.subr.mxu0 0.0
  %3172 = vmatpush1.msra.mxu0 0.0
  %3173 = vmatprep.subr.mxu0 0.0
  %3174 = vmatpush1.msra.mxu0 0.0
  %3175 = vmatprep.subr.mxu0 0.0
  %3176 = vmatpush1.msra.mxu0 0.0
  %3177 = vmatprep.subr.mxu0 0.0
  %3178 = vmatpush1.msra.mxu0 0.0
  %3179 = vmatprep.subr.mxu0 0.0
  %3180 = vmatpush1.msra.mxu0 0.0
  %3181 = vmatprep.subr.mxu0 0.0
  %3182 = vmatpush1.msra.mxu0 0.0
  %3183 = vmatprep.subr.mxu0 0.0
  %3184 = vmatpush1.msra.mxu0 0.0
  %3185 = vmatprep.subr.mxu0 0.0
  %3186 = vmatpush1.msra.mxu0 0.0
  %3187 = vmatprep.subr.mxu0 0.0
  %3188 = vmatpush1.msra.mxu0 0.0
  %3189 = vmatprep.subr.mxu0 0.0
  %3190 = vmatpush1.msra.mxu0 0.0
  %3191 = vmatprep.subr.mxu0 0.0
  %3192 = vmatpush1.msra.mxu0 0.0
  %3193 = vmatprep.subr.mxu0 0.0
  %3194 = vmatpush1.msra.mxu0 0.0
  %3195 = vmatprep.subr.mxu0 0.0
  %3196 = vmatpush1.msra.mxu0 0.0
  %3197 = vmatprep.subr.mxu0 0.0
  %3198 = vmatpush1.msra.mxu0 0.0
  %3199 = vmatprep.mubr.f32.mxu0 0.0
  %3200 = vmatmul.mubr.f32.gmra.mrb[0].mxu0 %v3134
  %v3201 = vpop.f32.mrb[0].mxu0
  %v3202 = vadd.f32 %v67, %v3201
  %v3203 = vpop.f32.mrb[0].mxu0
  %3204 = vdwg.mxu0
  %v3205 = vtanh.pop %v3202
  %v3206 = vmul.f32 %v3205, %v2839
  %v3208 = vsel %vm315, %v3206, 0
  %3210 = vmatprep.subr.mxu0 0.0
  %3211 = vmatpush1.msra.mxu0 %v69
  %3212 = vmatprep.subr.mxu0 0.0
  %3213 = vmatpush1.msra.mxu0 %v70
  %3214 = vmatprep.subr.mxu0 0.0
  %3215 = vmatpush1.msra.mxu0 %v71
  %3216 = vmatprep.subr.mxu0 0.0
  %3217 = vmatpush1.msra.mxu0 0.0
  %3218 = vmatprep.subr.mxu0 0.0
  %3219 = vmatpush1.msra.mxu0 0.0
  %3220 = vmatprep.subr.mxu0 0.0
  %3221 = vmatpush1.msra.mxu0 0.0
  %3222 = vmatprep.subr.mxu0 0.0
  %3223 = vmatpush1.msra.mxu0 0.0
  %3224 = vmatprep.subr.mxu0 0.0
  %3225 = vmatpush1.msra.mxu0 0.0
  %3226 = vmatprep.subr.mxu0 0.0
  %3227 = vmatpush1.msra.mxu0 0.0
  %3228 = vmatprep.subr.mxu0 0.0
  %3229 = vmatpush1.msra.mxu0 0.0
  %3230 = vmatprep.subr.mxu0 0.0
  %3231 = vmatpush1.msra.mxu0 0.0
  %3232 = vmatprep.subr.mxu0 0.0
  %3233 = vmatpush1.msra.mxu0 0.0
  %3234 = vmatprep.subr.mxu0 0.0
  %3235 = vmatpush1.msra.mxu0 0.0
  %3236 = vmatprep.subr.mxu0 0.0
  %3237 = vmatpush1.msra.mxu0 0.0
  %3238 = vmatprep.subr.mxu0 0.0
  %3239 = vmatpush1.msra.mxu0 0.0
  %3240 = vmatprep.subr.mxu0 0.0
  %3241 = vmatpush1.msra.mxu0 0.0
  %3242 = vmatprep.subr.mxu0 0.0
  %3243 = vmatpush1.msra.mxu0 0.0
  %3244 = vmatprep.subr.mxu0 0.0
  %3245 = vmatpush1.msra.mxu0 0.0
  %3246 = vmatprep.subr.mxu0 0.0
  %3247 = vmatpush1.msra.mxu0 0.0
  %3248 = vmatprep.subr.mxu0 0.0
  %3249 = vmatpush1.msra.mxu0 0.0
  %3250 = vmatprep.subr.mxu0 0.0
  %3251 = vmatpush1.msra.mxu0 0.0
  %3252 = vmatprep.subr.mxu0 0.0
  %3253 = vmatpush1.msra.mxu0 0.0
  %3254 = vmatprep.subr.mxu0 0.0
  %3255 = vmatpush1.msra.mxu0 0.0
  %3256 = vmatprep.subr.mxu0 0.0
  %3257 = vmatpush1.msra.mxu0 0.0
  %3258 = vmatprep.subr.mxu0 0.0
  %3259 = vmatpush1.msra.mxu0 0.0
  %3260 = vmatprep.subr.mxu0 0.0
  %3261 = vmatpush1.msra.mxu0 0.0
  %3262 = vmatprep.subr.mxu0 0.0
  %3263 = vmatpush1.msra.mxu0 0.0
  %3264 = vmatprep.subr.mxu0 0.0
  %3265 = vmatpush1.msra.mxu0 0.0
  %3266 = vmatprep.subr.mxu0 0.0
  %3267 = vmatpush1.msra.mxu0 0.0
  %3268 = vmatprep.subr.mxu0 0.0
  %3269 = vmatpush1.msra.mxu0 0.0
  %3270 = vmatprep.subr.mxu0 0.0
  %3271 = vmatpush1.msra.mxu0 0.0
  %3272 = vmatprep.subr.mxu0 0.0
  %3273 = vmatpush1.msra.mxu0 0.0
  %3274 = vmatprep.mubr.f32.mxu0 0.0
  %3275 = vmatmul.mubr.f32.gmra.mrb[0].mxu0 %v3208
  %v3276 = vpop.f32.mrb[0].mxu0
  %v3277 = vadd.f32 0.0, %v3276
  %v3278 = vpop.f32.mrb[0].mxu0
  %3279 = vdwg.mxu0
  %v3280 = vmul.f32 %v3277, 0.5
  %v3281 = vadd.f32 %v2837, %v3280
  %v3283 = vsel %vm168, %v3281, 0
  %3285 = vmatprep.subr.mxu0 0.0
  %3286 = vmatpush1.msra.mxu0 %v38
  %3287 = vmatprep.subr.mxu0 0.0
  %3288 = vmatpush1.msra.mxu0 0.0
  %3289 = vmatprep.subr.mxu0 0.0
  %3290 = vmatpush1.msra.mxu0 0.0
  %3291 = vmatprep.subr.mxu0 0.0
  %3292 = vmatpush1.msra.mxu0 0.0
  %3293 = vmatprep.subr.mxu0 0.0
  %3294 = vmatpush1.msra.mxu0 0.0
  %3295 = vmatprep.subr.mxu0 0.0
  %3296 = vmatpush1.msra.mxu0 0.0
  %3297 = vmatprep.subr.mxu0 0.0
  %3298 = vmatpush1.msra.mxu0 0.0
  %3299 = vmatprep.subr.mxu0 0.0
  %3300 = vmatpush1.msra.mxu0 0.0
  %3301 = vmatprep.subr.mxu0 0.0
  %3302 = vmatpush1.msra.mxu0 0.0
  %3303 = vmatprep.subr.mxu0 0.0
  %3304 = vmatpush1.msra.mxu0 0.0
  %3305 = vmatprep.subr.mxu0 0.0
  %3306 = vmatpush1.msra.mxu0 0.0
  %3307 = vmatprep.subr.mxu0 0.0
  %3308 = vmatpush1.msra.mxu0 0.0
  %3309 = vmatprep.subr.mxu0 0.0
  %3310 = vmatpush1.msra.mxu0 0.0
  %3311 = vmatprep.subr.mxu0 0.0
  %3312 = vmatpush1.msra.mxu0 0.0
  %3313 = vmatprep.subr.mxu0 0.0
  %3314 = vmatpush1.msra.mxu0 0.0
  %3315 = vmatprep.subr.mxu0 0.0
  %3316 = vmatpush1.msra.mxu0 0.0
  %3317 = vmatprep.subr.mxu0 0.0
  %3318 = vmatpush1.msra.mxu0 0.0
  %3319 = vmatprep.subr.mxu0 0.0
  %3320 = vmatpush1.msra.mxu0 0.0
  %3321 = vmatprep.subr.mxu0 0.0
  %3322 = vmatpush1.msra.mxu0 0.0
  %3323 = vmatprep.subr.mxu0 0.0
  %3324 = vmatpush1.msra.mxu0 0.0
  %3325 = vmatprep.subr.mxu0 0.0
  %3326 = vmatpush1.msra.mxu0 0.0
  %3327 = vmatprep.subr.mxu0 0.0
  %3328 = vmatpush1.msra.mxu0 0.0
  %3329 = vmatprep.subr.mxu0 0.0
  %3330 = vmatpush1.msra.mxu0 0.0
  %3331 = vmatprep.subr.mxu0 0.0
  %3332 = vmatpush1.msra.mxu0 0.0
  %3333 = vmatprep.subr.mxu0 0.0
  %3334 = vmatpush1.msra.mxu0 0.0
  %3335 = vmatprep.subr.mxu0 0.0
  %3336 = vmatpush1.msra.mxu0 0.0
  %3337 = vmatprep.subr.mxu0 0.0
  %3338 = vmatpush1.msra.mxu0 0.0
  %3339 = vmatprep.subr.mxu0 0.0
  %3340 = vmatpush1.msra.mxu0 0.0
  %3341 = vmatprep.subr.mxu0 0.0
  %3342 = vmatpush1.msra.mxu0 0.0
  %3343 = vmatprep.subr.mxu0 0.0
  %3344 = vmatpush1.msra.mxu0 0.0
  %3345 = vmatprep.subr.mxu0 0.0
  %3346 = vmatpush1.msra.mxu0 0.0
  %3347 = vmatprep.subr.mxu0 0.0
  %3348 = vmatpush1.msra.mxu0 0.0
  %3349 = vmatprep.mubr.f32.mxu0 0.0
  %3350 = vmatmul.mubr.f32.gmra.mrb[0].mxu0 %v3283
  %v3351 = vpop.f32.mrb[0].mxu0
  %v3352 = vadd.f32 %v44, %v3351
  %v3353 = vpop.f32.mrb[0].mxu0
  %3354 = vdwg.mxu0
  %v3355 = vmax.f32 %v3352, 0.0
  %3356 = vmatprep.subr.mxu0 0.0
  %3357 = vmatpush1.msra.mxu0 %v46
  %3358 = vmatprep.subr.mxu0 0.0
  %3359 = vmatpush1.msra.mxu0 %v47
  %3360 = vmatprep.subr.mxu0 0.0
  %3361 = vmatpush1.msra.mxu0 %v48
  %3362 = vmatprep.subr.mxu0 0.0
  %3363 = vmatpush1.msra.mxu0 %v49
  %3364 = vmatprep.subr.mxu0 0.0
  %3365 = vmatpush1.msra.mxu0 %v50
  %3366 = vmatprep.subr.mxu0 0.0
  %3367 = vmatpush1.msra.mxu0 %v51
  %3368 = vmatprep.subr.mxu0 0.0
  %3369 = vmatpush1.msra.mxu0 %v52
  %3370 = vmatprep.subr.mxu0 0.0
  %3371 = vmatpush1.msra.mxu0 %v53
  %3372 = vmatprep.subr.mxu0 0.0
  %3373 = vmatpush1.msra.mxu0 %v54
  %3374 = vmatprep.subr.mxu0 0.0
  %3375 = vmatpush1.msra.mxu0 %v55
  %3376 = vmatprep.subr.mxu0 0.0
  %3377 = vmatpush1.msra.mxu0 %v56
  %3378 = vmatprep.subr.mxu0 0.0
  %3379 = vmatpush1.msra.mxu0 %v57
  %3380 = vmatprep.subr.mxu0 0.0
  %3381 = vmatpush1.msra.mxu0 %v58
  %3382 = vmatprep.subr.mxu0 0.0
  %3383 = vmatpush1.msra.mxu0 %v59
  %3384 = vmatprep.subr.mxu0 0.0
  %3385 = vmatpush1.msra.mxu0 %v60
  %3386 = vmatprep.subr.mxu0 0.0
  %3387 = vmatpush1.msra.mxu0 %v61
  %3388 = vmatprep.subr.mxu0 0.0
  %3389 = vmatpush1.msra.mxu0 0.0
  %3390 = vmatprep.subr.mxu0 0.0
  %3391 = vmatpush1.msra.mxu0 0.0
  %3392 = vmatprep.subr.mxu0 0.0
  %3393 = vmatpush1.msra.mxu0 0.0
  %3394 = vmatprep.subr.mxu0 0.0
  %3395 = vmatpush1.msra.mxu0 0.0
  %3396 = vmatprep.subr.mxu0 0.0
  %3397 = vmatpush1.msra.mxu0 0.0
  %3398 = vmatprep.subr.mxu0 0.0
  %3399 = vmatpush1.msra.mxu0 0.0
  %3400 = vmatprep.subr.mxu0 0.0
  %3401 = vmatpush1.msra.mxu0 0.0
  %3402 = vmatprep.subr.mxu0 0.0
  %3403 = vmatpush1.msra.mxu0 0.0
  %3404 = vmatprep.subr.mxu0 0.0
  %3405 = vmatpush1.msra.mxu0 0.0
  %3406 = vmatprep.subr.mxu0 0.0
  %3407 = vmatpush1.msra.mxu0 0.0
  %3408 = vmatprep.subr.mxu0 0.0
  %3409 = vmatpush1.msra.mxu0 0.0
  %3410 = vmatprep.subr.mxu0 0.0
  %3411 = vmatpush1.msra.mxu0 0.0
  %3412 = vmatprep.subr.mxu0 0.0
  %3413 = vmatpush1.msra.mxu0 0.0
  %3414 = vmatprep.subr.mxu0 0.0
  %3415 = vmatpush1.msra.mxu0 0.0
  %3416 = vmatprep.subr.mxu0 0.0
  %3417 = vmatpush1.msra.mxu0 0.0
  %3418 = vmatprep.subr.mxu0 0.0
  %3419 = vmatpush1.msra.mxu0 0.0
  %3420 = vmatprep.mubr.f32.mxu0 0.0
  %3421 = vmatmul.mubr.f32.gmra.mrb[0].mxu0 %v3355
  %v3422 = vpop.f32.mrb[0].mxu0
  %v3423 = vadd.f32 %v67, %v3422
  %v3424 = vpop.f32.mrb[0].mxu0
  %3425 = vdwg.mxu0
  %v3426 = vtanh.pop %v3423
  %v3427 = vmul.f32 %v3426, %v2839
  %v3429 = vsel %vm315, %v3427, 0
  %3431 = vmatprep.subr.mxu0 0.0
  %3432 = vmatpush1.msra.mxu0 %v69
  %3433 = vmatprep.subr.mxu0 0.0
  %3434 = vmatpush1.msra.mxu0 %v70
  %3435 = vmatprep.subr.mxu0 0.0
  %3436 = vmatpush1.msra.mxu0 %v71
  %3437 = vmatprep.subr.mxu0 0.0
  %3438 = vmatpush1.msra.mxu0 0.0
  %3439 = vmatprep.subr.mxu0 0.0
  %3440 = vmatpush1.msra.mxu0 0.0
  %3441 = vmatprep.subr.mxu0 0.0
  %3442 = vmatpush1.msra.mxu0 0.0
  %3443 = vmatprep.subr.mxu0 0.0
  %3444 = vmatpush1.msra.mxu0 0.0
  %3445 = vmatprep.subr.mxu0 0.0
  %3446 = vmatpush1.msra.mxu0 0.0
  %3447 = vmatprep.subr.mxu0 0.0
  %3448 = vmatpush1.msra.mxu0 0.0
  %3449 = vmatprep.subr.mxu0 0.0
  %3450 = vmatpush1.msra.mxu0 0.0
  %3451 = vmatprep.subr.mxu0 0.0
  %3452 = vmatpush1.msra.mxu0 0.0
  %3453 = vmatprep.subr.mxu0 0.0
  %3454 = vmatpush1.msra.mxu0 0.0
  %3455 = vmatprep.subr.mxu0 0.0
  %3456 = vmatpush1.msra.mxu0 0.0
  %3457 = vmatprep.subr.mxu0 0.0
  %3458 = vmatpush1.msra.mxu0 0.0
  %3459 = vmatprep.subr.mxu0 0.0
  %3460 = vmatpush1.msra.mxu0 0.0
  %3461 = vmatprep.subr.mxu0 0.0
  %3462 = vmatpush1.msra.mxu0 0.0
  %3463 = vmatprep.subr.mxu0 0.0
  %3464 = vmatpush1.msra.mxu0 0.0
  %3465 = vmatprep.subr.mxu0 0.0
  %3466 = vmatpush1.msra.mxu0 0.0
  %3467 = vmatprep.subr.mxu0 0.0
  %3468 = vmatpush1.msra.mxu0 0.0
  %3469 = vmatprep.subr.mxu0 0.0
  %3470 = vmatpush1.msra.mxu0 0.0
  %3471 = vmatprep.subr.mxu0 0.0
  %3472 = vmatpush1.msra.mxu0 0.0
  %3473 = vmatprep.subr.mxu0 0.0
  %3474 = vmatpush1.msra.mxu0 0.0
  %3475 = vmatprep.subr.mxu0 0.0
  %3476 = vmatpush1.msra.mxu0 0.0
  %3477 = vmatprep.subr.mxu0 0.0
  %3478 = vmatpush1.msra.mxu0 0.0
  %3479 = vmatprep.subr.mxu0 0.0
  %3480 = vmatpush1.msra.mxu0 0.0
  %3481 = vmatprep.subr.mxu0 0.0
  %3482 = vmatpush1.msra.mxu0 0.0
  %3483 = vmatprep.subr.mxu0 0.0
  %3484 = vmatpush1.msra.mxu0 0.0
  %3485 = vmatprep.subr.mxu0 0.0
  %3486 = vmatpush1.msra.mxu0 0.0
  %3487 = vmatprep.subr.mxu0 0.0
  %3488 = vmatpush1.msra.mxu0 0.0
  %3489 = vmatprep.subr.mxu0 0.0
  %3490 = vmatpush1.msra.mxu0 0.0
  %3491 = vmatprep.subr.mxu0 0.0
  %3492 = vmatpush1.msra.mxu0 0.0
  %3493 = vmatprep.subr.mxu0 0.0
  %3494 = vmatpush1.msra.mxu0 0.0
  %3495 = vmatprep.mubr.f32.mxu0 0.0
  %3496 = vmatmul.mubr.f32.gmra.mrb[0].mxu0 %v3429
  %v3497 = vpop.f32.mrb[0].mxu0
  %v3498 = vadd.f32 0.0, %v3497
  %v3499 = vpop.f32.mrb[0].mxu0
  %3500 = vdwg.mxu0
  %v3501 = vadd.f32 %v2837, %v3498
  %v3503 = vsel %vm168, %v3501, 0
  %3505 = vmatprep.subr.mxu0 0.0
  %3506 = vmatpush1.msra.mxu0 %v38
  %3507 = vmatprep.subr.mxu0 0.0
  %3508 = vmatpush1.msra.mxu0 0.0
  %3509 = vmatprep.subr.mxu0 0.0
  %3510 = vmatpush1.msra.mxu0 0.0
  %3511 = vmatprep.subr.mxu0 0.0
  %3512 = vmatpush1.msra.mxu0 0.0
  %3513 = vmatprep.subr.mxu0 0.0
  %3514 = vmatpush1.msra.mxu0 0.0
  %3515 = vmatprep.subr.mxu0 0.0
  %3516 = vmatpush1.msra.mxu0 0.0
  %3517 = vmatprep.subr.mxu0 0.0
  %3518 = vmatpush1.msra.mxu0 0.0
  %3519 = vmatprep.subr.mxu0 0.0
  %3520 = vmatpush1.msra.mxu0 0.0
  %3521 = vmatprep.subr.mxu0 0.0
  %3522 = vmatpush1.msra.mxu0 0.0
  %3523 = vmatprep.subr.mxu0 0.0
  %3524 = vmatpush1.msra.mxu0 0.0
  %3525 = vmatprep.subr.mxu0 0.0
  %3526 = vmatpush1.msra.mxu0 0.0
  %3527 = vmatprep.subr.mxu0 0.0
  %3528 = vmatpush1.msra.mxu0 0.0
  %3529 = vmatprep.subr.mxu0 0.0
  %3530 = vmatpush1.msra.mxu0 0.0
  %3531 = vmatprep.subr.mxu0 0.0
  %3532 = vmatpush1.msra.mxu0 0.0
  %3533 = vmatprep.subr.mxu0 0.0
  %3534 = vmatpush1.msra.mxu0 0.0
  %3535 = vmatprep.subr.mxu0 0.0
  %3536 = vmatpush1.msra.mxu0 0.0
  %3537 = vmatprep.subr.mxu0 0.0
  %3538 = vmatpush1.msra.mxu0 0.0
  %3539 = vmatprep.subr.mxu0 0.0
  %3540 = vmatpush1.msra.mxu0 0.0
  %3541 = vmatprep.subr.mxu0 0.0
  %3542 = vmatpush1.msra.mxu0 0.0
  %3543 = vmatprep.subr.mxu0 0.0
  %3544 = vmatpush1.msra.mxu0 0.0
  %3545 = vmatprep.subr.mxu0 0.0
  %3546 = vmatpush1.msra.mxu0 0.0
  %3547 = vmatprep.subr.mxu0 0.0
  %3548 = vmatpush1.msra.mxu0 0.0
  %3549 = vmatprep.subr.mxu0 0.0
  %3550 = vmatpush1.msra.mxu0 0.0
  %3551 = vmatprep.subr.mxu0 0.0
  %3552 = vmatpush1.msra.mxu0 0.0
  %3553 = vmatprep.subr.mxu0 0.0
  %3554 = vmatpush1.msra.mxu0 0.0
  %3555 = vmatprep.subr.mxu0 0.0
  %3556 = vmatpush1.msra.mxu0 0.0
  %3557 = vmatprep.subr.mxu0 0.0
  %3558 = vmatpush1.msra.mxu0 0.0
  %3559 = vmatprep.subr.mxu0 0.0
  %3560 = vmatpush1.msra.mxu0 0.0
  %3561 = vmatprep.subr.mxu0 0.0
  %3562 = vmatpush1.msra.mxu0 0.0
  %3563 = vmatprep.subr.mxu0 0.0
  %3564 = vmatpush1.msra.mxu0 0.0
  %3565 = vmatprep.subr.mxu0 0.0
  %3566 = vmatpush1.msra.mxu0 0.0
  %3567 = vmatprep.subr.mxu0 0.0
  %3568 = vmatpush1.msra.mxu0 0.0
  %3569 = vmatprep.mubr.f32.mxu0 0.0
  %3570 = vmatmul.mubr.f32.gmra.mrb[0].mxu0 %v3503
  %v3571 = vpop.f32.mrb[0].mxu0
  %v3572 = vadd.f32 %v44, %v3571
  %v3573 = vpop.f32.mrb[0].mxu0
  %3574 = vdwg.mxu0
  %v3575 = vmax.f32 %v3572, 0.0
  %3576 = vmatprep.subr.mxu0 0.0
  %3577 = vmatpush1.msra.mxu0 %v46
  %3578 = vmatprep.subr.mxu0 0.0
  %3579 = vmatpush1.msra.mxu0 %v47
  %3580 = vmatprep.subr.mxu0 0.0
  %3581 = vmatpush1.msra.mxu0 %v48
  %3582 = vmatprep.subr.mxu0 0.0
  %3583 = vmatpush1.msra.mxu0 %v49
  %3584 = vmatprep.subr.mxu0 0.0
  %3585 = vmatpush1.msra.mxu0 %v50
  %3586 = vmatprep.subr.mxu0 0.0
  %3587 = vmatpush1.msra.mxu0 %v51
  %3588 = vmatprep.subr.mxu0 0.0
  %3589 = vmatpush1.msra.mxu0 %v52
  %3590 = vmatprep.subr.mxu0 0.0
  %3591 = vmatpush1.msra.mxu0 %v53
  %3592 = vmatprep.subr.mxu0 0.0
  %3593 = vmatpush1.msra.mxu0 %v54
  %3594 = vmatprep.subr.mxu0 0.0
  %3595 = vmatpush1.msra.mxu0 %v55
  %3596 = vmatprep.subr.mxu0 0.0
  %3597 = vmatpush1.msra.mxu0 %v56
  %3598 = vmatprep.subr.mxu0 0.0
  %3599 = vmatpush1.msra.mxu0 %v57
  %3600 = vmatprep.subr.mxu0 0.0
  %3601 = vmatpush1.msra.mxu0 %v58
  %3602 = vmatprep.subr.mxu0 0.0
  %3603 = vmatpush1.msra.mxu0 %v59
  %3604 = vmatprep.subr.mxu0 0.0
  %3605 = vmatpush1.msra.mxu0 %v60
  %3606 = vmatprep.subr.mxu0 0.0
  %3607 = vmatpush1.msra.mxu0 %v61
  %3608 = vmatprep.subr.mxu0 0.0
  %3609 = vmatpush1.msra.mxu0 0.0
  %3610 = vmatprep.subr.mxu0 0.0
  %3611 = vmatpush1.msra.mxu0 0.0
  %3612 = vmatprep.subr.mxu0 0.0
  %3613 = vmatpush1.msra.mxu0 0.0
  %3614 = vmatprep.subr.mxu0 0.0
  %3615 = vmatpush1.msra.mxu0 0.0
  %3616 = vmatprep.subr.mxu0 0.0
  %3617 = vmatpush1.msra.mxu0 0.0
  %3618 = vmatprep.subr.mxu0 0.0
  %3619 = vmatpush1.msra.mxu0 0.0
  %3620 = vmatprep.subr.mxu0 0.0
  %3621 = vmatpush1.msra.mxu0 0.0
  %3622 = vmatprep.subr.mxu0 0.0
  %3623 = vmatpush1.msra.mxu0 0.0
  %3624 = vmatprep.subr.mxu0 0.0
  %3625 = vmatpush1.msra.mxu0 0.0
  %3626 = vmatprep.subr.mxu0 0.0
  %3627 = vmatpush1.msra.mxu0 0.0
  %3628 = vmatprep.subr.mxu0 0.0
  %3629 = vmatpush1.msra.mxu0 0.0
  %3630 = vmatprep.subr.mxu0 0.0
  %3631 = vmatpush1.msra.mxu0 0.0
  %3632 = vmatprep.subr.mxu0 0.0
  %3633 = vmatpush1.msra.mxu0 0.0
  %3634 = vmatprep.subr.mxu0 0.0
  %3635 = vmatpush1.msra.mxu0 0.0
  %3636 = vmatprep.subr.mxu0 0.0
  %3637 = vmatpush1.msra.mxu0 0.0
  %3638 = vmatprep.subr.mxu0 0.0
  %3639 = vmatpush1.msra.mxu0 0.0
  %3640 = vmatprep.mubr.f32.mxu0 0.0
  %3641 = vmatmul.mubr.f32.gmra.mrb[0].mxu0 %v3575
  %v3642 = vpop.f32.mrb[0].mxu0
  %v3643 = vadd.f32 %v67, %v3642
  %v3644 = vpop.f32.mrb[0].mxu0
  %3645 = vdwg.mxu0
  %v3646 = vtanh.pop %v3643
  %v3647 = vmul.f32 %v3646, %v2839
  %v3649 = vsel %vm315, %v3647, 0
  %3651 = vmatprep.subr.mxu0 0.0
  %3652 = vmatpush1.msra.mxu0 %v69
  %3653 = vmatprep.subr.mxu0 0.0
  %3654 = vmatpush1.msra.mxu0 %v70
  %3655 = vmatprep.subr.mxu0 0.0
  %3656 = vmatpush1.msra.mxu0 %v71
  %3657 = vmatprep.subr.mxu0 0.0
  %3658 = vmatpush1.msra.mxu0 0.0
  %3659 = vmatprep.subr.mxu0 0.0
  %3660 = vmatpush1.msra.mxu0 0.0
  %3661 = vmatprep.subr.mxu0 0.0
  %3662 = vmatpush1.msra.mxu0 0.0
  %3663 = vmatprep.subr.mxu0 0.0
  %3664 = vmatpush1.msra.mxu0 0.0
  %3665 = vmatprep.subr.mxu0 0.0
  %3666 = vmatpush1.msra.mxu0 0.0
  %3667 = vmatprep.subr.mxu0 0.0
  %3668 = vmatpush1.msra.mxu0 0.0
  %3669 = vmatprep.subr.mxu0 0.0
  %3670 = vmatpush1.msra.mxu0 0.0
  %3671 = vmatprep.subr.mxu0 0.0
  %3672 = vmatpush1.msra.mxu0 0.0
  %3673 = vmatprep.subr.mxu0 0.0
  %3674 = vmatpush1.msra.mxu0 0.0
  %3675 = vmatprep.subr.mxu0 0.0
  %3676 = vmatpush1.msra.mxu0 0.0
  %3677 = vmatprep.subr.mxu0 0.0
  %3678 = vmatpush1.msra.mxu0 0.0
  %3679 = vmatprep.subr.mxu0 0.0
  %3680 = vmatpush1.msra.mxu0 0.0
  %3681 = vmatprep.subr.mxu0 0.0
  %3682 = vmatpush1.msra.mxu0 0.0
  %3683 = vmatprep.subr.mxu0 0.0
  %3684 = vmatpush1.msra.mxu0 0.0
  %3685 = vmatprep.subr.mxu0 0.0
  %3686 = vmatpush1.msra.mxu0 0.0
  %3687 = vmatprep.subr.mxu0 0.0
  %3688 = vmatpush1.msra.mxu0 0.0
  %3689 = vmatprep.subr.mxu0 0.0
  %3690 = vmatpush1.msra.mxu0 0.0
  %3691 = vmatprep.subr.mxu0 0.0
  %3692 = vmatpush1.msra.mxu0 0.0
  %3693 = vmatprep.subr.mxu0 0.0
  %3694 = vmatpush1.msra.mxu0 0.0
  %3695 = vmatprep.subr.mxu0 0.0
  %3696 = vmatpush1.msra.mxu0 0.0
  %3697 = vmatprep.subr.mxu0 0.0
  %3698 = vmatpush1.msra.mxu0 0.0
  %3699 = vmatprep.subr.mxu0 0.0
  %3700 = vmatpush1.msra.mxu0 0.0
  %3701 = vmatprep.subr.mxu0 0.0
  %3702 = vmatpush1.msra.mxu0 0.0
  %3703 = vmatprep.subr.mxu0 0.0
  %3704 = vmatpush1.msra.mxu0 0.0
  %3705 = vmatprep.subr.mxu0 0.0
  %3706 = vmatpush1.msra.mxu0 0.0
  %3707 = vmatprep.subr.mxu0 0.0
  %3708 = vmatpush1.msra.mxu0 0.0
  %3709 = vmatprep.subr.mxu0 0.0
  %3710 = vmatpush1.msra.mxu0 0.0
  %3711 = vmatprep.subr.mxu0 0.0
  %3712 = vmatpush1.msra.mxu0 0.0
  %3713 = vmatprep.subr.mxu0 0.0
  %3714 = vmatpush1.msra.mxu0 0.0
  %3715 = vmatprep.mubr.f32.mxu0 0.0
  %3716 = vmatmul.mubr.f32.gmra.mrb[0].mxu0 %v3649
  %v3717 = vpop.f32.mrb[0].mxu0
  %v3718 = vadd.f32 0.0, %v3717
  %v3719 = vpop.f32.mrb[0].mxu0
  %3720 = vdwg.mxu0
  %v3721 = vmul.f32 %v3277, 2.0
  %v3722 = vadd.f32 %v3056, %v3721
  %v3723 = vmul.f32 %v3498, 2.0
  %v3724 = vadd.f32 %v3722, %v3723
  %v3725 = vadd.f32 %v3724, %v3718
  %v3726 = vmul.f32 %v3725, 0.16666667
  %v3727 = vadd.f32 %v2837, %v3726
  %s3728 = scalar_lea.vmem %s1, 32
  %v3729 = vld [vmem:[%s3728] sm:$0xff]
  %v3731 = vsel %vm168, %v3727, 0
  %3733 = vmatprep.subr.mxu0 0.0
  %3734 = vmatpush1.msra.mxu0 %v38
  %3735 = vmatprep.subr.mxu0 0.0
  %3736 = vmatpush1.msra.mxu0 0.0
  %3737 = vmatprep.subr.mxu0 0.0
  %3738 = vmatpush1.msra.mxu0 0.0
  %3739 = vmatprep.subr.mxu0 0.0
  %3740 = vmatpush1.msra.mxu0 0.0
  %3741 = vmatprep.subr.mxu0 0.0
  %3742 = vmatpush1.msra.mxu0 0.0
  %3743 = vmatprep.subr.mxu0 0.0
  %3744 = vmatpush1.msra.mxu0 0.0
  %3745 = vmatprep.subr.mxu0 0.0
  %3746 = vmatpush1.msra.mxu0 0.0
  %3747 = vmatprep.subr.mxu0 0.0
  %3748 = vmatpush1.msra.mxu0 0.0
  %3749 = vmatprep.subr.mxu0 0.0
  %3750 = vmatpush1.msra.mxu0 0.0
  %3751 = vmatprep.subr.mxu0 0.0
  %3752 = vmatpush1.msra.mxu0 0.0
  %3753 = vmatprep.subr.mxu0 0.0
  %3754 = vmatpush1.msra.mxu0 0.0
  %3755 = vmatprep.subr.mxu0 0.0
  %3756 = vmatpush1.msra.mxu0 0.0
  %3757 = vmatprep.subr.mxu0 0.0
  %3758 = vmatpush1.msra.mxu0 0.0
  %3759 = vmatprep.subr.mxu0 0.0
  %3760 = vmatpush1.msra.mxu0 0.0
  %3761 = vmatprep.subr.mxu0 0.0
  %3762 = vmatpush1.msra.mxu0 0.0
  %3763 = vmatprep.subr.mxu0 0.0
  %3764 = vmatpush1.msra.mxu0 0.0
  %3765 = vmatprep.subr.mxu0 0.0
  %3766 = vmatpush1.msra.mxu0 0.0
  %3767 = vmatprep.subr.mxu0 0.0
  %3768 = vmatpush1.msra.mxu0 0.0
  %3769 = vmatprep.subr.mxu0 0.0
  %3770 = vmatpush1.msra.mxu0 0.0
  %3771 = vmatprep.subr.mxu0 0.0
  %3772 = vmatpush1.msra.mxu0 0.0
  %3773 = vmatprep.subr.mxu0 0.0
  %3774 = vmatpush1.msra.mxu0 0.0
  %3775 = vmatprep.subr.mxu0 0.0
  %3776 = vmatpush1.msra.mxu0 0.0
  %3777 = vmatprep.subr.mxu0 0.0
  %3778 = vmatpush1.msra.mxu0 0.0
  %3779 = vmatprep.subr.mxu0 0.0
  %3780 = vmatpush1.msra.mxu0 0.0
  %3781 = vmatprep.subr.mxu0 0.0
  %3782 = vmatpush1.msra.mxu0 0.0
  %3783 = vmatprep.subr.mxu0 0.0
  %3784 = vmatpush1.msra.mxu0 0.0
  %3785 = vmatprep.subr.mxu0 0.0
  %3786 = vmatpush1.msra.mxu0 0.0
  %3787 = vmatprep.subr.mxu0 0.0
  %3788 = vmatpush1.msra.mxu0 0.0
  %3789 = vmatprep.subr.mxu0 0.0
  %3790 = vmatpush1.msra.mxu0 0.0
  %3791 = vmatprep.subr.mxu0 0.0
  %3792 = vmatpush1.msra.mxu0 0.0
  %3793 = vmatprep.subr.mxu0 0.0
  %3794 = vmatpush1.msra.mxu0 0.0
  %3795 = vmatprep.subr.mxu0 0.0
  %3796 = vmatpush1.msra.mxu0 0.0
  %3797 = vmatprep.mubr.f32.mxu0 0.0
  %3798 = vmatmul.mubr.f32.gmra.mrb[0].mxu0 %v3731
  %v3799 = vpop.f32.mrb[0].mxu0
  %v3800 = vadd.f32 %v44, %v3799
  %v3801 = vpop.f32.mrb[0].mxu0
  %3802 = vdwg.mxu0
  %v3803 = vmax.f32 %v3800, 0.0
  %3804 = vmatprep.subr.mxu0 0.0
  %3805 = vmatpush1.msra.mxu0 %v46
  %3806 = vmatprep.subr.mxu0 0.0
  %3807 = vmatpush1.msra.mxu0 %v47
  %3808 = vmatprep.subr.mxu0 0.0
  %3809 = vmatpush1.msra.mxu0 %v48
  %3810 = vmatprep.subr.mxu0 0.0
  %3811 = vmatpush1.msra.mxu0 %v49
  %3812 = vmatprep.subr.mxu0 0.0
  %3813 = vmatpush1.msra.mxu0 %v50
  %3814 = vmatprep.subr.mxu0 0.0
  %3815 = vmatpush1.msra.mxu0 %v51
  %3816 = vmatprep.subr.mxu0 0.0
  %3817 = vmatpush1.msra.mxu0 %v52
  %3818 = vmatprep.subr.mxu0 0.0
  %3819 = vmatpush1.msra.mxu0 %v53
  %3820 = vmatprep.subr.mxu0 0.0
  %3821 = vmatpush1.msra.mxu0 %v54
  %3822 = vmatprep.subr.mxu0 0.0
  %3823 = vmatpush1.msra.mxu0 %v55
  %3824 = vmatprep.subr.mxu0 0.0
  %3825 = vmatpush1.msra.mxu0 %v56
  %3826 = vmatprep.subr.mxu0 0.0
  %3827 = vmatpush1.msra.mxu0 %v57
  %3828 = vmatprep.subr.mxu0 0.0
  %3829 = vmatpush1.msra.mxu0 %v58
  %3830 = vmatprep.subr.mxu0 0.0
  %3831 = vmatpush1.msra.mxu0 %v59
  %3832 = vmatprep.subr.mxu0 0.0
  %3833 = vmatpush1.msra.mxu0 %v60
  %3834 = vmatprep.subr.mxu0 0.0
  %3835 = vmatpush1.msra.mxu0 %v61
  %3836 = vmatprep.subr.mxu0 0.0
  %3837 = vmatpush1.msra.mxu0 0.0
  %3838 = vmatprep.subr.mxu0 0.0
  %3839 = vmatpush1.msra.mxu0 0.0
  %3840 = vmatprep.subr.mxu0 0.0
  %3841 = vmatpush1.msra.mxu0 0.0
  %3842 = vmatprep.subr.mxu0 0.0
  %3843 = vmatpush1.msra.mxu0 0.0
  %3844 = vmatprep.subr.mxu0 0.0
  %3845 = vmatpush1.msra.mxu0 0.0
  %3846 = vmatprep.subr.mxu0 0.0
  %3847 = vmatpush1.msra.mxu0 0.0
  %3848 = vmatprep.subr.mxu0 0.0
  %3849 = vmatpush1.msra.mxu0 0.0
  %3850 = vmatprep.subr.mxu0 0.0
  %3851 = vmatpush1.msra.mxu0 0.0
  %3852 = vmatprep.subr.mxu0 0.0
  %3853 = vmatpush1.msra.mxu0 0.0
  %3854 = vmatprep.subr.mxu0 0.0
  %3855 = vmatpush1.msra.mxu0 0.0
  %3856 = vmatprep.subr.mxu0 0.0
  %3857 = vmatpush1.msra.mxu0 0.0
  %3858 = vmatprep.subr.mxu0 0.0
  %3859 = vmatpush1.msra.mxu0 0.0
  %3860 = vmatprep.subr.mxu0 0.0
  %3861 = vmatpush1.msra.mxu0 0.0
  %3862 = vmatprep.subr.mxu0 0.0
  %3863 = vmatpush1.msra.mxu0 0.0
  %3864 = vmatprep.subr.mxu0 0.0
  %3865 = vmatpush1.msra.mxu0 0.0
  %3866 = vmatprep.subr.mxu0 0.0
  %3867 = vmatpush1.msra.mxu0 0.0
  %3868 = vmatprep.mubr.f32.mxu0 0.0
  %3869 = vmatmul.mubr.f32.gmra.mrb[0].mxu0 %v3803
  %v3870 = vpop.f32.mrb[0].mxu0
  %v3871 = vadd.f32 %v67, %v3870
  %v3872 = vpop.f32.mrb[0].mxu0
  %3873 = vdwg.mxu0
  %v3874 = vtanh.pop %v3871
  %v3875 = vmul.f32 %v3874, %v3729
  %v3877 = vsel %vm315, %v3875, 0
  %3879 = vmatprep.subr.mxu0 0.0
  %3880 = vmatpush1.msra.mxu0 %v69
  %3881 = vmatprep.subr.mxu0 0.0
  %3882 = vmatpush1.msra.mxu0 %v70
  %3883 = vmatprep.subr.mxu0 0.0
  %3884 = vmatpush1.msra.mxu0 %v71
  %3885 = vmatprep.subr.mxu0 0.0
  %3886 = vmatpush1.msra.mxu0 0.0
  %3887 = vmatprep.subr.mxu0 0.0
  %3888 = vmatpush1.msra.mxu0 0.0
  %3889 = vmatprep.subr.mxu0 0.0
  %3890 = vmatpush1.msra.mxu0 0.0
  %3891 = vmatprep.subr.mxu0 0.0
  %3892 = vmatpush1.msra.mxu0 0.0
  %3893 = vmatprep.subr.mxu0 0.0
  %3894 = vmatpush1.msra.mxu0 0.0
  %3895 = vmatprep.subr.mxu0 0.0
  %3896 = vmatpush1.msra.mxu0 0.0
  %3897 = vmatprep.subr.mxu0 0.0
  %3898 = vmatpush1.msra.mxu0 0.0
  %3899 = vmatprep.subr.mxu0 0.0
  %3900 = vmatpush1.msra.mxu0 0.0
  %3901 = vmatprep.subr.mxu0 0.0
  %3902 = vmatpush1.msra.mxu0 0.0
  %3903 = vmatprep.subr.mxu0 0.0
  %3904 = vmatpush1.msra.mxu0 0.0
  %3905 = vmatprep.subr.mxu0 0.0
  %3906 = vmatpush1.msra.mxu0 0.0
  %3907 = vmatprep.subr.mxu0 0.0
  %3908 = vmatpush1.msra.mxu0 0.0
  %3909 = vmatprep.subr.mxu0 0.0
  %3910 = vmatpush1.msra.mxu0 0.0
  %3911 = vmatprep.subr.mxu0 0.0
  %3912 = vmatpush1.msra.mxu0 0.0
  %3913 = vmatprep.subr.mxu0 0.0
  %3914 = vmatpush1.msra.mxu0 0.0
  %3915 = vmatprep.subr.mxu0 0.0
  %3916 = vmatpush1.msra.mxu0 0.0
  %3917 = vmatprep.subr.mxu0 0.0
  %3918 = vmatpush1.msra.mxu0 0.0
  %3919 = vmatprep.subr.mxu0 0.0
  %3920 = vmatpush1.msra.mxu0 0.0
  %3921 = vmatprep.subr.mxu0 0.0
  %3922 = vmatpush1.msra.mxu0 0.0
  %3923 = vmatprep.subr.mxu0 0.0
  %3924 = vmatpush1.msra.mxu0 0.0
  %3925 = vmatprep.subr.mxu0 0.0
  %3926 = vmatpush1.msra.mxu0 0.0
  %3927 = vmatprep.subr.mxu0 0.0
  %3928 = vmatpush1.msra.mxu0 0.0
  %3929 = vmatprep.subr.mxu0 0.0
  %3930 = vmatpush1.msra.mxu0 0.0
  %3931 = vmatprep.subr.mxu0 0.0
  %3932 = vmatpush1.msra.mxu0 0.0
  %3933 = vmatprep.subr.mxu0 0.0
  %3934 = vmatpush1.msra.mxu0 0.0
  %3935 = vmatprep.subr.mxu0 0.0
  %3936 = vmatpush1.msra.mxu0 0.0
  %3937 = vmatprep.subr.mxu0 0.0
  %3938 = vmatpush1.msra.mxu0 0.0
  %3939 = vmatprep.subr.mxu0 0.0
  %3940 = vmatpush1.msra.mxu0 0.0
  %3941 = vmatprep.subr.mxu0 0.0
  %3942 = vmatpush1.msra.mxu0 0.0
  %3943 = vmatprep.mubr.f32.mxu0 0.0
  %3944 = vmatmul.mubr.f32.gmra.mrb[0].mxu0 %v3877
  %v3945 = vpop.f32.mrb[0].mxu0
  %v3946 = vadd.f32 0.0, %v3945
  %v3947 = vpop.f32.mrb[0].mxu0
  %3948 = vdwg.mxu0
  %v3949 = vmul.f32 %v3946, 0.5
  %v3950 = vadd.f32 %v3727, %v3949
  %v3952 = vsel %vm168, %v3950, 0
  %3954 = vmatprep.subr.mxu0 0.0
  %3955 = vmatpush1.msra.mxu0 %v38
  %3956 = vmatprep.subr.mxu0 0.0
  %3957 = vmatpush1.msra.mxu0 0.0
  %3958 = vmatprep.subr.mxu0 0.0
  %3959 = vmatpush1.msra.mxu0 0.0
  %3960 = vmatprep.subr.mxu0 0.0
  %3961 = vmatpush1.msra.mxu0 0.0
  %3962 = vmatprep.subr.mxu0 0.0
  %3963 = vmatpush1.msra.mxu0 0.0
  %3964 = vmatprep.subr.mxu0 0.0
  %3965 = vmatpush1.msra.mxu0 0.0
  %3966 = vmatprep.subr.mxu0 0.0
  %3967 = vmatpush1.msra.mxu0 0.0
  %3968 = vmatprep.subr.mxu0 0.0
  %3969 = vmatpush1.msra.mxu0 0.0
  %3970 = vmatprep.subr.mxu0 0.0
  %3971 = vmatpush1.msra.mxu0 0.0
  %3972 = vmatprep.subr.mxu0 0.0
  %3973 = vmatpush1.msra.mxu0 0.0
  %3974 = vmatprep.subr.mxu0 0.0
  %3975 = vmatpush1.msra.mxu0 0.0
  %3976 = vmatprep.subr.mxu0 0.0
  %3977 = vmatpush1.msra.mxu0 0.0
  %3978 = vmatprep.subr.mxu0 0.0
  %3979 = vmatpush1.msra.mxu0 0.0
  %3980 = vmatprep.subr.mxu0 0.0
  %3981 = vmatpush1.msra.mxu0 0.0
  %3982 = vmatprep.subr.mxu0 0.0
  %3983 = vmatpush1.msra.mxu0 0.0
  %3984 = vmatprep.subr.mxu0 0.0
  %3985 = vmatpush1.msra.mxu0 0.0
  %3986 = vmatprep.subr.mxu0 0.0
  %3987 = vmatpush1.msra.mxu0 0.0
  %3988 = vmatprep.subr.mxu0 0.0
  %3989 = vmatpush1.msra.mxu0 0.0
  %3990 = vmatprep.subr.mxu0 0.0
  %3991 = vmatpush1.msra.mxu0 0.0
  %3992 = vmatprep.subr.mxu0 0.0
  %3993 = vmatpush1.msra.mxu0 0.0
  %3994 = vmatprep.subr.mxu0 0.0
  %3995 = vmatpush1.msra.mxu0 0.0
  %3996 = vmatprep.subr.mxu0 0.0
  %3997 = vmatpush1.msra.mxu0 0.0
  %3998 = vmatprep.subr.mxu0 0.0
  %3999 = vmatpush1.msra.mxu0 0.0
  %4000 = vmatprep.subr.mxu0 0.0
  %4001 = vmatpush1.msra.mxu0 0.0
  %4002 = vmatprep.subr.mxu0 0.0
  %4003 = vmatpush1.msra.mxu0 0.0
  %4004 = vmatprep.subr.mxu0 0.0
  %4005 = vmatpush1.msra.mxu0 0.0
  %4006 = vmatprep.subr.mxu0 0.0
  %4007 = vmatpush1.msra.mxu0 0.0
  %4008 = vmatprep.subr.mxu0 0.0
  %4009 = vmatpush1.msra.mxu0 0.0
  %4010 = vmatprep.subr.mxu0 0.0
  %4011 = vmatpush1.msra.mxu0 0.0
  %4012 = vmatprep.subr.mxu0 0.0
  %4013 = vmatpush1.msra.mxu0 0.0
  %4014 = vmatprep.subr.mxu0 0.0
  %4015 = vmatpush1.msra.mxu0 0.0
  %4016 = vmatprep.subr.mxu0 0.0
  %4017 = vmatpush1.msra.mxu0 0.0
  %4018 = vmatprep.mubr.f32.mxu0 0.0
  %4019 = vmatmul.mubr.f32.gmra.mrb[0].mxu0 %v3952
  %v4020 = vpop.f32.mrb[0].mxu0
  %v4021 = vadd.f32 %v44, %v4020
  %v4022 = vpop.f32.mrb[0].mxu0
  %4023 = vdwg.mxu0
  %v4024 = vmax.f32 %v4021, 0.0
  %4025 = vmatprep.subr.mxu0 0.0
  %4026 = vmatpush1.msra.mxu0 %v46
  %4027 = vmatprep.subr.mxu0 0.0
  %4028 = vmatpush1.msra.mxu0 %v47
  %4029 = vmatprep.subr.mxu0 0.0
  %4030 = vmatpush1.msra.mxu0 %v48
  %4031 = vmatprep.subr.mxu0 0.0
  %4032 = vmatpush1.msra.mxu0 %v49
  %4033 = vmatprep.subr.mxu0 0.0
  %4034 = vmatpush1.msra.mxu0 %v50
  %4035 = vmatprep.subr.mxu0 0.0
  %4036 = vmatpush1.msra.mxu0 %v51
  %4037 = vmatprep.subr.mxu0 0.0
  %4038 = vmatpush1.msra.mxu0 %v52
  %4039 = vmatprep.subr.mxu0 0.0
  %4040 = vmatpush1.msra.mxu0 %v53
  %4041 = vmatprep.subr.mxu0 0.0
  %4042 = vmatpush1.msra.mxu0 %v54
  %4043 = vmatprep.subr.mxu0 0.0
  %4044 = vmatpush1.msra.mxu0 %v55
  %4045 = vmatprep.subr.mxu0 0.0
  %4046 = vmatpush1.msra.mxu0 %v56
  %4047 = vmatprep.subr.mxu0 0.0
  %4048 = vmatpush1.msra.mxu0 %v57
  %4049 = vmatprep.subr.mxu0 0.0
  %4050 = vmatpush1.msra.mxu0 %v58
  %4051 = vmatprep.subr.mxu0 0.0
  %4052 = vmatpush1.msra.mxu0 %v59
  %4053 = vmatprep.subr.mxu0 0.0
  %4054 = vmatpush1.msra.mxu0 %v60
  %4055 = vmatprep.subr.mxu0 0.0
  %4056 = vmatpush1.msra.mxu0 %v61
  %4057 = vmatprep.subr.mxu0 0.0
  %4058 = vmatpush1.msra.mxu0 0.0
  %4059 = vmatprep.subr.mxu0 0.0
  %4060 = vmatpush1.msra.mxu0 0.0
  %4061 = vmatprep.subr.mxu0 0.0
  %4062 = vmatpush1.msra.mxu0 0.0
  %4063 = vmatprep.subr.mxu0 0.0
  %4064 = vmatpush1.msra.mxu0 0.0
  %4065 = vmatprep.subr.mxu0 0.0
  %4066 = vmatpush1.msra.mxu0 0.0
  %4067 = vmatprep.subr.mxu0 0.0
  %4068 = vmatpush1.msra.mxu0 0.0
  %4069 = vmatprep.subr.mxu0 0.0
  %4070 = vmatpush1.msra.mxu0 0.0
  %4071 = vmatprep.subr.mxu0 0.0
  %4072 = vmatpush1.msra.mxu0 0.0
  %4073 = vmatprep.subr.mxu0 0.0
  %4074 = vmatpush1.msra.mxu0 0.0
  %4075 = vmatprep.subr.mxu0 0.0
  %4076 = vmatpush1.msra.mxu0 0.0
  %4077 = vmatprep.subr.mxu0 0.0
  %4078 = vmatpush1.msra.mxu0 0.0
  %4079 = vmatprep.subr.mxu0 0.0
  %4080 = vmatpush1.msra.mxu0 0.0
  %4081 = vmatprep.subr.mxu0 0.0
  %4082 = vmatpush1.msra.mxu0 0.0
  %4083 = vmatprep.subr.mxu0 0.0
  %4084 = vmatpush1.msra.mxu0 0.0
  %4085 = vmatprep.subr.mxu0 0.0
  %4086 = vmatpush1.msra.mxu0 0.0
  %4087 = vmatprep.subr.mxu0 0.0
  %4088 = vmatpush1.msra.mxu0 0.0
  %4089 = vmatprep.mubr.f32.mxu0 0.0
  %4090 = vmatmul.mubr.f32.gmra.mrb[0].mxu0 %v4024
  %v4091 = vpop.f32.mrb[0].mxu0
  %v4092 = vadd.f32 %v67, %v4091
  %v4093 = vpop.f32.mrb[0].mxu0
  %4094 = vdwg.mxu0
  %v4095 = vtanh.pop %v4092
  %v4096 = vmul.f32 %v4095, %v3729
  %v4098 = vsel %vm315, %v4096, 0
  %4100 = vmatprep.subr.mxu0 0.0
  %4101 = vmatpush1.msra.mxu0 %v69
  %4102 = vmatprep.subr.mxu0 0.0
  %4103 = vmatpush1.msra.mxu0 %v70
  %4104 = vmatprep.subr.mxu0 0.0
  %4105 = vmatpush1.msra.mxu0 %v71
  %4106 = vmatprep.subr.mxu0 0.0
  %4107 = vmatpush1.msra.mxu0 0.0
  %4108 = vmatprep.subr.mxu0 0.0
  %4109 = vmatpush1.msra.mxu0 0.0
  %4110 = vmatprep.subr.mxu0 0.0
  %4111 = vmatpush1.msra.mxu0 0.0
  %4112 = vmatprep.subr.mxu0 0.0
  %4113 = vmatpush1.msra.mxu0 0.0
  %4114 = vmatprep.subr.mxu0 0.0
  %4115 = vmatpush1.msra.mxu0 0.0
  %4116 = vmatprep.subr.mxu0 0.0
  %4117 = vmatpush1.msra.mxu0 0.0
  %4118 = vmatprep.subr.mxu0 0.0
  %4119 = vmatpush1.msra.mxu0 0.0
  %4120 = vmatprep.subr.mxu0 0.0
  %4121 = vmatpush1.msra.mxu0 0.0
  %4122 = vmatprep.subr.mxu0 0.0
  %4123 = vmatpush1.msra.mxu0 0.0
  %4124 = vmatprep.subr.mxu0 0.0
  %4125 = vmatpush1.msra.mxu0 0.0
  %4126 = vmatprep.subr.mxu0 0.0
  %4127 = vmatpush1.msra.mxu0 0.0
  %4128 = vmatprep.subr.mxu0 0.0
  %4129 = vmatpush1.msra.mxu0 0.0
  %4130 = vmatprep.subr.mxu0 0.0
  %4131 = vmatpush1.msra.mxu0 0.0
  %4132 = vmatprep.subr.mxu0 0.0
  %4133 = vmatpush1.msra.mxu0 0.0
  %4134 = vmatprep.subr.mxu0 0.0
  %4135 = vmatpush1.msra.mxu0 0.0
  %4136 = vmatprep.subr.mxu0 0.0
  %4137 = vmatpush1.msra.mxu0 0.0
  %4138 = vmatprep.subr.mxu0 0.0
  %4139 = vmatpush1.msra.mxu0 0.0
  %4140 = vmatprep.subr.mxu0 0.0
  %4141 = vmatpush1.msra.mxu0 0.0
  %4142 = vmatprep.subr.mxu0 0.0
  %4143 = vmatpush1.msra.mxu0 0.0
  %4144 = vmatprep.subr.mxu0 0.0
  %4145 = vmatpush1.msra.mxu0 0.0
  %4146 = vmatprep.subr.mxu0 0.0
  %4147 = vmatpush1.msra.mxu0 0.0
  %4148 = vmatprep.subr.mxu0 0.0
  %4149 = vmatpush1.msra.mxu0 0.0
  %4150 = vmatprep.subr.mxu0 0.0
  %4151 = vmatpush1.msra.mxu0 0.0
  %4152 = vmatprep.subr.mxu0 0.0
  %4153 = vmatpush1.msra.mxu0 0.0
  %4154 = vmatprep.subr.mxu0 0.0
  %4155 = vmatpush1.msra.mxu0 0.0
  %4156 = vmatprep.subr.mxu0 0.0
  %4157 = vmatpush1.msra.mxu0 0.0
  %4158 = vmatprep.subr.mxu0 0.0
  %4159 = vmatpush1.msra.mxu0 0.0
  %4160 = vmatprep.subr.mxu0 0.0
  %4161 = vmatpush1.msra.mxu0 0.0
  %4162 = vmatprep.subr.mxu0 0.0
  %4163 = vmatpush1.msra.mxu0 0.0
  %4164 = vmatprep.mubr.f32.mxu0 0.0
  %4165 = vmatmul.mubr.f32.gmra.mrb[0].mxu0 %v4098
  %v4166 = vpop.f32.mrb[0].mxu0
  %v4167 = vadd.f32 0.0, %v4166
  %v4168 = vpop.f32.mrb[0].mxu0
  %4169 = vdwg.mxu0
  %v4170 = vmul.f32 %v4167, 0.5
  %v4171 = vadd.f32 %v3727, %v4170
  %v4173 = vsel %vm168, %v4171, 0
  %4175 = vmatprep.subr.mxu0 0.0
  %4176 = vmatpush1.msra.mxu0 %v38
  %4177 = vmatprep.subr.mxu0 0.0
  %4178 = vmatpush1.msra.mxu0 0.0
  %4179 = vmatprep.subr.mxu0 0.0
  %4180 = vmatpush1.msra.mxu0 0.0
  %4181 = vmatprep.subr.mxu0 0.0
  %4182 = vmatpush1.msra.mxu0 0.0
  %4183 = vmatprep.subr.mxu0 0.0
  %4184 = vmatpush1.msra.mxu0 0.0
  %4185 = vmatprep.subr.mxu0 0.0
  %4186 = vmatpush1.msra.mxu0 0.0
  %4187 = vmatprep.subr.mxu0 0.0
  %4188 = vmatpush1.msra.mxu0 0.0
  %4189 = vmatprep.subr.mxu0 0.0
  %4190 = vmatpush1.msra.mxu0 0.0
  %4191 = vmatprep.subr.mxu0 0.0
  %4192 = vmatpush1.msra.mxu0 0.0
  %4193 = vmatprep.subr.mxu0 0.0
  %4194 = vmatpush1.msra.mxu0 0.0
  %4195 = vmatprep.subr.mxu0 0.0
  %4196 = vmatpush1.msra.mxu0 0.0
  %4197 = vmatprep.subr.mxu0 0.0
  %4198 = vmatpush1.msra.mxu0 0.0
  %4199 = vmatprep.subr.mxu0 0.0
  %4200 = vmatpush1.msra.mxu0 0.0
  %4201 = vmatprep.subr.mxu0 0.0
  %4202 = vmatpush1.msra.mxu0 0.0
  %4203 = vmatprep.subr.mxu0 0.0
  %4204 = vmatpush1.msra.mxu0 0.0
  %4205 = vmatprep.subr.mxu0 0.0
  %4206 = vmatpush1.msra.mxu0 0.0
  %4207 = vmatprep.subr.mxu0 0.0
  %4208 = vmatpush1.msra.mxu0 0.0
  %4209 = vmatprep.subr.mxu0 0.0
  %4210 = vmatpush1.msra.mxu0 0.0
  %4211 = vmatprep.subr.mxu0 0.0
  %4212 = vmatpush1.msra.mxu0 0.0
  %4213 = vmatprep.subr.mxu0 0.0
  %4214 = vmatpush1.msra.mxu0 0.0
  %4215 = vmatprep.subr.mxu0 0.0
  %4216 = vmatpush1.msra.mxu0 0.0
  %4217 = vmatprep.subr.mxu0 0.0
  %4218 = vmatpush1.msra.mxu0 0.0
  %4219 = vmatprep.subr.mxu0 0.0
  %4220 = vmatpush1.msra.mxu0 0.0
  %4221 = vmatprep.subr.mxu0 0.0
  %4222 = vmatpush1.msra.mxu0 0.0
  %4223 = vmatprep.subr.mxu0 0.0
  %4224 = vmatpush1.msra.mxu0 0.0
  %4225 = vmatprep.subr.mxu0 0.0
  %4226 = vmatpush1.msra.mxu0 0.0
  %4227 = vmatprep.subr.mxu0 0.0
  %4228 = vmatpush1.msra.mxu0 0.0
  %4229 = vmatprep.subr.mxu0 0.0
  %4230 = vmatpush1.msra.mxu0 0.0
  %4231 = vmatprep.subr.mxu0 0.0
  %4232 = vmatpush1.msra.mxu0 0.0
  %4233 = vmatprep.subr.mxu0 0.0
  %4234 = vmatpush1.msra.mxu0 0.0
  %4235 = vmatprep.subr.mxu0 0.0
  %4236 = vmatpush1.msra.mxu0 0.0
  %4237 = vmatprep.subr.mxu0 0.0
  %4238 = vmatpush1.msra.mxu0 0.0
  %4239 = vmatprep.mubr.f32.mxu0 0.0
  %4240 = vmatmul.mubr.f32.gmra.mrb[0].mxu0 %v4173
  %v4241 = vpop.f32.mrb[0].mxu0
  %v4242 = vadd.f32 %v44, %v4241
  %v4243 = vpop.f32.mrb[0].mxu0
  %4244 = vdwg.mxu0
  %v4245 = vmax.f32 %v4242, 0.0
  %4246 = vmatprep.subr.mxu0 0.0
  %4247 = vmatpush1.msra.mxu0 %v46
  %4248 = vmatprep.subr.mxu0 0.0
  %4249 = vmatpush1.msra.mxu0 %v47
  %4250 = vmatprep.subr.mxu0 0.0
  %4251 = vmatpush1.msra.mxu0 %v48
  %4252 = vmatprep.subr.mxu0 0.0
  %4253 = vmatpush1.msra.mxu0 %v49
  %4254 = vmatprep.subr.mxu0 0.0
  %4255 = vmatpush1.msra.mxu0 %v50
  %4256 = vmatprep.subr.mxu0 0.0
  %4257 = vmatpush1.msra.mxu0 %v51
  %4258 = vmatprep.subr.mxu0 0.0
  %4259 = vmatpush1.msra.mxu0 %v52
  %4260 = vmatprep.subr.mxu0 0.0
  %4261 = vmatpush1.msra.mxu0 %v53
  %4262 = vmatprep.subr.mxu0 0.0
  %4263 = vmatpush1.msra.mxu0 %v54
  %4264 = vmatprep.subr.mxu0 0.0
  %4265 = vmatpush1.msra.mxu0 %v55
  %4266 = vmatprep.subr.mxu0 0.0
  %4267 = vmatpush1.msra.mxu0 %v56
  %4268 = vmatprep.subr.mxu0 0.0
  %4269 = vmatpush1.msra.mxu0 %v57
  %4270 = vmatprep.subr.mxu0 0.0
  %4271 = vmatpush1.msra.mxu0 %v58
  %4272 = vmatprep.subr.mxu0 0.0
  %4273 = vmatpush1.msra.mxu0 %v59
  %4274 = vmatprep.subr.mxu0 0.0
  %4275 = vmatpush1.msra.mxu0 %v60
  %4276 = vmatprep.subr.mxu0 0.0
  %4277 = vmatpush1.msra.mxu0 %v61
  %4278 = vmatprep.subr.mxu0 0.0
  %4279 = vmatpush1.msra.mxu0 0.0
  %4280 = vmatprep.subr.mxu0 0.0
  %4281 = vmatpush1.msra.mxu0 0.0
  %4282 = vmatprep.subr.mxu0 0.0
  %4283 = vmatpush1.msra.mxu0 0.0
  %4284 = vmatprep.subr.mxu0 0.0
  %4285 = vmatpush1.msra.mxu0 0.0
  %4286 = vmatprep.subr.mxu0 0.0
  %4287 = vmatpush1.msra.mxu0 0.0
  %4288 = vmatprep.subr.mxu0 0.0
  %4289 = vmatpush1.msra.mxu0 0.0
  %4290 = vmatprep.subr.mxu0 0.0
  %4291 = vmatpush1.msra.mxu0 0.0
  %4292 = vmatprep.subr.mxu0 0.0
  %4293 = vmatpush1.msra.mxu0 0.0
  %4294 = vmatprep.subr.mxu0 0.0
  %4295 = vmatpush1.msra.mxu0 0.0
  %4296 = vmatprep.subr.mxu0 0.0
  %4297 = vmatpush1.msra.mxu0 0.0
  %4298 = vmatprep.subr.mxu0 0.0
  %4299 = vmatpush1.msra.mxu0 0.0
  %4300 = vmatprep.subr.mxu0 0.0
  %4301 = vmatpush1.msra.mxu0 0.0
  %4302 = vmatprep.subr.mxu0 0.0
  %4303 = vmatpush1.msra.mxu0 0.0
  %4304 = vmatprep.subr.mxu0 0.0
  %4305 = vmatpush1.msra.mxu0 0.0
  %4306 = vmatprep.subr.mxu0 0.0
  %4307 = vmatpush1.msra.mxu0 0.0
  %4308 = vmatprep.subr.mxu0 0.0
  %4309 = vmatpush1.msra.mxu0 0.0
  %4310 = vmatprep.mubr.f32.mxu0 0.0
  %4311 = vmatmul.mubr.f32.gmra.mrb[0].mxu0 %v4245
  %v4312 = vpop.f32.mrb[0].mxu0
  %v4313 = vadd.f32 %v67, %v4312
  %v4314 = vpop.f32.mrb[0].mxu0
  %4315 = vdwg.mxu0
  %v4316 = vtanh.pop %v4313
  %v4317 = vmul.f32 %v4316, %v3729
  %v4319 = vsel %vm315, %v4317, 0
  %4321 = vmatprep.subr.mxu0 0.0
  %4322 = vmatpush1.msra.mxu0 %v69
  %4323 = vmatprep.subr.mxu0 0.0
  %4324 = vmatpush1.msra.mxu0 %v70
  %4325 = vmatprep.subr.mxu0 0.0
  %4326 = vmatpush1.msra.mxu0 %v71
  %4327 = vmatprep.subr.mxu0 0.0
  %4328 = vmatpush1.msra.mxu0 0.0
  %4329 = vmatprep.subr.mxu0 0.0
  %4330 = vmatpush1.msra.mxu0 0.0
  %4331 = vmatprep.subr.mxu0 0.0
  %4332 = vmatpush1.msra.mxu0 0.0
  %4333 = vmatprep.subr.mxu0 0.0
  %4334 = vmatpush1.msra.mxu0 0.0
  %4335 = vmatprep.subr.mxu0 0.0
  %4336 = vmatpush1.msra.mxu0 0.0
  %4337 = vmatprep.subr.mxu0 0.0
  %4338 = vmatpush1.msra.mxu0 0.0
  %4339 = vmatprep.subr.mxu0 0.0
  %4340 = vmatpush1.msra.mxu0 0.0
  %4341 = vmatprep.subr.mxu0 0.0
  %4342 = vmatpush1.msra.mxu0 0.0
  %4343 = vmatprep.subr.mxu0 0.0
  %4344 = vmatpush1.msra.mxu0 0.0
  %4345 = vmatprep.subr.mxu0 0.0
  %4346 = vmatpush1.msra.mxu0 0.0
  %4347 = vmatprep.subr.mxu0 0.0
  %4348 = vmatpush1.msra.mxu0 0.0
  %4349 = vmatprep.subr.mxu0 0.0
  %4350 = vmatpush1.msra.mxu0 0.0
  %4351 = vmatprep.subr.mxu0 0.0
  %4352 = vmatpush1.msra.mxu0 0.0
  %4353 = vmatprep.subr.mxu0 0.0
  %4354 = vmatpush1.msra.mxu0 0.0
  %4355 = vmatprep.subr.mxu0 0.0
  %4356 = vmatpush1.msra.mxu0 0.0
  %4357 = vmatprep.subr.mxu0 0.0
  %4358 = vmatpush1.msra.mxu0 0.0
  %4359 = vmatprep.subr.mxu0 0.0
  %4360 = vmatpush1.msra.mxu0 0.0
  %4361 = vmatprep.subr.mxu0 0.0
  %4362 = vmatpush1.msra.mxu0 0.0
  %4363 = vmatprep.subr.mxu0 0.0
  %4364 = vmatpush1.msra.mxu0 0.0
  %4365 = vmatprep.subr.mxu0 0.0
  %4366 = vmatpush1.msra.mxu0 0.0
  %4367 = vmatprep.subr.mxu0 0.0
  %4368 = vmatpush1.msra.mxu0 0.0
  %4369 = vmatprep.subr.mxu0 0.0
  %4370 = vmatpush1.msra.mxu0 0.0
  %4371 = vmatprep.subr.mxu0 0.0
  %4372 = vmatpush1.msra.mxu0 0.0
  %4373 = vmatprep.subr.mxu0 0.0
  %4374 = vmatpush1.msra.mxu0 0.0
  %4375 = vmatprep.subr.mxu0 0.0
  %4376 = vmatpush1.msra.mxu0 0.0
  %4377 = vmatprep.subr.mxu0 0.0
  %4378 = vmatpush1.msra.mxu0 0.0
  %4379 = vmatprep.subr.mxu0 0.0
  %4380 = vmatpush1.msra.mxu0 0.0
  %4381 = vmatprep.subr.mxu0 0.0
  %4382 = vmatpush1.msra.mxu0 0.0
  %4383 = vmatprep.subr.mxu0 0.0
  %4384 = vmatpush1.msra.mxu0 0.0
  %4385 = vmatprep.mubr.f32.mxu0 0.0
  %4386 = vmatmul.mubr.f32.gmra.mrb[0].mxu0 %v4319
  %v4387 = vpop.f32.mrb[0].mxu0
  %v4388 = vadd.f32 0.0, %v4387
  %v4389 = vpop.f32.mrb[0].mxu0
  %4390 = vdwg.mxu0
  %v4391 = vadd.f32 %v3727, %v4388
  %v4393 = vsel %vm168, %v4391, 0
  %4395 = vmatprep.subr.mxu0 0.0
  %4396 = vmatpush1.msra.mxu0 %v38
  %4397 = vmatprep.subr.mxu0 0.0
  %4398 = vmatpush1.msra.mxu0 0.0
  %4399 = vmatprep.subr.mxu0 0.0
  %4400 = vmatpush1.msra.mxu0 0.0
  %4401 = vmatprep.subr.mxu0 0.0
  %4402 = vmatpush1.msra.mxu0 0.0
  %4403 = vmatprep.subr.mxu0 0.0
  %4404 = vmatpush1.msra.mxu0 0.0
  %4405 = vmatprep.subr.mxu0 0.0
  %4406 = vmatpush1.msra.mxu0 0.0
  %4407 = vmatprep.subr.mxu0 0.0
  %4408 = vmatpush1.msra.mxu0 0.0
  %4409 = vmatprep.subr.mxu0 0.0
  %4410 = vmatpush1.msra.mxu0 0.0
  %4411 = vmatprep.subr.mxu0 0.0
  %4412 = vmatpush1.msra.mxu0 0.0
  %4413 = vmatprep.subr.mxu0 0.0
  %4414 = vmatpush1.msra.mxu0 0.0
  %4415 = vmatprep.subr.mxu0 0.0
  %4416 = vmatpush1.msra.mxu0 0.0
  %4417 = vmatprep.subr.mxu0 0.0
  %4418 = vmatpush1.msra.mxu0 0.0
  %4419 = vmatprep.subr.mxu0 0.0
  %4420 = vmatpush1.msra.mxu0 0.0
  %4421 = vmatprep.subr.mxu0 0.0
  %4422 = vmatpush1.msra.mxu0 0.0
  %4423 = vmatprep.subr.mxu0 0.0
  %4424 = vmatpush1.msra.mxu0 0.0
  %4425 = vmatprep.subr.mxu0 0.0
  %4426 = vmatpush1.msra.mxu0 0.0
  %4427 = vmatprep.subr.mxu0 0.0
  %4428 = vmatpush1.msra.mxu0 0.0
  %4429 = vmatprep.subr.mxu0 0.0
  %4430 = vmatpush1.msra.mxu0 0.0
  %4431 = vmatprep.subr.mxu0 0.0
  %4432 = vmatpush1.msra.mxu0 0.0
  %4433 = vmatprep.subr.mxu0 0.0
  %4434 = vmatpush1.msra.mxu0 0.0
  %4435 = vmatprep.subr.mxu0 0.0
  %4436 = vmatpush1.msra.mxu0 0.0
  %4437 = vmatprep.subr.mxu0 0.0
  %4438 = vmatpush1.msra.mxu0 0.0
  %4439 = vmatprep.subr.mxu0 0.0
  %4440 = vmatpush1.msra.mxu0 0.0
  %4441 = vmatprep.subr.mxu0 0.0
  %4442 = vmatpush1.msra.mxu0 0.0
  %4443 = vmatprep.subr.mxu0 0.0
  %4444 = vmatpush1.msra.mxu0 0.0
  %4445 = vmatprep.subr.mxu0 0.0
  %4446 = vmatpush1.msra.mxu0 0.0
  %4447 = vmatprep.subr.mxu0 0.0
  %4448 = vmatpush1.msra.mxu0 0.0
  %4449 = vmatprep.subr.mxu0 0.0
  %4450 = vmatpush1.msra.mxu0 0.0
  %4451 = vmatprep.subr.mxu0 0.0
  %4452 = vmatpush1.msra.mxu0 0.0
  %4453 = vmatprep.subr.mxu0 0.0
  %4454 = vmatpush1.msra.mxu0 0.0
  %4455 = vmatprep.subr.mxu0 0.0
  %4456 = vmatpush1.msra.mxu0 0.0
  %4457 = vmatprep.subr.mxu0 0.0
  %4458 = vmatpush1.msra.mxu0 0.0
  %4459 = vmatprep.mubr.f32.mxu0 0.0
  %4460 = vmatmul.mubr.f32.gmra.mrb[0].mxu0 %v4393
  %v4461 = vpop.f32.mrb[0].mxu0
  %v4462 = vadd.f32 %v44, %v4461
  %v4463 = vpop.f32.mrb[0].mxu0
  %4464 = vdwg.mxu0
  %v4465 = vmax.f32 %v4462, 0.0
  %4466 = vmatprep.subr.mxu0 0.0
  %4467 = vmatpush1.msra.mxu0 %v46
  %4468 = vmatprep.subr.mxu0 0.0
  %4469 = vmatpush1.msra.mxu0 %v47
  %4470 = vmatprep.subr.mxu0 0.0
  %4471 = vmatpush1.msra.mxu0 %v48
  %4472 = vmatprep.subr.mxu0 0.0
  %4473 = vmatpush1.msra.mxu0 %v49
  %4474 = vmatprep.subr.mxu0 0.0
  %4475 = vmatpush1.msra.mxu0 %v50
  %4476 = vmatprep.subr.mxu0 0.0
  %4477 = vmatpush1.msra.mxu0 %v51
  %4478 = vmatprep.subr.mxu0 0.0
  %4479 = vmatpush1.msra.mxu0 %v52
  %4480 = vmatprep.subr.mxu0 0.0
  %4481 = vmatpush1.msra.mxu0 %v53
  %4482 = vmatprep.subr.mxu0 0.0
  %4483 = vmatpush1.msra.mxu0 %v54
  %4484 = vmatprep.subr.mxu0 0.0
  %4485 = vmatpush1.msra.mxu0 %v55
  %4486 = vmatprep.subr.mxu0 0.0
  %4487 = vmatpush1.msra.mxu0 %v56
  %4488 = vmatprep.subr.mxu0 0.0
  %4489 = vmatpush1.msra.mxu0 %v57
  %4490 = vmatprep.subr.mxu0 0.0
  %4491 = vmatpush1.msra.mxu0 %v58
  %4492 = vmatprep.subr.mxu0 0.0
  %4493 = vmatpush1.msra.mxu0 %v59
  %4494 = vmatprep.subr.mxu0 0.0
  %4495 = vmatpush1.msra.mxu0 %v60
  %4496 = vmatprep.subr.mxu0 0.0
  %4497 = vmatpush1.msra.mxu0 %v61
  %4498 = vmatprep.subr.mxu0 0.0
  %4499 = vmatpush1.msra.mxu0 0.0
  %4500 = vmatprep.subr.mxu0 0.0
  %4501 = vmatpush1.msra.mxu0 0.0
  %4502 = vmatprep.subr.mxu0 0.0
  %4503 = vmatpush1.msra.mxu0 0.0
  %4504 = vmatprep.subr.mxu0 0.0
  %4505 = vmatpush1.msra.mxu0 0.0
  %4506 = vmatprep.subr.mxu0 0.0
  %4507 = vmatpush1.msra.mxu0 0.0
  %4508 = vmatprep.subr.mxu0 0.0
  %4509 = vmatpush1.msra.mxu0 0.0
  %4510 = vmatprep.subr.mxu0 0.0
  %4511 = vmatpush1.msra.mxu0 0.0
  %4512 = vmatprep.subr.mxu0 0.0
  %4513 = vmatpush1.msra.mxu0 0.0
  %4514 = vmatprep.subr.mxu0 0.0
  %4515 = vmatpush1.msra.mxu0 0.0
  %4516 = vmatprep.subr.mxu0 0.0
  %4517 = vmatpush1.msra.mxu0 0.0
  %4518 = vmatprep.subr.mxu0 0.0
  %4519 = vmatpush1.msra.mxu0 0.0
  %4520 = vmatprep.subr.mxu0 0.0
  %4521 = vmatpush1.msra.mxu0 0.0
  %4522 = vmatprep.subr.mxu0 0.0
  %4523 = vmatpush1.msra.mxu0 0.0
  %4524 = vmatprep.subr.mxu0 0.0
  %4525 = vmatpush1.msra.mxu0 0.0
  %4526 = vmatprep.subr.mxu0 0.0
  %4527 = vmatpush1.msra.mxu0 0.0
  %4528 = vmatprep.subr.mxu0 0.0
  %4529 = vmatpush1.msra.mxu0 0.0
  %4530 = vmatprep.mubr.f32.mxu0 0.0
  %4531 = vmatmul.mubr.f32.gmra.mrb[0].mxu0 %v4465
  %v4532 = vpop.f32.mrb[0].mxu0
  %v4533 = vadd.f32 %v67, %v4532
  %v4534 = vpop.f32.mrb[0].mxu0
  %4535 = vdwg.mxu0
  %v4536 = vtanh.pop %v4533
  %v4537 = vmul.f32 %v4536, %v3729
  %v4539 = vsel %vm315, %v4537, 0
  %4541 = vmatprep.subr.mxu0 0.0
  %4542 = vmatpush1.msra.mxu0 %v69
  %4543 = vmatprep.subr.mxu0 0.0
  %4544 = vmatpush1.msra.mxu0 %v70
  %4545 = vmatprep.subr.mxu0 0.0
  %4546 = vmatpush1.msra.mxu0 %v71
  %4547 = vmatprep.subr.mxu0 0.0
  %4548 = vmatpush1.msra.mxu0 0.0
  %4549 = vmatprep.subr.mxu0 0.0
  %4550 = vmatpush1.msra.mxu0 0.0
  %4551 = vmatprep.subr.mxu0 0.0
  %4552 = vmatpush1.msra.mxu0 0.0
  %4553 = vmatprep.subr.mxu0 0.0
  %4554 = vmatpush1.msra.mxu0 0.0
  %4555 = vmatprep.subr.mxu0 0.0
  %4556 = vmatpush1.msra.mxu0 0.0
  %4557 = vmatprep.subr.mxu0 0.0
  %4558 = vmatpush1.msra.mxu0 0.0
  %4559 = vmatprep.subr.mxu0 0.0
  %4560 = vmatpush1.msra.mxu0 0.0
  %4561 = vmatprep.subr.mxu0 0.0
  %4562 = vmatpush1.msra.mxu0 0.0
  %4563 = vmatprep.subr.mxu0 0.0
  %4564 = vmatpush1.msra.mxu0 0.0
  %4565 = vmatprep.subr.mxu0 0.0
  %4566 = vmatpush1.msra.mxu0 0.0
  %4567 = vmatprep.subr.mxu0 0.0
  %4568 = vmatpush1.msra.mxu0 0.0
  %4569 = vmatprep.subr.mxu0 0.0
  %4570 = vmatpush1.msra.mxu0 0.0
  %4571 = vmatprep.subr.mxu0 0.0
  %4572 = vmatpush1.msra.mxu0 0.0
  %4573 = vmatprep.subr.mxu0 0.0
  %4574 = vmatpush1.msra.mxu0 0.0
  %4575 = vmatprep.subr.mxu0 0.0
  %4576 = vmatpush1.msra.mxu0 0.0
  %4577 = vmatprep.subr.mxu0 0.0
  %4578 = vmatpush1.msra.mxu0 0.0
  %4579 = vmatprep.subr.mxu0 0.0
  %4580 = vmatpush1.msra.mxu0 0.0
  %4581 = vmatprep.subr.mxu0 0.0
  %4582 = vmatpush1.msra.mxu0 0.0
  %4583 = vmatprep.subr.mxu0 0.0
  %4584 = vmatpush1.msra.mxu0 0.0
  %4585 = vmatprep.subr.mxu0 0.0
  %4586 = vmatpush1.msra.mxu0 0.0
  %4587 = vmatprep.subr.mxu0 0.0
  %4588 = vmatpush1.msra.mxu0 0.0
  %4589 = vmatprep.subr.mxu0 0.0
  %4590 = vmatpush1.msra.mxu0 0.0
  %4591 = vmatprep.subr.mxu0 0.0
  %4592 = vmatpush1.msra.mxu0 0.0
  %4593 = vmatprep.subr.mxu0 0.0
  %4594 = vmatpush1.msra.mxu0 0.0
  %4595 = vmatprep.subr.mxu0 0.0
  %4596 = vmatpush1.msra.mxu0 0.0
  %4597 = vmatprep.subr.mxu0 0.0
  %4598 = vmatpush1.msra.mxu0 0.0
  %4599 = vmatprep.subr.mxu0 0.0
  %4600 = vmatpush1.msra.mxu0 0.0
  %4601 = vmatprep.subr.mxu0 0.0
  %4602 = vmatpush1.msra.mxu0 0.0
  %4603 = vmatprep.subr.mxu0 0.0
  %4604 = vmatpush1.msra.mxu0 0.0
  %4605 = vmatprep.mubr.f32.mxu0 0.0
  %4606 = vmatmul.mubr.f32.gmra.mrb[0].mxu0 %v4539
  %v4607 = vpop.f32.mrb[0].mxu0
  %v4608 = vadd.f32 0.0, %v4607
  %v4609 = vpop.f32.mrb[0].mxu0
  %4610 = vdwg.mxu0
  %v4611 = vmul.f32 %v4167, 2.0
  %v4612 = vadd.f32 %v3946, %v4611
  %v4613 = vmul.f32 %v4388, 2.0
  %v4614 = vadd.f32 %v4612, %v4613
  %v4615 = vadd.f32 %v4614, %v4608
  %v4616 = vmul.f32 %v4615, 0.16666667
  %v4617 = vadd.f32 %v3727, %v4616
  %s4618 = scalar_lea.vmem %s1, 40
  %v4619 = vld [vmem:[%s4618] sm:$0xff]
  %v4621 = vsel %vm168, %v4617, 0
  %4623 = vmatprep.subr.mxu0 0.0
  %4624 = vmatpush1.msra.mxu0 %v38
  %4625 = vmatprep.subr.mxu0 0.0
  %4626 = vmatpush1.msra.mxu0 0.0
  %4627 = vmatprep.subr.mxu0 0.0
  %4628 = vmatpush1.msra.mxu0 0.0
  %4629 = vmatprep.subr.mxu0 0.0
  %4630 = vmatpush1.msra.mxu0 0.0
  %4631 = vmatprep.subr.mxu0 0.0
  %4632 = vmatpush1.msra.mxu0 0.0
  %4633 = vmatprep.subr.mxu0 0.0
  %4634 = vmatpush1.msra.mxu0 0.0
  %4635 = vmatprep.subr.mxu0 0.0
  %4636 = vmatpush1.msra.mxu0 0.0
  %4637 = vmatprep.subr.mxu0 0.0
  %4638 = vmatpush1.msra.mxu0 0.0
  %4639 = vmatprep.subr.mxu0 0.0
  %4640 = vmatpush1.msra.mxu0 0.0
  %4641 = vmatprep.subr.mxu0 0.0
  %4642 = vmatpush1.msra.mxu0 0.0
  %4643 = vmatprep.subr.mxu0 0.0
  %4644 = vmatpush1.msra.mxu0 0.0
  %4645 = vmatprep.subr.mxu0 0.0
  %4646 = vmatpush1.msra.mxu0 0.0
  %4647 = vmatprep.subr.mxu0 0.0
  %4648 = vmatpush1.msra.mxu0 0.0
  %4649 = vmatprep.subr.mxu0 0.0
  %4650 = vmatpush1.msra.mxu0 0.0
  %4651 = vmatprep.subr.mxu0 0.0
  %4652 = vmatpush1.msra.mxu0 0.0
  %4653 = vmatprep.subr.mxu0 0.0
  %4654 = vmatpush1.msra.mxu0 0.0
  %4655 = vmatprep.subr.mxu0 0.0
  %4656 = vmatpush1.msra.mxu0 0.0
  %4657 = vmatprep.subr.mxu0 0.0
  %4658 = vmatpush1.msra.mxu0 0.0
  %4659 = vmatprep.subr.mxu0 0.0
  %4660 = vmatpush1.msra.mxu0 0.0
  %4661 = vmatprep.subr.mxu0 0.0
  %4662 = vmatpush1.msra.mxu0 0.0
  %4663 = vmatprep.subr.mxu0 0.0
  %4664 = vmatpush1.msra.mxu0 0.0
  %4665 = vmatprep.subr.mxu0 0.0
  %4666 = vmatpush1.msra.mxu0 0.0
  %4667 = vmatprep.subr.mxu0 0.0
  %4668 = vmatpush1.msra.mxu0 0.0
  %4669 = vmatprep.subr.mxu0 0.0
  %4670 = vmatpush1.msra.mxu0 0.0
  %4671 = vmatprep.subr.mxu0 0.0
  %4672 = vmatpush1.msra.mxu0 0.0
  %4673 = vmatprep.subr.mxu0 0.0
  %4674 = vmatpush1.msra.mxu0 0.0
  %4675 = vmatprep.subr.mxu0 0.0
  %4676 = vmatpush1.msra.mxu0 0.0
  %4677 = vmatprep.subr.mxu0 0.0
  %4678 = vmatpush1.msra.mxu0 0.0
  %4679 = vmatprep.subr.mxu0 0.0
  %4680 = vmatpush1.msra.mxu0 0.0
  %4681 = vmatprep.subr.mxu0 0.0
  %4682 = vmatpush1.msra.mxu0 0.0
  %4683 = vmatprep.subr.mxu0 0.0
  %4684 = vmatpush1.msra.mxu0 0.0
  %4685 = vmatprep.subr.mxu0 0.0
  %4686 = vmatpush1.msra.mxu0 0.0
  %4687 = vmatprep.mubr.f32.mxu0 0.0
  %4688 = vmatmul.mubr.f32.gmra.mrb[0].mxu0 %v4621
  %v4689 = vpop.f32.mrb[0].mxu0
  %v4690 = vadd.f32 %v44, %v4689
  %v4691 = vpop.f32.mrb[0].mxu0
  %4692 = vdwg.mxu0
  %v4693 = vmax.f32 %v4690, 0.0
  %4694 = vmatprep.subr.mxu0 0.0
  %4695 = vmatpush1.msra.mxu0 %v46
  %4696 = vmatprep.subr.mxu0 0.0
  %4697 = vmatpush1.msra.mxu0 %v47
  %4698 = vmatprep.subr.mxu0 0.0
  %4699 = vmatpush1.msra.mxu0 %v48
  %4700 = vmatprep.subr.mxu0 0.0
  %4701 = vmatpush1.msra.mxu0 %v49
  %4702 = vmatprep.subr.mxu0 0.0
  %4703 = vmatpush1.msra.mxu0 %v50
  %4704 = vmatprep.subr.mxu0 0.0
  %4705 = vmatpush1.msra.mxu0 %v51
  %4706 = vmatprep.subr.mxu0 0.0
  %4707 = vmatpush1.msra.mxu0 %v52
  %4708 = vmatprep.subr.mxu0 0.0
  %4709 = vmatpush1.msra.mxu0 %v53
  %4710 = vmatprep.subr.mxu0 0.0
  %4711 = vmatpush1.msra.mxu0 %v54
  %4712 = vmatprep.subr.mxu0 0.0
  %4713 = vmatpush1.msra.mxu0 %v55
  %4714 = vmatprep.subr.mxu0 0.0
  %4715 = vmatpush1.msra.mxu0 %v56
  %4716 = vmatprep.subr.mxu0 0.0
  %4717 = vmatpush1.msra.mxu0 %v57
  %4718 = vmatprep.subr.mxu0 0.0
  %4719 = vmatpush1.msra.mxu0 %v58
  %4720 = vmatprep.subr.mxu0 0.0
  %4721 = vmatpush1.msra.mxu0 %v59
  %4722 = vmatprep.subr.mxu0 0.0
  %4723 = vmatpush1.msra.mxu0 %v60
  %4724 = vmatprep.subr.mxu0 0.0
  %4725 = vmatpush1.msra.mxu0 %v61
  %4726 = vmatprep.subr.mxu0 0.0
  %4727 = vmatpush1.msra.mxu0 0.0
  %4728 = vmatprep.subr.mxu0 0.0
  %4729 = vmatpush1.msra.mxu0 0.0
  %4730 = vmatprep.subr.mxu0 0.0
  %4731 = vmatpush1.msra.mxu0 0.0
  %4732 = vmatprep.subr.mxu0 0.0
  %4733 = vmatpush1.msra.mxu0 0.0
  %4734 = vmatprep.subr.mxu0 0.0
  %4735 = vmatpush1.msra.mxu0 0.0
  %4736 = vmatprep.subr.mxu0 0.0
  %4737 = vmatpush1.msra.mxu0 0.0
  %4738 = vmatprep.subr.mxu0 0.0
  %4739 = vmatpush1.msra.mxu0 0.0
  %4740 = vmatprep.subr.mxu0 0.0
  %4741 = vmatpush1.msra.mxu0 0.0
  %4742 = vmatprep.subr.mxu0 0.0
  %4743 = vmatpush1.msra.mxu0 0.0
  %4744 = vmatprep.subr.mxu0 0.0
  %4745 = vmatpush1.msra.mxu0 0.0
  %4746 = vmatprep.subr.mxu0 0.0
  %4747 = vmatpush1.msra.mxu0 0.0
  %4748 = vmatprep.subr.mxu0 0.0
  %4749 = vmatpush1.msra.mxu0 0.0
  %4750 = vmatprep.subr.mxu0 0.0
  %4751 = vmatpush1.msra.mxu0 0.0
  %4752 = vmatprep.subr.mxu0 0.0
  %4753 = vmatpush1.msra.mxu0 0.0
  %4754 = vmatprep.subr.mxu0 0.0
  %4755 = vmatpush1.msra.mxu0 0.0
  %4756 = vmatprep.subr.mxu0 0.0
  %4757 = vmatpush1.msra.mxu0 0.0
  %4758 = vmatprep.mubr.f32.mxu0 0.0
  %4759 = vmatmul.mubr.f32.gmra.mrb[0].mxu0 %v4693
  %v4760 = vpop.f32.mrb[0].mxu0
  %v4761 = vadd.f32 %v67, %v4760
  %v4762 = vpop.f32.mrb[0].mxu0
  %4763 = vdwg.mxu0
  %v4764 = vtanh.pop %v4761
  %v4765 = vmul.f32 %v4764, %v4619
  %v4767 = vsel %vm315, %v4765, 0
  %4769 = vmatprep.subr.mxu0 0.0
  %4770 = vmatpush1.msra.mxu0 %v69
  %4771 = vmatprep.subr.mxu0 0.0
  %4772 = vmatpush1.msra.mxu0 %v70
  %4773 = vmatprep.subr.mxu0 0.0
  %4774 = vmatpush1.msra.mxu0 %v71
  %4775 = vmatprep.subr.mxu0 0.0
  %4776 = vmatpush1.msra.mxu0 0.0
  %4777 = vmatprep.subr.mxu0 0.0
  %4778 = vmatpush1.msra.mxu0 0.0
  %4779 = vmatprep.subr.mxu0 0.0
  %4780 = vmatpush1.msra.mxu0 0.0
  %4781 = vmatprep.subr.mxu0 0.0
  %4782 = vmatpush1.msra.mxu0 0.0
  %4783 = vmatprep.subr.mxu0 0.0
  %4784 = vmatpush1.msra.mxu0 0.0
  %4785 = vmatprep.subr.mxu0 0.0
  %4786 = vmatpush1.msra.mxu0 0.0
  %4787 = vmatprep.subr.mxu0 0.0
  %4788 = vmatpush1.msra.mxu0 0.0
  %4789 = vmatprep.subr.mxu0 0.0
  %4790 = vmatpush1.msra.mxu0 0.0
  %4791 = vmatprep.subr.mxu0 0.0
  %4792 = vmatpush1.msra.mxu0 0.0
  %4793 = vmatprep.subr.mxu0 0.0
  %4794 = vmatpush1.msra.mxu0 0.0
  %4795 = vmatprep.subr.mxu0 0.0
  %4796 = vmatpush1.msra.mxu0 0.0
  %4797 = vmatprep.subr.mxu0 0.0
  %4798 = vmatpush1.msra.mxu0 0.0
  %4799 = vmatprep.subr.mxu0 0.0
  %4800 = vmatpush1.msra.mxu0 0.0
  %4801 = vmatprep.subr.mxu0 0.0
  %4802 = vmatpush1.msra.mxu0 0.0
  %4803 = vmatprep.subr.mxu0 0.0
  %4804 = vmatpush1.msra.mxu0 0.0
  %4805 = vmatprep.subr.mxu0 0.0
  %4806 = vmatpush1.msra.mxu0 0.0
  %4807 = vmatprep.subr.mxu0 0.0
  %4808 = vmatpush1.msra.mxu0 0.0
  %4809 = vmatprep.subr.mxu0 0.0
  %4810 = vmatpush1.msra.mxu0 0.0
  %4811 = vmatprep.subr.mxu0 0.0
  %4812 = vmatpush1.msra.mxu0 0.0
  %4813 = vmatprep.subr.mxu0 0.0
  %4814 = vmatpush1.msra.mxu0 0.0
  %4815 = vmatprep.subr.mxu0 0.0
  %4816 = vmatpush1.msra.mxu0 0.0
  %4817 = vmatprep.subr.mxu0 0.0
  %4818 = vmatpush1.msra.mxu0 0.0
  %4819 = vmatprep.subr.mxu0 0.0
  %4820 = vmatpush1.msra.mxu0 0.0
  %4821 = vmatprep.subr.mxu0 0.0
  %4822 = vmatpush1.msra.mxu0 0.0
  %4823 = vmatprep.subr.mxu0 0.0
  %4824 = vmatpush1.msra.mxu0 0.0
  %4825 = vmatprep.subr.mxu0 0.0
  %4826 = vmatpush1.msra.mxu0 0.0
  %4827 = vmatprep.subr.mxu0 0.0
  %4828 = vmatpush1.msra.mxu0 0.0
  %4829 = vmatprep.subr.mxu0 0.0
  %4830 = vmatpush1.msra.mxu0 0.0
  %4831 = vmatprep.subr.mxu0 0.0
  %4832 = vmatpush1.msra.mxu0 0.0
  %4833 = vmatprep.mubr.f32.mxu0 0.0
  %4834 = vmatmul.mubr.f32.gmra.mrb[0].mxu0 %v4767
  %v4835 = vpop.f32.mrb[0].mxu0
  %v4836 = vadd.f32 0.0, %v4835
  %v4837 = vpop.f32.mrb[0].mxu0
  %4838 = vdwg.mxu0
  %v4839 = vmul.f32 %v4836, 0.5
  %v4840 = vadd.f32 %v4617, %v4839
  %v4842 = vsel %vm168, %v4840, 0
  %4844 = vmatprep.subr.mxu0 0.0
  %4845 = vmatpush1.msra.mxu0 %v38
  %4846 = vmatprep.subr.mxu0 0.0
  %4847 = vmatpush1.msra.mxu0 0.0
  %4848 = vmatprep.subr.mxu0 0.0
  %4849 = vmatpush1.msra.mxu0 0.0
  %4850 = vmatprep.subr.mxu0 0.0
  %4851 = vmatpush1.msra.mxu0 0.0
  %4852 = vmatprep.subr.mxu0 0.0
  %4853 = vmatpush1.msra.mxu0 0.0
  %4854 = vmatprep.subr.mxu0 0.0
  %4855 = vmatpush1.msra.mxu0 0.0
  %4856 = vmatprep.subr.mxu0 0.0
  %4857 = vmatpush1.msra.mxu0 0.0
  %4858 = vmatprep.subr.mxu0 0.0
  %4859 = vmatpush1.msra.mxu0 0.0
  %4860 = vmatprep.subr.mxu0 0.0
  %4861 = vmatpush1.msra.mxu0 0.0
  %4862 = vmatprep.subr.mxu0 0.0
  %4863 = vmatpush1.msra.mxu0 0.0
  %4864 = vmatprep.subr.mxu0 0.0
  %4865 = vmatpush1.msra.mxu0 0.0
  %4866 = vmatprep.subr.mxu0 0.0
  %4867 = vmatpush1.msra.mxu0 0.0
  %4868 = vmatprep.subr.mxu0 0.0
  %4869 = vmatpush1.msra.mxu0 0.0
  %4870 = vmatprep.subr.mxu0 0.0
  %4871 = vmatpush1.msra.mxu0 0.0
  %4872 = vmatprep.subr.mxu0 0.0
  %4873 = vmatpush1.msra.mxu0 0.0
  %4874 = vmatprep.subr.mxu0 0.0
  %4875 = vmatpush1.msra.mxu0 0.0
  %4876 = vmatprep.subr.mxu0 0.0
  %4877 = vmatpush1.msra.mxu0 0.0
  %4878 = vmatprep.subr.mxu0 0.0
  %4879 = vmatpush1.msra.mxu0 0.0
  %4880 = vmatprep.subr.mxu0 0.0
  %4881 = vmatpush1.msra.mxu0 0.0
  %4882 = vmatprep.subr.mxu0 0.0
  %4883 = vmatpush1.msra.mxu0 0.0
  %4884 = vmatprep.subr.mxu0 0.0
  %4885 = vmatpush1.msra.mxu0 0.0
  %4886 = vmatprep.subr.mxu0 0.0
  %4887 = vmatpush1.msra.mxu0 0.0
  %4888 = vmatprep.subr.mxu0 0.0
  %4889 = vmatpush1.msra.mxu0 0.0
  %4890 = vmatprep.subr.mxu0 0.0
  %4891 = vmatpush1.msra.mxu0 0.0
  %4892 = vmatprep.subr.mxu0 0.0
  %4893 = vmatpush1.msra.mxu0 0.0
  %4894 = vmatprep.subr.mxu0 0.0
  %4895 = vmatpush1.msra.mxu0 0.0
  %4896 = vmatprep.subr.mxu0 0.0
  %4897 = vmatpush1.msra.mxu0 0.0
  %4898 = vmatprep.subr.mxu0 0.0
  %4899 = vmatpush1.msra.mxu0 0.0
  %4900 = vmatprep.subr.mxu0 0.0
  %4901 = vmatpush1.msra.mxu0 0.0
  %4902 = vmatprep.subr.mxu0 0.0
  %4903 = vmatpush1.msra.mxu0 0.0
  %4904 = vmatprep.subr.mxu0 0.0
  %4905 = vmatpush1.msra.mxu0 0.0
  %4906 = vmatprep.subr.mxu0 0.0
  %4907 = vmatpush1.msra.mxu0 0.0
  %4908 = vmatprep.mubr.f32.mxu0 0.0
  %4909 = vmatmul.mubr.f32.gmra.mrb[0].mxu0 %v4842
  %v4910 = vpop.f32.mrb[0].mxu0
  %v4911 = vadd.f32 %v44, %v4910
  %v4912 = vpop.f32.mrb[0].mxu0
  %4913 = vdwg.mxu0
  %v4914 = vmax.f32 %v4911, 0.0
  %4915 = vmatprep.subr.mxu0 0.0
  %4916 = vmatpush1.msra.mxu0 %v46
  %4917 = vmatprep.subr.mxu0 0.0
  %4918 = vmatpush1.msra.mxu0 %v47
  %4919 = vmatprep.subr.mxu0 0.0
  %4920 = vmatpush1.msra.mxu0 %v48
  %4921 = vmatprep.subr.mxu0 0.0
  %4922 = vmatpush1.msra.mxu0 %v49
  %4923 = vmatprep.subr.mxu0 0.0
  %4924 = vmatpush1.msra.mxu0 %v50
  %4925 = vmatprep.subr.mxu0 0.0
  %4926 = vmatpush1.msra.mxu0 %v51
  %4927 = vmatprep.subr.mxu0 0.0
  %4928 = vmatpush1.msra.mxu0 %v52
  %4929 = vmatprep.subr.mxu0 0.0
  %4930 = vmatpush1.msra.mxu0 %v53
  %4931 = vmatprep.subr.mxu0 0.0
  %4932 = vmatpush1.msra.mxu0 %v54
  %4933 = vmatprep.subr.mxu0 0.0
  %4934 = vmatpush1.msra.mxu0 %v55
  %4935 = vmatprep.subr.mxu0 0.0
  %4936 = vmatpush1.msra.mxu0 %v56
  %4937 = vmatprep.subr.mxu0 0.0
  %4938 = vmatpush1.msra.mxu0 %v57
  %4939 = vmatprep.subr.mxu0 0.0
  %4940 = vmatpush1.msra.mxu0 %v58
  %4941 = vmatprep.subr.mxu0 0.0
  %4942 = vmatpush1.msra.mxu0 %v59
  %4943 = vmatprep.subr.mxu0 0.0
  %4944 = vmatpush1.msra.mxu0 %v60
  %4945 = vmatprep.subr.mxu0 0.0
  %4946 = vmatpush1.msra.mxu0 %v61
  %4947 = vmatprep.subr.mxu0 0.0
  %4948 = vmatpush1.msra.mxu0 0.0
  %4949 = vmatprep.subr.mxu0 0.0
  %4950 = vmatpush1.msra.mxu0 0.0
  %4951 = vmatprep.subr.mxu0 0.0
  %4952 = vmatpush1.msra.mxu0 0.0
  %4953 = vmatprep.subr.mxu0 0.0
  %4954 = vmatpush1.msra.mxu0 0.0
  %4955 = vmatprep.subr.mxu0 0.0
  %4956 = vmatpush1.msra.mxu0 0.0
  %4957 = vmatprep.subr.mxu0 0.0
  %4958 = vmatpush1.msra.mxu0 0.0
  %4959 = vmatprep.subr.mxu0 0.0
  %4960 = vmatpush1.msra.mxu0 0.0
  %4961 = vmatprep.subr.mxu0 0.0
  %4962 = vmatpush1.msra.mxu0 0.0
  %4963 = vmatprep.subr.mxu0 0.0
  %4964 = vmatpush1.msra.mxu0 0.0
  %4965 = vmatprep.subr.mxu0 0.0
  %4966 = vmatpush1.msra.mxu0 0.0
  %4967 = vmatprep.subr.mxu0 0.0
  %4968 = vmatpush1.msra.mxu0 0.0
  %4969 = vmatprep.subr.mxu0 0.0
  %4970 = vmatpush1.msra.mxu0 0.0
  %4971 = vmatprep.subr.mxu0 0.0
  %4972 = vmatpush1.msra.mxu0 0.0
  %4973 = vmatprep.subr.mxu0 0.0
  %4974 = vmatpush1.msra.mxu0 0.0
  %4975 = vmatprep.subr.mxu0 0.0
  %4976 = vmatpush1.msra.mxu0 0.0
  %4977 = vmatprep.subr.mxu0 0.0
  %4978 = vmatpush1.msra.mxu0 0.0
  %4979 = vmatprep.mubr.f32.mxu0 0.0
  %4980 = vmatmul.mubr.f32.gmra.mrb[0].mxu0 %v4914
  %v4981 = vpop.f32.mrb[0].mxu0
  %v4982 = vadd.f32 %v67, %v4981
  %v4983 = vpop.f32.mrb[0].mxu0
  %4984 = vdwg.mxu0
  %v4985 = vtanh.pop %v4982
  %v4986 = vmul.f32 %v4985, %v4619
  %v4988 = vsel %vm315, %v4986, 0
  %4990 = vmatprep.subr.mxu0 0.0
  %4991 = vmatpush1.msra.mxu0 %v69
  %4992 = vmatprep.subr.mxu0 0.0
  %4993 = vmatpush1.msra.mxu0 %v70
  %4994 = vmatprep.subr.mxu0 0.0
  %4995 = vmatpush1.msra.mxu0 %v71
  %4996 = vmatprep.subr.mxu0 0.0
  %4997 = vmatpush1.msra.mxu0 0.0
  %4998 = vmatprep.subr.mxu0 0.0
  %4999 = vmatpush1.msra.mxu0 0.0
  %5000 = vmatprep.subr.mxu0 0.0
  %5001 = vmatpush1.msra.mxu0 0.0
  %5002 = vmatprep.subr.mxu0 0.0
  %5003 = vmatpush1.msra.mxu0 0.0
  %5004 = vmatprep.subr.mxu0 0.0
  %5005 = vmatpush1.msra.mxu0 0.0
  %5006 = vmatprep.subr.mxu0 0.0
  %5007 = vmatpush1.msra.mxu0 0.0
  %5008 = vmatprep.subr.mxu0 0.0
  %5009 = vmatpush1.msra.mxu0 0.0
  %5010 = vmatprep.subr.mxu0 0.0
  %5011 = vmatpush1.msra.mxu0 0.0
  %5012 = vmatprep.subr.mxu0 0.0
  %5013 = vmatpush1.msra.mxu0 0.0
  %5014 = vmatprep.subr.mxu0 0.0
  %5015 = vmatpush1.msra.mxu0 0.0
  %5016 = vmatprep.subr.mxu0 0.0
  %5017 = vmatpush1.msra.mxu0 0.0
  %5018 = vmatprep.subr.mxu0 0.0
  %5019 = vmatpush1.msra.mxu0 0.0
  %5020 = vmatprep.subr.mxu0 0.0
  %5021 = vmatpush1.msra.mxu0 0.0
  %5022 = vmatprep.subr.mxu0 0.0
  %5023 = vmatpush1.msra.mxu0 0.0
  %5024 = vmatprep.subr.mxu0 0.0
  %5025 = vmatpush1.msra.mxu0 0.0
  %5026 = vmatprep.subr.mxu0 0.0
  %5027 = vmatpush1.msra.mxu0 0.0
  %5028 = vmatprep.subr.mxu0 0.0
  %5029 = vmatpush1.msra.mxu0 0.0
  %5030 = vmatprep.subr.mxu0 0.0
  %5031 = vmatpush1.msra.mxu0 0.0
  %5032 = vmatprep.subr.mxu0 0.0
  %5033 = vmatpush1.msra.mxu0 0.0
  %5034 = vmatprep.subr.mxu0 0.0
  %5035 = vmatpush1.msra.mxu0 0.0
  %5036 = vmatprep.subr.mxu0 0.0
  %5037 = vmatpush1.msra.mxu0 0.0
  %5038 = vmatprep.subr.mxu0 0.0
  %5039 = vmatpush1.msra.mxu0 0.0
  %5040 = vmatprep.subr.mxu0 0.0
  %5041 = vmatpush1.msra.mxu0 0.0
  %5042 = vmatprep.subr.mxu0 0.0
  %5043 = vmatpush1.msra.mxu0 0.0
  %5044 = vmatprep.subr.mxu0 0.0
  %5045 = vmatpush1.msra.mxu0 0.0
  %5046 = vmatprep.subr.mxu0 0.0
  %5047 = vmatpush1.msra.mxu0 0.0
  %5048 = vmatprep.subr.mxu0 0.0
  %5049 = vmatpush1.msra.mxu0 0.0
  %5050 = vmatprep.subr.mxu0 0.0
  %5051 = vmatpush1.msra.mxu0 0.0
  %5052 = vmatprep.subr.mxu0 0.0
  %5053 = vmatpush1.msra.mxu0 0.0
  %5054 = vmatprep.mubr.f32.mxu0 0.0
  %5055 = vmatmul.mubr.f32.gmra.mrb[0].mxu0 %v4988
  %v5056 = vpop.f32.mrb[0].mxu0
  %v5057 = vadd.f32 0.0, %v5056
  %v5058 = vpop.f32.mrb[0].mxu0
  %5059 = vdwg.mxu0
  %v5060 = vmul.f32 %v5057, 0.5
  %v5061 = vadd.f32 %v4617, %v5060
  %v5063 = vsel %vm168, %v5061, 0
  %5065 = vmatprep.subr.mxu0 0.0
  %5066 = vmatpush1.msra.mxu0 %v38
  %5067 = vmatprep.subr.mxu0 0.0
  %5068 = vmatpush1.msra.mxu0 0.0
  %5069 = vmatprep.subr.mxu0 0.0
  %5070 = vmatpush1.msra.mxu0 0.0
  %5071 = vmatprep.subr.mxu0 0.0
  %5072 = vmatpush1.msra.mxu0 0.0
  %5073 = vmatprep.subr.mxu0 0.0
  %5074 = vmatpush1.msra.mxu0 0.0
  %5075 = vmatprep.subr.mxu0 0.0
  %5076 = vmatpush1.msra.mxu0 0.0
  %5077 = vmatprep.subr.mxu0 0.0
  %5078 = vmatpush1.msra.mxu0 0.0
  %5079 = vmatprep.subr.mxu0 0.0
  %5080 = vmatpush1.msra.mxu0 0.0
  %5081 = vmatprep.subr.mxu0 0.0
  %5082 = vmatpush1.msra.mxu0 0.0
  %5083 = vmatprep.subr.mxu0 0.0
  %5084 = vmatpush1.msra.mxu0 0.0
  %5085 = vmatprep.subr.mxu0 0.0
  %5086 = vmatpush1.msra.mxu0 0.0
  %5087 = vmatprep.subr.mxu0 0.0
  %5088 = vmatpush1.msra.mxu0 0.0
  %5089 = vmatprep.subr.mxu0 0.0
  %5090 = vmatpush1.msra.mxu0 0.0
  %5091 = vmatprep.subr.mxu0 0.0
  %5092 = vmatpush1.msra.mxu0 0.0
  %5093 = vmatprep.subr.mxu0 0.0
  %5094 = vmatpush1.msra.mxu0 0.0
  %5095 = vmatprep.subr.mxu0 0.0
  %5096 = vmatpush1.msra.mxu0 0.0
  %5097 = vmatprep.subr.mxu0 0.0
  %5098 = vmatpush1.msra.mxu0 0.0
  %5099 = vmatprep.subr.mxu0 0.0
  %5100 = vmatpush1.msra.mxu0 0.0
  %5101 = vmatprep.subr.mxu0 0.0
  %5102 = vmatpush1.msra.mxu0 0.0
  %5103 = vmatprep.subr.mxu0 0.0
  %5104 = vmatpush1.msra.mxu0 0.0
  %5105 = vmatprep.subr.mxu0 0.0
  %5106 = vmatpush1.msra.mxu0 0.0
  %5107 = vmatprep.subr.mxu0 0.0
  %5108 = vmatpush1.msra.mxu0 0.0
  %5109 = vmatprep.subr.mxu0 0.0
  %5110 = vmatpush1.msra.mxu0 0.0
  %5111 = vmatprep.subr.mxu0 0.0
  %5112 = vmatpush1.msra.mxu0 0.0
  %5113 = vmatprep.subr.mxu0 0.0
  %5114 = vmatpush1.msra.mxu0 0.0
  %5115 = vmatprep.subr.mxu0 0.0
  %5116 = vmatpush1.msra.mxu0 0.0
  %5117 = vmatprep.subr.mxu0 0.0
  %5118 = vmatpush1.msra.mxu0 0.0
  %5119 = vmatprep.subr.mxu0 0.0
  %5120 = vmatpush1.msra.mxu0 0.0
  %5121 = vmatprep.subr.mxu0 0.0
  %5122 = vmatpush1.msra.mxu0 0.0
  %5123 = vmatprep.subr.mxu0 0.0
  %5124 = vmatpush1.msra.mxu0 0.0
  %5125 = vmatprep.subr.mxu0 0.0
  %5126 = vmatpush1.msra.mxu0 0.0
  %5127 = vmatprep.subr.mxu0 0.0
  %5128 = vmatpush1.msra.mxu0 0.0
  %5129 = vmatprep.mubr.f32.mxu0 0.0
  %5130 = vmatmul.mubr.f32.gmra.mrb[0].mxu0 %v5063
  %v5131 = vpop.f32.mrb[0].mxu0
  %v5132 = vadd.f32 %v44, %v5131
  %v5133 = vpop.f32.mrb[0].mxu0
  %5134 = vdwg.mxu0
  %v5135 = vmax.f32 %v5132, 0.0
  %5136 = vmatprep.subr.mxu0 0.0
  %5137 = vmatpush1.msra.mxu0 %v46
  %5138 = vmatprep.subr.mxu0 0.0
  %5139 = vmatpush1.msra.mxu0 %v47
  %5140 = vmatprep.subr.mxu0 0.0
  %5141 = vmatpush1.msra.mxu0 %v48
  %5142 = vmatprep.subr.mxu0 0.0
  %5143 = vmatpush1.msra.mxu0 %v49
  %5144 = vmatprep.subr.mxu0 0.0
  %5145 = vmatpush1.msra.mxu0 %v50
  %5146 = vmatprep.subr.mxu0 0.0
  %5147 = vmatpush1.msra.mxu0 %v51
  %5148 = vmatprep.subr.mxu0 0.0
  %5149 = vmatpush1.msra.mxu0 %v52
  %5150 = vmatprep.subr.mxu0 0.0
  %5151 = vmatpush1.msra.mxu0 %v53
  %5152 = vmatprep.subr.mxu0 0.0
  %5153 = vmatpush1.msra.mxu0 %v54
  %5154 = vmatprep.subr.mxu0 0.0
  %5155 = vmatpush1.msra.mxu0 %v55
  %5156 = vmatprep.subr.mxu0 0.0
  %5157 = vmatpush1.msra.mxu0 %v56
  %5158 = vmatprep.subr.mxu0 0.0
  %5159 = vmatpush1.msra.mxu0 %v57
  %5160 = vmatprep.subr.mxu0 0.0
  %5161 = vmatpush1.msra.mxu0 %v58
  %5162 = vmatprep.subr.mxu0 0.0
  %5163 = vmatpush1.msra.mxu0 %v59
  %5164 = vmatprep.subr.mxu0 0.0
  %5165 = vmatpush1.msra.mxu0 %v60
  %5166 = vmatprep.subr.mxu0 0.0
  %5167 = vmatpush1.msra.mxu0 %v61
  %5168 = vmatprep.subr.mxu0 0.0
  %5169 = vmatpush1.msra.mxu0 0.0
  %5170 = vmatprep.subr.mxu0 0.0
  %5171 = vmatpush1.msra.mxu0 0.0
  %5172 = vmatprep.subr.mxu0 0.0
  %5173 = vmatpush1.msra.mxu0 0.0
  %5174 = vmatprep.subr.mxu0 0.0
  %5175 = vmatpush1.msra.mxu0 0.0
  %5176 = vmatprep.subr.mxu0 0.0
  %5177 = vmatpush1.msra.mxu0 0.0
  %5178 = vmatprep.subr.mxu0 0.0
  %5179 = vmatpush1.msra.mxu0 0.0
  %5180 = vmatprep.subr.mxu0 0.0
  %5181 = vmatpush1.msra.mxu0 0.0
  %5182 = vmatprep.subr.mxu0 0.0
  %5183 = vmatpush1.msra.mxu0 0.0
  %5184 = vmatprep.subr.mxu0 0.0
  %5185 = vmatpush1.msra.mxu0 0.0
  %5186 = vmatprep.subr.mxu0 0.0
  %5187 = vmatpush1.msra.mxu0 0.0
  %5188 = vmatprep.subr.mxu0 0.0
  %5189 = vmatpush1.msra.mxu0 0.0
  %5190 = vmatprep.subr.mxu0 0.0
  %5191 = vmatpush1.msra.mxu0 0.0
  %5192 = vmatprep.subr.mxu0 0.0
  %5193 = vmatpush1.msra.mxu0 0.0
  %5194 = vmatprep.subr.mxu0 0.0
  %5195 = vmatpush1.msra.mxu0 0.0
  %5196 = vmatprep.subr.mxu0 0.0
  %5197 = vmatpush1.msra.mxu0 0.0
  %5198 = vmatprep.subr.mxu0 0.0
  %5199 = vmatpush1.msra.mxu0 0.0
  %5200 = vmatprep.mubr.f32.mxu0 0.0
  %5201 = vmatmul.mubr.f32.gmra.mrb[0].mxu0 %v5135
  %v5202 = vpop.f32.mrb[0].mxu0
  %v5203 = vadd.f32 %v67, %v5202
  %v5204 = vpop.f32.mrb[0].mxu0
  %5205 = vdwg.mxu0
  %v5206 = vtanh.pop %v5203
  %v5207 = vmul.f32 %v5206, %v4619
  %v5209 = vsel %vm315, %v5207, 0
  %5211 = vmatprep.subr.mxu0 0.0
  %5212 = vmatpush1.msra.mxu0 %v69
  %5213 = vmatprep.subr.mxu0 0.0
  %5214 = vmatpush1.msra.mxu0 %v70
  %5215 = vmatprep.subr.mxu0 0.0
  %5216 = vmatpush1.msra.mxu0 %v71
  %5217 = vmatprep.subr.mxu0 0.0
  %5218 = vmatpush1.msra.mxu0 0.0
  %5219 = vmatprep.subr.mxu0 0.0
  %5220 = vmatpush1.msra.mxu0 0.0
  %5221 = vmatprep.subr.mxu0 0.0
  %5222 = vmatpush1.msra.mxu0 0.0
  %5223 = vmatprep.subr.mxu0 0.0
  %5224 = vmatpush1.msra.mxu0 0.0
  %5225 = vmatprep.subr.mxu0 0.0
  %5226 = vmatpush1.msra.mxu0 0.0
  %5227 = vmatprep.subr.mxu0 0.0
  %5228 = vmatpush1.msra.mxu0 0.0
  %5229 = vmatprep.subr.mxu0 0.0
  %5230 = vmatpush1.msra.mxu0 0.0
  %5231 = vmatprep.subr.mxu0 0.0
  %5232 = vmatpush1.msra.mxu0 0.0
  %5233 = vmatprep.subr.mxu0 0.0
  %5234 = vmatpush1.msra.mxu0 0.0
  %5235 = vmatprep.subr.mxu0 0.0
  %5236 = vmatpush1.msra.mxu0 0.0
  %5237 = vmatprep.subr.mxu0 0.0
  %5238 = vmatpush1.msra.mxu0 0.0
  %5239 = vmatprep.subr.mxu0 0.0
  %5240 = vmatpush1.msra.mxu0 0.0
  %5241 = vmatprep.subr.mxu0 0.0
  %5242 = vmatpush1.msra.mxu0 0.0
  %5243 = vmatprep.subr.mxu0 0.0
  %5244 = vmatpush1.msra.mxu0 0.0
  %5245 = vmatprep.subr.mxu0 0.0
  %5246 = vmatpush1.msra.mxu0 0.0
  %5247 = vmatprep.subr.mxu0 0.0
  %5248 = vmatpush1.msra.mxu0 0.0
  %5249 = vmatprep.subr.mxu0 0.0
  %5250 = vmatpush1.msra.mxu0 0.0
  %5251 = vmatprep.subr.mxu0 0.0
  %5252 = vmatpush1.msra.mxu0 0.0
  %5253 = vmatprep.subr.mxu0 0.0
  %5254 = vmatpush1.msra.mxu0 0.0
  %5255 = vmatprep.subr.mxu0 0.0
  %5256 = vmatpush1.msra.mxu0 0.0
  %5257 = vmatprep.subr.mxu0 0.0
  %5258 = vmatpush1.msra.mxu0 0.0
  %5259 = vmatprep.subr.mxu0 0.0
  %5260 = vmatpush1.msra.mxu0 0.0
  %5261 = vmatprep.subr.mxu0 0.0
  %5262 = vmatpush1.msra.mxu0 0.0
  %5263 = vmatprep.subr.mxu0 0.0
  %5264 = vmatpush1.msra.mxu0 0.0
  %5265 = vmatprep.subr.mxu0 0.0
  %5266 = vmatpush1.msra.mxu0 0.0
  %5267 = vmatprep.subr.mxu0 0.0
  %5268 = vmatpush1.msra.mxu0 0.0
  %5269 = vmatprep.subr.mxu0 0.0
  %5270 = vmatpush1.msra.mxu0 0.0
  %5271 = vmatprep.subr.mxu0 0.0
  %5272 = vmatpush1.msra.mxu0 0.0
  %5273 = vmatprep.subr.mxu0 0.0
  %5274 = vmatpush1.msra.mxu0 0.0
  %5275 = vmatprep.mubr.f32.mxu0 0.0
  %5276 = vmatmul.mubr.f32.gmra.mrb[0].mxu0 %v5209
  %v5277 = vpop.f32.mrb[0].mxu0
  %v5278 = vadd.f32 0.0, %v5277
  %v5279 = vpop.f32.mrb[0].mxu0
  %5280 = vdwg.mxu0
  %v5281 = vadd.f32 %v4617, %v5278
  %v5283 = vsel %vm168, %v5281, 0
  %5285 = vmatprep.subr.mxu0 0.0
  %5286 = vmatpush1.msra.mxu0 %v38
  %5287 = vmatprep.subr.mxu0 0.0
  %5288 = vmatpush1.msra.mxu0 0.0
  %5289 = vmatprep.subr.mxu0 0.0
  %5290 = vmatpush1.msra.mxu0 0.0
  %5291 = vmatprep.subr.mxu0 0.0
  %5292 = vmatpush1.msra.mxu0 0.0
  %5293 = vmatprep.subr.mxu0 0.0
  %5294 = vmatpush1.msra.mxu0 0.0
  %5295 = vmatprep.subr.mxu0 0.0
  %5296 = vmatpush1.msra.mxu0 0.0
  %5297 = vmatprep.subr.mxu0 0.0
  %5298 = vmatpush1.msra.mxu0 0.0
  %5299 = vmatprep.subr.mxu0 0.0
  %5300 = vmatpush1.msra.mxu0 0.0
  %5301 = vmatprep.subr.mxu0 0.0
  %5302 = vmatpush1.msra.mxu0 0.0
  %5303 = vmatprep.subr.mxu0 0.0
  %5304 = vmatpush1.msra.mxu0 0.0
  %5305 = vmatprep.subr.mxu0 0.0
  %5306 = vmatpush1.msra.mxu0 0.0
  %5307 = vmatprep.subr.mxu0 0.0
  %5308 = vmatpush1.msra.mxu0 0.0
  %5309 = vmatprep.subr.mxu0 0.0
  %5310 = vmatpush1.msra.mxu0 0.0
  %5311 = vmatprep.subr.mxu0 0.0
  %5312 = vmatpush1.msra.mxu0 0.0
  %5313 = vmatprep.subr.mxu0 0.0
  %5314 = vmatpush1.msra.mxu0 0.0
  %5315 = vmatprep.subr.mxu0 0.0
  %5316 = vmatpush1.msra.mxu0 0.0
  %5317 = vmatprep.subr.mxu0 0.0
  %5318 = vmatpush1.msra.mxu0 0.0
  %5319 = vmatprep.subr.mxu0 0.0
  %5320 = vmatpush1.msra.mxu0 0.0
  %5321 = vmatprep.subr.mxu0 0.0
  %5322 = vmatpush1.msra.mxu0 0.0
  %5323 = vmatprep.subr.mxu0 0.0
  %5324 = vmatpush1.msra.mxu0 0.0
  %5325 = vmatprep.subr.mxu0 0.0
  %5326 = vmatpush1.msra.mxu0 0.0
  %5327 = vmatprep.subr.mxu0 0.0
  %5328 = vmatpush1.msra.mxu0 0.0
  %5329 = vmatprep.subr.mxu0 0.0
  %5330 = vmatpush1.msra.mxu0 0.0
  %5331 = vmatprep.subr.mxu0 0.0
  %5332 = vmatpush1.msra.mxu0 0.0
  %5333 = vmatprep.subr.mxu0 0.0
  %5334 = vmatpush1.msra.mxu0 0.0
  %5335 = vmatprep.subr.mxu0 0.0
  %5336 = vmatpush1.msra.mxu0 0.0
  %5337 = vmatprep.subr.mxu0 0.0
  %5338 = vmatpush1.msra.mxu0 0.0
  %5339 = vmatprep.subr.mxu0 0.0
  %5340 = vmatpush1.msra.mxu0 0.0
  %5341 = vmatprep.subr.mxu0 0.0
  %5342 = vmatpush1.msra.mxu0 0.0
  %5343 = vmatprep.subr.mxu0 0.0
  %5344 = vmatpush1.msra.mxu0 0.0
  %5345 = vmatprep.subr.mxu0 0.0
  %5346 = vmatpush1.msra.mxu0 0.0
  %5347 = vmatprep.subr.mxu0 0.0
  %5348 = vmatpush1.msra.mxu0 0.0
  %5349 = vmatprep.mubr.f32.mxu0 0.0
  %5350 = vmatmul.mubr.f32.gmra.mrb[0].mxu0 %v5283
  %v5351 = vpop.f32.mrb[0].mxu0
  %v5352 = vadd.f32 %v44, %v5351
  %v5353 = vpop.f32.mrb[0].mxu0
  %5354 = vdwg.mxu0
  %v5355 = vmax.f32 %v5352, 0.0
  %5356 = vmatprep.subr.mxu0 0.0
  %5357 = vmatpush1.msra.mxu0 %v46
  %5358 = vmatprep.subr.mxu0 0.0
  %5359 = vmatpush1.msra.mxu0 %v47
  %5360 = vmatprep.subr.mxu0 0.0
  %5361 = vmatpush1.msra.mxu0 %v48
  %5362 = vmatprep.subr.mxu0 0.0
  %5363 = vmatpush1.msra.mxu0 %v49
  %5364 = vmatprep.subr.mxu0 0.0
  %5365 = vmatpush1.msra.mxu0 %v50
  %5366 = vmatprep.subr.mxu0 0.0
  %5367 = vmatpush1.msra.mxu0 %v51
  %5368 = vmatprep.subr.mxu0 0.0
  %5369 = vmatpush1.msra.mxu0 %v52
  %5370 = vmatprep.subr.mxu0 0.0
  %5371 = vmatpush1.msra.mxu0 %v53
  %5372 = vmatprep.subr.mxu0 0.0
  %5373 = vmatpush1.msra.mxu0 %v54
  %5374 = vmatprep.subr.mxu0 0.0
  %5375 = vmatpush1.msra.mxu0 %v55
  %5376 = vmatprep.subr.mxu0 0.0
  %5377 = vmatpush1.msra.mxu0 %v56
  %5378 = vmatprep.subr.mxu0 0.0
  %5379 = vmatpush1.msra.mxu0 %v57
  %5380 = vmatprep.subr.mxu0 0.0
  %5381 = vmatpush1.msra.mxu0 %v58
  %5382 = vmatprep.subr.mxu0 0.0
  %5383 = vmatpush1.msra.mxu0 %v59
  %5384 = vmatprep.subr.mxu0 0.0
  %5385 = vmatpush1.msra.mxu0 %v60
  %5386 = vmatprep.subr.mxu0 0.0
  %5387 = vmatpush1.msra.mxu0 %v61
  %5388 = vmatprep.subr.mxu0 0.0
  %5389 = vmatpush1.msra.mxu0 0.0
  %5390 = vmatprep.subr.mxu0 0.0
  %5391 = vmatpush1.msra.mxu0 0.0
  %5392 = vmatprep.subr.mxu0 0.0
  %5393 = vmatpush1.msra.mxu0 0.0
  %5394 = vmatprep.subr.mxu0 0.0
  %5395 = vmatpush1.msra.mxu0 0.0
  %5396 = vmatprep.subr.mxu0 0.0
  %5397 = vmatpush1.msra.mxu0 0.0
  %5398 = vmatprep.subr.mxu0 0.0
  %5399 = vmatpush1.msra.mxu0 0.0
  %5400 = vmatprep.subr.mxu0 0.0
  %5401 = vmatpush1.msra.mxu0 0.0
  %5402 = vmatprep.subr.mxu0 0.0
  %5403 = vmatpush1.msra.mxu0 0.0
  %5404 = vmatprep.subr.mxu0 0.0
  %5405 = vmatpush1.msra.mxu0 0.0
  %5406 = vmatprep.subr.mxu0 0.0
  %5407 = vmatpush1.msra.mxu0 0.0
  %5408 = vmatprep.subr.mxu0 0.0
  %5409 = vmatpush1.msra.mxu0 0.0
  %5410 = vmatprep.subr.mxu0 0.0
  %5411 = vmatpush1.msra.mxu0 0.0
  %5412 = vmatprep.subr.mxu0 0.0
  %5413 = vmatpush1.msra.mxu0 0.0
  %5414 = vmatprep.subr.mxu0 0.0
  %5415 = vmatpush1.msra.mxu0 0.0
  %5416 = vmatprep.subr.mxu0 0.0
  %5417 = vmatpush1.msra.mxu0 0.0
  %5418 = vmatprep.subr.mxu0 0.0
  %5419 = vmatpush1.msra.mxu0 0.0
  %5420 = vmatprep.mubr.f32.mxu0 0.0
  %5421 = vmatmul.mubr.f32.gmra.mrb[0].mxu0 %v5355
  %v5422 = vpop.f32.mrb[0].mxu0
  %v5423 = vadd.f32 %v67, %v5422
  %v5424 = vpop.f32.mrb[0].mxu0
  %5425 = vdwg.mxu0
  %v5426 = vtanh.pop %v5423
  %v5427 = vmul.f32 %v5426, %v4619
  %v5429 = vsel %vm315, %v5427, 0
  %5431 = vmatprep.subr.mxu0 0.0
  %5432 = vmatpush1.msra.mxu0 %v69
  %5433 = vmatprep.subr.mxu0 0.0
  %5434 = vmatpush1.msra.mxu0 %v70
  %5435 = vmatprep.subr.mxu0 0.0
  %5436 = vmatpush1.msra.mxu0 %v71
  %5437 = vmatprep.subr.mxu0 0.0
  %5438 = vmatpush1.msra.mxu0 0.0
  %5439 = vmatprep.subr.mxu0 0.0
  %5440 = vmatpush1.msra.mxu0 0.0
  %5441 = vmatprep.subr.mxu0 0.0
  %5442 = vmatpush1.msra.mxu0 0.0
  %5443 = vmatprep.subr.mxu0 0.0
  %5444 = vmatpush1.msra.mxu0 0.0
  %5445 = vmatprep.subr.mxu0 0.0
  %5446 = vmatpush1.msra.mxu0 0.0
  %5447 = vmatprep.subr.mxu0 0.0
  %5448 = vmatpush1.msra.mxu0 0.0
  %5449 = vmatprep.subr.mxu0 0.0
  %5450 = vmatpush1.msra.mxu0 0.0
  %5451 = vmatprep.subr.mxu0 0.0
  %5452 = vmatpush1.msra.mxu0 0.0
  %5453 = vmatprep.subr.mxu0 0.0
  %5454 = vmatpush1.msra.mxu0 0.0
  %5455 = vmatprep.subr.mxu0 0.0
  %5456 = vmatpush1.msra.mxu0 0.0
  %5457 = vmatprep.subr.mxu0 0.0
  %5458 = vmatpush1.msra.mxu0 0.0
  %5459 = vmatprep.subr.mxu0 0.0
  %5460 = vmatpush1.msra.mxu0 0.0
  %5461 = vmatprep.subr.mxu0 0.0
  %5462 = vmatpush1.msra.mxu0 0.0
  %5463 = vmatprep.subr.mxu0 0.0
  %5464 = vmatpush1.msra.mxu0 0.0
  %5465 = vmatprep.subr.mxu0 0.0
  %5466 = vmatpush1.msra.mxu0 0.0
  %5467 = vmatprep.subr.mxu0 0.0
  %5468 = vmatpush1.msra.mxu0 0.0
  %5469 = vmatprep.subr.mxu0 0.0
  %5470 = vmatpush1.msra.mxu0 0.0
  %5471 = vmatprep.subr.mxu0 0.0
  %5472 = vmatpush1.msra.mxu0 0.0
  %5473 = vmatprep.subr.mxu0 0.0
  %5474 = vmatpush1.msra.mxu0 0.0
  %5475 = vmatprep.subr.mxu0 0.0
  %5476 = vmatpush1.msra.mxu0 0.0
  %5477 = vmatprep.subr.mxu0 0.0
  %5478 = vmatpush1.msra.mxu0 0.0
  %5479 = vmatprep.subr.mxu0 0.0
  %5480 = vmatpush1.msra.mxu0 0.0
  %5481 = vmatprep.subr.mxu0 0.0
  %5482 = vmatpush1.msra.mxu0 0.0
  %5483 = vmatprep.subr.mxu0 0.0
  %5484 = vmatpush1.msra.mxu0 0.0
  %5485 = vmatprep.subr.mxu0 0.0
  %5486 = vmatpush1.msra.mxu0 0.0
  %5487 = vmatprep.subr.mxu0 0.0
  %5488 = vmatpush1.msra.mxu0 0.0
  %5489 = vmatprep.subr.mxu0 0.0
  %5490 = vmatpush1.msra.mxu0 0.0
  %5491 = vmatprep.subr.mxu0 0.0
  %5492 = vmatpush1.msra.mxu0 0.0
  %5493 = vmatprep.subr.mxu0 0.0
  %5494 = vmatpush1.msra.mxu0 0.0
  %5495 = vmatprep.mubr.f32.mxu0 0.0
  %5496 = vmatmul.mubr.f32.gmra.mrb[0].mxu0 %v5429
  %v5497 = vpop.f32.mrb[0].mxu0
  %v5498 = vadd.f32 0.0, %v5497
  %v5499 = vpop.f32.mrb[0].mxu0
  %5500 = vdwg.mxu0
  %v5501 = vmul.f32 %v5057, 2.0
  %v5502 = vadd.f32 %v4836, %v5501
  %v5503 = vmul.f32 %v5278, 2.0
  %v5504 = vadd.f32 %v5502, %v5503
  %v5505 = vadd.f32 %v5504, %v5498
  %v5506 = vmul.f32 %v5505, 0.16666667
  %v5507 = vadd.f32 %v4617, %v5506
  %s5508 = scalar_lea.vmem %s1, 48
  %v5509 = vld [vmem:[%s5508] sm:$0xff]
  %v5511 = vsel %vm168, %v5507, 0
  %5513 = vmatprep.subr.mxu0 0.0
  %5514 = vmatpush1.msra.mxu0 %v38
  %5515 = vmatprep.subr.mxu0 0.0
  %5516 = vmatpush1.msra.mxu0 0.0
  %5517 = vmatprep.subr.mxu0 0.0
  %5518 = vmatpush1.msra.mxu0 0.0
  %5519 = vmatprep.subr.mxu0 0.0
  %5520 = vmatpush1.msra.mxu0 0.0
  %5521 = vmatprep.subr.mxu0 0.0
  %5522 = vmatpush1.msra.mxu0 0.0
  %5523 = vmatprep.subr.mxu0 0.0
  %5524 = vmatpush1.msra.mxu0 0.0
  %5525 = vmatprep.subr.mxu0 0.0
  %5526 = vmatpush1.msra.mxu0 0.0
  %5527 = vmatprep.subr.mxu0 0.0
  %5528 = vmatpush1.msra.mxu0 0.0
  %5529 = vmatprep.subr.mxu0 0.0
  %5530 = vmatpush1.msra.mxu0 0.0
  %5531 = vmatprep.subr.mxu0 0.0
  %5532 = vmatpush1.msra.mxu0 0.0
  %5533 = vmatprep.subr.mxu0 0.0
  %5534 = vmatpush1.msra.mxu0 0.0
  %5535 = vmatprep.subr.mxu0 0.0
  %5536 = vmatpush1.msra.mxu0 0.0
  %5537 = vmatprep.subr.mxu0 0.0
  %5538 = vmatpush1.msra.mxu0 0.0
  %5539 = vmatprep.subr.mxu0 0.0
  %5540 = vmatpush1.msra.mxu0 0.0
  %5541 = vmatprep.subr.mxu0 0.0
  %5542 = vmatpush1.msra.mxu0 0.0
  %5543 = vmatprep.subr.mxu0 0.0
  %5544 = vmatpush1.msra.mxu0 0.0
  %5545 = vmatprep.subr.mxu0 0.0
  %5546 = vmatpush1.msra.mxu0 0.0
  %5547 = vmatprep.subr.mxu0 0.0
  %5548 = vmatpush1.msra.mxu0 0.0
  %5549 = vmatprep.subr.mxu0 0.0
  %5550 = vmatpush1.msra.mxu0 0.0
  %5551 = vmatprep.subr.mxu0 0.0
  %5552 = vmatpush1.msra.mxu0 0.0
  %5553 = vmatprep.subr.mxu0 0.0
  %5554 = vmatpush1.msra.mxu0 0.0
  %5555 = vmatprep.subr.mxu0 0.0
  %5556 = vmatpush1.msra.mxu0 0.0
  %5557 = vmatprep.subr.mxu0 0.0
  %5558 = vmatpush1.msra.mxu0 0.0
  %5559 = vmatprep.subr.mxu0 0.0
  %5560 = vmatpush1.msra.mxu0 0.0
  %5561 = vmatprep.subr.mxu0 0.0
  %5562 = vmatpush1.msra.mxu0 0.0
  %5563 = vmatprep.subr.mxu0 0.0
  %5564 = vmatpush1.msra.mxu0 0.0
  %5565 = vmatprep.subr.mxu0 0.0
  %5566 = vmatpush1.msra.mxu0 0.0
  %5567 = vmatprep.subr.mxu0 0.0
  %5568 = vmatpush1.msra.mxu0 0.0
  %5569 = vmatprep.subr.mxu0 0.0
  %5570 = vmatpush1.msra.mxu0 0.0
  %5571 = vmatprep.subr.mxu0 0.0
  %5572 = vmatpush1.msra.mxu0 0.0
  %5573 = vmatprep.subr.mxu0 0.0
  %5574 = vmatpush1.msra.mxu0 0.0
  %5575 = vmatprep.subr.mxu0 0.0
  %5576 = vmatpush1.msra.mxu0 0.0
  %5577 = vmatprep.mubr.f32.mxu0 0.0
  %5578 = vmatmul.mubr.f32.gmra.mrb[0].mxu0 %v5511
  %v5579 = vpop.f32.mrb[0].mxu0
  %v5580 = vadd.f32 %v44, %v5579
  %v5581 = vpop.f32.mrb[0].mxu0
  %5582 = vdwg.mxu0
  %v5583 = vmax.f32 %v5580, 0.0
  %5584 = vmatprep.subr.mxu0 0.0
  %5585 = vmatpush1.msra.mxu0 %v46
  %5586 = vmatprep.subr.mxu0 0.0
  %5587 = vmatpush1.msra.mxu0 %v47
  %5588 = vmatprep.subr.mxu0 0.0
  %5589 = vmatpush1.msra.mxu0 %v48
  %5590 = vmatprep.subr.mxu0 0.0
  %5591 = vmatpush1.msra.mxu0 %v49
  %5592 = vmatprep.subr.mxu0 0.0
  %5593 = vmatpush1.msra.mxu0 %v50
  %5594 = vmatprep.subr.mxu0 0.0
  %5595 = vmatpush1.msra.mxu0 %v51
  %5596 = vmatprep.subr.mxu0 0.0
  %5597 = vmatpush1.msra.mxu0 %v52
  %5598 = vmatprep.subr.mxu0 0.0
  %5599 = vmatpush1.msra.mxu0 %v53
  %5600 = vmatprep.subr.mxu0 0.0
  %5601 = vmatpush1.msra.mxu0 %v54
  %5602 = vmatprep.subr.mxu0 0.0
  %5603 = vmatpush1.msra.mxu0 %v55
  %5604 = vmatprep.subr.mxu0 0.0
  %5605 = vmatpush1.msra.mxu0 %v56
  %5606 = vmatprep.subr.mxu0 0.0
  %5607 = vmatpush1.msra.mxu0 %v57
  %5608 = vmatprep.subr.mxu0 0.0
  %5609 = vmatpush1.msra.mxu0 %v58
  %5610 = vmatprep.subr.mxu0 0.0
  %5611 = vmatpush1.msra.mxu0 %v59
  %5612 = vmatprep.subr.mxu0 0.0
  %5613 = vmatpush1.msra.mxu0 %v60
  %5614 = vmatprep.subr.mxu0 0.0
  %5615 = vmatpush1.msra.mxu0 %v61
  %5616 = vmatprep.subr.mxu0 0.0
  %5617 = vmatpush1.msra.mxu0 0.0
  %5618 = vmatprep.subr.mxu0 0.0
  %5619 = vmatpush1.msra.mxu0 0.0
  %5620 = vmatprep.subr.mxu0 0.0
  %5621 = vmatpush1.msra.mxu0 0.0
  %5622 = vmatprep.subr.mxu0 0.0
  %5623 = vmatpush1.msra.mxu0 0.0
  %5624 = vmatprep.subr.mxu0 0.0
  %5625 = vmatpush1.msra.mxu0 0.0
  %5626 = vmatprep.subr.mxu0 0.0
  %5627 = vmatpush1.msra.mxu0 0.0
  %5628 = vmatprep.subr.mxu0 0.0
  %5629 = vmatpush1.msra.mxu0 0.0
  %5630 = vmatprep.subr.mxu0 0.0
  %5631 = vmatpush1.msra.mxu0 0.0
  %5632 = vmatprep.subr.mxu0 0.0
  %5633 = vmatpush1.msra.mxu0 0.0
  %5634 = vmatprep.subr.mxu0 0.0
  %5635 = vmatpush1.msra.mxu0 0.0
  %5636 = vmatprep.subr.mxu0 0.0
  %5637 = vmatpush1.msra.mxu0 0.0
  %5638 = vmatprep.subr.mxu0 0.0
  %5639 = vmatpush1.msra.mxu0 0.0
  %5640 = vmatprep.subr.mxu0 0.0
  %5641 = vmatpush1.msra.mxu0 0.0
  %5642 = vmatprep.subr.mxu0 0.0
  %5643 = vmatpush1.msra.mxu0 0.0
  %5644 = vmatprep.subr.mxu0 0.0
  %5645 = vmatpush1.msra.mxu0 0.0
  %5646 = vmatprep.subr.mxu0 0.0
  %5647 = vmatpush1.msra.mxu0 0.0
  %5648 = vmatprep.mubr.f32.mxu0 0.0
  %5649 = vmatmul.mubr.f32.gmra.mrb[0].mxu0 %v5583
  %v5650 = vpop.f32.mrb[0].mxu0
  %v5651 = vadd.f32 %v67, %v5650
  %v5652 = vpop.f32.mrb[0].mxu0
  %5653 = vdwg.mxu0
  %v5654 = vtanh.pop %v5651
  %v5655 = vmul.f32 %v5654, %v5509
  %v5657 = vsel %vm315, %v5655, 0
  %5659 = vmatprep.subr.mxu0 0.0
  %5660 = vmatpush1.msra.mxu0 %v69
  %5661 = vmatprep.subr.mxu0 0.0
  %5662 = vmatpush1.msra.mxu0 %v70
  %5663 = vmatprep.subr.mxu0 0.0
  %5664 = vmatpush1.msra.mxu0 %v71
  %5665 = vmatprep.subr.mxu0 0.0
  %5666 = vmatpush1.msra.mxu0 0.0
  %5667 = vmatprep.subr.mxu0 0.0
  %5668 = vmatpush1.msra.mxu0 0.0
  %5669 = vmatprep.subr.mxu0 0.0
  %5670 = vmatpush1.msra.mxu0 0.0
  %5671 = vmatprep.subr.mxu0 0.0
  %5672 = vmatpush1.msra.mxu0 0.0
  %5673 = vmatprep.subr.mxu0 0.0
  %5674 = vmatpush1.msra.mxu0 0.0
  %5675 = vmatprep.subr.mxu0 0.0
  %5676 = vmatpush1.msra.mxu0 0.0
  %5677 = vmatprep.subr.mxu0 0.0
  %5678 = vmatpush1.msra.mxu0 0.0
  %5679 = vmatprep.subr.mxu0 0.0
  %5680 = vmatpush1.msra.mxu0 0.0
  %5681 = vmatprep.subr.mxu0 0.0
  %5682 = vmatpush1.msra.mxu0 0.0
  %5683 = vmatprep.subr.mxu0 0.0
  %5684 = vmatpush1.msra.mxu0 0.0
  %5685 = vmatprep.subr.mxu0 0.0
  %5686 = vmatpush1.msra.mxu0 0.0
  %5687 = vmatprep.subr.mxu0 0.0
  %5688 = vmatpush1.msra.mxu0 0.0
  %5689 = vmatprep.subr.mxu0 0.0
  %5690 = vmatpush1.msra.mxu0 0.0
  %5691 = vmatprep.subr.mxu0 0.0
  %5692 = vmatpush1.msra.mxu0 0.0
  %5693 = vmatprep.subr.mxu0 0.0
  %5694 = vmatpush1.msra.mxu0 0.0
  %5695 = vmatprep.subr.mxu0 0.0
  %5696 = vmatpush1.msra.mxu0 0.0
  %5697 = vmatprep.subr.mxu0 0.0
  %5698 = vmatpush1.msra.mxu0 0.0
  %5699 = vmatprep.subr.mxu0 0.0
  %5700 = vmatpush1.msra.mxu0 0.0
  %5701 = vmatprep.subr.mxu0 0.0
  %5702 = vmatpush1.msra.mxu0 0.0
  %5703 = vmatprep.subr.mxu0 0.0
  %5704 = vmatpush1.msra.mxu0 0.0
  %5705 = vmatprep.subr.mxu0 0.0
  %5706 = vmatpush1.msra.mxu0 0.0
  %5707 = vmatprep.subr.mxu0 0.0
  %5708 = vmatpush1.msra.mxu0 0.0
  %5709 = vmatprep.subr.mxu0 0.0
  %5710 = vmatpush1.msra.mxu0 0.0
  %5711 = vmatprep.subr.mxu0 0.0
  %5712 = vmatpush1.msra.mxu0 0.0
  %5713 = vmatprep.subr.mxu0 0.0
  %5714 = vmatpush1.msra.mxu0 0.0
  %5715 = vmatprep.subr.mxu0 0.0
  %5716 = vmatpush1.msra.mxu0 0.0
  %5717 = vmatprep.subr.mxu0 0.0
  %5718 = vmatpush1.msra.mxu0 0.0
  %5719 = vmatprep.subr.mxu0 0.0
  %5720 = vmatpush1.msra.mxu0 0.0
  %5721 = vmatprep.subr.mxu0 0.0
  %5722 = vmatpush1.msra.mxu0 0.0
  %5723 = vmatprep.mubr.f32.mxu0 0.0
  %5724 = vmatmul.mubr.f32.gmra.mrb[0].mxu0 %v5657
  %v5725 = vpop.f32.mrb[0].mxu0
  %v5726 = vadd.f32 0.0, %v5725
  %v5727 = vpop.f32.mrb[0].mxu0
  %5728 = vdwg.mxu0
  %v5729 = vmul.f32 %v5726, 0.5
  %v5730 = vadd.f32 %v5507, %v5729
  %v5732 = vsel %vm168, %v5730, 0
  %5734 = vmatprep.subr.mxu0 0.0
  %5735 = vmatpush1.msra.mxu0 %v38
  %5736 = vmatprep.subr.mxu0 0.0
  %5737 = vmatpush1.msra.mxu0 0.0
  %5738 = vmatprep.subr.mxu0 0.0
  %5739 = vmatpush1.msra.mxu0 0.0
  %5740 = vmatprep.subr.mxu0 0.0
  %5741 = vmatpush1.msra.mxu0 0.0
  %5742 = vmatprep.subr.mxu0 0.0
  %5743 = vmatpush1.msra.mxu0 0.0
  %5744 = vmatprep.subr.mxu0 0.0
  %5745 = vmatpush1.msra.mxu0 0.0
  %5746 = vmatprep.subr.mxu0 0.0
  %5747 = vmatpush1.msra.mxu0 0.0
  %5748 = vmatprep.subr.mxu0 0.0
  %5749 = vmatpush1.msra.mxu0 0.0
  %5750 = vmatprep.subr.mxu0 0.0
  %5751 = vmatpush1.msra.mxu0 0.0
  %5752 = vmatprep.subr.mxu0 0.0
  %5753 = vmatpush1.msra.mxu0 0.0
  %5754 = vmatprep.subr.mxu0 0.0
  %5755 = vmatpush1.msra.mxu0 0.0
  %5756 = vmatprep.subr.mxu0 0.0
  %5757 = vmatpush1.msra.mxu0 0.0
  %5758 = vmatprep.subr.mxu0 0.0
  %5759 = vmatpush1.msra.mxu0 0.0
  %5760 = vmatprep.subr.mxu0 0.0
  %5761 = vmatpush1.msra.mxu0 0.0
  %5762 = vmatprep.subr.mxu0 0.0
  %5763 = vmatpush1.msra.mxu0 0.0
  %5764 = vmatprep.subr.mxu0 0.0
  %5765 = vmatpush1.msra.mxu0 0.0
  %5766 = vmatprep.subr.mxu0 0.0
  %5767 = vmatpush1.msra.mxu0 0.0
  %5768 = vmatprep.subr.mxu0 0.0
  %5769 = vmatpush1.msra.mxu0 0.0
  %5770 = vmatprep.subr.mxu0 0.0
  %5771 = vmatpush1.msra.mxu0 0.0
  %5772 = vmatprep.subr.mxu0 0.0
  %5773 = vmatpush1.msra.mxu0 0.0
  %5774 = vmatprep.subr.mxu0 0.0
  %5775 = vmatpush1.msra.mxu0 0.0
  %5776 = vmatprep.subr.mxu0 0.0
  %5777 = vmatpush1.msra.mxu0 0.0
  %5778 = vmatprep.subr.mxu0 0.0
  %5779 = vmatpush1.msra.mxu0 0.0
  %5780 = vmatprep.subr.mxu0 0.0
  %5781 = vmatpush1.msra.mxu0 0.0
  %5782 = vmatprep.subr.mxu0 0.0
  %5783 = vmatpush1.msra.mxu0 0.0
  %5784 = vmatprep.subr.mxu0 0.0
  %5785 = vmatpush1.msra.mxu0 0.0
  %5786 = vmatprep.subr.mxu0 0.0
  %5787 = vmatpush1.msra.mxu0 0.0
  %5788 = vmatprep.subr.mxu0 0.0
  %5789 = vmatpush1.msra.mxu0 0.0
  %5790 = vmatprep.subr.mxu0 0.0
  %5791 = vmatpush1.msra.mxu0 0.0
  %5792 = vmatprep.subr.mxu0 0.0
  %5793 = vmatpush1.msra.mxu0 0.0
  %5794 = vmatprep.subr.mxu0 0.0
  %5795 = vmatpush1.msra.mxu0 0.0
  %5796 = vmatprep.subr.mxu0 0.0
  %5797 = vmatpush1.msra.mxu0 0.0
  %5798 = vmatprep.mubr.f32.mxu0 0.0
  %5799 = vmatmul.mubr.f32.gmra.mrb[0].mxu0 %v5732
  %v5800 = vpop.f32.mrb[0].mxu0
  %v5801 = vadd.f32 %v44, %v5800
  %v5802 = vpop.f32.mrb[0].mxu0
  %5803 = vdwg.mxu0
  %v5804 = vmax.f32 %v5801, 0.0
  %5805 = vmatprep.subr.mxu0 0.0
  %5806 = vmatpush1.msra.mxu0 %v46
  %5807 = vmatprep.subr.mxu0 0.0
  %5808 = vmatpush1.msra.mxu0 %v47
  %5809 = vmatprep.subr.mxu0 0.0
  %5810 = vmatpush1.msra.mxu0 %v48
  %5811 = vmatprep.subr.mxu0 0.0
  %5812 = vmatpush1.msra.mxu0 %v49
  %5813 = vmatprep.subr.mxu0 0.0
  %5814 = vmatpush1.msra.mxu0 %v50
  %5815 = vmatprep.subr.mxu0 0.0
  %5816 = vmatpush1.msra.mxu0 %v51
  %5817 = vmatprep.subr.mxu0 0.0
  %5818 = vmatpush1.msra.mxu0 %v52
  %5819 = vmatprep.subr.mxu0 0.0
  %5820 = vmatpush1.msra.mxu0 %v53
  %5821 = vmatprep.subr.mxu0 0.0
  %5822 = vmatpush1.msra.mxu0 %v54
  %5823 = vmatprep.subr.mxu0 0.0
  %5824 = vmatpush1.msra.mxu0 %v55
  %5825 = vmatprep.subr.mxu0 0.0
  %5826 = vmatpush1.msra.mxu0 %v56
  %5827 = vmatprep.subr.mxu0 0.0
  %5828 = vmatpush1.msra.mxu0 %v57
  %5829 = vmatprep.subr.mxu0 0.0
  %5830 = vmatpush1.msra.mxu0 %v58
  %5831 = vmatprep.subr.mxu0 0.0
  %5832 = vmatpush1.msra.mxu0 %v59
  %5833 = vmatprep.subr.mxu0 0.0
  %5834 = vmatpush1.msra.mxu0 %v60
  %5835 = vmatprep.subr.mxu0 0.0
  %5836 = vmatpush1.msra.mxu0 %v61
  %5837 = vmatprep.subr.mxu0 0.0
  %5838 = vmatpush1.msra.mxu0 0.0
  %5839 = vmatprep.subr.mxu0 0.0
  %5840 = vmatpush1.msra.mxu0 0.0
  %5841 = vmatprep.subr.mxu0 0.0
  %5842 = vmatpush1.msra.mxu0 0.0
  %5843 = vmatprep.subr.mxu0 0.0
  %5844 = vmatpush1.msra.mxu0 0.0
  %5845 = vmatprep.subr.mxu0 0.0
  %5846 = vmatpush1.msra.mxu0 0.0
  %5847 = vmatprep.subr.mxu0 0.0
  %5848 = vmatpush1.msra.mxu0 0.0
  %5849 = vmatprep.subr.mxu0 0.0
  %5850 = vmatpush1.msra.mxu0 0.0
  %5851 = vmatprep.subr.mxu0 0.0
  %5852 = vmatpush1.msra.mxu0 0.0
  %5853 = vmatprep.subr.mxu0 0.0
  %5854 = vmatpush1.msra.mxu0 0.0
  %5855 = vmatprep.subr.mxu0 0.0
  %5856 = vmatpush1.msra.mxu0 0.0
  %5857 = vmatprep.subr.mxu0 0.0
  %5858 = vmatpush1.msra.mxu0 0.0
  %5859 = vmatprep.subr.mxu0 0.0
  %5860 = vmatpush1.msra.mxu0 0.0
  %5861 = vmatprep.subr.mxu0 0.0
  %5862 = vmatpush1.msra.mxu0 0.0
  %5863 = vmatprep.subr.mxu0 0.0
  %5864 = vmatpush1.msra.mxu0 0.0
  %5865 = vmatprep.subr.mxu0 0.0
  %5866 = vmatpush1.msra.mxu0 0.0
  %5867 = vmatprep.subr.mxu0 0.0
  %5868 = vmatpush1.msra.mxu0 0.0
  %5869 = vmatprep.mubr.f32.mxu0 0.0
  %5870 = vmatmul.mubr.f32.gmra.mrb[0].mxu0 %v5804
  %v5871 = vpop.f32.mrb[0].mxu0
  %v5872 = vadd.f32 %v67, %v5871
  %v5873 = vpop.f32.mrb[0].mxu0
  %5874 = vdwg.mxu0
  %v5875 = vtanh.pop %v5872
  %v5876 = vmul.f32 %v5875, %v5509
  %v5878 = vsel %vm315, %v5876, 0
  %5880 = vmatprep.subr.mxu0 0.0
  %5881 = vmatpush1.msra.mxu0 %v69
  %5882 = vmatprep.subr.mxu0 0.0
  %5883 = vmatpush1.msra.mxu0 %v70
  %5884 = vmatprep.subr.mxu0 0.0
  %5885 = vmatpush1.msra.mxu0 %v71
  %5886 = vmatprep.subr.mxu0 0.0
  %5887 = vmatpush1.msra.mxu0 0.0
  %5888 = vmatprep.subr.mxu0 0.0
  %5889 = vmatpush1.msra.mxu0 0.0
  %5890 = vmatprep.subr.mxu0 0.0
  %5891 = vmatpush1.msra.mxu0 0.0
  %5892 = vmatprep.subr.mxu0 0.0
  %5893 = vmatpush1.msra.mxu0 0.0
  %5894 = vmatprep.subr.mxu0 0.0
  %5895 = vmatpush1.msra.mxu0 0.0
  %5896 = vmatprep.subr.mxu0 0.0
  %5897 = vmatpush1.msra.mxu0 0.0
  %5898 = vmatprep.subr.mxu0 0.0
  %5899 = vmatpush1.msra.mxu0 0.0
  %5900 = vmatprep.subr.mxu0 0.0
  %5901 = vmatpush1.msra.mxu0 0.0
  %5902 = vmatprep.subr.mxu0 0.0
  %5903 = vmatpush1.msra.mxu0 0.0
  %5904 = vmatprep.subr.mxu0 0.0
  %5905 = vmatpush1.msra.mxu0 0.0
  %5906 = vmatprep.subr.mxu0 0.0
  %5907 = vmatpush1.msra.mxu0 0.0
  %5908 = vmatprep.subr.mxu0 0.0
  %5909 = vmatpush1.msra.mxu0 0.0
  %5910 = vmatprep.subr.mxu0 0.0
  %5911 = vmatpush1.msra.mxu0 0.0
  %5912 = vmatprep.subr.mxu0 0.0
  %5913 = vmatpush1.msra.mxu0 0.0
  %5914 = vmatprep.subr.mxu0 0.0
  %5915 = vmatpush1.msra.mxu0 0.0
  %5916 = vmatprep.subr.mxu0 0.0
  %5917 = vmatpush1.msra.mxu0 0.0
  %5918 = vmatprep.subr.mxu0 0.0
  %5919 = vmatpush1.msra.mxu0 0.0
  %5920 = vmatprep.subr.mxu0 0.0
  %5921 = vmatpush1.msra.mxu0 0.0
  %5922 = vmatprep.subr.mxu0 0.0
  %5923 = vmatpush1.msra.mxu0 0.0
  %5924 = vmatprep.subr.mxu0 0.0
  %5925 = vmatpush1.msra.mxu0 0.0
  %5926 = vmatprep.subr.mxu0 0.0
  %5927 = vmatpush1.msra.mxu0 0.0
  %5928 = vmatprep.subr.mxu0 0.0
  %5929 = vmatpush1.msra.mxu0 0.0
  %5930 = vmatprep.subr.mxu0 0.0
  %5931 = vmatpush1.msra.mxu0 0.0
  %5932 = vmatprep.subr.mxu0 0.0
  %5933 = vmatpush1.msra.mxu0 0.0
  %5934 = vmatprep.subr.mxu0 0.0
  %5935 = vmatpush1.msra.mxu0 0.0
  %5936 = vmatprep.subr.mxu0 0.0
  %5937 = vmatpush1.msra.mxu0 0.0
  %5938 = vmatprep.subr.mxu0 0.0
  %5939 = vmatpush1.msra.mxu0 0.0
  %5940 = vmatprep.subr.mxu0 0.0
  %5941 = vmatpush1.msra.mxu0 0.0
  %5942 = vmatprep.subr.mxu0 0.0
  %5943 = vmatpush1.msra.mxu0 0.0
  %5944 = vmatprep.mubr.f32.mxu0 0.0
  %5945 = vmatmul.mubr.f32.gmra.mrb[0].mxu0 %v5878
  %v5946 = vpop.f32.mrb[0].mxu0
  %v5947 = vadd.f32 0.0, %v5946
  %v5948 = vpop.f32.mrb[0].mxu0
  %5949 = vdwg.mxu0
  %v5950 = vmul.f32 %v5947, 0.5
  %v5951 = vadd.f32 %v5507, %v5950
  %v5953 = vsel %vm168, %v5951, 0
  %5955 = vmatprep.subr.mxu0 0.0
  %5956 = vmatpush1.msra.mxu0 %v38
  %5957 = vmatprep.subr.mxu0 0.0
  %5958 = vmatpush1.msra.mxu0 0.0
  %5959 = vmatprep.subr.mxu0 0.0
  %5960 = vmatpush1.msra.mxu0 0.0
  %5961 = vmatprep.subr.mxu0 0.0
  %5962 = vmatpush1.msra.mxu0 0.0
  %5963 = vmatprep.subr.mxu0 0.0
  %5964 = vmatpush1.msra.mxu0 0.0
  %5965 = vmatprep.subr.mxu0 0.0
  %5966 = vmatpush1.msra.mxu0 0.0
  %5967 = vmatprep.subr.mxu0 0.0
  %5968 = vmatpush1.msra.mxu0 0.0
  %5969 = vmatprep.subr.mxu0 0.0
  %5970 = vmatpush1.msra.mxu0 0.0
  %5971 = vmatprep.subr.mxu0 0.0
  %5972 = vmatpush1.msra.mxu0 0.0
  %5973 = vmatprep.subr.mxu0 0.0
  %5974 = vmatpush1.msra.mxu0 0.0
  %5975 = vmatprep.subr.mxu0 0.0
  %5976 = vmatpush1.msra.mxu0 0.0
  %5977 = vmatprep.subr.mxu0 0.0
  %5978 = vmatpush1.msra.mxu0 0.0
  %5979 = vmatprep.subr.mxu0 0.0
  %5980 = vmatpush1.msra.mxu0 0.0
  %5981 = vmatprep.subr.mxu0 0.0
  %5982 = vmatpush1.msra.mxu0 0.0
  %5983 = vmatprep.subr.mxu0 0.0
  %5984 = vmatpush1.msra.mxu0 0.0
  %5985 = vmatprep.subr.mxu0 0.0
  %5986 = vmatpush1.msra.mxu0 0.0
  %5987 = vmatprep.subr.mxu0 0.0
  %5988 = vmatpush1.msra.mxu0 0.0
  %5989 = vmatprep.subr.mxu0 0.0
  %5990 = vmatpush1.msra.mxu0 0.0
  %5991 = vmatprep.subr.mxu0 0.0
  %5992 = vmatpush1.msra.mxu0 0.0
  %5993 = vmatprep.subr.mxu0 0.0
  %5994 = vmatpush1.msra.mxu0 0.0
  %5995 = vmatprep.subr.mxu0 0.0
  %5996 = vmatpush1.msra.mxu0 0.0
  %5997 = vmatprep.subr.mxu0 0.0
  %5998 = vmatpush1.msra.mxu0 0.0
  %5999 = vmatprep.subr.mxu0 0.0
  %6000 = vmatpush1.msra.mxu0 0.0
  %6001 = vmatprep.subr.mxu0 0.0
  %6002 = vmatpush1.msra.mxu0 0.0
  %6003 = vmatprep.subr.mxu0 0.0
  %6004 = vmatpush1.msra.mxu0 0.0
  %6005 = vmatprep.subr.mxu0 0.0
  %6006 = vmatpush1.msra.mxu0 0.0
  %6007 = vmatprep.subr.mxu0 0.0
  %6008 = vmatpush1.msra.mxu0 0.0
  %6009 = vmatprep.subr.mxu0 0.0
  %6010 = vmatpush1.msra.mxu0 0.0
  %6011 = vmatprep.subr.mxu0 0.0
  %6012 = vmatpush1.msra.mxu0 0.0
  %6013 = vmatprep.subr.mxu0 0.0
  %6014 = vmatpush1.msra.mxu0 0.0
  %6015 = vmatprep.subr.mxu0 0.0
  %6016 = vmatpush1.msra.mxu0 0.0
  %6017 = vmatprep.subr.mxu0 0.0
  %6018 = vmatpush1.msra.mxu0 0.0
  %6019 = vmatprep.mubr.f32.mxu0 0.0
  %6020 = vmatmul.mubr.f32.gmra.mrb[0].mxu0 %v5953
  %v6021 = vpop.f32.mrb[0].mxu0
  %v6022 = vadd.f32 %v44, %v6021
  %v6023 = vpop.f32.mrb[0].mxu0
  %6024 = vdwg.mxu0
  %v6025 = vmax.f32 %v6022, 0.0
  %6026 = vmatprep.subr.mxu0 0.0
  %6027 = vmatpush1.msra.mxu0 %v46
  %6028 = vmatprep.subr.mxu0 0.0
  %6029 = vmatpush1.msra.mxu0 %v47
  %6030 = vmatprep.subr.mxu0 0.0
  %6031 = vmatpush1.msra.mxu0 %v48
  %6032 = vmatprep.subr.mxu0 0.0
  %6033 = vmatpush1.msra.mxu0 %v49
  %6034 = vmatprep.subr.mxu0 0.0
  %6035 = vmatpush1.msra.mxu0 %v50
  %6036 = vmatprep.subr.mxu0 0.0
  %6037 = vmatpush1.msra.mxu0 %v51
  %6038 = vmatprep.subr.mxu0 0.0
  %6039 = vmatpush1.msra.mxu0 %v52
  %6040 = vmatprep.subr.mxu0 0.0
  %6041 = vmatpush1.msra.mxu0 %v53
  %6042 = vmatprep.subr.mxu0 0.0
  %6043 = vmatpush1.msra.mxu0 %v54
  %6044 = vmatprep.subr.mxu0 0.0
  %6045 = vmatpush1.msra.mxu0 %v55
  %6046 = vmatprep.subr.mxu0 0.0
  %6047 = vmatpush1.msra.mxu0 %v56
  %6048 = vmatprep.subr.mxu0 0.0
  %6049 = vmatpush1.msra.mxu0 %v57
  %6050 = vmatprep.subr.mxu0 0.0
  %6051 = vmatpush1.msra.mxu0 %v58
  %6052 = vmatprep.subr.mxu0 0.0
  %6053 = vmatpush1.msra.mxu0 %v59
  %6054 = vmatprep.subr.mxu0 0.0
  %6055 = vmatpush1.msra.mxu0 %v60
  %6056 = vmatprep.subr.mxu0 0.0
  %6057 = vmatpush1.msra.mxu0 %v61
  %6058 = vmatprep.subr.mxu0 0.0
  %6059 = vmatpush1.msra.mxu0 0.0
  %6060 = vmatprep.subr.mxu0 0.0
  %6061 = vmatpush1.msra.mxu0 0.0
  %6062 = vmatprep.subr.mxu0 0.0
  %6063 = vmatpush1.msra.mxu0 0.0
  %6064 = vmatprep.subr.mxu0 0.0
  %6065 = vmatpush1.msra.mxu0 0.0
  %6066 = vmatprep.subr.mxu0 0.0
  %6067 = vmatpush1.msra.mxu0 0.0
  %6068 = vmatprep.subr.mxu0 0.0
  %6069 = vmatpush1.msra.mxu0 0.0
  %6070 = vmatprep.subr.mxu0 0.0
  %6071 = vmatpush1.msra.mxu0 0.0
  %6072 = vmatprep.subr.mxu0 0.0
  %6073 = vmatpush1.msra.mxu0 0.0
  %6074 = vmatprep.subr.mxu0 0.0
  %6075 = vmatpush1.msra.mxu0 0.0
  %6076 = vmatprep.subr.mxu0 0.0
  %6077 = vmatpush1.msra.mxu0 0.0
  %6078 = vmatprep.subr.mxu0 0.0
  %6079 = vmatpush1.msra.mxu0 0.0
  %6080 = vmatprep.subr.mxu0 0.0
  %6081 = vmatpush1.msra.mxu0 0.0
  %6082 = vmatprep.subr.mxu0 0.0
  %6083 = vmatpush1.msra.mxu0 0.0
  %6084 = vmatprep.subr.mxu0 0.0
  %6085 = vmatpush1.msra.mxu0 0.0
  %6086 = vmatprep.subr.mxu0 0.0
  %6087 = vmatpush1.msra.mxu0 0.0
  %6088 = vmatprep.subr.mxu0 0.0
  %6089 = vmatpush1.msra.mxu0 0.0
  %6090 = vmatprep.mubr.f32.mxu0 0.0
  %6091 = vmatmul.mubr.f32.gmra.mrb[0].mxu0 %v6025
  %v6092 = vpop.f32.mrb[0].mxu0
  %v6093 = vadd.f32 %v67, %v6092
  %v6094 = vpop.f32.mrb[0].mxu0
  %6095 = vdwg.mxu0
  %v6096 = vtanh.pop %v6093
  %v6097 = vmul.f32 %v6096, %v5509
  %v6099 = vsel %vm315, %v6097, 0
  %6101 = vmatprep.subr.mxu0 0.0
  %6102 = vmatpush1.msra.mxu0 %v69
  %6103 = vmatprep.subr.mxu0 0.0
  %6104 = vmatpush1.msra.mxu0 %v70
  %6105 = vmatprep.subr.mxu0 0.0
  %6106 = vmatpush1.msra.mxu0 %v71
  %6107 = vmatprep.subr.mxu0 0.0
  %6108 = vmatpush1.msra.mxu0 0.0
  %6109 = vmatprep.subr.mxu0 0.0
  %6110 = vmatpush1.msra.mxu0 0.0
  %6111 = vmatprep.subr.mxu0 0.0
  %6112 = vmatpush1.msra.mxu0 0.0
  %6113 = vmatprep.subr.mxu0 0.0
  %6114 = vmatpush1.msra.mxu0 0.0
  %6115 = vmatprep.subr.mxu0 0.0
  %6116 = vmatpush1.msra.mxu0 0.0
  %6117 = vmatprep.subr.mxu0 0.0
  %6118 = vmatpush1.msra.mxu0 0.0
  %6119 = vmatprep.subr.mxu0 0.0
  %6120 = vmatpush1.msra.mxu0 0.0
  %6121 = vmatprep.subr.mxu0 0.0
  %6122 = vmatpush1.msra.mxu0 0.0
  %6123 = vmatprep.subr.mxu0 0.0
  %6124 = vmatpush1.msra.mxu0 0.0
  %6125 = vmatprep.subr.mxu0 0.0
  %6126 = vmatpush1.msra.mxu0 0.0
  %6127 = vmatprep.subr.mxu0 0.0
  %6128 = vmatpush1.msra.mxu0 0.0
  %6129 = vmatprep.subr.mxu0 0.0
  %6130 = vmatpush1.msra.mxu0 0.0
  %6131 = vmatprep.subr.mxu0 0.0
  %6132 = vmatpush1.msra.mxu0 0.0
  %6133 = vmatprep.subr.mxu0 0.0
  %6134 = vmatpush1.msra.mxu0 0.0
  %6135 = vmatprep.subr.mxu0 0.0
  %6136 = vmatpush1.msra.mxu0 0.0
  %6137 = vmatprep.subr.mxu0 0.0
  %6138 = vmatpush1.msra.mxu0 0.0
  %6139 = vmatprep.subr.mxu0 0.0
  %6140 = vmatpush1.msra.mxu0 0.0
  %6141 = vmatprep.subr.mxu0 0.0
  %6142 = vmatpush1.msra.mxu0 0.0
  %6143 = vmatprep.subr.mxu0 0.0
  %6144 = vmatpush1.msra.mxu0 0.0
  %6145 = vmatprep.subr.mxu0 0.0
  %6146 = vmatpush1.msra.mxu0 0.0
  %6147 = vmatprep.subr.mxu0 0.0
  %6148 = vmatpush1.msra.mxu0 0.0
  %6149 = vmatprep.subr.mxu0 0.0
  %6150 = vmatpush1.msra.mxu0 0.0
  %6151 = vmatprep.subr.mxu0 0.0
  %6152 = vmatpush1.msra.mxu0 0.0
  %6153 = vmatprep.subr.mxu0 0.0
  %6154 = vmatpush1.msra.mxu0 0.0
  %6155 = vmatprep.subr.mxu0 0.0
  %6156 = vmatpush1.msra.mxu0 0.0
  %6157 = vmatprep.subr.mxu0 0.0
  %6158 = vmatpush1.msra.mxu0 0.0
  %6159 = vmatprep.subr.mxu0 0.0
  %6160 = vmatpush1.msra.mxu0 0.0
  %6161 = vmatprep.subr.mxu0 0.0
  %6162 = vmatpush1.msra.mxu0 0.0
  %6163 = vmatprep.subr.mxu0 0.0
  %6164 = vmatpush1.msra.mxu0 0.0
  %6165 = vmatprep.mubr.f32.mxu0 0.0
  %6166 = vmatmul.mubr.f32.gmra.mrb[0].mxu0 %v6099
  %v6167 = vpop.f32.mrb[0].mxu0
  %v6168 = vadd.f32 0.0, %v6167
  %v6169 = vpop.f32.mrb[0].mxu0
  %6170 = vdwg.mxu0
  %v6171 = vadd.f32 %v5507, %v6168
  %v6173 = vsel %vm168, %v6171, 0
  %6175 = vmatprep.subr.mxu0 0.0
  %6176 = vmatpush1.msra.mxu0 %v38
  %6177 = vmatprep.subr.mxu0 0.0
  %6178 = vmatpush1.msra.mxu0 0.0
  %6179 = vmatprep.subr.mxu0 0.0
  %6180 = vmatpush1.msra.mxu0 0.0
  %6181 = vmatprep.subr.mxu0 0.0
  %6182 = vmatpush1.msra.mxu0 0.0
  %6183 = vmatprep.subr.mxu0 0.0
  %6184 = vmatpush1.msra.mxu0 0.0
  %6185 = vmatprep.subr.mxu0 0.0
  %6186 = vmatpush1.msra.mxu0 0.0
  %6187 = vmatprep.subr.mxu0 0.0
  %6188 = vmatpush1.msra.mxu0 0.0
  %6189 = vmatprep.subr.mxu0 0.0
  %6190 = vmatpush1.msra.mxu0 0.0
  %6191 = vmatprep.subr.mxu0 0.0
  %6192 = vmatpush1.msra.mxu0 0.0
  %6193 = vmatprep.subr.mxu0 0.0
  %6194 = vmatpush1.msra.mxu0 0.0
  %6195 = vmatprep.subr.mxu0 0.0
  %6196 = vmatpush1.msra.mxu0 0.0
  %6197 = vmatprep.subr.mxu0 0.0
  %6198 = vmatpush1.msra.mxu0 0.0
  %6199 = vmatprep.subr.mxu0 0.0
  %6200 = vmatpush1.msra.mxu0 0.0
  %6201 = vmatprep.subr.mxu0 0.0
  %6202 = vmatpush1.msra.mxu0 0.0
  %6203 = vmatprep.subr.mxu0 0.0
  %6204 = vmatpush1.msra.mxu0 0.0
  %6205 = vmatprep.subr.mxu0 0.0
  %6206 = vmatpush1.msra.mxu0 0.0
  %6207 = vmatprep.subr.mxu0 0.0
  %6208 = vmatpush1.msra.mxu0 0.0
  %6209 = vmatprep.subr.mxu0 0.0
  %6210 = vmatpush1.msra.mxu0 0.0
  %6211 = vmatprep.subr.mxu0 0.0
  %6212 = vmatpush1.msra.mxu0 0.0
  %6213 = vmatprep.subr.mxu0 0.0
  %6214 = vmatpush1.msra.mxu0 0.0
  %6215 = vmatprep.subr.mxu0 0.0
  %6216 = vmatpush1.msra.mxu0 0.0
  %6217 = vmatprep.subr.mxu0 0.0
  %6218 = vmatpush1.msra.mxu0 0.0
  %6219 = vmatprep.subr.mxu0 0.0
  %6220 = vmatpush1.msra.mxu0 0.0
  %6221 = vmatprep.subr.mxu0 0.0
  %6222 = vmatpush1.msra.mxu0 0.0
  %6223 = vmatprep.subr.mxu0 0.0
  %6224 = vmatpush1.msra.mxu0 0.0
  %6225 = vmatprep.subr.mxu0 0.0
  %6226 = vmatpush1.msra.mxu0 0.0
  %6227 = vmatprep.subr.mxu0 0.0
  %6228 = vmatpush1.msra.mxu0 0.0
  %6229 = vmatprep.subr.mxu0 0.0
  %6230 = vmatpush1.msra.mxu0 0.0
  %6231 = vmatprep.subr.mxu0 0.0
  %6232 = vmatpush1.msra.mxu0 0.0
  %6233 = vmatprep.subr.mxu0 0.0
  %6234 = vmatpush1.msra.mxu0 0.0
  %6235 = vmatprep.subr.mxu0 0.0
  %6236 = vmatpush1.msra.mxu0 0.0
  %6237 = vmatprep.subr.mxu0 0.0
  %6238 = vmatpush1.msra.mxu0 0.0
  %6239 = vmatprep.mubr.f32.mxu0 0.0
  %6240 = vmatmul.mubr.f32.gmra.mrb[0].mxu0 %v6173
  %v6241 = vpop.f32.mrb[0].mxu0
  %v6242 = vadd.f32 %v44, %v6241
  %v6243 = vpop.f32.mrb[0].mxu0
  %6244 = vdwg.mxu0
  %v6245 = vmax.f32 %v6242, 0.0
  %6246 = vmatprep.subr.mxu0 0.0
  %6247 = vmatpush1.msra.mxu0 %v46
  %6248 = vmatprep.subr.mxu0 0.0
  %6249 = vmatpush1.msra.mxu0 %v47
  %6250 = vmatprep.subr.mxu0 0.0
  %6251 = vmatpush1.msra.mxu0 %v48
  %6252 = vmatprep.subr.mxu0 0.0
  %6253 = vmatpush1.msra.mxu0 %v49
  %6254 = vmatprep.subr.mxu0 0.0
  %6255 = vmatpush1.msra.mxu0 %v50
  %6256 = vmatprep.subr.mxu0 0.0
  %6257 = vmatpush1.msra.mxu0 %v51
  %6258 = vmatprep.subr.mxu0 0.0
  %6259 = vmatpush1.msra.mxu0 %v52
  %6260 = vmatprep.subr.mxu0 0.0
  %6261 = vmatpush1.msra.mxu0 %v53
  %6262 = vmatprep.subr.mxu0 0.0
  %6263 = vmatpush1.msra.mxu0 %v54
  %6264 = vmatprep.subr.mxu0 0.0
  %6265 = vmatpush1.msra.mxu0 %v55
  %6266 = vmatprep.subr.mxu0 0.0
  %6267 = vmatpush1.msra.mxu0 %v56
  %6268 = vmatprep.subr.mxu0 0.0
  %6269 = vmatpush1.msra.mxu0 %v57
  %6270 = vmatprep.subr.mxu0 0.0
  %6271 = vmatpush1.msra.mxu0 %v58
  %6272 = vmatprep.subr.mxu0 0.0
  %6273 = vmatpush1.msra.mxu0 %v59
  %6274 = vmatprep.subr.mxu0 0.0
  %6275 = vmatpush1.msra.mxu0 %v60
  %6276 = vmatprep.subr.mxu0 0.0
  %6277 = vmatpush1.msra.mxu0 %v61
  %6278 = vmatprep.subr.mxu0 0.0
  %6279 = vmatpush1.msra.mxu0 0.0
  %6280 = vmatprep.subr.mxu0 0.0
  %6281 = vmatpush1.msra.mxu0 0.0
  %6282 = vmatprep.subr.mxu0 0.0
  %6283 = vmatpush1.msra.mxu0 0.0
  %6284 = vmatprep.subr.mxu0 0.0
  %6285 = vmatpush1.msra.mxu0 0.0
  %6286 = vmatprep.subr.mxu0 0.0
  %6287 = vmatpush1.msra.mxu0 0.0
  %6288 = vmatprep.subr.mxu0 0.0
  %6289 = vmatpush1.msra.mxu0 0.0
  %6290 = vmatprep.subr.mxu0 0.0
  %6291 = vmatpush1.msra.mxu0 0.0
  %6292 = vmatprep.subr.mxu0 0.0
  %6293 = vmatpush1.msra.mxu0 0.0
  %6294 = vmatprep.subr.mxu0 0.0
  %6295 = vmatpush1.msra.mxu0 0.0
  %6296 = vmatprep.subr.mxu0 0.0
  %6297 = vmatpush1.msra.mxu0 0.0
  %6298 = vmatprep.subr.mxu0 0.0
  %6299 = vmatpush1.msra.mxu0 0.0
  %6300 = vmatprep.subr.mxu0 0.0
  %6301 = vmatpush1.msra.mxu0 0.0
  %6302 = vmatprep.subr.mxu0 0.0
  %6303 = vmatpush1.msra.mxu0 0.0
  %6304 = vmatprep.subr.mxu0 0.0
  %6305 = vmatpush1.msra.mxu0 0.0
  %6306 = vmatprep.subr.mxu0 0.0
  %6307 = vmatpush1.msra.mxu0 0.0
  %6308 = vmatprep.subr.mxu0 0.0
  %6309 = vmatpush1.msra.mxu0 0.0
  %6310 = vmatprep.mubr.f32.mxu0 0.0
  %6311 = vmatmul.mubr.f32.gmra.mrb[0].mxu0 %v6245
  %v6312 = vpop.f32.mrb[0].mxu0
  %v6313 = vadd.f32 %v67, %v6312
  %v6314 = vpop.f32.mrb[0].mxu0
  %6315 = vdwg.mxu0
  %v6316 = vtanh.pop %v6313
  %v6317 = vmul.f32 %v6316, %v5509
  %v6319 = vsel %vm315, %v6317, 0
  %6321 = vmatprep.subr.mxu0 0.0
  %6322 = vmatpush1.msra.mxu0 %v69
  %6323 = vmatprep.subr.mxu0 0.0
  %6324 = vmatpush1.msra.mxu0 %v70
  %6325 = vmatprep.subr.mxu0 0.0
  %6326 = vmatpush1.msra.mxu0 %v71
  %6327 = vmatprep.subr.mxu0 0.0
  %6328 = vmatpush1.msra.mxu0 0.0
  %6329 = vmatprep.subr.mxu0 0.0
  %6330 = vmatpush1.msra.mxu0 0.0
  %6331 = vmatprep.subr.mxu0 0.0
  %6332 = vmatpush1.msra.mxu0 0.0
  %6333 = vmatprep.subr.mxu0 0.0
  %6334 = vmatpush1.msra.mxu0 0.0
  %6335 = vmatprep.subr.mxu0 0.0
  %6336 = vmatpush1.msra.mxu0 0.0
  %6337 = vmatprep.subr.mxu0 0.0
  %6338 = vmatpush1.msra.mxu0 0.0
  %6339 = vmatprep.subr.mxu0 0.0
  %6340 = vmatpush1.msra.mxu0 0.0
  %6341 = vmatprep.subr.mxu0 0.0
  %6342 = vmatpush1.msra.mxu0 0.0
  %6343 = vmatprep.subr.mxu0 0.0
  %6344 = vmatpush1.msra.mxu0 0.0
  %6345 = vmatprep.subr.mxu0 0.0
  %6346 = vmatpush1.msra.mxu0 0.0
  %6347 = vmatprep.subr.mxu0 0.0
  %6348 = vmatpush1.msra.mxu0 0.0
  %6349 = vmatprep.subr.mxu0 0.0
  %6350 = vmatpush1.msra.mxu0 0.0
  %6351 = vmatprep.subr.mxu0 0.0
  %6352 = vmatpush1.msra.mxu0 0.0
  %6353 = vmatprep.subr.mxu0 0.0
  %6354 = vmatpush1.msra.mxu0 0.0
  %6355 = vmatprep.subr.mxu0 0.0
  %6356 = vmatpush1.msra.mxu0 0.0
  %6357 = vmatprep.subr.mxu0 0.0
  %6358 = vmatpush1.msra.mxu0 0.0
  %6359 = vmatprep.subr.mxu0 0.0
  %6360 = vmatpush1.msra.mxu0 0.0
  %6361 = vmatprep.subr.mxu0 0.0
  %6362 = vmatpush1.msra.mxu0 0.0
  %6363 = vmatprep.subr.mxu0 0.0
  %6364 = vmatpush1.msra.mxu0 0.0
  %6365 = vmatprep.subr.mxu0 0.0
  %6366 = vmatpush1.msra.mxu0 0.0
  %6367 = vmatprep.subr.mxu0 0.0
  %6368 = vmatpush1.msra.mxu0 0.0
  %6369 = vmatprep.subr.mxu0 0.0
  %6370 = vmatpush1.msra.mxu0 0.0
  %6371 = vmatprep.subr.mxu0 0.0
  %6372 = vmatpush1.msra.mxu0 0.0
  %6373 = vmatprep.subr.mxu0 0.0
  %6374 = vmatpush1.msra.mxu0 0.0
  %6375 = vmatprep.subr.mxu0 0.0
  %6376 = vmatpush1.msra.mxu0 0.0
  %6377 = vmatprep.subr.mxu0 0.0
  %6378 = vmatpush1.msra.mxu0 0.0
  %6379 = vmatprep.subr.mxu0 0.0
  %6380 = vmatpush1.msra.mxu0 0.0
  %6381 = vmatprep.subr.mxu0 0.0
  %6382 = vmatpush1.msra.mxu0 0.0
  %6383 = vmatprep.subr.mxu0 0.0
  %6384 = vmatpush1.msra.mxu0 0.0
  %6385 = vmatprep.mubr.f32.mxu0 0.0
  %6386 = vmatmul.mubr.f32.gmra.mrb[0].mxu0 %v6319
  %v6387 = vpop.f32.mrb[0].mxu0
  %v6388 = vadd.f32 0.0, %v6387
  %v6389 = vpop.f32.mrb[0].mxu0
  %6390 = vdwg.mxu0
  %v6391 = vmul.f32 %v5947, 2.0
  %v6392 = vadd.f32 %v5726, %v6391
  %v6393 = vmul.f32 %v6168, 2.0
  %v6394 = vadd.f32 %v6392, %v6393
  %v6395 = vadd.f32 %v6394, %v6388
  %v6396 = vmul.f32 %v6395, 0.16666667
  %v6397 = vadd.f32 %v5507, %v6396
  %v6399 = vsel %vm168, %v6397, 0
  %6401 = vmatprep.subr.mxu0 0.0
  %6402 = vmatpush1.msra.mxu0 %v72
  %6403 = vmatprep.subr.mxu0 0.0
  %6404 = vmatpush1.msra.mxu0 0.0
  %6405 = vmatprep.subr.mxu0 0.0
  %6406 = vmatpush1.msra.mxu0 0.0
  %6407 = vmatprep.subr.mxu0 0.0
  %6408 = vmatpush1.msra.mxu0 0.0
  %6409 = vmatprep.subr.mxu0 0.0
  %6410 = vmatpush1.msra.mxu0 0.0
  %6411 = vmatprep.subr.mxu0 0.0
  %6412 = vmatpush1.msra.mxu0 0.0
  %6413 = vmatprep.subr.mxu0 0.0
  %6414 = vmatpush1.msra.mxu0 0.0
  %6415 = vmatprep.subr.mxu0 0.0
  %6416 = vmatpush1.msra.mxu0 0.0
  %6417 = vmatprep.subr.mxu0 0.0
  %6418 = vmatpush1.msra.mxu0 0.0
  %6419 = vmatprep.subr.mxu0 0.0
  %6420 = vmatpush1.msra.mxu0 0.0
  %6421 = vmatprep.subr.mxu0 0.0
  %6422 = vmatpush1.msra.mxu0 0.0
  %6423 = vmatprep.subr.mxu0 0.0
  %6424 = vmatpush1.msra.mxu0 0.0
  %6425 = vmatprep.subr.mxu0 0.0
  %6426 = vmatpush1.msra.mxu0 0.0
  %6427 = vmatprep.subr.mxu0 0.0
  %6428 = vmatpush1.msra.mxu0 0.0
  %6429 = vmatprep.subr.mxu0 0.0
  %6430 = vmatpush1.msra.mxu0 0.0
  %6431 = vmatprep.subr.mxu0 0.0
  %6432 = vmatpush1.msra.mxu0 0.0
  %6433 = vmatprep.subr.mxu0 0.0
  %6434 = vmatpush1.msra.mxu0 0.0
  %6435 = vmatprep.subr.mxu0 0.0
  %6436 = vmatpush1.msra.mxu0 0.0
  %6437 = vmatprep.subr.mxu0 0.0
  %6438 = vmatpush1.msra.mxu0 0.0
  %6439 = vmatprep.subr.mxu0 0.0
  %6440 = vmatpush1.msra.mxu0 0.0
  %6441 = vmatprep.subr.mxu0 0.0
  %6442 = vmatpush1.msra.mxu0 0.0
  %6443 = vmatprep.subr.mxu0 0.0
  %6444 = vmatpush1.msra.mxu0 0.0
  %6445 = vmatprep.subr.mxu0 0.0
  %6446 = vmatpush1.msra.mxu0 0.0
  %6447 = vmatprep.subr.mxu0 0.0
  %6448 = vmatpush1.msra.mxu0 0.0
  %6449 = vmatprep.subr.mxu0 0.0
  %6450 = vmatpush1.msra.mxu0 0.0
  %6451 = vmatprep.subr.mxu0 0.0
  %6452 = vmatpush1.msra.mxu0 0.0
  %6453 = vmatprep.subr.mxu0 0.0
  %6454 = vmatpush1.msra.mxu0 0.0
  %6455 = vmatprep.subr.mxu0 0.0
  %6456 = vmatpush1.msra.mxu0 0.0
  %6457 = vmatprep.subr.mxu0 0.0
  %6458 = vmatpush1.msra.mxu0 0.0
  %6459 = vmatprep.subr.mxu0 0.0
  %6460 = vmatpush1.msra.mxu0 0.0
  %6461 = vmatprep.subr.mxu0 0.0
  %6462 = vmatpush1.msra.mxu0 0.0
  %6463 = vmatprep.subr.mxu0 0.0
  %6464 = vmatpush1.msra.mxu0 0.0
  %6465 = vmatprep.mubr.f32.mxu0 0.0
  %6466 = vmatmul.mubr.f32.gmra.mrb[0].mxu0 %v6399
  %v6467 = vpop.f32.mrb[0].mxu0
  %v6468 = vadd.f32 %v78, %v6467
  %v6469 = vpop.f32.mrb[0].mxu0
  %6470 = vdwg.mxu0
  %vm6471 = vcmask 15360
  %6472 = vst.msk [vmem:[%s11] sm:$0xff] %vm6471, %v6468
  // Predicated region
  $region46: #{tpu_custom_call.1} parent=0 // pred_check
    _
  $region47: #{tpu_custom_call.1} parent=0 // pred_check_branch
    %6474 = sbr.rel (0) target = $region49
  $region48: #{tpu_custom_call.1} parent=0 // pred_region
    _
  $region49: #{tpu_custom_call.1} parent=0 // pred_fallthru
    _
  // Predicated region
  $region50: #{tpu_custom_call.1} parent=0 // pred_check
    _
  $region51: #{tpu_custom_call.1} parent=0 // pred_check_branch
    %6476 = sbr.rel (0) target = $region53
  $region52: #{tpu_custom_call.1} parent=0 // pred_region
    _
  $region53: #{tpu_custom_call.1} parent=0 // pred_fallthru
    _

</llo_original>
